<compile_context>
chip_gen: v7x
topology: tpu7x:2x2x1
jax: 0.10.0
libtpu: 0.0.40
codegen_flags: <defaults>
</compile_context>

<pallas_src>
import math

import jax
import jax.numpy as jnp
from jax.experimental import pallas as pl
from jax.experimental.pallas import tpu as pltpu

DTYPE = jnp.bfloat16  # matches `DTYPE = torch.bfloat16`

# ----------------------------- small synthetic config -----------------------
B = 2                       # batch
IN_CHANNELS = 16            # hidden_states feature dim (x_embedder in)
JOINT_DIM = 32              # encoder_hidden_states feature dim
POOLED_DIM = 32             # pooled_projections dim
NUM_HEADS = 2
HEAD_DIM = 32
D = NUM_HEADS * HEAD_DIM    # inner dim = 64
S_IMG = 16                  # image tokens
S_TXT = 8                   # text tokens
S_TOTAL = S_TXT + S_IMG     # 24 (text first, matching Flux joint attention)
T_SIN = 32                  # sinusoidal timestep-embedding width
AXES_DIM = (8, 12, 12)      # rope dims per id axis; sums to HEAD_DIM
MLP_RATIO = 4
D_FF = MLP_RATIO * D
OUT_DIM = 16                # patch_size**2 * out_channels
N_DUAL_BLOCKS = 1
N_SINGLE_BLOCKS = 1
EPS = 1e-6
ATTN_SCALE = 1.0 / math.sqrt(HEAD_DIM)


# =========================== in-kernel math helpers ==========================

def _silu(x):
    return x * jax.nn.sigmoid(x)


def _gelu_tanh(x):
    return 0.5 * x * (1.0 + jnp.tanh(0.7978845608028654 * (x + 0.044715 * x * x * x)))


def _matmul(x, w_ref, b_ref):
    """bf16 MXU matmul with f32 accumulation + f32 bias add."""
    y = jnp.dot(x.astype(DTYPE), w_ref[...], preferred_element_type=jnp.float32)
    return y + b_ref[...].astype(jnp.float32)


def _layernorm_mod(x, scale, shift, eps=EPS):
    """LayerNorm (no affine) + AdaLN modulation. x:[S,D] f32, scale/shift:[1,D]."""
    mean = jnp.mean(x, axis=-1, keepdims=True)
    xc = x - mean
    var = jnp.mean(xc * xc, axis=-1, keepdims=True)
    xn = xc * jax.lax.rsqrt(var + eps)
    return xn * (1.0 + scale) + shift


def _rmsnorm(x, w, eps=EPS):
    """Per-head RMSNorm (qk-norm). x:[S,HEAD_DIM] f32, w:[1,HEAD_DIM] f32."""
    var = jnp.mean(x * x, axis=-1, keepdims=True)
    return x * jax.lax.rsqrt(var + eps) * w


def _rope(x, cos, s_neg, s_pos):
    """Interleaved-pair rotary embedding: out = x*cos + rotate(x)*sin, with
    rotate(x)*sin expressed via two rolls and zero/sign-folded sin halves
    (precomputed in the wrapper) -> no iota/select in the kernel."""
    return x * cos + jnp.roll(x, -1, axis=-1) * s_neg + jnp.roll(x, 1, axis=-1) * s_pos


def _attend_head(q_h, k_h, v_h):
    """Single-head attention on [S,HEAD_DIM] f32 inputs (already normed+roped)."""
    s = jax.lax.dot_general(q_h.astype(DTYPE), k_h.astype(DTYPE),
                            (((1,), (1,)), ((), ())),
                            preferred_element_type=jnp.float32) * ATTN_SCALE
    s = s - jnp.max(s, axis=-1, keepdims=True)
    p = jnp.exp(s)
    inv = pl.reciprocal(jnp.sum(p, axis=-1, keepdims=True), approx=True)
    o = jnp.dot(p.astype(DTYPE), v_h.astype(DTYPE),
                preferred_element_type=jnp.float32)
    return o * inv


# =============================== Pallas kernels ==============================

def _embed_kernel(hs_ref, ehs_ref, tproj_ref, gproj_ref, pooled_ref,
                  wx_ref, bx_ref, wc_ref, bc_ref,
                  wt1_ref, bt1_ref, wg1_ref, bg1_ref, wp1_ref, bp1_ref,
                  w2_ref, b2_ref,
                  o_ref, temb_ref):
    # x_embedder / context_embedder, written into one [S_TOTAL, D] slab (text first)
    hid = _matmul(hs_ref[0], wx_ref, bx_ref)           # [S_IMG, D]
    enc = _matmul(ehs_ref[0], wc_ref, bc_ref)          # [S_TXT, D]
    # time / guidance / pooled-text MLPs; second layers packed into one [3D, D] matmul
    h_t = _silu(_matmul(tproj_ref[0], wt1_ref, bt1_ref))
    h_g = _silu(_matmul(gproj_ref[0], wg1_ref, bg1_ref))
    h_p = _silu(_matmul(pooled_ref[0], wp1_ref, bp1_ref))
    temb = _matmul(jnp.concatenate([h_t, h_g, h_p], axis=-1), w2_ref, b2_ref)
    o_ref[0] = jnp.concatenate([enc, hid], axis=0).astype(o_ref.dtype)
    # SiLU hoisted here: every downstream AdaLN consumer applies silu(temb)
    # before its Linear, so emit it pre-activated once.
    temb_ref[0] = _silu(temb).astype(temb_ref.dtype)


def _dual_block_kernel(x_ref, temb_ref, rope_ref,
                       wmod_ref, bmod_ref,
                       wqkv_i_ref, bqkv_i_ref, wqkv_c_ref, bqkv_c_ref,
                       wrms_ref,
                       wout_ref, bout_ref, waddout_ref, baddout_ref,
                       wff1_ref, bff1_ref, wff2_ref, bff2_ref,
                       wfc1_ref, bfc1_ref, wfc2_ref, bfc2_ref,
                       o_ref):
    x = x_ref[0].astype(jnp.float32)                   # [S_TOTAL, D]
    e = x[:S_TXT]                                      # context stream
    h = x[S_TXT:]                                      # image stream
    t = temb_ref[0].astype(jnp.float32)                # [1, D] (already silu'd)

    # both AdaLayerNormZero modulations in one [D, 12D] matmul
    mod = _matmul(t, wmod_ref, bmod_ref)               # [1, 12D]

    def chunk(i):
        return mod[:, i * D:(i + 1) * D]

    sh_msa, sc_msa, g_msa = chunk(0), chunk(1), chunk(2)
    sh_mlp, sc_mlp, g_mlp = chunk(3), chunk(4), chunk(5)
    csh_msa, csc_msa, cg_msa = chunk(6), chunk(7), chunk(8)
    csh_mlp, csc_mlp, cg_mlp = chunk(9), chunk(10), chunk(11)

    norm_h = _layernorm_mod(h, sc_msa, sh_msa)
    norm_e = _layernorm_mod(e, csc_msa, csh_msa)

    # packed QKV projections (one wide matmul per stream)
    qkv_i = _matmul(norm_h, wqkv_i_ref, bqkv_i_ref)    # [S_IMG, 3D]
    qkv_c = _matmul(norm_e, wqkv_c_ref, bqkv_c_ref)    # [S_TXT, 3D]

    cos = rope_ref[0].astype(jnp.float32)              # [S_TOTAL, HEAD_DIM]
    s_neg = rope_ref[1].astype(jnp.float32)
    s_pos = rope_ref[2].astype(jnp.float32)
    w_q = wrms_ref[0].astype(jnp.float32)              # [1, HEAD_DIM]
    w_k = wrms_ref[1].astype(jnp.float32)
    w_aq = wrms_ref[2].astype(jnp.float32)
    w_ak = wrms_ref[3].astype(jnp.float32)

    heads = []
    for hd in range(NUM_HEADS):
        col = hd * HEAD_DIM

        def part(mat, which):
            base = which * D + col
            return mat[:, base:base + HEAD_DIM]

        q_h = jnp.concatenate([_rmsnorm(part(qkv_c, 0), w_aq),
                               _rmsnorm(part(qkv_i, 0), w_q)], axis=0)
        k_h = jnp.concatenate([_rmsnorm(part(qkv_c, 1), w_ak),
                               _rmsnorm(part(qkv_i, 1), w_k)], axis=0)
        v_h = jnp.concatenate([part(qkv_c, 2), part(qkv_i, 2)], axis=0)
        q_h = _rope(q_h, cos, s_neg, s_pos)
        k_h = _rope(k_h, cos, s_neg, s_pos)
        heads.append(_attend_head(q_h, k_h, v_h))       # [S_TOTAL, HEAD_DIM]
    attn = jnp.concatenate(heads, axis=-1)              # [S_TOTAL, D]

    attn_out = _matmul(attn[S_TXT:], wout_ref, bout_ref)            # image [S_IMG, D]
    ctx_attn_out = _matmul(attn[:S_TXT], waddout_ref, baddout_ref)  # text  [S_TXT, D]

    # image stream: attn residual + MLP (gates fused here)
    h = h + g_msa * attn_out
    norm_h2 = _layernorm_mod(h, sc_mlp, sh_mlp)
    ff = _matmul(_gelu_tanh(_matmul(norm_h2, wff1_ref, bff1_ref)), wff2_ref, bff2_ref)
    h = h + g_mlp * ff

    # context stream
    e = e + cg_msa * ctx_attn_out
    norm_e2 = _layernorm_mod(e, csc_mlp, csh_mlp)
    ffc = _matmul(_gelu_tanh(_matmul(norm_e2, wfc1_ref, bfc1_ref)), wfc2_ref, bfc2_ref)
    e = e + cg_mlp * ffc

    o_ref[0] = jnp.concatenate([e, h], axis=0).astype(o_ref.dtype)


def _single_block_kernel(x_ref, temb_ref, rope_ref,
                         wmod_ref, bmod_ref, wfused_ref, bfused_ref,
                         wrms_ref, wproj_ref, bproj_ref, o_ref):
    x = x_ref[0].astype(jnp.float32)                   # [S_TOTAL, D]
    t = temb_ref[0].astype(jnp.float32)                # already silu'd
    mod = _matmul(t, wmod_ref, bmod_ref)               # [1, 3D]
    shift, scale, gate = mod[:, :D], mod[:, D:2 * D], mod[:, 2 * D:]
    norm_x = _layernorm_mod(x, scale, shift)

    # packed q|k|v|proj_mlp projection: one [D, 3D + 4D] matmul
    big = _matmul(norm_x, wfused_ref, bfused_ref)      # [S_TOTAL, 3D + D_FF]
    q = big[:, :D]
    k = big[:, D:2 * D]
    v = big[:, 2 * D:3 * D]
    mlp = _gelu_tanh(big[:, 3 * D:])                   # [S_TOTAL, D_FF]

    cos = rope_ref[0].astype(jnp.float32)
    s_neg = rope_ref[1].astype(jnp.float32)
    s_pos = rope_ref[2].astype(jnp.float32)
    w_q = wrms_ref[0].astype(jnp.float32)
    w_k = wrms_ref[1].astype(jnp.float32)

    heads = []
    for hd in range(NUM_HEADS):
        sl = slice(hd * HEAD_DIM, (hd + 1) * HEAD_DIM)
        q_h = _rope(_rmsnorm(q[:, sl], w_q), cos, s_neg, s_pos)
        k_h = _rope(_rmsnorm(k[:, sl], w_k), cos, s_neg, s_pos)
        heads.append(_attend_head(q_h, k_h, v[:, sl]))
    attn = jnp.concatenate(heads, axis=-1)             # [S_TOTAL, D]

    cat = jnp.concatenate([attn, mlp], axis=-1)        # [S_TOTAL, D + D_FF]
    out = _matmul(cat, wproj_ref, bproj_ref)           # [S_TOTAL, D]
    o_ref[0] = (x + gate * out).astype(o_ref.dtype)


def _out_layers_kernel(x_ref, temb_ref, wno_ref, bno_ref, wpo_ref, bpo_ref, o_ref):
    x = x_ref[0].astype(jnp.float32)[S_TXT:]           # image tokens [S_IMG, D]
    t = temb_ref[0].astype(jnp.float32)                # already silu'd
    mod = _matmul(t, wno_ref, bno_ref)                 # [1, 2D]
    scale, shift = mod[:, :D], mod[:, D:]              # AdaLayerNormContinuous: scale first
    xn = _layernorm_mod(x, scale, shift)
    o_ref[0] = _matmul(xn, wpo_ref, bpo_ref).astype(o_ref.dtype)


# ============================== pallas_call wrappers ==========================

def _const_spec(shape):
    n = len(shape)

    def idx(b):
        return (0,) * n

    return pl.BlockSpec(shape, idx)


def _batch_spec(shape):
    n = len(shape)

    def idx(b):
        return (b,) + (0,) * (n - 1)

    return pl.BlockSpec(shape, idx)


_PARAMS = pltpu.CompilerParams(dimension_semantics=("parallel",))


def embed_forward(params, hidden_states, encoder_hidden_states, t_proj, g_proj, pooled):
    pe = params["embedders"]
    return pl.pallas_call(
        _embed_kernel,
        grid=(B,),
        in_specs=[
            _batch_spec((1, S_IMG, IN_CHANNELS)),
            _batch_spec((1, S_TXT, JOINT_DIM)),
            _batch_spec((1, 1, T_SIN)),
            _batch_spec((1, 1, T_SIN)),
            _batch_spec((1, 1, POOLED_DIM)),
            _const_spec((IN_CHANNELS, D)), _const_spec((1, D)),
            _const_spec((JOINT_DIM, D)), _const_spec((1, D)),
            _const_spec((T_SIN, D)), _const_spec((1, D)),
            _const_spec((T_SIN, D)), _const_spec((1, D)),
            _const_spec((POOLED_DIM, D)), _const_spec((1, D)),
            _const_spec((3 * D, D)), _const_spec((1, D)),
        ],
        out_specs=[
            _batch_spec((1, S_TOTAL, D)),
            _batch_spec((1, 1, D)),
        ],
        out_shape=[
            jax.ShapeDtypeStruct((B, S_TOTAL, D), DTYPE),
            jax.ShapeDtypeStruct((B, 1, D), DTYPE),
        ],
        compiler_params=_PARAMS,
    )(hidden_states, encoder_hidden_states,
      t_proj.reshape(B, 1, T_SIN), g_proj.reshape(B, 1, T_SIN),
      pooled.reshape(B, 1, POOLED_DIM),
      params["x_embedder"]["w"], params["x_embedder"]["b"],
      params["context_embedder"]["w"], params["context_embedder"]["b"],
      pe["time1"]["w"], pe["time1"]["b"],
      pe["guid1"]["w"], pe["guid1"]["b"],
      pe["text1"]["w"], pe["text1"]["b"],
      pe["w2"], pe["b2"])


def dual_block_forward(bp, hs_cat, temb, rope):
    return pl.pallas_call(
        _dual_block_kernel,
        grid=(B,),
        in_specs=[
            _batch_spec((1, S_TOTAL, D)),
            _batch_spec((1, 1, D)),
            _const_spec((3, S_TOTAL, HEAD_DIM)),
            _const_spec((D, 12 * D)), _const_spec((1, 12 * D)),
            _const_spec((D, 3 * D)), _const_spec((1, 3 * D)),
            _const_spec((D, 3 * D)), _const_spec((1, 3 * D)),
            _const_spec((4, 1, HEAD_DIM)),
            _const_spec((D, D)), _const_spec((1, D)),
            _const_spec((D, D)), _const_spec((1, D)),
            _const_spec((D, D_FF)), _const_spec((1, D_FF)),
            _const_spec((D_FF, D)), _const_spec((1, D)),
            _const_spec((D, D_FF)), _const_spec((1, D_FF)),
            _const_spec((D_FF, D)), _const_spec((1, D)),
        ],
        out_specs=_batch_spec((1, S_TOTAL, D)),
        out_shape=jax.ShapeDtypeStruct((B, S_TOTAL, D), DTYPE),
        compiler_params=_PARAMS,
    )(hs_cat, temb, rope,
      bp["w_mod"], bp["b_mod"],
      bp["w_qkv_img"], bp["b_qkv_img"], bp["w_qkv_ctx"], bp["b_qkv_ctx"],
      bp["w_rms"],
      bp["w_out"], bp["b_out"], bp["w_add_out"], bp["b_add_out"],
      bp["w_ff1"], bp["b_ff1"], bp["w_ff2"], bp["b_ff2"],
      bp["w_fc1"], bp["b_fc1"], bp["w_fc2"], bp["b_fc2"])


def single_block_forward(bp, hs_cat, temb, rope):
    return pl.pallas_call(
        _single_block_kernel,
        grid=(B,),
        in_specs=[
            _batch_spec((1, S_TOTAL, D)),
            _batch_spec((1, 1, D)),
            _const_spec((3, S_TOTAL, HEAD_DIM)),
            _const_spec((D, 3 * D)), _const_spec((1, 3 * D)),
            _const_spec((D, 3 * D + D_FF)), _const_spec((1, 3 * D + D_FF)),
            _const_spec((2, 1, HEAD_DIM)),
            _const_spec((D + D_FF, D)), _const_spec((1, D)),
        ],
        out_specs=_batch_spec((1, S_TOTAL, D)),
        out_shape=jax.ShapeDtypeStruct((B, S_TOTAL, D), DTYPE),
        compiler_params=_PARAMS,
    )(hs_cat, temb, rope,
      bp["w_mod"], bp["b_mod"], bp["w_fused"], bp["b_fused"],
      bp["w_rms"], bp["w_proj"], bp["b_proj"])


def out_layers_forward(op, hs_cat, temb):
    return pl.pallas_call(
        _out_layers_kernel,
        grid=(B,),
        in_specs=[
            _batch_spec((1, S_TOTAL, D)),
            _batch_spec((1, 1, D)),
            _const_spec((D, 2 * D)), _const_spec((1, 2 * D)),
            _const_spec((D, OUT_DIM)), _const_spec((1, OUT_DIM)),
        ],
        out_specs=_batch_spec((1, S_IMG, OUT_DIM)),
        out_shape=jax.ShapeDtypeStruct((B, S_IMG, OUT_DIM), DTYPE),
        compiler_params=_PARAMS,
    )(hs_cat, temb, op["w_norm"], op["b_norm"], op["w_proj"], op["b_proj"])


# =============================== model pieces ================================

def _w(key, fan_in, fan_out):
    return (0.02 * jax.random.normal(key, (fan_in, fan_out), jnp.float32)).astype(DTYPE)


def _zb(n):
    return jnp.zeros((1, n), DTYPE)


def init_params(key):
    keys = iter(jax.random.split(key, 64))
    nk = lambda: next(keys)
    p = {
        "x_embedder": {"w": _w(nk(), IN_CHANNELS, D), "b": _zb(D)},
        "context_embedder": {"w": _w(nk(), JOINT_DIM, D), "b": _zb(D)},
        "embedders": {
            "time1": {"w": _w(nk(), T_SIN, D), "b": _zb(D)},
            "guid1": {"w": _w(nk(), T_SIN, D), "b": _zb(D)},
            "text1": {"w": _w(nk(), POOLED_DIM, D), "b": _zb(D)},
            # second layers of the 3 embed-MLPs packed along K (outputs sum)
            "w2": _w(nk(), 3 * D, D), "b2": _zb(D),
        },
    }
    dual = []
    for _ in range(N_DUAL_BLOCKS):
        dual.append({
            "w_mod": _w(nk(), D, 12 * D), "b_mod": _zb(12 * D),   # norm1 | norm1_context
            "w_qkv_img": _w(nk(), D, 3 * D), "b_qkv_img": _zb(3 * D),
            "w_qkv_ctx": _w(nk(), D, 3 * D), "b_qkv_ctx": _zb(3 * D),
            "w_rms": jnp.ones((4, 1, HEAD_DIM), DTYPE),  # norm_q|norm_k|norm_added_q|norm_added_k
            "w_out": _w(nk(), D, D), "b_out": _zb(D),
            "w_add_out": _w(nk(), D, D), "b_add_out": _zb(D),
            "w_ff1": _w(nk(), D, D_FF), "b_ff1": _zb(D_FF),
            "w_ff2": _w(nk(), D_FF, D), "b_ff2": _zb(D),
            "w_fc1": _w(nk(), D, D_FF), "b_fc1": _zb(D_FF),
            "w_fc2": _w(nk(), D_FF, D), "b_fc2": _zb(D),
        })
    p["transformer_blocks"] = dual
    single = []
    for _ in range(N_SINGLE_BLOCKS):
        single.append({
            "w_mod": _w(nk(), D, 3 * D), "b_mod": _zb(3 * D),
            "w_fused": _w(nk(), D, 3 * D + D_FF), "b_fused": _zb(3 * D + D_FF),  # q|k|v|proj_mlp
            "w_rms": jnp.ones((2, 1, HEAD_DIM), DTYPE),
            "w_proj": _w(nk(), D + D_FF, D), "b_proj": _zb(D),
        })
    p["single_transformer_blocks"] = single
    p["out_layers"] = {
        "w_norm": _w(nk(), D, 2 * D), "b_norm": _zb(2 * D),
        "w_proj": _w(nk(), D, OUT_DIM), "b_proj": _zb(OUT_DIM),
    }
    return p


def sinusoidal_embedding(t, dim):
    # flip_sin_to_cos=True, downscale_freq_shift=0 -> [cos, sin]
    half = dim // 2
    freqs = jnp.exp(-math.log(10000.0) * jnp.arange(half, dtype=jnp.float32) / half)
    args = t.astype(jnp.float32)[:, None] * freqs[None, :]
    return jnp.concatenate([jnp.cos(args), jnp.sin(args)], axis=-1)


def rope_embeddings(txt_ids, img_ids):
    """Returns [3, S_TOTAL, HEAD_DIM] bf16: cos, and two zero/sign-folded sin
    halves so the kernel applies interleaved-pair rotation with two rolls and
    no iota/select: rot(x)*sin == roll(x,-1)*s_neg + roll(x,+1)*s_pos."""
    ids = jnp.concatenate([txt_ids, img_ids], axis=0)   # [S_TOTAL, 3], text first
    cos_parts, sin_parts = [], []
    for axis, dim in enumerate(AXES_DIM):
        freqs = 1.0 / (10000.0 ** (jnp.arange(0, dim, 2, dtype=jnp.float32) / dim))
        angles = ids[:, axis].astype(jnp.float32)[:, None] * freqs[None, :]
        cos_parts.append(jnp.repeat(jnp.cos(angles), 2, axis=-1))
        sin_parts.append(jnp.repeat(jnp.sin(angles), 2, axis=-1))
    cos = jnp.concatenate(cos_parts, axis=-1)            # [S_TOTAL, HEAD_DIM]
    sin = jnp.concatenate(sin_parts, axis=-1)
    even = (jnp.arange(HEAD_DIM) % 2) == 0
    s_neg = jnp.where(even[None, :], -sin, 0.0)          # hits even lanes only
    s_pos = jnp.where(even[None, :], 0.0, sin)           # hits odd lanes only
    # mirrors `image_rotary_emb.type(DTYPE)` in the reference
    return jnp.stack([cos, s_neg, s_pos], axis=0).astype(DTYPE)


def flux_transformer_forward(params, hidden_states, encoder_hidden_states,
                             pooled_projections, timestep, img_ids, txt_ids, guidance):
    # tiny transcendental precompute kept in JAX glue
    t_proj = sinusoidal_embedding(timestep * 1000.0, T_SIN).astype(DTYPE)
    g_proj = sinusoidal_embedding(guidance * 1000.0, T_SIN).astype(DTYPE)
    rope = rope_embeddings(txt_ids, img_ids)

    # x_embedder + context_embedder + time/guidance/text embed MLPs, fused;
    # produces the concatenated [text | image] token slab used by all blocks
    # plus the pre-activated (silu'd) time embedding.
    hs_cat, temb = embed_forward(params, hidden_states, encoder_hidden_states,
                                 t_proj, g_proj, pooled_projections)
    # dual-stream transformer blocks (one fused kernel each)
    for bp in params["transformer_blocks"]:
        hs_cat = dual_block_forward(bp, hs_cat, temb, rope)
    # single-stream blocks operate directly on the concatenated slab
    for bp in params["single_transformer_blocks"]:
        hs_cat = single_block_forward(bp, hs_cat, temb, rope)
    # out_layers: slice image tokens, AdaLayerNormContinuous + proj_out
    return out_layers_forward(params["out_layers"], hs_cat, temb)


# ==================================== main ===================================

if __name__ == "__main__":
    key = jax.random.PRNGKey(0)
    k_param, k_h, k_e, k_p = jax.random.split(key, 4)
    params = init_params(k_param)

    hidden_states = jax.random.normal(k_h, (B, S_IMG, IN_CHANNELS), jnp.float32).astype(DTYPE)
    encoder_hidden_states = jax.random.normal(k_e, (B, S_TXT, JOINT_DIM), jnp.float32).astype(DTYPE)
    pooled_projections = jax.random.normal(k_p, (B, POOLED_DIM), jnp.float32).astype(DTYPE)
    timestep = jnp.full((B,), 0.5, jnp.float32)
    guidance = jnp.full((B,), 3.5, jnp.float32)
    txt_ids = jnp.zeros((S_TXT, 3), jnp.float32)
    rows = jnp.arange(4, dtype=jnp.float32)
    img_ids = jnp.stack([jnp.zeros((S_IMG,), jnp.float32),
                         jnp.repeat(rows, 4),
                         jnp.tile(rows, 4)], axis=-1)    # [16, 3]

    fwd = jax.jit(flux_transformer_forward)
    out = fwd(params, hidden_states, encoder_hidden_states,
              pooled_projections, timestep, img_ids, txt_ids, guidance)
    out = jax.block_until_ready(out)
    assert out.shape == (B, S_IMG, OUT_DIM) and out.dtype == DTYPE
    print("KERNEL_OK")
</pallas_src>

<mosaic_0001>
module attributes {stable_mosaic.version = 11 : i64} {
  func.func @_embed_kernel(%arg0: i32, %arg1: memref<1x16x16xbf16, #tpu.memory_space<vmem>>, %arg2: memref<1x8x32xbf16, #tpu.memory_space<vmem>>, %arg3: memref<1x1x32xbf16, #tpu.memory_space<vmem>>, %arg4: memref<1x1x32xbf16, #tpu.memory_space<vmem>>, %arg5: memref<1x1x32xbf16, #tpu.memory_space<vmem>>, %arg6: memref<16x64xbf16, #tpu.memory_space<vmem>>, %arg7: memref<1x64xbf16, #tpu.memory_space<vmem>>, %arg8: memref<32x64xbf16, #tpu.memory_space<vmem>>, %arg9: memref<1x64xbf16, #tpu.memory_space<vmem>>, %arg10: memref<32x64xbf16, #tpu.memory_space<vmem>>, %arg11: memref<1x64xbf16, #tpu.memory_space<vmem>>, %arg12: memref<32x64xbf16, #tpu.memory_space<vmem>>, %arg13: memref<1x64xbf16, #tpu.memory_space<vmem>>, %arg14: memref<32x64xbf16, #tpu.memory_space<vmem>>, %arg15: memref<1x64xbf16, #tpu.memory_space<vmem>>, %arg16: memref<192x64xbf16, #tpu.memory_space<vmem>>, %arg17: memref<1x64xbf16, #tpu.memory_space<vmem>>, %arg18: memref<1x24x64xbf16, #tpu.memory_space<vmem>>, %arg19: memref<1x1x64xbf16, #tpu.memory_space<vmem>>) attributes {dimension_semantics = [#tpu.dimension_semantics<parallel>], iteration_bounds = array<i64: 2>, scalar_prefetch = 0 : i64, scratch_operands = 0 : i64, tpu.core_type = #tpu.core_type<tc>, window_params = [{transform_indices = @transform_0, window_bounds = array<i64: 1, 16, 16>}, {transform_indices = @transform_1, window_bounds = array<i64: 1, 8, 32>}, {transform_indices = @transform_2, window_bounds = array<i64: 1, 1, 32>}, {transform_indices = @transform_3, window_bounds = array<i64: 1, 1, 32>}, {transform_indices = @transform_4, window_bounds = array<i64: 1, 1, 32>}, {pipeline_mode = #tpu.pipeline_mode<synchronous>, transform_indices = @transform_5, window_bounds = array<i64: 16, 64>}, {pipeline_mode = #tpu.pipeline_mode<synchronous>, transform_indices = @transform_6, window_bounds = array<i64: 1, 64>}, {pipeline_mode = #tpu.pipeline_mode<synchronous>, transform_indices = @transform_7, window_bounds = array<i64: 32, 64>}, {pipeline_mode = #tpu.pipeline_mode<synchronous>, transform_indices = @transform_8, window_bounds = array<i64: 1, 64>}, {pipeline_mode = #tpu.pipeline_mode<synchronous>, transform_indices = @transform_9, window_bounds = array<i64: 32, 64>}, {pipeline_mode = #tpu.pipeline_mode<synchronous>, transform_indices = @transform_10, window_bounds = array<i64: 1, 64>}, {pipeline_mode = #tpu.pipeline_mode<synchronous>, transform_indices = @transform_11, window_bounds = array<i64: 32, 64>}, {pipeline_mode = #tpu.pipeline_mode<synchronous>, transform_indices = @transform_12, window_bounds = array<i64: 1, 64>}, {pipeline_mode = #tpu.pipeline_mode<synchronous>, transform_indices = @transform_13, window_bounds = array<i64: 32, 64>}, {pipeline_mode = #tpu.pipeline_mode<synchronous>, transform_indices = @transform_14, window_bounds = array<i64: 1, 64>}, {pipeline_mode = #tpu.pipeline_mode<synchronous>, transform_indices = @transform_15, window_bounds = array<i64: 192, 64>}, {pipeline_mode = #tpu.pipeline_mode<synchronous>, transform_indices = @transform_16, window_bounds = array<i64: 1, 64>}, {transform_indices = @transform_17, window_bounds = array<i64: 1, 24, 64>}, {transform_indices = @transform_18, window_bounds = array<i64: 1, 1, 64>}]} {
    %c0 = arith.constant 0 : index
    %c0_0 = arith.constant 0 : index
    %c0_1 = arith.constant 0 : index
    %0 = vector.load %arg1[%c0, %c0_0, %c0_1] : memref<1x16x16xbf16, #tpu.memory_space<vmem>>, vector<1x16x16xbf16>
    %1 = vector.shape_cast %0 : vector<1x16x16xbf16> to vector<16x16xbf16>
    %c0_2 = arith.constant 0 : index
    %c0_3 = arith.constant 0 : index
    %2 = vector.load %arg6[%c0_2, %c0_3] : memref<16x64xbf16, #tpu.memory_space<vmem>>, vector<16x64xbf16>
    %cst = arith.constant dense<0.000000e+00> : vector<16x64xf32>
    %3 = tpu.matmul %1, %2, %cst {dimension_numbers = #tpu.dot_dimension_numbers<[1], [0], [0], [1], [0, 0, 1, 1], [], []>} : vector<16x16xbf16>, vector<16x64xbf16>, vector<16x64xf32> -> vector<16x64xf32>
    %c0_4 = arith.constant 0 : index
    %c0_5 = arith.constant 0 : index
    %4 = vector.load %arg7[%c0_4, %c0_5] : memref<1x64xbf16, #tpu.memory_space<vmem>>, vector<1x64xbf16>
    %5 = arith.extf %4 : vector<1x64xbf16> to vector<1x64xf32>
    %6 = vector.broadcast %5 : vector<1x64xf32> to vector<16x64xf32>
    %7 = arith.addf %3, %6 : vector<16x64xf32>
    %c0_6 = arith.constant 0 : index
    %c0_7 = arith.constant 0 : index
    %c0_8 = arith.constant 0 : index
    %8 = vector.load %arg2[%c0_6, %c0_7, %c0_8] : memref<1x8x32xbf16, #tpu.memory_space<vmem>>, vector<1x8x32xbf16>
    %9 = vector.shape_cast %8 : vector<1x8x32xbf16> to vector<8x32xbf16>
    %c0_9 = arith.constant 0 : index
    %c0_10 = arith.constant 0 : index
    %10 = vector.load %arg8[%c0_9, %c0_10] : memref<32x64xbf16, #tpu.memory_space<vmem>>, vector<32x64xbf16>
    %cst_11 = arith.constant dense<0.000000e+00> : vector<8x64xf32>
    %11 = tpu.matmul %9, %10, %cst_11 {dimension_numbers = #tpu.dot_dimension_numbers<[1], [0], [0], [1], [0, 0, 1, 1], [], []>} : vector<8x32xbf16>, vector<32x64xbf16>, vector<8x64xf32> -> vector<8x64xf32>
    %c0_12 = arith.constant 0 : index
    %c0_13 = arith.constant 0 : index
    %12 = vector.load %arg9[%c0_12, %c0_13] : memref<1x64xbf16, #tpu.memory_space<vmem>>, vector<1x64xbf16>
    %13 = arith.extf %12 : vector<1x64xbf16> to vector<1x64xf32>
    %14 = vector.broadcast %13 : vector<1x64xf32> to vector<8x64xf32>
    %15 = arith.addf %11, %14 : vector<8x64xf32>
    %c0_14 = arith.constant 0 : index
    %c0_15 = arith.constant 0 : index
    %c0_16 = arith.constant 0 : index
    %16 = vector.load %arg3[%c0_14, %c0_15, %c0_16] : memref<1x1x32xbf16, #tpu.memory_space<vmem>>, vector<1x1x32xbf16>
    %17 = vector.shape_cast %16 : vector<1x1x32xbf16> to vector<1x32xbf16>
    %c0_17 = arith.constant 0 : index
    %c0_18 = arith.constant 0 : index
    %18 = vector.load %arg10[%c0_17, %c0_18] : memref<32x64xbf16, #tpu.memory_space<vmem>>, vector<32x64xbf16>
    %cst_19 = arith.constant dense<0.000000e+00> : vector<1x64xf32>
    %19 = tpu.matmul %17, %18, %cst_19 {dimension_numbers = #tpu.dot_dimension_numbers<[1], [0], [0], [1], [0, 0, 1, 1], [], []>} : vector<1x32xbf16>, vector<32x64xbf16>, vector<1x64xf32> -> vector<1x64xf32>
    %c0_20 = arith.constant 0 : index
    %c0_21 = arith.constant 0 : index
    %20 = vector.load %arg11[%c0_20, %c0_21] : memref<1x64xbf16, #tpu.memory_space<vmem>>, vector<1x64xbf16>
    %21 = arith.extf %20 : vector<1x64xbf16> to vector<1x64xf32>
    %22 = arith.addf %19, %21 : vector<1x64xf32>
    %23 = arith.negf %22 : vector<1x64xf32>
    %24 = math.exp %23 : vector<1x64xf32>
    %cst_22 = arith.constant 1.000000e+00 : f32
    %25 = vector.broadcast %cst_22 : f32 to vector<1x64xf32>
    %26 = arith.addf %25, %24 : vector<1x64xf32>
    %27 = arith.divf %25, %26 : vector<1x64xf32>
    %28 = arith.mulf %22, %27 : vector<1x64xf32>
    %c0_23 = arith.constant 0 : index
    %c0_24 = arith.constant 0 : index
    %c0_25 = arith.constant 0 : index
    %29 = vector.load %arg4[%c0_23, %c0_24, %c0_25] : memref<1x1x32xbf16, #tpu.memory_space<vmem>>, vector<1x1x32xbf16>
    %30 = vector.shape_cast %29 : vector<1x1x32xbf16> to vector<1x32xbf16>
    %c0_26 = arith.constant 0 : index
    %c0_27 = arith.constant 0 : index
    %31 = vector.load %arg12[%c0_26, %c0_27] : memref<32x64xbf16, #tpu.memory_space<vmem>>, vector<32x64xbf16>
    %cst_28 = arith.constant dense<0.000000e+00> : vector<1x64xf32>
    %32 = tpu.matmul %30, %31, %cst_28 {dimension_numbers = #tpu.dot_dimension_numbers<[1], [0], [0], [1], [0, 0, 1, 1], [], []>} : vector<1x32xbf16>, vector<32x64xbf16>, vector<1x64xf32> -> vector<1x64xf32>
    %c0_29 = arith.constant 0 : index
    %c0_30 = arith.constant 0 : index
    %33 = vector.load %arg13[%c0_29, %c0_30] : memref<1x64xbf16, #tpu.memory_space<vmem>>, vector<1x64xbf16>
    %34 = arith.extf %33 : vector<1x64xbf16> to vector<1x64xf32>
    %35 = arith.addf %32, %34 : vector<1x64xf32>
    %36 = arith.negf %35 : vector<1x64xf32>
    %37 = math.exp %36 : vector<1x64xf32>
    %cst_31 = arith.constant 1.000000e+00 : f32
    %38 = vector.broadcast %cst_31 : f32 to vector<1x64xf32>
    %39 = arith.addf %38, %37 : vector<1x64xf32>
    %40 = arith.divf %38, %39 : vector<1x64xf32>
    %41 = arith.mulf %35, %40 : vector<1x64xf32>
    %c0_32 = arith.constant 0 : index
    %c0_33 = arith.constant 0 : index
    %c0_34 = arith.constant 0 : index
    %42 = vector.load %arg5[%c0_32, %c0_33, %c0_34] : memref<1x1x32xbf16, #tpu.memory_space<vmem>>, vector<1x1x32xbf16>
    %43 = vector.shape_cast %42 : vector<1x1x32xbf16> to vector<1x32xbf16>
    %c0_35 = arith.constant 0 : index
    %c0_36 = arith.constant 0 : index
    %44 = vector.load %arg14[%c0_35, %c0_36] : memref<32x64xbf16, #tpu.memory_space<vmem>>, vector<32x64xbf16>
    %cst_37 = arith.constant dense<0.000000e+00> : vector<1x64xf32>
    %45 = tpu.matmul %43, %44, %cst_37 {dimension_numbers = #tpu.dot_dimension_numbers<[1], [0], [0], [1], [0, 0, 1, 1], [], []>} : vector<1x32xbf16>, vector<32x64xbf16>, vector<1x64xf32> -> vector<1x64xf32>
    %c0_38 = arith.constant 0 : index
    %c0_39 = arith.constant 0 : index
    %46 = vector.load %arg15[%c0_38, %c0_39] : memref<1x64xbf16, #tpu.memory_space<vmem>>, vector<1x64xbf16>
    %47 = arith.extf %46 : vector<1x64xbf16> to vector<1x64xf32>
    %48 = arith.addf %45, %47 : vector<1x64xf32>
    %49 = arith.negf %48 : vector<1x64xf32>
    %50 = math.exp %49 : vector<1x64xf32>
    %cst_40 = arith.constant 1.000000e+00 : f32
    %51 = vector.broadcast %cst_40 : f32 to vector<1x64xf32>
    %52 = arith.addf %51, %50 : vector<1x64xf32>
    %53 = arith.divf %51, %52 : vector<1x64xf32>
    %54 = arith.mulf %48, %53 : vector<1x64xf32>
    %55 = tpu.concatenate %28, %41, %54 in 1 : vector<1x64xf32>, vector<1x64xf32>, vector<1x64xf32> -> vector<1x192xf32>
    %56 = arith.truncf %55 : vector<1x192xf32> to vector<1x192xbf16>
    %c0_41 = arith.constant 0 : index
    %c0_42 = arith.constant 0 : index
    %57 = vector.load %arg16[%c0_41, %c0_42] : memref<192x64xbf16, #tpu.memory_space<vmem>>, vector<192x64xbf16>
    %cst_43 = arith.constant dense<0.000000e+00> : vector<1x64xf32>
    %58 = tpu.matmul %56, %57, %cst_43 {dimension_numbers = #tpu.dot_dimension_numbers<[1], [0], [0], [1], [0, 0, 1, 1], [], []>} : vector<1x192xbf16>, vector<192x64xbf16>, vector<1x64xf32> -> vector<1x64xf32>
    %c0_44 = arith.constant 0 : index
    %c0_45 = arith.constant 0 : index
    %59 = vector.load %arg17[%c0_44, %c0_45] : memref<1x64xbf16, #tpu.memory_space<vmem>>, vector<1x64xbf16>
    %60 = arith.extf %59 : vector<1x64xbf16> to vector<1x64xf32>
    %61 = arith.addf %58, %60 : vector<1x64xf32>
    %62 = tpu.concatenate %15, %7 in 0 : vector<8x64xf32>, vector<16x64xf32> -> vector<24x64xf32>
    %63 = arith.truncf %62 : vector<24x64xf32> to vector<24x64xbf16>
    %c0_46 = arith.constant 0 : index
    %c0_47 = arith.constant 0 : index
    %c0_48 = arith.constant 0 : index
    %64 = vector.load %arg18[%c0_46, %c0_47, %c0_48] : memref<1x24x64xbf16, #tpu.memory_space<vmem>>, vector<1x24x64xbf16>
    %65 = vector.shape_cast %64 : vector<1x24x64xbf16> to vector<24x64xbf16>
    %66 = vector.shape_cast %63 : vector<24x64xbf16> to vector<1x24x64xbf16>
    tpu.vector_store %arg18[%c0_46, %c0_47, %c0_48], %66 {strides = array<i32>} : memref<1x24x64xbf16, #tpu.memory_space<vmem>>, vector<1x24x64xbf16>,
    %67 = arith.negf %61 : vector<1x64xf32>
    %68 = math.exp %67 : vector<1x64xf32>
    %cst_49 = arith.constant 1.000000e+00 : f32
    %69 = vector.broadcast %cst_49 : f32 to vector<1x64xf32>
    %70 = arith.addf %69, %68 : vector<1x64xf32>
    %71 = arith.divf %69, %70 : vector<1x64xf32>
    %72 = arith.mulf %61, %71 : vector<1x64xf32>
    %73 = arith.truncf %72 : vector<1x64xf32> to vector<1x64xbf16>
    %c0_50 = arith.constant 0 : index
    %c0_51 = arith.constant 0 : index
    %c0_52 = arith.constant 0 : index
    %74 = vector.load %arg19[%c0_50, %c0_51, %c0_52] : memref<1x1x64xbf16, #tpu.memory_space<vmem>>, vector<1x1x64xbf16>
    %75 = vector.shape_cast %74 : vector<1x1x64xbf16> to vector<1x64xbf16>
    %76 = vector.shape_cast %73 : vector<1x64xbf16> to vector<1x1x64xbf16>
    tpu.vector_store %arg19[%c0_50, %c0_51, %c0_52], %76 {strides = array<i32>} : memref<1x1x64xbf16, #tpu.memory_space<vmem>>, vector<1x1x64xbf16>,
    return
  }
  func.func @transform_0(%arg0: i32) -> (i32, i32, i32) {
    %c0_i32 = arith.constant 0 : i32
    %c0_i32_0 = arith.constant 0 : i32
    %c0_i32_1 = arith.constant 0 : i32
    return %arg0, %c0_i32, %c0_i32_0 : i32, i32, i32
  }
  func.func @transform_1(%arg0: i32) -> (i32, i32, i32) {
    %c0_i32 = arith.constant 0 : i32
    %c0_i32_0 = arith.constant 0 : i32
    %c0_i32_1 = arith.constant 0 : i32
    return %arg0, %c0_i32, %c0_i32_0 : i32, i32, i32
  }
  func.func @transform_2(%arg0: i32) -> (i32, i32, i32) {
    %c0_i32 = arith.constant 0 : i32
    %c0_i32_0 = arith.constant 0 : i32
    %c0_i32_1 = arith.constant 0 : i32
    return %arg0, %c0_i32, %c0_i32_0 : i32, i32, i32
  }
  func.func @transform_3(%arg0: i32) -> (i32, i32, i32) {
    %c0_i32 = arith.constant 0 : i32
    %c0_i32_0 = arith.constant 0 : i32
    %c0_i32_1 = arith.constant 0 : i32
    return %arg0, %c0_i32, %c0_i32_0 : i32, i32, i32
  }
  func.func @transform_4(%arg0: i32) -> (i32, i32, i32) {
    %c0_i32 = arith.constant 0 : i32
    %c0_i32_0 = arith.constant 0 : i32
    %c0_i32_1 = arith.constant 0 : i32
    return %arg0, %c0_i32, %c0_i32_0 : i32, i32, i32
  }
  func.func @transform_5(%arg0: i32) -> (i32, i32) {
    %c0_i32 = arith.constant 0 : i32
    %c0_i32_0 = arith.constant 0 : i32
    %c0_i32_1 = arith.constant 0 : i32
    return %c0_i32, %c0_i32_0 : i32, i32
  }
  func.func @transform_6(%arg0: i32) -> (i32, i32) {
    %c0_i32 = arith.constant 0 : i32
    %c0_i32_0 = arith.constant 0 : i32
    %c0_i32_1 = arith.constant 0 : i32
    return %c0_i32, %c0_i32_0 : i32, i32
  }
  func.func @transform_7(%arg0: i32) -> (i32, i32) {
    %c0_i32 = arith.constant 0 : i32
    %c0_i32_0 = arith.constant 0 : i32
    %c0_i32_1 = arith.constant 0 : i32
    return %c0_i32, %c0_i32_0 : i32, i32
  }
  func.func @transform_8(%arg0: i32) -> (i32, i32) {
    %c0_i32 = arith.constant 0 : i32
    %c0_i32_0 = arith.constant 0 : i32
    %c0_i32_1 = arith.constant 0 : i32
    return %c0_i32, %c0_i32_0 : i32, i32
  }
  func.func @transform_9(%arg0: i32) -> (i32, i32) {
    %c0_i32 = arith.constant 0 : i32
    %c0_i32_0 = arith.constant 0 : i32
    %c0_i32_1 = arith.constant 0 : i32
    return %c0_i32, %c0_i32_0 : i32, i32
  }
  func.func @transform_10(%arg0: i32) -> (i32, i32) {
    %c0_i32 = arith.constant 0 : i32
    %c0_i32_0 = arith.constant 0 : i32
    %c0_i32_1 = arith.constant 0 : i32
    return %c0_i32, %c0_i32_0 : i32, i32
  }
  func.func @transform_11(%arg0: i32) -> (i32, i32) {
    %c0_i32 = arith.constant 0 : i32
    %c0_i32_0 = arith.constant 0 : i32
    %c0_i32_1 = arith.constant 0 : i32
    return %c0_i32, %c0_i32_0 : i32, i32
  }
  func.func @transform_12(%arg0: i32) -> (i32, i32) {
    %c0_i32 = arith.constant 0 : i32
    %c0_i32_0 = arith.constant 0 : i32
    %c0_i32_1 = arith.constant 0 : i32
    return %c0_i32, %c0_i32_0 : i32, i32
  }
  func.func @transform_13(%arg0: i32) -> (i32, i32) {
    %c0_i32 = arith.constant 0 : i32
    %c0_i32_0 = arith.constant 0 : i32
    %c0_i32_1 = arith.constant 0 : i32
    return %c0_i32, %c0_i32_0 : i32, i32
  }
  func.func @transform_14(%arg0: i32) -> (i32, i32) {
    %c0_i32 = arith.constant 0 : i32
    %c0_i32_0 = arith.constant 0 : i32
    %c0_i32_1 = arith.constant 0 : i32
    return %c0_i32, %c0_i32_0 : i32, i32
  }
  func.func @transform_15(%arg0: i32) -> (i32, i32) {
    %c0_i32 = arith.constant 0 : i32
    %c0_i32_0 = arith.constant 0 : i32
    %c0_i32_1 = arith.constant 0 : i32
    return %c0_i32, %c0_i32_0 : i32, i32
  }
  func.func @transform_16(%arg0: i32) -> (i32, i32) {
    %c0_i32 = arith.constant 0 : i32
    %c0_i32_0 = arith.constant 0 : i32
    %c0_i32_1 = arith.constant 0 : i32
    return %c0_i32, %c0_i32_0 : i32, i32
  }
  func.func @transform_17(%arg0: i32) -> (i32, i32, i32) {
    %c0_i32 = arith.constant 0 : i32
    %c0_i32_0 = arith.constant 0 : i32
    %c0_i32_1 = arith.constant 0 : i32
    return %arg0, %c0_i32, %c0_i32_0 : i32, i32, i32
  }
  func.func @transform_18(%arg0: i32) -> (i32, i32, i32) {
    %c0_i32 = arith.constant 0 : i32
    %c0_i32_0 = arith.constant 0 : i32
    %c0_i32_1 = arith.constant 0 : i32
    return %arg0, %c0_i32, %c0_i32_0 : i32, i32, i32
  }
}

module attributes {stable_mosaic.version = 11 : i64} {
  func.func @_dual_block_kernel(%arg0: i32, %arg1: memref<1x24x64xbf16, #tpu.memory_space<vmem>>, %arg2: memref<1x1x64xbf16, #tpu.memory_space<vmem>>, %arg3: memref<3x24x32xbf16, #tpu.memory_space<vmem>>, %arg4: memref<64x768xbf16, #tpu.memory_space<vmem>>, %arg5: memref<1x768xbf16, #tpu.memory_space<vmem>>, %arg6: memref<64x192xbf16, #tpu.memory_space<vmem>>, %arg7: memref<1x192xbf16, #tpu.memory_space<vmem>>, %arg8: memref<64x192xbf16, #tpu.memory_space<vmem>>, %arg9: memref<1x192xbf16, #tpu.memory_space<vmem>>, %arg10: memref<4x1x32xbf16, #tpu.memory_space<vmem>>, %arg11: memref<64x64xbf16, #tpu.memory_space<vmem>>, %arg12: memref<1x64xbf16, #tpu.memory_space<vmem>>, %arg13: memref<64x64xbf16, #tpu.memory_space<vmem>>, %arg14: memref<1x64xbf16, #tpu.memory_space<vmem>>, %arg15: memref<64x256xbf16, #tpu.memory_space<vmem>>, %arg16: memref<1x256xbf16, #tpu.memory_space<vmem>>, %arg17: memref<256x64xbf16, #tpu.memory_space<vmem>>, %arg18: memref<1x64xbf16, #tpu.memory_space<vmem>>, %arg19: memref<64x256xbf16, #tpu.memory_space<vmem>>, %arg20: memref<1x256xbf16, #tpu.memory_space<vmem>>, %arg21: memref<256x64xbf16, #tpu.memory_space<vmem>>, %arg22: memref<1x64xbf16, #tpu.memory_space<vmem>>, %arg23: memref<1x24x64xbf16, #tpu.memory_space<vmem>>) attributes {dimension_semantics = [#tpu.dimension_semantics<parallel>], iteration_bounds = array<i64: 2>, scalar_prefetch = 0 : i64, scratch_operands = 0 : i64, tpu.core_type = #tpu.core_type<tc>, window_params = [{transform_indices = @transform_0, window_bounds = array<i64: 1, 24, 64>}, {transform_indices = @transform_1, window_bounds = array<i64: 1, 1, 64>}, {pipeline_mode = #tpu.pipeline_mode<synchronous>, transform_indices = @transform_2, window_bounds = array<i64: 3, 24, 32>}, {pipeline_mode = #tpu.pipeline_mode<synchronous>, transform_indices = @transform_3, window_bounds = array<i64: 64, 768>}, {pipeline_mode = #tpu.pipeline_mode<synchronous>, transform_indices = @transform_4, window_bounds = array<i64: 1, 768>}, {pipeline_mode = #tpu.pipeline_mode<synchronous>, transform_indices = @transform_5, window_bounds = array<i64: 64, 192>}, {pipeline_mode = #tpu.pipeline_mode<synchronous>, transform_indices = @transform_6, window_bounds = array<i64: 1, 192>}, {pipeline_mode = #tpu.pipeline_mode<synchronous>, transform_indices = @transform_7, window_bounds = array<i64: 64, 192>}, {pipeline_mode = #tpu.pipeline_mode<synchronous>, transform_indices = @transform_8, window_bounds = array<i64: 1, 192>}, {pipeline_mode = #tpu.pipeline_mode<synchronous>, transform_indices = @transform_9, window_bounds = array<i64: 4, 1, 32>}, {pipeline_mode = #tpu.pipeline_mode<synchronous>, transform_indices = @transform_10, window_bounds = array<i64: 64, 64>}, {pipeline_mode = #tpu.pipeline_mode<synchronous>, transform_indices = @transform_11, window_bounds = array<i64: 1, 64>}, {pipeline_mode = #tpu.pipeline_mode<synchronous>, transform_indices = @transform_12, window_bounds = array<i64: 64, 64>}, {pipeline_mode = #tpu.pipeline_mode<synchronous>, transform_indices = @transform_13, window_bounds = array<i64: 1, 64>}, {pipeline_mode = #tpu.pipeline_mode<synchronous>, transform_indices = @transform_14, window_bounds = array<i64: 64, 256>}, {pipeline_mode = #tpu.pipeline_mode<synchronous>, transform_indices = @transform_15, window_bounds = array<i64: 1, 256>}, {pipeline_mode = #tpu.pipeline_mode<synchronous>, transform_indices = @transform_16, window_bounds = array<i64: 256, 64>}, {pipeline_mode = #tpu.pipeline_mode<synchronous>, transform_indices = @transform_17, window_bounds = array<i64: 1, 64>}, {pipeline_mode = #tpu.pipeline_mode<synchronous>, transform_indices = @transform_18, window_bounds = array<i64: 64, 256>}, {pipeline_mode = #tpu.pipeline_mode<synchronous>, transform_indices = @transform_19, window_bounds = array<i64: 1, 256>}, {pipeline_mode = #tpu.pipeline_mode<synchronous>, transform_indices = @transform_20, window_bounds = array<i64: 256, 64>}, {pipeline_mode = #tpu.pipeline_mode<synchronous>, transform_indices = @transform_21, window_bounds = array<i64: 1, 64>}, {transform_indices = @transform_22, window_bounds = array<i64: 1, 24, 64>}]} {
    %c0 = arith.constant 0 : index
    %c0_0 = arith.constant 0 : index
    %c0_1 = arith.constant 0 : index
    %0 = vector.load %arg1[%c0, %c0_0, %c0_1] : memref<1x24x64xbf16, #tpu.memory_space<vmem>>, vector<1x24x64xbf16>
    %1 = vector.shape_cast %0 : vector<1x24x64xbf16> to vector<24x64xbf16>
    %2 = arith.extf %1 : vector<24x64xbf16> to vector<24x64xf32>
    %3 = vector.extract_strided_slice %2 {offsets = [0, 0], sizes = [8, 64], strides = [1, 1]} : vector<24x64xf32> to vector<8x64xf32>
    %4 = vector.extract_strided_slice %2 {offsets = [8, 0], sizes = [16, 64], strides = [1, 1]} : vector<24x64xf32> to vector<16x64xf32>
    %c0_2 = arith.constant 0 : index
    %c0_3 = arith.constant 0 : index
    %c0_4 = arith.constant 0 : index
    %5 = vector.load %arg2[%c0_2, %c0_3, %c0_4] : memref<1x1x64xbf16, #tpu.memory_space<vmem>>, vector<1x1x64xbf16>
    %6 = vector.shape_cast %5 : vector<1x1x64xbf16> to vector<1x64xbf16>
    %7 = arith.extf %6 : vector<1x64xbf16> to vector<1x64xf32>
    %8 = arith.truncf %7 : vector<1x64xf32> to vector<1x64xbf16>
    %c0_5 = arith.constant 0 : index
    %c0_6 = arith.constant 0 : index
    %9 = vector.load %arg4[%c0_5, %c0_6] : memref<64x768xbf16, #tpu.memory_space<vmem>>, vector<64x768xbf16>
    %cst = arith.constant dense<0.000000e+00> : vector<1x768xf32>
    %10 = tpu.matmul %8, %9, %cst {dimension_numbers = #tpu.dot_dimension_numbers<[1], [0], [0], [1], [0, 0, 1, 1], [], []>} : vector<1x64xbf16>, vector<64x768xbf16>, vector<1x768xf32> -> vector<1x768xf32>
    %c0_7 = arith.constant 0 : index
    %c0_8 = arith.constant 0 : index
    %11 = vector.load %arg5[%c0_7, %c0_8] : memref<1x768xbf16, #tpu.memory_space<vmem>>, vector<1x768xbf16>
    %12 = arith.extf %11 : vector<1x768xbf16> to vector<1x768xf32>
    %13 = arith.addf %10, %12 : vector<1x768xf32>
    %14 = vector.extract_strided_slice %13 {offsets = [0, 0], sizes = [1, 64], strides = [1, 1]} : vector<1x768xf32> to vector<1x64xf32>
    %15 = vector.extract_strided_slice %13 {offsets = [0, 64], sizes = [1, 64], strides = [1, 1]} : vector<1x768xf32> to vector<1x64xf32>
    %16 = vector.extract_strided_slice %13 {offsets = [0, 128], sizes = [1, 64], strides = [1, 1]} : vector<1x768xf32> to vector<1x64xf32>
    %17 = vector.extract_strided_slice %13 {offsets = [0, 192], sizes = [1, 64], strides = [1, 1]} : vector<1x768xf32> to vector<1x64xf32>
    %18 = vector.extract_strided_slice %13 {offsets = [0, 256], sizes = [1, 64], strides = [1, 1]} : vector<1x768xf32> to vector<1x64xf32>
    %19 = vector.extract_strided_slice %13 {offsets = [0, 320], sizes = [1, 64], strides = [1, 1]} : vector<1x768xf32> to vector<1x64xf32>
    %20 = vector.extract_strided_slice %13 {offsets = [0, 384], sizes = [1, 64], strides = [1, 1]} : vector<1x768xf32> to vector<1x64xf32>
    %21 = vector.extract_strided_slice %13 {offsets = [0, 448], sizes = [1, 64], strides = [1, 1]} : vector<1x768xf32> to vector<1x64xf32>
    %22 = vector.extract_strided_slice %13 {offsets = [0, 512], sizes = [1, 64], strides = [1, 1]} : vector<1x768xf32> to vector<1x64xf32>
    %23 = vector.extract_strided_slice %13 {offsets = [0, 576], sizes = [1, 64], strides = [1, 1]} : vector<1x768xf32> to vector<1x64xf32>
    %24 = vector.extract_strided_slice %13 {offsets = [0, 640], sizes = [1, 64], strides = [1, 1]} : vector<1x768xf32> to vector<1x64xf32>
    %25 = vector.extract_strided_slice %13 {offsets = [0, 704], sizes = [1, 64], strides = [1, 1]} : vector<1x768xf32> to vector<1x64xf32>
    %cst_9 = arith.constant dense<0.000000e+00> : vector<16xf32>
    %26 = vector.multi_reduction <add>, %4, %cst_9 [1] : vector<16x64xf32> to vector<16xf32>
    %27 = vector.shape_cast %26 : vector<16xf32> to vector<16x1xf32>
    %cst_10 = arith.constant 6.400000e+01 : f32
    %28 = vector.broadcast %cst_10 : f32 to vector<16x1xf32>
    %29 = arith.divf %27, %28 : vector<16x1xf32>
    %30 = vector.broadcast %29 : vector<16x1xf32> to vector<16x64xf32>
    %31 = arith.subf %4, %30 : vector<16x64xf32>
    %32 = arith.mulf %31, %31 : vector<16x64xf32>
    %cst_11 = arith.constant dense<0.000000e+00> : vector<16xf32>
    %33 = vector.multi_reduction <add>, %32, %cst_11 [1] : vector<16x64xf32> to vector<16xf32>
    %34 = vector.shape_cast %33 : vector<16xf32> to vector<16x1xf32>
    %cst_12 = arith.constant 6.400000e+01 : f32
    %35 = vector.broadcast %cst_12 : f32 to vector<16x1xf32>
    %36 = arith.divf %34, %35 : vector<16x1xf32>
    %cst_13 = arith.constant 9.99999997E-7 : f32
    %37 = vector.broadcast %cst_13 : f32 to vector<16x1xf32>
    %38 = arith.addf %36, %37 : vector<16x1xf32>
    %39 = math.rsqrt %38 : vector<16x1xf32>
    %40 = vector.broadcast %39 : vector<16x1xf32> to vector<16x64xf32>
    %41 = arith.mulf %31, %40 : vector<16x64xf32>
    %cst_14 = arith.constant 1.000000e+00 : f32
    %42 = vector.broadcast %cst_14 : f32 to vector<1x64xf32>
    %43 = arith.addf %42, %15 : vector<1x64xf32>
    %44 = vector.broadcast %43 : vector<1x64xf32> to vector<16x64xf32>
    %45 = arith.mulf %41, %44 : vector<16x64xf32>
    %46 = vector.broadcast %14 : vector<1x64xf32> to vector<16x64xf32>
    %47 = arith.addf %45, %46 : vector<16x64xf32>
    %cst_15 = arith.constant dense<0.000000e+00> : vector<8xf32>
    %48 = vector.multi_reduction <add>, %3, %cst_15 [1] : vector<8x64xf32> to vector<8xf32>
    %49 = vector.shape_cast %48 : vector<8xf32> to vector<8x1xf32>
    %cst_16 = arith.constant 6.400000e+01 : f32
    %50 = vector.broadcast %cst_16 : f32 to vector<8x1xf32>
    %51 = arith.divf %49, %50 : vector<8x1xf32>
    %52 = vector.broadcast %51 : vector<8x1xf32> to vector<8x64xf32>
    %53 = arith.subf %3, %52 : vector<8x64xf32>
    %54 = arith.mulf %53, %53 : vector<8x64xf32>
    %cst_17 = arith.constant dense<0.000000e+00> : vector<8xf32>
    %55 = vector.multi_reduction <add>, %54, %cst_17 [1] : vector<8x64xf32> to vector<8xf32>
    %56 = vector.shape_cast %55 : vector<8xf32> to vector<8x1xf32>
    %cst_18 = arith.constant 6.400000e+01 : f32
    %57 = vector.broadcast %cst_18 : f32 to vector<8x1xf32>
    %58 = arith.divf %56, %57 : vector<8x1xf32>
    %cst_19 = arith.constant 9.99999997E-7 : f32
    %59 = vector.broadcast %cst_19 : f32 to vector<8x1xf32>
    %60 = arith.addf %58, %59 : vector<8x1xf32>
    %61 = math.rsqrt %60 : vector<8x1xf32>
    %62 = vector.broadcast %61 : vector<8x1xf32> to vector<8x64xf32>
    %63 = arith.mulf %53, %62 : vector<8x64xf32>
    %cst_20 = arith.constant 1.000000e+00 : f32
    %64 = vector.broadcast %cst_20 : f32 to vector<1x64xf32>
    %65 = arith.addf %64, %21 : vector<1x64xf32>
    %66 = vector.broadcast %65 : vector<1x64xf32> to vector<8x64xf32>
    %67 = arith.mulf %63, %66 : vector<8x64xf32>
    %68 = vector.broadcast %20 : vector<1x64xf32> to vector<8x64xf32>
    %69 = arith.addf %67, %68 : vector<8x64xf32>
    %70 = arith.truncf %47 : vector<16x64xf32> to vector<16x64xbf16>
    %c0_21 = arith.constant 0 : index
    %c0_22 = arith.constant 0 : index
    %71 = vector.load %arg6[%c0_21, %c0_22] : memref<64x192xbf16, #tpu.memory_space<vmem>>, vector<64x192xbf16>
    %cst_23 = arith.constant dense<0.000000e+00> : vector<16x192xf32>
    %72 = tpu.matmul %70, %71, %cst_23 {dimension_numbers = #tpu.dot_dimension_numbers<[1], [0], [0], [1], [0, 0, 1, 1], [], []>} : vector<16x64xbf16>, vector<64x192xbf16>, vector<16x192xf32> -> vector<16x192xf32>
    %c0_24 = arith.constant 0 : index
    %c0_25 = arith.constant 0 : index
    %73 = vector.load %arg7[%c0_24, %c0_25] : memref<1x192xbf16, #tpu.memory_space<vmem>>, vector<1x192xbf16>
    %74 = arith.extf %73 : vector<1x192xbf16> to vector<1x192xf32>
    %75 = vector.broadcast %74 : vector<1x192xf32> to vector<16x192xf32>
    %76 = arith.addf %72, %75 : vector<16x192xf32>
    %77 = arith.truncf %69 : vector<8x64xf32> to vector<8x64xbf16>
    %c0_26 = arith.constant 0 : index
    %c0_27 = arith.constant 0 : index
    %78 = vector.load %arg8[%c0_26, %c0_27] : memref<64x192xbf16, #tpu.memory_space<vmem>>, vector<64x192xbf16>
    %cst_28 = arith.constant dense<0.000000e+00> : vector<8x192xf32>
    %79 = tpu.matmul %77, %78, %cst_28 {dimension_numbers = #tpu.dot_dimension_numbers<[1], [0], [0], [1], [0, 0, 1, 1], [], []>} : vector<8x64xbf16>, vector<64x192xbf16>, vector<8x192xf32> -> vector<8x192xf32>
    %c0_29 = arith.constant 0 : index
    %c0_30 = arith.constant 0 : index
    %80 = vector.load %arg9[%c0_29, %c0_30] : memref<1x192xbf16, #tpu.memory_space<vmem>>, vector<1x192xbf16>
    %81 = arith.extf %80 : vector<1x192xbf16> to vector<1x192xf32>
    %82 = vector.broadcast %81 : vector<1x192xf32> to vector<8x192xf32>
    %83 = arith.addf %79, %82 : vector<8x192xf32>
    %c0_31 = arith.constant 0 : index
    %c0_32 = arith.constant 0 : index
    %c0_33 = arith.constant 0 : index
    %84 = vector.load %arg3[%c0_31, %c0_32, %c0_33] : memref<3x24x32xbf16, #tpu.memory_space<vmem>>, vector<1x24x32xbf16>
    %85 = vector.shape_cast %84 : vector<1x24x32xbf16> to vector<24x32xbf16>
    %86 = arith.extf %85 : vector<24x32xbf16> to vector<24x32xf32>
    %c1 = arith.constant 1 : index
    %c0_34 = arith.constant 0 : index
    %c0_35 = arith.constant 0 : index
    %87 = vector.load %arg3[%c1, %c0_34, %c0_35] : memref<3x24x32xbf16, #tpu.memory_space<vmem>>, vector<1x24x32xbf16>
    %88 = vector.shape_cast %87 : vector<1x24x32xbf16> to vector<24x32xbf16>
    %89 = arith.extf %88 : vector<24x32xbf16> to vector<24x32xf32>
    %c2 = arith.constant 2 : index
    %c0_36 = arith.constant 0 : index
    %c0_37 = arith.constant 0 : index
    %90 = vector.load %arg3[%c2, %c0_36, %c0_37] : memref<3x24x32xbf16, #tpu.memory_space<vmem>>, vector<1x24x32xbf16>
    %91 = vector.shape_cast %90 : vector<1x24x32xbf16> to vector<24x32xbf16>
    %92 = arith.extf %91 : vector<24x32xbf16> to vector<24x32xf32>
    %c0_38 = arith.constant 0 : index
    %c0_39 = arith.constant 0 : index
    %c0_40 = arith.constant 0 : index
    %93 = vector.load %arg10[%c0_38, %c0_39, %c0_40] : memref<4x1x32xbf16, #tpu.memory_space<vmem>>, vector<1x1x32xbf16>
    %94 = vector.shape_cast %93 : vector<1x1x32xbf16> to vector<1x32xbf16>
    %95 = arith.extf %94 : vector<1x32xbf16> to vector<1x32xf32>
    %c1_41 = arith.constant 1 : index
    %c0_42 = arith.constant 0 : index
    %c0_43 = arith.constant 0 : index
    %96 = vector.load %arg10[%c1_41, %c0_42, %c0_43] : memref<4x1x32xbf16, #tpu.memory_space<vmem>>, vector<1x1x32xbf16>
    %97 = vector.shape_cast %96 : vector<1x1x32xbf16> to vector<1x32xbf16>
    %98 = arith.extf %97 : vector<1x32xbf16> to vector<1x32xf32>
    %c2_44 = arith.constant 2 : index
    %c0_45 = arith.constant 0 : index
    %c0_46 = arith.constant 0 : index
    %99 = vector.load %arg10[%c2_44, %c0_45, %c0_46] : memref<4x1x32xbf16, #tpu.memory_space<vmem>>, vector<1x1x32xbf16>
    %100 = vector.shape_cast %99 : vector<1x1x32xbf16> to vector<1x32xbf16>
    %101 = arith.extf %100 : vector<1x32xbf16> to vector<1x32xf32>
    %c3 = arith.constant 3 : index
    %c0_47 = arith.constant 0 : index
    %c0_48 = arith.constant 0 : index
    %102 = vector.load %arg10[%c3, %c0_47, %c0_48] : memref<4x1x32xbf16, #tpu.memory_space<vmem>>, vector<1x1x32xbf16>
    %103 = vector.shape_cast %102 : vector<1x1x32xbf16> to vector<1x32xbf16>
    %104 = arith.extf %103 : vector<1x32xbf16> to vector<1x32xf32>
    %105 = vector.extract_strided_slice %83 {offsets = [0, 0], sizes = [8, 32], strides = [1, 1]} : vector<8x192xf32> to vector<8x32xf32>
    %106 = arith.mulf %105, %105 : vector<8x32xf32>
    %cst_49 = arith.constant dense<0.000000e+00> : vector<8xf32>
    %107 = vector.multi_reduction <add>, %106, %cst_49 [1] : vector<8x32xf32> to vector<8xf32>
    %108 = vector.shape_cast %107 : vector<8xf32> to vector<8x1xf32>
    %cst_50 = arith.constant 3.200000e+01 : f32
    %109 = vector.broadcast %cst_50 : f32 to vector<8x1xf32>
    %110 = arith.divf %108, %109 : vector<8x1xf32>
    %cst_51 = arith.constant 9.99999997E-7 : f32
    %111 = vector.broadcast %cst_51 : f32 to vector<8x1xf32>
    %112 = arith.addf %110, %111 : vector<8x1xf32>
    %113 = math.rsqrt %112 : vector<8x1xf32>
    %114 = vector.broadcast %113 : vector<8x1xf32> to vector<8x32xf32>
    %115 = arith.mulf %105, %114 : vector<8x32xf32>
    %116 = vector.broadcast %101 : vector<1x32xf32> to vector<8x32xf32>
    %117 = arith.mulf %115, %116 : vector<8x32xf32>
    %118 = vector.extract_strided_slice %76 {offsets = [0, 0], sizes = [16, 32], strides = [1, 1]} : vector<16x192xf32> to vector<16x32xf32>
    %119 = arith.mulf %118, %118 : vector<16x32xf32>
    %cst_52 = arith.constant dense<0.000000e+00> : vector<16xf32>
    %120 = vector.multi_reduction <add>, %119, %cst_52 [1] : vector<16x32xf32> to vector<16xf32>
    %121 = vector.shape_cast %120 : vector<16xf32> to vector<16x1xf32>
    %cst_53 = arith.constant 3.200000e+01 : f32
    %122 = vector.broadcast %cst_53 : f32 to vector<16x1xf32>
    %123 = arith.divf %121, %122 : vector<16x1xf32>
    %cst_54 = arith.constant 9.99999997E-7 : f32
    %124 = vector.broadcast %cst_54 : f32 to vector<16x1xf32>
    %125 = arith.addf %123, %124 : vector<16x1xf32>
    %126 = math.rsqrt %125 : vector<16x1xf32>
    %127 = vector.broadcast %126 : vector<16x1xf32> to vector<16x32xf32>
    %128 = arith.mulf %118, %127 : vector<16x32xf32>
    %129 = vector.broadcast %95 : vector<1x32xf32> to vector<16x32xf32>
    %130 = arith.mulf %128, %129 : vector<16x32xf32>
    %131 = tpu.concatenate %117, %130 in 0 : vector<8x32xf32>, vector<16x32xf32> -> vector<24x32xf32>
    %132 = vector.extract_strided_slice %83 {offsets = [0, 64], sizes = [8, 32], strides = [1, 1]} : vector<8x192xf32> to vector<8x32xf32>
    %133 = arith.mulf %132, %132 : vector<8x32xf32>
    %cst_55 = arith.constant dense<0.000000e+00> : vector<8xf32>
    %134 = vector.multi_reduction <add>, %133, %cst_55 [1] : vector<8x32xf32> to vector<8xf32>
    %135 = vector.shape_cast %134 : vector<8xf32> to vector<8x1xf32>
    %cst_56 = arith.constant 3.200000e+01 : f32
    %136 = vector.broadcast %cst_56 : f32 to vector<8x1xf32>
    %137 = arith.divf %135, %136 : vector<8x1xf32>
    %cst_57 = arith.constant 9.99999997E-7 : f32
    %138 = vector.broadcast %cst_57 : f32 to vector<8x1xf32>
    %139 = arith.addf %137, %138 : vector<8x1xf32>
    %140 = math.rsqrt %139 : vector<8x1xf32>
    %141 = vector.broadcast %140 : vector<8x1xf32> to vector<8x32xf32>
    %142 = arith.mulf %132, %141 : vector<8x32xf32>
    %143 = vector.broadcast %104 : vector<1x32xf32> to vector<8x32xf32>
    %144 = arith.mulf %142, %143 : vector<8x32xf32>
    %145 = vector.extract_strided_slice %76 {offsets = [0, 64], sizes = [16, 32], strides = [1, 1]} : vector<16x192xf32> to vector<16x32xf32>
    %146 = arith.mulf %145, %145 : vector<16x32xf32>
    %cst_58 = arith.constant dense<0.000000e+00> : vector<16xf32>
    %147 = vector.multi_reduction <add>, %146, %cst_58 [1] : vector<16x32xf32> to vector<16xf32>
    %148 = vector.shape_cast %147 : vector<16xf32> to vector<16x1xf32>
    %cst_59 = arith.constant 3.200000e+01 : f32
    %149 = vector.broadcast %cst_59 : f32 to vector<16x1xf32>
    %150 = arith.divf %148, %149 : vector<16x1xf32>
    %cst_60 = arith.constant 9.99999997E-7 : f32
    %151 = vector.broadcast %cst_60 : f32 to vector<16x1xf32>
    %152 = arith.addf %150, %151 : vector<16x1xf32>
    %153 = math.rsqrt %152 : vector<16x1xf32>
    %154 = vector.broadcast %153 : vector<16x1xf32> to vector<16x32xf32>
    %155 = arith.mulf %145, %154 : vector<16x32xf32>
    %156 = vector.broadcast %98 : vector<1x32xf32> to vector<16x32xf32>
    %157 = arith.mulf %155, %156 : vector<16x32xf32>
    %158 = tpu.concatenate %144, %157 in 0 : vector<8x32xf32>, vector<16x32xf32> -> vector<24x32xf32>
    %159 = vector.extract_strided_slice %83 {offsets = [0, 128], sizes = [8, 32], strides = [1, 1]} : vector<8x192xf32> to vector<8x32xf32>
    %160 = vector.extract_strided_slice %76 {offsets = [0, 128], sizes = [16, 32], strides = [1, 1]} : vector<16x192xf32> to vector<16x32xf32>
    %161 = tpu.concatenate %159, %160 in 0 : vector<8x32xf32>, vector<16x32xf32> -> vector<24x32xf32>
    %162 = arith.mulf %131, %86 : vector<24x32xf32>
    %163 = vector.extract_strided_slice %131 {offsets = [0, 1], sizes = [24, 31], strides = [1, 1]} : vector<24x32xf32> to vector<24x31xf32>
    %164 = vector.extract_strided_slice %131 {offsets = [0, 0], sizes = [24, 1], strides = [1, 1]} : vector<24x32xf32> to vector<24x1xf32>
    %165 = tpu.concatenate %163, %164 in 1 : vector<24x31xf32>, vector<24x1xf32> -> vector<24x32xf32>
    %166 = arith.mulf %165, %89 : vector<24x32xf32>
    %167 = arith.addf %162, %166 : vector<24x32xf32>
    %168 = vector.extract_strided_slice %131 {offsets = [0, 31], sizes = [24, 1], strides = [1, 1]} : vector<24x32xf32> to vector<24x1xf32>
    %169 = vector.extract_strided_slice %131 {offsets = [0, 0], sizes = [24, 31], strides = [1, 1]} : vector<24x32xf32> to vector<24x31xf32>
    %170 = tpu.concatenate %168, %169 in 1 : vector<24x1xf32>, vector<24x31xf32> -> vector<24x32xf32>
    %171 = arith.mulf %170, %92 : vector<24x32xf32>
    %172 = arith.addf %167, %171 : vector<24x32xf32>
    %173 = arith.mulf %158, %86 : vector<24x32xf32>
    %174 = vector.extract_strided_slice %158 {offsets = [0, 1], sizes = [24, 31], strides = [1, 1]} : vector<24x32xf32> to vector<24x31xf32>
    %175 = vector.extract_strided_slice %158 {offsets = [0, 0], sizes = [24, 1], strides = [1, 1]} : vector<24x32xf32> to vector<24x1xf32>
    %176 = tpu.concatenate %174, %175 in 1 : vector<24x31xf32>, vector<24x1xf32> -> vector<24x32xf32>
    %177 = arith.mulf %176, %89 : vector<24x32xf32>
    %178 = arith.addf %173, %177 : vector<24x32xf32>
    %179 = vector.extract_strided_slice %158 {offsets = [0, 31], sizes = [24, 1], strides = [1, 1]} : vector<24x32xf32> to vector<24x1xf32>
    %180 = vector.extract_strided_slice %158 {offsets = [0, 0], sizes = [24, 31], strides = [1, 1]} : vector<24x32xf32> to vector<24x31xf32>
    %181 = tpu.concatenate %179, %180 in 1 : vector<24x1xf32>, vector<24x31xf32> -> vector<24x32xf32>
    %182 = arith.mulf %181, %92 : vector<24x32xf32>
    %183 = arith.addf %178, %182 : vector<24x32xf32>
    %184 = arith.truncf %172 : vector<24x32xf32> to vector<24x32xbf16>
    %185 = arith.truncf %183 : vector<24x32xf32> to vector<24x32xbf16>
    %cst_61 = arith.constant dense<0.000000e+00> : vector<24x24xf32>
    %186 = tpu.matmul %184, %185, %cst_61 {dimension_numbers = #tpu.dot_dimension_numbers<[1], [1], [0], [0], [0, 0, 1, 0], [], []>} : vector<24x32xbf16>, vector<24x32xbf16>, vector<24x24xf32> -> vector<24x24xf32>
    %cst_62 = arith.constant 0.176776692 : f32
    %187 = vector.broadcast %cst_62 : f32 to vector<24x24xf32>
    %188 = arith.mulf %186, %187 : vector<24x24xf32>
    %cst_63 = arith.constant dense<0xFF800000> : vector<24xf32>
    %189 = vector.multi_reduction <maximumf>, %188, %cst_63 [1] : vector<24x24xf32> to vector<24xf32>
    %190 = vector.shape_cast %189 : vector<24xf32> to vector<24x1xf32>
    %191 = vector.broadcast %190 : vector<24x1xf32> to vector<24x24xf32>
    %192 = arith.subf %188, %191 : vector<24x24xf32>
    %193 = math.exp %192 : vector<24x24xf32>
    %cst_64 = arith.constant dense<0.000000e+00> : vector<24xf32>
    %194 = vector.multi_reduction <add>, %193, %cst_64 [1] : vector<24x24xf32> to vector<24xf32>
    %195 = vector.shape_cast %194 : vector<24xf32> to vector<24x1xf32>
    %196 = tpu.reciprocal %195 {approx = true} : vector<24x1xf32> -> vector<24x1xf32>
    %197 = arith.truncf %193 : vector<24x24xf32> to vector<24x24xbf16>
    %198 = arith.truncf %161 : vector<24x32xf32> to vector<24x32xbf16>
    %cst_65 = arith.constant dense<0.000000e+00> : vector<24x32xf32>
    %199 = tpu.matmul %197, %198, %cst_65 {dimension_numbers = #tpu.dot_dimension_numbers<[1], [0], [0], [1], [0, 0, 1, 1], [], []>} : vector<24x24xbf16>, vector<24x32xbf16>, vector<24x32xf32> -> vector<24x32xf32>
    %200 = vector.broadcast %196 : vector<24x1xf32> to vector<24x32xf32>
    %201 = arith.mulf %199, %200 : vector<24x32xf32>
    %202 = vector.extract_strided_slice %83 {offsets = [0, 32], sizes = [8, 32], strides = [1, 1]} : vector<8x192xf32> to vector<8x32xf32>
    %203 = arith.mulf %202, %202 : vector<8x32xf32>
    %cst_66 = arith.constant dense<0.000000e+00> : vector<8xf32>
    %204 = vector.multi_reduction <add>, %203, %cst_66 [1] : vector<8x32xf32> to vector<8xf32>
    %205 = vector.shape_cast %204 : vector<8xf32> to vector<8x1xf32>
    %cst_67 = arith.constant 3.200000e+01 : f32
    %206 = vector.broadcast %cst_67 : f32 to vector<8x1xf32>
    %207 = arith.divf %205, %206 : vector<8x1xf32>
    %cst_68 = arith.constant 9.99999997E-7 : f32
    %208 = vector.broadcast %cst_68 : f32 to vector<8x1xf32>
    %209 = arith.addf %207, %208 : vector<8x1xf32>
    %210 = math.rsqrt %209 : vector<8x1xf32>
    %211 = vector.broadcast %210 : vector<8x1xf32> to vector<8x32xf32>
    %212 = arith.mulf %202, %211 : vector<8x32xf32>
    %213 = vector.broadcast %101 : vector<1x32xf32> to vector<8x32xf32>
    %214 = arith.mulf %212, %213 : vector<8x32xf32>
    %215 = vector.extract_strided_slice %76 {offsets = [0, 32], sizes = [16, 32], strides = [1, 1]} : vector<16x192xf32> to vector<16x32xf32>
    %216 = arith.mulf %215, %215 : vector<16x32xf32>
    %cst_69 = arith.constant dense<0.000000e+00> : vector<16xf32>
    %217 = vector.multi_reduction <add>, %216, %cst_69 [1] : vector<16x32xf32> to vector<16xf32>
    %218 = vector.shape_cast %217 : vector<16xf32> to vector<16x1xf32>
    %cst_70 = arith.constant 3.200000e+01 : f32
    %219 = vector.broadcast %cst_70 : f32 to vector<16x1xf32>
    %220 = arith.divf %218, %219 : vector<16x1xf32>
    %cst_71 = arith.constant 9.99999997E-7 : f32
    %221 = vector.broadcast %cst_71 : f32 to vector<16x1xf32>
    %222 = arith.addf %220, %221 : vector<16x1xf32>
    %223 = math.rsqrt %222 : vector<16x1xf32>
    %224 = vector.broadcast %223 : vector<16x1xf32> to vector<16x32xf32>
    %225 = arith.mulf %215, %224 : vector<16x32xf32>
    %226 = vector.broadcast %95 : vector<1x32xf32> to vector<16x32xf32>
    %227 = arith.mulf %225, %226 : vector<16x32xf32>
    %228 = tpu.concatenate %214, %227 in 0 : vector<8x32xf32>, vector<16x32xf32> -> vector<24x32xf32>
    %229 = vector.extract_strided_slice %83 {offsets = [0, 96], sizes = [8, 32], strides = [1, 1]} : vector<8x192xf32> to vector<8x32xf32>
    %230 = arith.mulf %229, %229 : vector<8x32xf32>
    %cst_72 = arith.constant dense<0.000000e+00> : vector<8xf32>
    %231 = vector.multi_reduction <add>, %230, %cst_72 [1] : vector<8x32xf32> to vector<8xf32>
    %232 = vector.shape_cast %231 : vector<8xf32> to vector<8x1xf32>
    %cst_73 = arith.constant 3.200000e+01 : f32
    %233 = vector.broadcast %cst_73 : f32 to vector<8x1xf32>
    %234 = arith.divf %232, %233 : vector<8x1xf32>
    %cst_74 = arith.constant 9.99999997E-7 : f32
    %235 = vector.broadcast %cst_74 : f32 to vector<8x1xf32>
    %236 = arith.addf %234, %235 : vector<8x1xf32>
    %237 = math.rsqrt %236 : vector<8x1xf32>
    %238 = vector.broadcast %237 : vector<8x1xf32> to vector<8x32xf32>
    %239 = arith.mulf %229, %238 : vector<8x32xf32>
    %240 = vector.broadcast %104 : vector<1x32xf32> to vector<8x32xf32>
    %241 = arith.mulf %239, %240 : vector<8x32xf32>
    %242 = vector.extract_strided_slice %76 {offsets = [0, 96], sizes = [16, 32], strides = [1, 1]} : vector<16x192xf32> to vector<16x32xf32>
    %243 = arith.mulf %242, %242 : vector<16x32xf32>
    %cst_75 = arith.constant dense<0.000000e+00> : vector<16xf32>
    %244 = vector.multi_reduction <add>, %243, %cst_75 [1] : vector<16x32xf32> to vector<16xf32>
    %245 = vector.shape_cast %244 : vector<16xf32> to vector<16x1xf32>
    %cst_76 = arith.constant 3.200000e+01 : f32
    %246 = vector.broadcast %cst_76 : f32 to vector<16x1xf32>
    %247 = arith.divf %245, %246 : vector<16x1xf32>
    %cst_77 = arith.constant 9.99999997E-7 : f32
    %248 = vector.broadcast %cst_77 : f32 to vector<16x1xf32>
    %249 = arith.addf %247, %248 : vector<16x1xf32>
    %250 = math.rsqrt %249 : vector<16x1xf32>
    %251 = vector.broadcast %250 : vector<16x1xf32> to vector<16x32xf32>
    %252 = arith.mulf %242, %251 : vector<16x32xf32>
    %253 = vector.broadcast %98 : vector<1x32xf32> to vector<16x32xf32>
    %254 = arith.mulf %252, %253 : vector<16x32xf32>
    %255 = tpu.concatenate %241, %254 in 0 : vector<8x32xf32>, vector<16x32xf32> -> vector<24x32xf32>
    %256 = vector.extract_strided_slice %83 {offsets = [0, 160], sizes = [8, 32], strides = [1, 1]} : vector<8x192xf32> to vector<8x32xf32>
    %257 = vector.extract_strided_slice %76 {offsets = [0, 160], sizes = [16, 32], strides = [1, 1]} : vector<16x192xf32> to vector<16x32xf32>
    %258 = tpu.concatenate %256, %257 in 0 : vector<8x32xf32>, vector<16x32xf32> -> vector<24x32xf32>
    %259 = arith.mulf %228, %86 : vector<24x32xf32>
    %260 = vector.extract_strided_slice %228 {offsets = [0, 1], sizes = [24, 31], strides = [1, 1]} : vector<24x32xf32> to vector<24x31xf32>
    %261 = vector.extract_strided_slice %228 {offsets = [0, 0], sizes = [24, 1], strides = [1, 1]} : vector<24x32xf32> to vector<24x1xf32>
    %262 = tpu.concatenate %260, %261 in 1 : vector<24x31xf32>, vector<24x1xf32> -> vector<24x32xf32>
    %263 = arith.mulf %262, %89 : vector<24x32xf32>
    %264 = arith.addf %259, %263 : vector<24x32xf32>
    %265 = vector.extract_strided_slice %228 {offsets = [0, 31], sizes = [24, 1], strides = [1, 1]} : vector<24x32xf32> to vector<24x1xf32>
    %266 = vector.extract_strided_slice %228 {offsets = [0, 0], sizes = [24, 31], strides = [1, 1]} : vector<24x32xf32> to vector<24x31xf32>
    %267 = tpu.concatenate %265, %266 in 1 : vector<24x1xf32>, vector<24x31xf32> -> vector<24x32xf32>
    %268 = arith.mulf %267, %92 : vector<24x32xf32>
    %269 = arith.addf %264, %268 : vector<24x32xf32>
    %270 = arith.mulf %255, %86 : vector<24x32xf32>
    %271 = vector.extract_strided_slice %255 {offsets = [0, 1], sizes = [24, 31], strides = [1, 1]} : vector<24x32xf32> to vector<24x31xf32>
    %272 = vector.extract_strided_slice %255 {offsets = [0, 0], sizes = [24, 1], strides = [1, 1]} : vector<24x32xf32> to vector<24x1xf32>
    %273 = tpu.concatenate %271, %272 in 1 : vector<24x31xf32>, vector<24x1xf32> -> vector<24x32xf32>
    %274 = arith.mulf %273, %89 : vector<24x32xf32>
    %275 = arith.addf %270, %274 : vector<24x32xf32>
    %276 = vector.extract_strided_slice %255 {offsets = [0, 31], sizes = [24, 1], strides = [1, 1]} : vector<24x32xf32> to vector<24x1xf32>
    %277 = vector.extract_strided_slice %255 {offsets = [0, 0], sizes = [24, 31], strides = [1, 1]} : vector<24x32xf32> to vector<24x31xf32>
    %278 = tpu.concatenate %276, %277 in 1 : vector<24x1xf32>, vector<24x31xf32> -> vector<24x32xf32>
    %279 = arith.mulf %278, %92 : vector<24x32xf32>
    %280 = arith.addf %275, %279 : vector<24x32xf32>
    %281 = arith.truncf %269 : vector<24x32xf32> to vector<24x32xbf16>
    %282 = arith.truncf %280 : vector<24x32xf32> to vector<24x32xbf16>
    %cst_78 = arith.constant dense<0.000000e+00> : vector<24x24xf32>
    %283 = tpu.matmul %281, %282, %cst_78 {dimension_numbers = #tpu.dot_dimension_numbers<[1], [1], [0], [0], [0, 0, 1, 0], [], []>} : vector<24x32xbf16>, vector<24x32xbf16>, vector<24x24xf32> -> vector<24x24xf32>
    %cst_79 = arith.constant 0.176776692 : f32
    %284 = vector.broadcast %cst_79 : f32 to vector<24x24xf32>
    %285 = arith.mulf %283, %284 : vector<24x24xf32>
    %cst_80 = arith.constant dense<0xFF800000> : vector<24xf32>
    %286 = vector.multi_reduction <maximumf>, %285, %cst_80 [1] : vector<24x24xf32> to vector<24xf32>
    %287 = vector.shape_cast %286 : vector<24xf32> to vector<24x1xf32>
    %288 = vector.broadcast %287 : vector<24x1xf32> to vector<24x24xf32>
    %289 = arith.subf %285, %288 : vector<24x24xf32>
    %290 = math.exp %289 : vector<24x24xf32>
    %cst_81 = arith.constant dense<0.000000e+00> : vector<24xf32>
    %291 = vector.multi_reduction <add>, %290, %cst_81 [1] : vector<24x24xf32> to vector<24xf32>
    %292 = vector.shape_cast %291 : vector<24xf32> to vector<24x1xf32>
    %293 = tpu.reciprocal %292 {approx = true} : vector<24x1xf32> -> vector<24x1xf32>
    %294 = arith.truncf %290 : vector<24x24xf32> to vector<24x24xbf16>
    %295 = arith.truncf %258 : vector<24x32xf32> to vector<24x32xbf16>
    %cst_82 = arith.constant dense<0.000000e+00> : vector<24x32xf32>
    %296 = tpu.matmul %294, %295, %cst_82 {dimension_numbers = #tpu.dot_dimension_numbers<[1], [0], [0], [1], [0, 0, 1, 1], [], []>} : vector<24x24xbf16>, vector<24x32xbf16>, vector<24x32xf32> -> vector<24x32xf32>
    %297 = vector.broadcast %293 : vector<24x1xf32> to vector<24x32xf32>
    %298 = arith.mulf %296, %297 : vector<24x32xf32>
    %299 = tpu.concatenate %201, %298 in 1 : vector<24x32xf32>, vector<24x32xf32> -> vector<24x64xf32>
    %300 = vector.extract_strided_slice %299 {offsets = [8, 0], sizes = [16, 64], strides = [1, 1]} : vector<24x64xf32> to vector<16x64xf32>
    %301 = arith.truncf %300 : vector<16x64xf32> to vector<16x64xbf16>
    %c0_83 = arith.constant 0 : index
    %c0_84 = arith.constant 0 : index
    %302 = vector.load %arg11[%c0_83, %c0_84] : memref<64x64xbf16, #tpu.memory_space<vmem>>, vector<64x64xbf16>
    %cst_85 = arith.constant dense<0.000000e+00> : vector<16x64xf32>
    %303 = tpu.matmul %301, %302, %cst_85 {dimension_numbers = #tpu.dot_dimension_numbers<[1], [0], [0], [1], [0, 0, 1, 1], [], []>} : vector<16x64xbf16>, vector<64x64xbf16>, vector<16x64xf32> -> vector<16x64xf32>
    %c0_86 = arith.constant 0 : index
    %c0_87 = arith.constant 0 : index
    %304 = vector.load %arg12[%c0_86, %c0_87] : memref<1x64xbf16, #tpu.memory_space<vmem>>, vector<1x64xbf16>
    %305 = arith.extf %304 : vector<1x64xbf16> to vector<1x64xf32>
    %306 = vector.broadcast %305 : vector<1x64xf32> to vector<16x64xf32>
    %307 = arith.addf %303, %306 : vector<16x64xf32>
    %308 = vector.extract_strided_slice %299 {offsets = [0, 0], sizes = [8, 64], strides = [1, 1]} : vector<24x64xf32> to vector<8x64xf32>
    %309 = arith.truncf %308 : vector<8x64xf32> to vector<8x64xbf16>
    %c0_88 = arith.constant 0 : index
    %c0_89 = arith.constant 0 : index
    %310 = vector.load %arg13[%c0_88, %c0_89] : memref<64x64xbf16, #tpu.memory_space<vmem>>, vector<64x64xbf16>
    %cst_90 = arith.constant dense<0.000000e+00> : vector<8x64xf32>
    %311 = tpu.matmul %309, %310, %cst_90 {dimension_numbers = #tpu.dot_dimension_numbers<[1], [0], [0], [1], [0, 0, 1, 1], [], []>} : vector<8x64xbf16>, vector<64x64xbf16>, vector<8x64xf32> -> vector<8x64xf32>
    %c0_91 = arith.constant 0 : index
    %c0_92 = arith.constant 0 : index
    %312 = vector.load %arg14[%c0_91, %c0_92] : memref<1x64xbf16, #tpu.memory_space<vmem>>, vector<1x64xbf16>
    %313 = arith.extf %312 : vector<1x64xbf16> to vector<1x64xf32>
    %314 = vector.broadcast %313 : vector<1x64xf32> to vector<8x64xf32>
    %315 = arith.addf %311, %314 : vector<8x64xf32>
    %316 = vector.broadcast %16 : vector<1x64xf32> to vector<16x64xf32>
    %317 = arith.mulf %316, %307 : vector<16x64xf32>
    %318 = arith.addf %4, %317 : vector<16x64xf32>
    %cst_93 = arith.constant dense<0.000000e+00> : vector<16xf32>
    %319 = vector.multi_reduction <add>, %318, %cst_93 [1] : vector<16x64xf32> to vector<16xf32>
    %320 = vector.shape_cast %319 : vector<16xf32> to vector<16x1xf32>
    %cst_94 = arith.constant 6.400000e+01 : f32
    %321 = vector.broadcast %cst_94 : f32 to vector<16x1xf32>
    %322 = arith.divf %320, %321 : vector<16x1xf32>
    %323 = vector.broadcast %322 : vector<16x1xf32> to vector<16x64xf32>
    %324 = arith.subf %318, %323 : vector<16x64xf32>
    %325 = arith.mulf %324, %324 : vector<16x64xf32>
    %cst_95 = arith.constant dense<0.000000e+00> : vector<16xf32>
    %326 = vector.multi_reduction <add>, %325, %cst_95 [1] : vector<16x64xf32> to vector<16xf32>
    %327 = vector.shape_cast %326 : vector<16xf32> to vector<16x1xf32>
    %cst_96 = arith.constant 6.400000e+01 : f32
    %328 = vector.broadcast %cst_96 : f32 to vector<16x1xf32>
    %329 = arith.divf %327, %328 : vector<16x1xf32>
    %cst_97 = arith.constant 9.99999997E-7 : f32
    %330 = vector.broadcast %cst_97 : f32 to vector<16x1xf32>
    %331 = arith.addf %329, %330 : vector<16x1xf32>
    %332 = math.rsqrt %331 : vector<16x1xf32>
    %333 = vector.broadcast %332 : vector<16x1xf32> to vector<16x64xf32>
    %334 = arith.mulf %324, %333 : vector<16x64xf32>
    %cst_98 = arith.constant 1.000000e+00 : f32
    %335 = vector.broadcast %cst_98 : f32 to vector<1x64xf32>
    %336 = arith.addf %335, %18 : vector<1x64xf32>
    %337 = vector.broadcast %336 : vector<1x64xf32> to vector<16x64xf32>
    %338 = arith.mulf %334, %337 : vector<16x64xf32>
    %339 = vector.broadcast %17 : vector<1x64xf32> to vector<16x64xf32>
    %340 = arith.addf %338, %339 : vector<16x64xf32>
    %341 = arith.truncf %340 : vector<16x64xf32> to vector<16x64xbf16>
    %c0_99 = arith.constant 0 : index
    %c0_100 = arith.constant 0 : index
    %342 = vector.load %arg15[%c0_99, %c0_100] : memref<64x256xbf16, #tpu.memory_space<vmem>>, vector<64x256xbf16>
    %cst_101 = arith.constant dense<0.000000e+00> : vector<16x256xf32>
    %343 = tpu.matmul %341, %342, %cst_101 {dimension_numbers = #tpu.dot_dimension_numbers<[1], [0], [0], [1], [0, 0, 1, 1], [], []>} : vector<16x64xbf16>, vector<64x256xbf16>, vector<16x256xf32> -> vector<16x256xf32>
    %c0_102 = arith.constant 0 : index
    %c0_103 = arith.constant 0 : index
    %344 = vector.load %arg16[%c0_102, %c0_103] : memref<1x256xbf16, #tpu.memory_space<vmem>>, vector<1x256xbf16>
    %345 = arith.extf %344 : vector<1x256xbf16> to vector<1x256xf32>
    %346 = vector.broadcast %345 : vector<1x256xf32> to vector<16x256xf32>
    %347 = arith.addf %343, %346 : vector<16x256xf32>
    %cst_104 = arith.constant 5.000000e-01 : f32
    %348 = vector.broadcast %cst_104 : f32 to vector<16x256xf32>
    %349 = arith.mulf %348, %347 : vector<16x256xf32>
    %cst_105 = arith.constant 4.471500e-02 : f32
    %350 = vector.broadcast %cst_105 : f32 to vector<16x256xf32>
    %351 = arith.mulf %350, %347 : vector<16x256xf32>
    %352 = arith.mulf %351, %347 : vector<16x256xf32>
    %353 = arith.mulf %352, %347 : vector<16x256xf32>
    %354 = arith.addf %347, %353 : vector<16x256xf32>
    %cst_106 = arith.constant 0.797884583 : f32
    %355 = vector.broadcast %cst_106 : f32 to vector<16x256xf32>
    %356 = arith.mulf %355, %354 : vector<16x256xf32>
    %357 = math.tanh %356 : vector<16x256xf32>
    %cst_107 = arith.constant 1.000000e+00 : f32
    %358 = vector.broadcast %cst_107 : f32 to vector<16x256xf32>
    %359 = arith.addf %358, %357 : vector<16x256xf32>
    %360 = arith.mulf %349, %359 : vector<16x256xf32>
    %361 = arith.truncf %360 : vector<16x256xf32> to vector<16x256xbf16>
    %c0_108 = arith.constant 0 : index
    %c0_109 = arith.constant 0 : index
    %362 = vector.load %arg17[%c0_108, %c0_109] : memref<256x64xbf16, #tpu.memory_space<vmem>>, vector<256x64xbf16>
    %cst_110 = arith.constant dense<0.000000e+00> : vector<16x64xf32>
    %363 = tpu.matmul %361, %362, %cst_110 {dimension_numbers = #tpu.dot_dimension_numbers<[1], [0], [0], [1], [0, 0, 1, 1], [], []>} : vector<16x256xbf16>, vector<256x64xbf16>, vector<16x64xf32> -> vector<16x64xf32>
    %c0_111 = arith.constant 0 : index
    %c0_112 = arith.constant 0 : index
    %364 = vector.load %arg18[%c0_111, %c0_112] : memref<1x64xbf16, #tpu.memory_space<vmem>>, vector<1x64xbf16>
    %365 = arith.extf %364 : vector<1x64xbf16> to vector<1x64xf32>
    %366 = vector.broadcast %365 : vector<1x64xf32> to vector<16x64xf32>
    %367 = arith.addf %363, %366 : vector<16x64xf32>
    %368 = vector.broadcast %19 : vector<1x64xf32> to vector<16x64xf32>
    %369 = arith.mulf %368, %367 : vector<16x64xf32>
    %370 = arith.addf %318, %369 : vector<16x64xf32>
    %371 = vector.broadcast %22 : vector<1x64xf32> to vector<8x64xf32>
    %372 = arith.mulf %371, %315 : vector<8x64xf32>
    %373 = arith.addf %3, %372 : vector<8x64xf32>
    %cst_113 = arith.constant dense<0.000000e+00> : vector<8xf32>
    %374 = vector.multi_reduction <add>, %373, %cst_113 [1] : vector<8x64xf32> to vector<8xf32>
    %375 = vector.shape_cast %374 : vector<8xf32> to vector<8x1xf32>
    %cst_114 = arith.constant 6.400000e+01 : f32
    %376 = vector.broadcast %cst_114 : f32 to vector<8x1xf32>
    %377 = arith.divf %375, %376 : vector<8x1xf32>
    %378 = vector.broadcast %377 : vector<8x1xf32> to vector<8x64xf32>
    %379 = arith.subf %373, %378 : vector<8x64xf32>
    %380 = arith.mulf %379, %379 : vector<8x64xf32>
    %cst_115 = arith.constant dense<0.000000e+00> : vector<8xf32>
    %381 = vector.multi_reduction <add>, %380, %cst_115 [1] : vector<8x64xf32> to vector<8xf32>
    %382 = vector.shape_cast %381 : vector<8xf32> to vector<8x1xf32>
    %cst_116 = arith.constant 6.400000e+01 : f32
    %383 = vector.broadcast %cst_116 : f32 to vector<8x1xf32>
    %384 = arith.divf %382, %383 : vector<8x1xf32>
    %cst_117 = arith.constant 9.99999997E-7 : f32
    %385 = vector.broadcast %cst_117 : f32 to vector<8x1xf32>
    %386 = arith.addf %384, %385 : vector<8x1xf32>
    %387 = math.rsqrt %386 : vector<8x1xf32>
    %388 = vector.broadcast %387 : vector<8x1xf32> to vector<8x64xf32>
    %389 = arith.mulf %379, %388 : vector<8x64xf32>
    %cst_118 = arith.constant 1.000000e+00 : f32
    %390 = vector.broadcast %cst_118 : f32 to vector<1x64xf32>
    %391 = arith.addf %390, %24 : vector<1x64xf32>
    %392 = vector.broadcast %391 : vector<1x64xf32> to vector<8x64xf32>
    %393 = arith.mulf %389, %392 : vector<8x64xf32>
    %394 = vector.broadcast %23 : vector<1x64xf32> to vector<8x64xf32>
    %395 = arith.addf %393, %394 : vector<8x64xf32>
    %396 = arith.truncf %395 : vector<8x64xf32> to vector<8x64xbf16>
    %c0_119 = arith.constant 0 : index
    %c0_120 = arith.constant 0 : index
    %397 = vector.load %arg19[%c0_119, %c0_120] : memref<64x256xbf16, #tpu.memory_space<vmem>>, vector<64x256xbf16>
    %cst_121 = arith.constant dense<0.000000e+00> : vector<8x256xf32>
    %398 = tpu.matmul %396, %397, %cst_121 {dimension_numbers = #tpu.dot_dimension_numbers<[1], [0], [0], [1], [0, 0, 1, 1], [], []>} : vector<8x64xbf16>, vector<64x256xbf16>, vector<8x256xf32> -> vector<8x256xf32>
    %c0_122 = arith.constant 0 : index
    %c0_123 = arith.constant 0 : index
    %399 = vector.load %arg20[%c0_122, %c0_123] : memref<1x256xbf16, #tpu.memory_space<vmem>>, vector<1x256xbf16>
    %400 = arith.extf %399 : vector<1x256xbf16> to vector<1x256xf32>
    %401 = vector.broadcast %400 : vector<1x256xf32> to vector<8x256xf32>
    %402 = arith.addf %398, %401 : vector<8x256xf32>
    %cst_124 = arith.constant 5.000000e-01 : f32
    %403 = vector.broadcast %cst_124 : f32 to vector<8x256xf32>
    %404 = arith.mulf %403, %402 : vector<8x256xf32>
    %cst_125 = arith.constant 4.471500e-02 : f32
    %405 = vector.broadcast %cst_125 : f32 to vector<8x256xf32>
    %406 = arith.mulf %405, %402 : vector<8x256xf32>
    %407 = arith.mulf %406, %402 : vector<8x256xf32>
    %408 = arith.mulf %407, %402 : vector<8x256xf32>
    %409 = arith.addf %402, %408 : vector<8x256xf32>
    %cst_126 = arith.constant 0.797884583 : f32
    %410 = vector.broadcast %cst_126 : f32 to vector<8x256xf32>
    %411 = arith.mulf %410, %409 : vector<8x256xf32>
    %412 = math.tanh %411 : vector<8x256xf32>
    %cst_127 = arith.constant 1.000000e+00 : f32
    %413 = vector.broadcast %cst_127 : f32 to vector<8x256xf32>
    %414 = arith.addf %413, %412 : vector<8x256xf32>
    %415 = arith.mulf %404, %414 : vector<8x256xf32>
    %416 = arith.truncf %415 : vector<8x256xf32> to vector<8x256xbf16>
    %c0_128 = arith.constant 0 : index
    %c0_129 = arith.constant 0 : index
    %417 = vector.load %arg21[%c0_128, %c0_129] : memref<256x64xbf16, #tpu.memory_space<vmem>>, vector<256x64xbf16>
    %cst_130 = arith.constant dense<0.000000e+00> : vector<8x64xf32>
    %418 = tpu.matmul %416, %417, %cst_130 {dimension_numbers = #tpu.dot_dimension_numbers<[1], [0], [0], [1], [0, 0, 1, 1], [], []>} : vector<8x256xbf16>, vector<256x64xbf16>, vector<8x64xf32> -> vector<8x64xf32>
    %c0_131 = arith.constant 0 : index
    %c0_132 = arith.constant 0 : index
    %419 = vector.load %arg22[%c0_131, %c0_132] : memref<1x64xbf16, #tpu.memory_space<vmem>>, vector<1x64xbf16>
    %420 = arith.extf %419 : vector<1x64xbf16> to vector<1x64xf32>
    %421 = vector.broadcast %420 : vector<1x64xf32> to vector<8x64xf32>
    %422 = arith.addf %418, %421 : vector<8x64xf32>
    %423 = vector.broadcast %25 : vector<1x64xf32> to vector<8x64xf32>
    %424 = arith.mulf %423, %422 : vector<8x64xf32>
    %425 = arith.addf %373, %424 : vector<8x64xf32>
    %426 = tpu.concatenate %425, %370 in 0 : vector<8x64xf32>, vector<16x64xf32> -> vector<24x64xf32>
    %427 = arith.truncf %426 : vector<24x64xf32> to vector<24x64xbf16>
    %c0_133 = arith.constant 0 : index
    %c0_134 = arith.constant 0 : index
    %c0_135 = arith.constant 0 : index
    %428 = vector.load %arg23[%c0_133, %c0_134, %c0_135] : memref<1x24x64xbf16, #tpu.memory_space<vmem>>, vector<1x24x64xbf16>
    %429 = vector.shape_cast %428 : vector<1x24x64xbf16> to vector<24x64xbf16>
    %430 = vector.shape_cast %427 : vector<24x64xbf16> to vector<1x24x64xbf16>
    tpu.vector_store %arg23[%c0_133, %c0_134, %c0_135], %430 {strides = array<i32>} : memref<1x24x64xbf16, #tpu.memory_space<vmem>>, vector<1x24x64xbf16>,
    return
  }
  func.func @transform_0(%arg0: i32) -> (i32, i32, i32) {
    %c0_i32 = arith.constant 0 : i32
    %c0_i32_0 = arith.constant 0 : i32
    %c0_i32_1 = arith.constant 0 : i32
    return %arg0, %c0_i32, %c0_i32_0 : i32, i32, i32
  }
  func.func @transform_1(%arg0: i32) -> (i32, i32, i32) {
    %c0_i32 = arith.constant 0 : i32
    %c0_i32_0 = arith.constant 0 : i32
    %c0_i32_1 = arith.constant 0 : i32
    return %arg0, %c0_i32, %c0_i32_0 : i32, i32, i32
  }
  func.func @transform_2(%arg0: i32) -> (i32, i32, i32) {
    %c0_i32 = arith.constant 0 : i32
    %c0_i32_0 = arith.constant 0 : i32
    %c0_i32_1 = arith.constant 0 : i32
    %c0_i32_2 = arith.constant 0 : i32
    return %c0_i32, %c0_i32_0, %c0_i32_1 : i32, i32, i32
  }
  func.func @transform_3(%arg0: i32) -> (i32, i32) {
    %c0_i32 = arith.constant 0 : i32
    %c0_i32_0 = arith.constant 0 : i32
    %c0_i32_1 = arith.constant 0 : i32
    return %c0_i32, %c0_i32_0 : i32, i32
  }
  func.func @transform_4(%arg0: i32) -> (i32, i32) {
    %c0_i32 = arith.constant 0 : i32
    %c0_i32_0 = arith.constant 0 : i32
    %c0_i32_1 = arith.constant 0 : i32
    return %c0_i32, %c0_i32_0 : i32, i32
  }
  func.func @transform_5(%arg0: i32) -> (i32, i32) {
    %c0_i32 = arith.constant 0 : i32
    %c0_i32_0 = arith.constant 0 : i32
    %c0_i32_1 = arith.constant 0 : i32
    return %c0_i32, %c0_i32_0 : i32, i32
  }
  func.func @transform_6(%arg0: i32) -> (i32, i32) {
    %c0_i32 = arith.constant 0 : i32
    %c0_i32_0 = arith.constant 0 : i32
    %c0_i32_1 = arith.constant 0 : i32
    return %c0_i32, %c0_i32_0 : i32, i32
  }
  func.func @transform_7(%arg0: i32) -> (i32, i32) {
    %c0_i32 = arith.constant 0 : i32
    %c0_i32_0 = arith.constant 0 : i32
    %c0_i32_1 = arith.constant 0 : i32
    return %c0_i32, %c0_i32_0 : i32, i32
  }
  func.func @transform_8(%arg0: i32) -> (i32, i32) {
    %c0_i32 = arith.constant 0 : i32
    %c0_i32_0 = arith.constant 0 : i32
    %c0_i32_1 = arith.constant 0 : i32
    return %c0_i32, %c0_i32_0 : i32, i32
  }
  func.func @transform_9(%arg0: i32) -> (i32, i32, i32) {
    %c0_i32 = arith.constant 0 : i32
    %c0_i32_0 = arith.constant 0 : i32
    %c0_i32_1 = arith.constant 0 : i32
    %c0_i32_2 = arith.constant 0 : i32
    return %c0_i32, %c0_i32_0, %c0_i32_1 : i32, i32, i32
  }
  func.func @transform_10(%arg0: i32) -> (i32, i32) {
    %c0_i32 = arith.constant 0 : i32
    %c0_i32_0 = arith.constant 0 : i32
    %c0_i32_1 = arith.constant 0 : i32
    return %c0_i32, %c0_i32_0 : i32, i32
  }
  func.func @transform_11(%arg0: i32) -> (i32, i32) {
    %c0_i32 = arith.constant 0 : i32
    %c0_i32_0 = arith.constant 0 : i32
    %c0_i32_1 = arith.constant 0 : i32
    return %c0_i32, %c0_i32_0 : i32, i32
  }
  func.func @transform_12(%arg0: i32) -> (i32, i32) {
    %c0_i32 = arith.constant 0 : i32
    %c0_i32_0 = arith.constant 0 : i32
    %c0_i32_1 = arith.constant 0 : i32
    return %c0_i32, %c0_i32_0 : i32, i32
  }
  func.func @transform_13(%arg0: i32) -> (i32, i32) {
    %c0_i32 = arith.constant 0 : i32
    %c0_i32_0 = arith.constant 0 : i32
    %c0_i32_1 = arith.constant 0 : i32
    return %c0_i32, %c0_i32_0 : i32, i32
  }
  func.func @transform_14(%arg0: i32) -> (i32, i32) {
    %c0_i32 = arith.constant 0 : i32
    %c0_i32_0 = arith.constant 0 : i32
    %c0_i32_1 = arith.constant 0 : i32
    return %c0_i32, %c0_i32_0 : i32, i32
  }
  func.func @transform_15(%arg0: i32) -> (i32, i32) {
    %c0_i32 = arith.constant 0 : i32
    %c0_i32_0 = arith.constant 0 : i32
    %c0_i32_1 = arith.constant 0 : i32
    return %c0_i32, %c0_i32_0 : i32, i32
  }
  func.func @transform_16(%arg0: i32) -> (i32, i32) {
    %c0_i32 = arith.constant 0 : i32
    %c0_i32_0 = arith.constant 0 : i32
    %c0_i32_1 = arith.constant 0 : i32
    return %c0_i32, %c0_i32_0 : i32, i32
  }
  func.func @transform_17(%arg0: i32) -> (i32, i32) {
    %c0_i32 = arith.constant 0 : i32
    %c0_i32_0 = arith.constant 0 : i32
    %c0_i32_1 = arith.constant 0 : i32
    return %c0_i32, %c0_i32_0 : i32, i32
  }
  func.func @transform_18(%arg0: i32) -> (i32, i32) {
    %c0_i32 = arith.constant 0 : i32
    %c0_i32_0 = arith.constant 0 : i32
    %c0_i32_1 = arith.constant 0 : i32
    return %c0_i32, %c0_i32_0 : i32, i32
  }
  func.func @transform_19(%arg0: i32) -> (i32, i32) {
    %c0_i32 = arith.constant 0 : i32
    %c0_i32_0 = arith.constant 0 : i32
    %c0_i32_1 = arith.constant 0 : i32
    return %c0_i32, %c0_i32_0 : i32, i32
  }
  func.func @transform_20(%arg0: i32) -> (i32, i32) {
    %c0_i32 = arith.constant 0 : i32
    %c0_i32_0 = arith.constant 0 : i32
    %c0_i32_1 = arith.constant 0 : i32
    return %c0_i32, %c0_i32_0 : i32, i32
  }
  func.func @transform_21(%arg0: i32) -> (i32, i32) {
    %c0_i32 = arith.constant 0 : i32
    %c0_i32_0 = arith.constant 0 : i32
    %c0_i32_1 = arith.constant 0 : i32
    return %c0_i32, %c0_i32_0 : i32, i32
  }
  func.func @transform_22(%arg0: i32) -> (i32, i32, i32) {
    %c0_i32 = arith.constant 0 : i32
    %c0_i32_0 = arith.constant 0 : i32
    %c0_i32_1 = arith.constant 0 : i32
    return %arg0, %c0_i32, %c0_i32_0 : i32, i32, i32
  }
}

module attributes {stable_mosaic.version = 11 : i64} {
  func.func @_single_block_kernel(%arg0: i32, %arg1: memref<1x24x64xbf16, #tpu.memory_space<vmem>>, %arg2: memref<1x1x64xbf16, #tpu.memory_space<vmem>>, %arg3: memref<3x24x32xbf16, #tpu.memory_space<vmem>>, %arg4: memref<64x192xbf16, #tpu.memory_space<vmem>>, %arg5: memref<1x192xbf16, #tpu.memory_space<vmem>>, %arg6: memref<64x448xbf16, #tpu.memory_space<vmem>>, %arg7: memref<1x448xbf16, #tpu.memory_space<vmem>>, %arg8: memref<2x1x32xbf16, #tpu.memory_space<vmem>>, %arg9: memref<320x64xbf16, #tpu.memory_space<vmem>>, %arg10: memref<1x64xbf16, #tpu.memory_space<vmem>>, %arg11: memref<1x24x64xbf16, #tpu.memory_space<vmem>>) attributes {dimension_semantics = [#tpu.dimension_semantics<parallel>], iteration_bounds = array<i64: 2>, scalar_prefetch = 0 : i64, scratch_operands = 0 : i64, tpu.core_type = #tpu.core_type<tc>, window_params = [{transform_indices = @transform_0, window_bounds = array<i64: 1, 24, 64>}, {transform_indices = @transform_1, window_bounds = array<i64: 1, 1, 64>}, {pipeline_mode = #tpu.pipeline_mode<synchronous>, transform_indices = @transform_2, window_bounds = array<i64: 3, 24, 32>}, {pipeline_mode = #tpu.pipeline_mode<synchronous>, transform_indices = @transform_3, window_bounds = array<i64: 64, 192>}, {pipeline_mode = #tpu.pipeline_mode<synchronous>, transform_indices = @transform_4, window_bounds = array<i64: 1, 192>}, {pipeline_mode = #tpu.pipeline_mode<synchronous>, transform_indices = @transform_5, window_bounds = array<i64: 64, 448>}, {pipeline_mode = #tpu.pipeline_mode<synchronous>, transform_indices = @transform_6, window_bounds = array<i64: 1, 448>}, {pipeline_mode = #tpu.pipeline_mode<synchronous>, transform_indices = @transform_7, window_bounds = array<i64: 2, 1, 32>}, {pipeline_mode = #tpu.pipeline_mode<synchronous>, transform_indices = @transform_8, window_bounds = array<i64: 320, 64>}, {pipeline_mode = #tpu.pipeline_mode<synchronous>, transform_indices = @transform_9, window_bounds = array<i64: 1, 64>}, {transform_indices = @transform_10, window_bounds = array<i64: 1, 24, 64>}]} {
    %c0 = arith.constant 0 : index
    %c0_0 = arith.constant 0 : index
    %c0_1 = arith.constant 0 : index
    %0 = vector.load %arg1[%c0, %c0_0, %c0_1] : memref<1x24x64xbf16, #tpu.memory_space<vmem>>, vector<1x24x64xbf16>
    %1 = vector.shape_cast %0 : vector<1x24x64xbf16> to vector<24x64xbf16>
    %2 = arith.extf %1 : vector<24x64xbf16> to vector<24x64xf32>
    %c0_2 = arith.constant 0 : index
    %c0_3 = arith.constant 0 : index
    %c0_4 = arith.constant 0 : index
    %3 = vector.load %arg2[%c0_2, %c0_3, %c0_4] : memref<1x1x64xbf16, #tpu.memory_space<vmem>>, vector<1x1x64xbf16>
    %4 = vector.shape_cast %3 : vector<1x1x64xbf16> to vector<1x64xbf16>
    %5 = arith.extf %4 : vector<1x64xbf16> to vector<1x64xf32>
    %6 = arith.truncf %5 : vector<1x64xf32> to vector<1x64xbf16>
    %c0_5 = arith.constant 0 : index
    %c0_6 = arith.constant 0 : index
    %7 = vector.load %arg4[%c0_5, %c0_6] : memref<64x192xbf16, #tpu.memory_space<vmem>>, vector<64x192xbf16>
    %cst = arith.constant dense<0.000000e+00> : vector<1x192xf32>
    %8 = tpu.matmul %6, %7, %cst {dimension_numbers = #tpu.dot_dimension_numbers<[1], [0], [0], [1], [0, 0, 1, 1], [], []>} : vector<1x64xbf16>, vector<64x192xbf16>, vector<1x192xf32> -> vector<1x192xf32>
    %c0_7 = arith.constant 0 : index
    %c0_8 = arith.constant 0 : index
    %9 = vector.load %arg5[%c0_7, %c0_8] : memref<1x192xbf16, #tpu.memory_space<vmem>>, vector<1x192xbf16>
    %10 = arith.extf %9 : vector<1x192xbf16> to vector<1x192xf32>
    %11 = arith.addf %8, %10 : vector<1x192xf32>
    %12 = vector.extract_strided_slice %11 {offsets = [0, 0], sizes = [1, 64], strides = [1, 1]} : vector<1x192xf32> to vector<1x64xf32>
    %13 = vector.extract_strided_slice %11 {offsets = [0, 64], sizes = [1, 64], strides = [1, 1]} : vector<1x192xf32> to vector<1x64xf32>
    %14 = vector.extract_strided_slice %11 {offsets = [0, 128], sizes = [1, 64], strides = [1, 1]} : vector<1x192xf32> to vector<1x64xf32>
    %cst_9 = arith.constant dense<0.000000e+00> : vector<24xf32>
    %15 = vector.multi_reduction <add>, %2, %cst_9 [1] : vector<24x64xf32> to vector<24xf32>
    %16 = vector.shape_cast %15 : vector<24xf32> to vector<24x1xf32>
    %cst_10 = arith.constant 6.400000e+01 : f32
    %17 = vector.broadcast %cst_10 : f32 to vector<24x1xf32>
    %18 = arith.divf %16, %17 : vector<24x1xf32>
    %19 = vector.broadcast %18 : vector<24x1xf32> to vector<24x64xf32>
    %20 = arith.subf %2, %19 : vector<24x64xf32>
    %21 = arith.mulf %20, %20 : vector<24x64xf32>
    %cst_11 = arith.constant dense<0.000000e+00> : vector<24xf32>
    %22 = vector.multi_reduction <add>, %21, %cst_11 [1] : vector<24x64xf32> to vector<24xf32>
    %23 = vector.shape_cast %22 : vector<24xf32> to vector<24x1xf32>
    %cst_12 = arith.constant 6.400000e+01 : f32
    %24 = vector.broadcast %cst_12 : f32 to vector<24x1xf32>
    %25 = arith.divf %23, %24 : vector<24x1xf32>
    %cst_13 = arith.constant 9.99999997E-7 : f32
    %26 = vector.broadcast %cst_13 : f32 to vector<24x1xf32>
    %27 = arith.addf %25, %26 : vector<24x1xf32>
    %28 = math.rsqrt %27 : vector<24x1xf32>
    %29 = vector.broadcast %28 : vector<24x1xf32> to vector<24x64xf32>
    %30 = arith.mulf %20, %29 : vector<24x64xf32>
    %cst_14 = arith.constant 1.000000e+00 : f32
    %31 = vector.broadcast %cst_14 : f32 to vector<1x64xf32>
    %32 = arith.addf %31, %13 : vector<1x64xf32>
    %33 = vector.broadcast %32 : vector<1x64xf32> to vector<24x64xf32>
    %34 = arith.mulf %30, %33 : vector<24x64xf32>
    %35 = vector.broadcast %12 : vector<1x64xf32> to vector<24x64xf32>
    %36 = arith.addf %34, %35 : vector<24x64xf32>
    %37 = arith.truncf %36 : vector<24x64xf32> to vector<24x64xbf16>
    %c0_15 = arith.constant 0 : index
    %c0_16 = arith.constant 0 : index
    %38 = vector.load %arg6[%c0_15, %c0_16] : memref<64x448xbf16, #tpu.memory_space<vmem>>, vector<64x448xbf16>
    %cst_17 = arith.constant dense<0.000000e+00> : vector<24x448xf32>
    %39 = tpu.matmul %37, %38, %cst_17 {dimension_numbers = #tpu.dot_dimension_numbers<[1], [0], [0], [1], [0, 0, 1, 1], [], []>} : vector<24x64xbf16>, vector<64x448xbf16>, vector<24x448xf32> -> vector<24x448xf32>
    %c0_18 = arith.constant 0 : index
    %c0_19 = arith.constant 0 : index
    %40 = vector.load %arg7[%c0_18, %c0_19] : memref<1x448xbf16, #tpu.memory_space<vmem>>, vector<1x448xbf16>
    %41 = arith.extf %40 : vector<1x448xbf16> to vector<1x448xf32>
    %42 = vector.broadcast %41 : vector<1x448xf32> to vector<24x448xf32>
    %43 = arith.addf %39, %42 : vector<24x448xf32>
    %44 = vector.extract_strided_slice %43 {offsets = [0, 0], sizes = [24, 64], strides = [1, 1]} : vector<24x448xf32> to vector<24x64xf32>
    %45 = vector.extract_strided_slice %43 {offsets = [0, 64], sizes = [24, 64], strides = [1, 1]} : vector<24x448xf32> to vector<24x64xf32>
    %46 = vector.extract_strided_slice %43 {offsets = [0, 128], sizes = [24, 64], strides = [1, 1]} : vector<24x448xf32> to vector<24x64xf32>
    %47 = vector.extract_strided_slice %43 {offsets = [0, 192], sizes = [24, 256], strides = [1, 1]} : vector<24x448xf32> to vector<24x256xf32>
    %cst_20 = arith.constant 5.000000e-01 : f32
    %48 = vector.broadcast %cst_20 : f32 to vector<24x256xf32>
    %49 = arith.mulf %48, %47 : vector<24x256xf32>
    %cst_21 = arith.constant 4.471500e-02 : f32
    %50 = vector.broadcast %cst_21 : f32 to vector<24x256xf32>
    %51 = arith.mulf %50, %47 : vector<24x256xf32>
    %52 = arith.mulf %51, %47 : vector<24x256xf32>
    %53 = arith.mulf %52, %47 : vector<24x256xf32>
    %54 = arith.addf %47, %53 : vector<24x256xf32>
    %cst_22 = arith.constant 0.797884583 : f32
    %55 = vector.broadcast %cst_22 : f32 to vector<24x256xf32>
    %56 = arith.mulf %55, %54 : vector<24x256xf32>
    %57 = math.tanh %56 : vector<24x256xf32>
    %cst_23 = arith.constant 1.000000e+00 : f32
    %58 = vector.broadcast %cst_23 : f32 to vector<24x256xf32>
    %59 = arith.addf %58, %57 : vector<24x256xf32>
    %60 = arith.mulf %49, %59 : vector<24x256xf32>
    %c0_24 = arith.constant 0 : index
    %c0_25 = arith.constant 0 : index
    %c0_26 = arith.constant 0 : index
    %61 = vector.load %arg3[%c0_24, %c0_25, %c0_26] : memref<3x24x32xbf16, #tpu.memory_space<vmem>>, vector<1x24x32xbf16>
    %62 = vector.shape_cast %61 : vector<1x24x32xbf16> to vector<24x32xbf16>
    %63 = arith.extf %62 : vector<24x32xbf16> to vector<24x32xf32>
    %c1 = arith.constant 1 : index
    %c0_27 = arith.constant 0 : index
    %c0_28 = arith.constant 0 : index
    %64 = vector.load %arg3[%c1, %c0_27, %c0_28] : memref<3x24x32xbf16, #tpu.memory_space<vmem>>, vector<1x24x32xbf16>
    %65 = vector.shape_cast %64 : vector<1x24x32xbf16> to vector<24x32xbf16>
    %66 = arith.extf %65 : vector<24x32xbf16> to vector<24x32xf32>
    %c2 = arith.constant 2 : index
    %c0_29 = arith.constant 0 : index
    %c0_30 = arith.constant 0 : index
    %67 = vector.load %arg3[%c2, %c0_29, %c0_30] : memref<3x24x32xbf16, #tpu.memory_space<vmem>>, vector<1x24x32xbf16>
    %68 = vector.shape_cast %67 : vector<1x24x32xbf16> to vector<24x32xbf16>
    %69 = arith.extf %68 : vector<24x32xbf16> to vector<24x32xf32>
    %c0_31 = arith.constant 0 : index
    %c0_32 = arith.constant 0 : index
    %c0_33 = arith.constant 0 : index
    %70 = vector.load %arg8[%c0_31, %c0_32, %c0_33] : memref<2x1x32xbf16, #tpu.memory_space<vmem>>, vector<1x1x32xbf16>
    %71 = vector.shape_cast %70 : vector<1x1x32xbf16> to vector<1x32xbf16>
    %72 = arith.extf %71 : vector<1x32xbf16> to vector<1x32xf32>
    %c1_34 = arith.constant 1 : index
    %c0_35 = arith.constant 0 : index
    %c0_36 = arith.constant 0 : index
    %73 = vector.load %arg8[%c1_34, %c0_35, %c0_36] : memref<2x1x32xbf16, #tpu.memory_space<vmem>>, vector<1x1x32xbf16>
    %74 = vector.shape_cast %73 : vector<1x1x32xbf16> to vector<1x32xbf16>
    %75 = arith.extf %74 : vector<1x32xbf16> to vector<1x32xf32>
    %76 = vector.extract_strided_slice %44 {offsets = [0, 0], sizes = [24, 32], strides = [1, 1]} : vector<24x64xf32> to vector<24x32xf32>
    %77 = arith.mulf %76, %76 : vector<24x32xf32>
    %cst_37 = arith.constant dense<0.000000e+00> : vector<24xf32>
    %78 = vector.multi_reduction <add>, %77, %cst_37 [1] : vector<24x32xf32> to vector<24xf32>
    %79 = vector.shape_cast %78 : vector<24xf32> to vector<24x1xf32>
    %cst_38 = arith.constant 3.200000e+01 : f32
    %80 = vector.broadcast %cst_38 : f32 to vector<24x1xf32>
    %81 = arith.divf %79, %80 : vector<24x1xf32>
    %cst_39 = arith.constant 9.99999997E-7 : f32
    %82 = vector.broadcast %cst_39 : f32 to vector<24x1xf32>
    %83 = arith.addf %81, %82 : vector<24x1xf32>
    %84 = math.rsqrt %83 : vector<24x1xf32>
    %85 = vector.broadcast %84 : vector<24x1xf32> to vector<24x32xf32>
    %86 = arith.mulf %76, %85 : vector<24x32xf32>
    %87 = vector.broadcast %72 : vector<1x32xf32> to vector<24x32xf32>
    %88 = arith.mulf %86, %87 : vector<24x32xf32>
    %89 = arith.mulf %88, %63 : vector<24x32xf32>
    %90 = vector.extract_strided_slice %88 {offsets = [0, 1], sizes = [24, 31], strides = [1, 1]} : vector<24x32xf32> to vector<24x31xf32>
    %91 = vector.extract_strided_slice %88 {offsets = [0, 0], sizes = [24, 1], strides = [1, 1]} : vector<24x32xf32> to vector<24x1xf32>
    %92 = tpu.concatenate %90, %91 in 1 : vector<24x31xf32>, vector<24x1xf32> -> vector<24x32xf32>
    %93 = arith.mulf %92, %66 : vector<24x32xf32>
    %94 = arith.addf %89, %93 : vector<24x32xf32>
    %95 = vector.extract_strided_slice %88 {offsets = [0, 31], sizes = [24, 1], strides = [1, 1]} : vector<24x32xf32> to vector<24x1xf32>
    %96 = vector.extract_strided_slice %88 {offsets = [0, 0], sizes = [24, 31], strides = [1, 1]} : vector<24x32xf32> to vector<24x31xf32>
    %97 = tpu.concatenate %95, %96 in 1 : vector<24x1xf32>, vector<24x31xf32> -> vector<24x32xf32>
    %98 = arith.mulf %97, %69 : vector<24x32xf32>
    %99 = arith.addf %94, %98 : vector<24x32xf32>
    %100 = vector.extract_strided_slice %45 {offsets = [0, 0], sizes = [24, 32], strides = [1, 1]} : vector<24x64xf32> to vector<24x32xf32>
    %101 = arith.mulf %100, %100 : vector<24x32xf32>
    %cst_40 = arith.constant dense<0.000000e+00> : vector<24xf32>
    %102 = vector.multi_reduction <add>, %101, %cst_40 [1] : vector<24x32xf32> to vector<24xf32>
    %103 = vector.shape_cast %102 : vector<24xf32> to vector<24x1xf32>
    %cst_41 = arith.constant 3.200000e+01 : f32
    %104 = vector.broadcast %cst_41 : f32 to vector<24x1xf32>
    %105 = arith.divf %103, %104 : vector<24x1xf32>
    %cst_42 = arith.constant 9.99999997E-7 : f32
    %106 = vector.broadcast %cst_42 : f32 to vector<24x1xf32>
    %107 = arith.addf %105, %106 : vector<24x1xf32>
    %108 = math.rsqrt %107 : vector<24x1xf32>
    %109 = vector.broadcast %108 : vector<24x1xf32> to vector<24x32xf32>
    %110 = arith.mulf %100, %109 : vector<24x32xf32>
    %111 = vector.broadcast %75 : vector<1x32xf32> to vector<24x32xf32>
    %112 = arith.mulf %110, %111 : vector<24x32xf32>
    %113 = arith.mulf %112, %63 : vector<24x32xf32>
    %114 = vector.extract_strided_slice %112 {offsets = [0, 1], sizes = [24, 31], strides = [1, 1]} : vector<24x32xf32> to vector<24x31xf32>
    %115 = vector.extract_strided_slice %112 {offsets = [0, 0], sizes = [24, 1], strides = [1, 1]} : vector<24x32xf32> to vector<24x1xf32>
    %116 = tpu.concatenate %114, %115 in 1 : vector<24x31xf32>, vector<24x1xf32> -> vector<24x32xf32>
    %117 = arith.mulf %116, %66 : vector<24x32xf32>
    %118 = arith.addf %113, %117 : vector<24x32xf32>
    %119 = vector.extract_strided_slice %112 {offsets = [0, 31], sizes = [24, 1], strides = [1, 1]} : vector<24x32xf32> to vector<24x1xf32>
    %120 = vector.extract_strided_slice %112 {offsets = [0, 0], sizes = [24, 31], strides = [1, 1]} : vector<24x32xf32> to vector<24x31xf32>
    %121 = tpu.concatenate %119, %120 in 1 : vector<24x1xf32>, vector<24x31xf32> -> vector<24x32xf32>
    %122 = arith.mulf %121, %69 : vector<24x32xf32>
    %123 = arith.addf %118, %122 : vector<24x32xf32>
    %124 = vector.extract_strided_slice %46 {offsets = [0, 0], sizes = [24, 32], strides = [1, 1]} : vector<24x64xf32> to vector<24x32xf32>
    %125 = arith.truncf %99 : vector<24x32xf32> to vector<24x32xbf16>
    %126 = arith.truncf %123 : vector<24x32xf32> to vector<24x32xbf16>
    %cst_43 = arith.constant dense<0.000000e+00> : vector<24x24xf32>
    %127 = tpu.matmul %125, %126, %cst_43 {dimension_numbers = #tpu.dot_dimension_numbers<[1], [1], [0], [0], [0, 0, 1, 0], [], []>} : vector<24x32xbf16>, vector<24x32xbf16>, vector<24x24xf32> -> vector<24x24xf32>
    %cst_44 = arith.constant 0.176776692 : f32
    %128 = vector.broadcast %cst_44 : f32 to vector<24x24xf32>
    %129 = arith.mulf %127, %128 : vector<24x24xf32>
    %cst_45 = arith.constant dense<0xFF800000> : vector<24xf32>
    %130 = vector.multi_reduction <maximumf>, %129, %cst_45 [1] : vector<24x24xf32> to vector<24xf32>
    %131 = vector.shape_cast %130 : vector<24xf32> to vector<24x1xf32>
    %132 = vector.broadcast %131 : vector<24x1xf32> to vector<24x24xf32>
    %133 = arith.subf %129, %132 : vector<24x24xf32>
    %134 = math.exp %133 : vector<24x24xf32>
    %cst_46 = arith.constant dense<0.000000e+00> : vector<24xf32>
    %135 = vector.multi_reduction <add>, %134, %cst_46 [1] : vector<24x24xf32> to vector<24xf32>
    %136 = vector.shape_cast %135 : vector<24xf32> to vector<24x1xf32>
    %137 = tpu.reciprocal %136 {approx = true} : vector<24x1xf32> -> vector<24x1xf32>
    %138 = arith.truncf %134 : vector<24x24xf32> to vector<24x24xbf16>
    %139 = arith.truncf %124 : vector<24x32xf32> to vector<24x32xbf16>
    %cst_47 = arith.constant dense<0.000000e+00> : vector<24x32xf32>
    %140 = tpu.matmul %138, %139, %cst_47 {dimension_numbers = #tpu.dot_dimension_numbers<[1], [0], [0], [1], [0, 0, 1, 1], [], []>} : vector<24x24xbf16>, vector<24x32xbf16>, vector<24x32xf32> -> vector<24x32xf32>
    %141 = vector.broadcast %137 : vector<24x1xf32> to vector<24x32xf32>
    %142 = arith.mulf %140, %141 : vector<24x32xf32>
    %143 = vector.extract_strided_slice %44 {offsets = [0, 32], sizes = [24, 32], strides = [1, 1]} : vector<24x64xf32> to vector<24x32xf32>
    %144 = arith.mulf %143, %143 : vector<24x32xf32>
    %cst_48 = arith.constant dense<0.000000e+00> : vector<24xf32>
    %145 = vector.multi_reduction <add>, %144, %cst_48 [1] : vector<24x32xf32> to vector<24xf32>
    %146 = vector.shape_cast %145 : vector<24xf32> to vector<24x1xf32>
    %cst_49 = arith.constant 3.200000e+01 : f32
    %147 = vector.broadcast %cst_49 : f32 to vector<24x1xf32>
    %148 = arith.divf %146, %147 : vector<24x1xf32>
    %cst_50 = arith.constant 9.99999997E-7 : f32
    %149 = vector.broadcast %cst_50 : f32 to vector<24x1xf32>
    %150 = arith.addf %148, %149 : vector<24x1xf32>
    %151 = math.rsqrt %150 : vector<24x1xf32>
    %152 = vector.broadcast %151 : vector<24x1xf32> to vector<24x32xf32>
    %153 = arith.mulf %143, %152 : vector<24x32xf32>
    %154 = vector.broadcast %72 : vector<1x32xf32> to vector<24x32xf32>
    %155 = arith.mulf %153, %154 : vector<24x32xf32>
    %156 = arith.mulf %155, %63 : vector<24x32xf32>
    %157 = vector.extract_strided_slice %155 {offsets = [0, 1], sizes = [24, 31], strides = [1, 1]} : vector<24x32xf32> to vector<24x31xf32>
    %158 = vector.extract_strided_slice %155 {offsets = [0, 0], sizes = [24, 1], strides = [1, 1]} : vector<24x32xf32> to vector<24x1xf32>
    %159 = tpu.concatenate %157, %158 in 1 : vector<24x31xf32>, vector<24x1xf32> -> vector<24x32xf32>
    %160 = arith.mulf %159, %66 : vector<24x32xf32>
    %161 = arith.addf %156, %160 : vector<24x32xf32>
    %162 = vector.extract_strided_slice %155 {offsets = [0, 31], sizes = [24, 1], strides = [1, 1]} : vector<24x32xf32> to vector<24x1xf32>
    %163 = vector.extract_strided_slice %155 {offsets = [0, 0], sizes = [24, 31], strides = [1, 1]} : vector<24x32xf32> to vector<24x31xf32>
    %164 = tpu.concatenate %162, %163 in 1 : vector<24x1xf32>, vector<24x31xf32> -> vector<24x32xf32>
    %165 = arith.mulf %164, %69 : vector<24x32xf32>
    %166 = arith.addf %161, %165 : vector<24x32xf32>
    %167 = vector.extract_strided_slice %45 {offsets = [0, 32], sizes = [24, 32], strides = [1, 1]} : vector<24x64xf32> to vector<24x32xf32>
    %168 = arith.mulf %167, %167 : vector<24x32xf32>
    %cst_51 = arith.constant dense<0.000000e+00> : vector<24xf32>
    %169 = vector.multi_reduction <add>, %168, %cst_51 [1] : vector<24x32xf32> to vector<24xf32>
    %170 = vector.shape_cast %169 : vector<24xf32> to vector<24x1xf32>
    %cst_52 = arith.constant 3.200000e+01 : f32
    %171 = vector.broadcast %cst_52 : f32 to vector<24x1xf32>
    %172 = arith.divf %170, %171 : vector<24x1xf32>
    %cst_53 = arith.constant 9.99999997E-7 : f32
    %173 = vector.broadcast %cst_53 : f32 to vector<24x1xf32>
    %174 = arith.addf %172, %173 : vector<24x1xf32>
    %175 = math.rsqrt %174 : vector<24x1xf32>
    %176 = vector.broadcast %175 : vector<24x1xf32> to vector<24x32xf32>
    %177 = arith.mulf %167, %176 : vector<24x32xf32>
    %178 = vector.broadcast %75 : vector<1x32xf32> to vector<24x32xf32>
    %179 = arith.mulf %177, %178 : vector<24x32xf32>
    %180 = arith.mulf %179, %63 : vector<24x32xf32>
    %181 = vector.extract_strided_slice %179 {offsets = [0, 1], sizes = [24, 31], strides = [1, 1]} : vector<24x32xf32> to vector<24x31xf32>
    %182 = vector.extract_strided_slice %179 {offsets = [0, 0], sizes = [24, 1], strides = [1, 1]} : vector<24x32xf32> to vector<24x1xf32>
    %183 = tpu.concatenate %181, %182 in 1 : vector<24x31xf32>, vector<24x1xf32> -> vector<24x32xf32>
    %184 = arith.mulf %183, %66 : vector<24x32xf32>
    %185 = arith.addf %180, %184 : vector<24x32xf32>
    %186 = vector.extract_strided_slice %179 {offsets = [0, 31], sizes = [24, 1], strides = [1, 1]} : vector<24x32xf32> to vector<24x1xf32>
    %187 = vector.extract_strided_slice %179 {offsets = [0, 0], sizes = [24, 31], strides = [1, 1]} : vector<24x32xf32> to vector<24x31xf32>
    %188 = tpu.concatenate %186, %187 in 1 : vector<24x1xf32>, vector<24x31xf32> -> vector<24x32xf32>
    %189 = arith.mulf %188, %69 : vector<24x32xf32>
    %190 = arith.addf %185, %189 : vector<24x32xf32>
    %191 = vector.extract_strided_slice %46 {offsets = [0, 32], sizes = [24, 32], strides = [1, 1]} : vector<24x64xf32> to vector<24x32xf32>
    %192 = arith.truncf %166 : vector<24x32xf32> to vector<24x32xbf16>
    %193 = arith.truncf %190 : vector<24x32xf32> to vector<24x32xbf16>
    %cst_54 = arith.constant dense<0.000000e+00> : vector<24x24xf32>
    %194 = tpu.matmul %192, %193, %cst_54 {dimension_numbers = #tpu.dot_dimension_numbers<[1], [1], [0], [0], [0, 0, 1, 0], [], []>} : vector<24x32xbf16>, vector<24x32xbf16>, vector<24x24xf32> -> vector<24x24xf32>
    %cst_55 = arith.constant 0.176776692 : f32
    %195 = vector.broadcast %cst_55 : f32 to vector<24x24xf32>
    %196 = arith.mulf %194, %195 : vector<24x24xf32>
    %cst_56 = arith.constant dense<0xFF800000> : vector<24xf32>
    %197 = vector.multi_reduction <maximumf>, %196, %cst_56 [1] : vector<24x24xf32> to vector<24xf32>
    %198 = vector.shape_cast %197 : vector<24xf32> to vector<24x1xf32>
    %199 = vector.broadcast %198 : vector<24x1xf32> to vector<24x24xf32>
    %200 = arith.subf %196, %199 : vector<24x24xf32>
    %201 = math.exp %200 : vector<24x24xf32>
    %cst_57 = arith.constant dense<0.000000e+00> : vector<24xf32>
    %202 = vector.multi_reduction <add>, %201, %cst_57 [1] : vector<24x24xf32> to vector<24xf32>
    %203 = vector.shape_cast %202 : vector<24xf32> to vector<24x1xf32>
    %204 = tpu.reciprocal %203 {approx = true} : vector<24x1xf32> -> vector<24x1xf32>
    %205 = arith.truncf %201 : vector<24x24xf32> to vector<24x24xbf16>
    %206 = arith.truncf %191 : vector<24x32xf32> to vector<24x32xbf16>
    %cst_58 = arith.constant dense<0.000000e+00> : vector<24x32xf32>
    %207 = tpu.matmul %205, %206, %cst_58 {dimension_numbers = #tpu.dot_dimension_numbers<[1], [0], [0], [1], [0, 0, 1, 1], [], []>} : vector<24x24xbf16>, vector<24x32xbf16>, vector<24x32xf32> -> vector<24x32xf32>
    %208 = vector.broadcast %204 : vector<24x1xf32> to vector<24x32xf32>
    %209 = arith.mulf %207, %208 : vector<24x32xf32>
    %210 = tpu.concatenate %142, %209 in 1 : vector<24x32xf32>, vector<24x32xf32> -> vector<24x64xf32>
    %211 = tpu.concatenate %210, %60 in 1 : vector<24x64xf32>, vector<24x256xf32> -> vector<24x320xf32>
    %212 = arith.truncf %211 : vector<24x320xf32> to vector<24x320xbf16>
    %c0_59 = arith.constant 0 : index
    %c0_60 = arith.constant 0 : index
    %213 = vector.load %arg9[%c0_59, %c0_60] : memref<320x64xbf16, #tpu.memory_space<vmem>>, vector<320x64xbf16>
    %cst_61 = arith.constant dense<0.000000e+00> : vector<24x64xf32>
    %214 = tpu.matmul %212, %213, %cst_61 {dimension_numbers = #tpu.dot_dimension_numbers<[1], [0], [0], [1], [0, 0, 1, 1], [], []>} : vector<24x320xbf16>, vector<320x64xbf16>, vector<24x64xf32> -> vector<24x64xf32>
    %c0_62 = arith.constant 0 : index
    %c0_63 = arith.constant 0 : index
    %215 = vector.load %arg10[%c0_62, %c0_63] : memref<1x64xbf16, #tpu.memory_space<vmem>>, vector<1x64xbf16>
    %216 = arith.extf %215 : vector<1x64xbf16> to vector<1x64xf32>
    %217 = vector.broadcast %216 : vector<1x64xf32> to vector<24x64xf32>
    %218 = arith.addf %214, %217 : vector<24x64xf32>
    %219 = vector.broadcast %14 : vector<1x64xf32> to vector<24x64xf32>
    %220 = arith.mulf %219, %218 : vector<24x64xf32>
    %221 = arith.addf %2, %220 : vector<24x64xf32>
    %222 = arith.truncf %221 : vector<24x64xf32> to vector<24x64xbf16>
    %c0_64 = arith.constant 0 : index
    %c0_65 = arith.constant 0 : index
    %c0_66 = arith.constant 0 : index
    %223 = vector.load %arg11[%c0_64, %c0_65, %c0_66] : memref<1x24x64xbf16, #tpu.memory_space<vmem>>, vector<1x24x64xbf16>
    %224 = vector.shape_cast %223 : vector<1x24x64xbf16> to vector<24x64xbf16>
    %225 = vector.shape_cast %222 : vector<24x64xbf16> to vector<1x24x64xbf16>
    tpu.vector_store %arg11[%c0_64, %c0_65, %c0_66], %225 {strides = array<i32>} : memref<1x24x64xbf16, #tpu.memory_space<vmem>>, vector<1x24x64xbf16>,
    return
  }
  func.func @transform_0(%arg0: i32) -> (i32, i32, i32) {
    %c0_i32 = arith.constant 0 : i32
    %c0_i32_0 = arith.constant 0 : i32
    %c0_i32_1 = arith.constant 0 : i32
    return %arg0, %c0_i32, %c0_i32_0 : i32, i32, i32
  }
  func.func @transform_1(%arg0: i32) -> (i32, i32, i32) {
    %c0_i32 = arith.constant 0 : i32
    %c0_i32_0 = arith.constant 0 : i32
    %c0_i32_1 = arith.constant 0 : i32
    return %arg0, %c0_i32, %c0_i32_0 : i32, i32, i32
  }
  func.func @transform_2(%arg0: i32) -> (i32, i32, i32) {
    %c0_i32 = arith.constant 0 : i32
    %c0_i32_0 = arith.constant 0 : i32
    %c0_i32_1 = arith.constant 0 : i32
    %c0_i32_2 = arith.constant 0 : i32
    return %c0_i32, %c0_i32_0, %c0_i32_1 : i32, i32, i32
  }
  func.func @transform_3(%arg0: i32) -> (i32, i32) {
    %c0_i32 = arith.constant 0 : i32
    %c0_i32_0 = arith.constant 0 : i32
    %c0_i32_1 = arith.constant 0 : i32
    return %c0_i32, %c0_i32_0 : i32, i32
  }
  func.func @transform_4(%arg0: i32) -> (i32, i32) {
    %c0_i32 = arith.constant 0 : i32
    %c0_i32_0 = arith.constant 0 : i32
    %c0_i32_1 = arith.constant 0 : i32
    return %c0_i32, %c0_i32_0 : i32, i32
  }
  func.func @transform_5(%arg0: i32) -> (i32, i32) {
    %c0_i32 = arith.constant 0 : i32
    %c0_i32_0 = arith.constant 0 : i32
    %c0_i32_1 = arith.constant 0 : i32
    return %c0_i32, %c0_i32_0 : i32, i32
  }
  func.func @transform_6(%arg0: i32) -> (i32, i32) {
    %c0_i32 = arith.constant 0 : i32
    %c0_i32_0 = arith.constant 0 : i32
    %c0_i32_1 = arith.constant 0 : i32
    return %c0_i32, %c0_i32_0 : i32, i32
  }
  func.func @transform_7(%arg0: i32) -> (i32, i32, i32) {
    %c0_i32 = arith.constant 0 : i32
    %c0_i32_0 = arith.constant 0 : i32
    %c0_i32_1 = arith.constant 0 : i32
    %c0_i32_2 = arith.constant 0 : i32
    return %c0_i32, %c0_i32_0, %c0_i32_1 : i32, i32, i32
  }
  func.func @transform_8(%arg0: i32) -> (i32, i32) {
    %c0_i32 = arith.constant 0 : i32
    %c0_i32_0 = arith.constant 0 : i32
    %c0_i32_1 = arith.constant 0 : i32
    return %c0_i32, %c0_i32_0 : i32, i32
  }
  func.func @transform_9(%arg0: i32) -> (i32, i32) {
    %c0_i32 = arith.constant 0 : i32
    %c0_i32_0 = arith.constant 0 : i32
    %c0_i32_1 = arith.constant 0 : i32
    return %c0_i32, %c0_i32_0 : i32, i32
  }
  func.func @transform_10(%arg0: i32) -> (i32, i32, i32) {
    %c0_i32 = arith.constant 0 : i32
    %c0_i32_0 = arith.constant 0 : i32
    %c0_i32_1 = arith.constant 0 : i32
    return %arg0, %c0_i32, %c0_i32_0 : i32, i32, i32
  }
}

module attributes {stable_mosaic.version = 11 : i64} {
  func.func @_out_layers_kernel(%arg0: i32, %arg1: memref<1x24x64xbf16, #tpu.memory_space<vmem>>, %arg2: memref<1x1x64xbf16, #tpu.memory_space<vmem>>, %arg3: memref<64x128xbf16, #tpu.memory_space<vmem>>, %arg4: memref<1x128xbf16, #tpu.memory_space<vmem>>, %arg5: memref<64x16xbf16, #tpu.memory_space<vmem>>, %arg6: memref<1x16xbf16, #tpu.memory_space<vmem>>, %arg7: memref<1x16x16xbf16, #tpu.memory_space<vmem>>) attributes {dimension_semantics = [#tpu.dimension_semantics<parallel>], iteration_bounds = array<i64: 2>, scalar_prefetch = 0 : i64, scratch_operands = 0 : i64, tpu.core_type = #tpu.core_type<tc>, window_params = [{transform_indices = @transform_0, window_bounds = array<i64: 1, 24, 64>}, {transform_indices = @transform_1, window_bounds = array<i64: 1, 1, 64>}, {pipeline_mode = #tpu.pipeline_mode<synchronous>, transform_indices = @transform_2, window_bounds = array<i64: 64, 128>}, {pipeline_mode = #tpu.pipeline_mode<synchronous>, transform_indices = @transform_3, window_bounds = array<i64: 1, 128>}, {pipeline_mode = #tpu.pipeline_mode<synchronous>, transform_indices = @transform_4, window_bounds = array<i64: 64, 16>}, {pipeline_mode = #tpu.pipeline_mode<synchronous>, transform_indices = @transform_5, window_bounds = array<i64: 1, 16>}, {transform_indices = @transform_6, window_bounds = array<i64: 1, 16, 16>}]} {
    %c0 = arith.constant 0 : index
    %c0_0 = arith.constant 0 : index
    %c0_1 = arith.constant 0 : index
    %0 = vector.load %arg1[%c0, %c0_0, %c0_1] : memref<1x24x64xbf16, #tpu.memory_space<vmem>>, vector<1x24x64xbf16>
    %1 = vector.shape_cast %0 : vector<1x24x64xbf16> to vector<24x64xbf16>
    %2 = arith.extf %1 : vector<24x64xbf16> to vector<24x64xf32>
    %3 = vector.extract_strided_slice %2 {offsets = [8, 0], sizes = [16, 64], strides = [1, 1]} : vector<24x64xf32> to vector<16x64xf32>
    %c0_2 = arith.constant 0 : index
    %c0_3 = arith.constant 0 : index
    %c0_4 = arith.constant 0 : index
    %4 = vector.load %arg2[%c0_2, %c0_3, %c0_4] : memref<1x1x64xbf16, #tpu.memory_space<vmem>>, vector<1x1x64xbf16>
    %5 = vector.shape_cast %4 : vector<1x1x64xbf16> to vector<1x64xbf16>
    %6 = arith.extf %5 : vector<1x64xbf16> to vector<1x64xf32>
    %7 = arith.truncf %6 : vector<1x64xf32> to vector<1x64xbf16>
    %c0_5 = arith.constant 0 : index
    %c0_6 = arith.constant 0 : index
    %8 = vector.load %arg3[%c0_5, %c0_6] : memref<64x128xbf16, #tpu.memory_space<vmem>>, vector<64x128xbf16>
    %cst = arith.constant dense<0.000000e+00> : vector<1x128xf32>
    %9 = tpu.matmul %7, %8, %cst {dimension_numbers = #tpu.dot_dimension_numbers<[1], [0], [0], [1], [0, 0, 1, 1], [], []>} : vector<1x64xbf16>, vector<64x128xbf16>, vector<1x128xf32> -> vector<1x128xf32>
    %c0_7 = arith.constant 0 : index
    %c0_8 = arith.constant 0 : index
    %10 = vector.load %arg4[%c0_7, %c0_8] : memref<1x128xbf16, #tpu.memory_space<vmem>>, vector<1x128xbf16>
    %11 = arith.extf %10 : vector<1x128xbf16> to vector<1x128xf32>
    %12 = arith.addf %9, %11 : vector<1x128xf32>
    %13 = vector.extract_strided_slice %12 {offsets = [0, 0], sizes = [1, 64], strides = [1, 1]} : vector<1x128xf32> to vector<1x64xf32>
    %14 = vector.extract_strided_slice %12 {offsets = [0, 64], sizes = [1, 64], strides = [1, 1]} : vector<1x128xf32> to vector<1x64xf32>
    %cst_9 = arith.constant dense<0.000000e+00> : vector<16xf32>
    %15 = vector.multi_reduction <add>, %3, %cst_9 [1] : vector<16x64xf32> to vector<16xf32>
    %16 = vector.shape_cast %15 : vector<16xf32> to vector<16x1xf32>
    %cst_10 = arith.constant 6.400000e+01 : f32
    %17 = vector.broadcast %cst_10 : f32 to vector<16x1xf32>
    %18 = arith.divf %16, %17 : vector<16x1xf32>
    %19 = vector.broadcast %18 : vector<16x1xf32> to vector<16x64xf32>
    %20 = arith.subf %3, %19 : vector<16x64xf32>
    %21 = arith.mulf %20, %20 : vector<16x64xf32>
    %cst_11 = arith.constant dense<0.000000e+00> : vector<16xf32>
    %22 = vector.multi_reduction <add>, %21, %cst_11 [1] : vector<16x64xf32> to vector<16xf32>
    %23 = vector.shape_cast %22 : vector<16xf32> to vector<16x1xf32>
    %cst_12 = arith.constant 6.400000e+01 : f32
    %24 = vector.broadcast %cst_12 : f32 to vector<16x1xf32>
    %25 = arith.divf %23, %24 : vector<16x1xf32>
    %cst_13 = arith.constant 9.99999997E-7 : f32
    %26 = vector.broadcast %cst_13 : f32 to vector<16x1xf32>
    %27 = arith.addf %25, %26 : vector<16x1xf32>
    %28 = math.rsqrt %27 : vector<16x1xf32>
    %29 = vector.broadcast %28 : vector<16x1xf32> to vector<16x64xf32>
    %30 = arith.mulf %20, %29 : vector<16x64xf32>
    %cst_14 = arith.constant 1.000000e+00 : f32
    %31 = vector.broadcast %cst_14 : f32 to vector<1x64xf32>
    %32 = arith.addf %31, %13 : vector<1x64xf32>
    %33 = vector.broadcast %32 : vector<1x64xf32> to vector<16x64xf32>
    %34 = arith.mulf %30, %33 : vector<16x64xf32>
    %35 = vector.broadcast %14 : vector<1x64xf32> to vector<16x64xf32>
    %36 = arith.addf %34, %35 : vector<16x64xf32>
    %37 = arith.truncf %36 : vector<16x64xf32> to vector<16x64xbf16>
    %c0_15 = arith.constant 0 : index
    %c0_16 = arith.constant 0 : index
    %38 = vector.load %arg5[%c0_15, %c0_16] : memref<64x16xbf16, #tpu.memory_space<vmem>>, vector<64x16xbf16>
    %cst_17 = arith.constant dense<0.000000e+00> : vector<16x16xf32>
    %39 = tpu.matmul %37, %38, %cst_17 {dimension_numbers = #tpu.dot_dimension_numbers<[1], [0], [0], [1], [0, 0, 1, 1], [], []>} : vector<16x64xbf16>, vector<64x16xbf16>, vector<16x16xf32> -> vector<16x16xf32>
    %c0_18 = arith.constant 0 : index
    %c0_19 = arith.constant 0 : index
    %40 = vector.load %arg6[%c0_18, %c0_19] : memref<1x16xbf16, #tpu.memory_space<vmem>>, vector<1x16xbf16>
    %41 = arith.extf %40 : vector<1x16xbf16> to vector<1x16xf32>
    %42 = vector.broadcast %41 : vector<1x16xf32> to vector<16x16xf32>
    %43 = arith.addf %39, %42 : vector<16x16xf32>
    %44 = arith.truncf %43 : vector<16x16xf32> to vector<16x16xbf16>
    %c0_20 = arith.constant 0 : index
    %c0_21 = arith.constant 0 : index
    %c0_22 = arith.constant 0 : index
    %45 = vector.load %arg7[%c0_20, %c0_21, %c0_22] : memref<1x16x16xbf16, #tpu.memory_space<vmem>>, vector<1x16x16xbf16>
    %46 = vector.shape_cast %45 : vector<1x16x16xbf16> to vector<16x16xbf16>
    %47 = vector.shape_cast %44 : vector<16x16xbf16> to vector<1x16x16xbf16>
    tpu.vector_store %arg7[%c0_20, %c0_21, %c0_22], %47 {strides = array<i32>} : memref<1x16x16xbf16, #tpu.memory_space<vmem>>, vector<1x16x16xbf16>,
    return
  }
  func.func @transform_0(%arg0: i32) -> (i32, i32, i32) {
    %c0_i32 = arith.constant 0 : i32
    %c0_i32_0 = arith.constant 0 : i32
    %c0_i32_1 = arith.constant 0 : i32
    return %arg0, %c0_i32, %c0_i32_0 : i32, i32, i32
  }
  func.func @transform_1(%arg0: i32) -> (i32, i32, i32) {
    %c0_i32 = arith.constant 0 : i32
    %c0_i32_0 = arith.constant 0 : i32
    %c0_i32_1 = arith.constant 0 : i32
    return %arg0, %c0_i32, %c0_i32_0 : i32, i32, i32
  }
  func.func @transform_2(%arg0: i32) -> (i32, i32) {
    %c0_i32 = arith.constant 0 : i32
    %c0_i32_0 = arith.constant 0 : i32
    %c0_i32_1 = arith.constant 0 : i32
    return %c0_i32, %c0_i32_0 : i32, i32
  }
  func.func @transform_3(%arg0: i32) -> (i32, i32) {
    %c0_i32 = arith.constant 0 : i32
    %c0_i32_0 = arith.constant 0 : i32
    %c0_i32_1 = arith.constant 0 : i32
    return %c0_i32, %c0_i32_0 : i32, i32
  }
  func.func @transform_4(%arg0: i32) -> (i32, i32) {
    %c0_i32 = arith.constant 0 : i32
    %c0_i32_0 = arith.constant 0 : i32
    %c0_i32_1 = arith.constant 0 : i32
    return %c0_i32, %c0_i32_0 : i32, i32
  }
  func.func @transform_5(%arg0: i32) -> (i32, i32) {
    %c0_i32 = arith.constant 0 : i32
    %c0_i32_0 = arith.constant 0 : i32
    %c0_i32_1 = arith.constant 0 : i32
    return %c0_i32, %c0_i32_0 : i32, i32
  }
  func.func @transform_6(%arg0: i32) -> (i32, i32, i32) {
    %c0_i32 = arith.constant 0 : i32
    %c0_i32_0 = arith.constant 0 : i32
    %c0_i32_1 = arith.constant 0 : i32
    return %arg0, %c0_i32, %c0_i32_0 : i32, i32, i32
  }
}

</mosaic_0001>

<llo_original>
// kernel: flux_transformer_forward.7
$region0: #{flux_transformer_forward.7}
  #allocation0 [shape = 'u32[]', space=smem, size = 0x4, offset = 0x4, fixed_abs, tag = 'smem constant byte address 0x4 - core index']
  #allocation1 [shape = 'u32[144,128]{1,0:T(1,128)}', space=vmem, size = 0x12000, scoped, tag = 'internal scratch']
  %s0 = inlined_call_operand.vmem [shape: bf16[2,24,64], index: 0, kind: input, shape index: {}]
  %s1 = inlined_call_operand.vmem [shape: bf16[2,1,64], index: 1, kind: input, shape index: {}]
  %s2 = inlined_call_operand.vmem [shape: bf16[64,128], index: 2, kind: input, shape index: {}]
  %s3 = inlined_call_operand.vmem [shape: bf16[1,128], index: 3, kind: input, shape index: {}]
  %s4 = inlined_call_operand.vmem [shape: bf16[64,16], index: 4, kind: input, shape index: {}]
  %s5 = inlined_call_operand.vmem [shape: bf16[1,16], index: 5, kind: input, shape index: {}]
  %s6 = inlined_call_operand.hbm [shape: bf16[2,16,16], index: 6, kind: output, shape index: {}]
  %s7 = sld [smem:[#allocation0]]
  $region57: #{flux_transformer_forward.7} parent=0
    _
  %s9 = ssub.s32 1, %s7
  %s10 = scalar_select 0, %s9, %s7
  $region1: #{flux_transformer_forward.7} parent=0
    #allocation2 [shape = 'u8[8192]{0}', space=vmem, size = 0x2000, scoped, tag = 'output window, operand 0']
    #allocation3 [shape = 's32[2]{0}', space=sflag, size = 0x8, scoped, tag = 'scoped memory for flux_transformer_forward.7']
    %11 = vsyncpa [#allocation3], 0
    %s12 = scalar_lea.sflag [#allocation3], 1
    %13 = vsyncpa %s12, 0
    loop: start=0, step=1, limit=4
    $region2: #{flux_transformer_forward.7} parent=1 // loop_pre_header
      _
    $region3: #{flux_transformer_forward.7} parent=1 // loop_header
      %s15 = sphi 0, %s19
      %p16 = scmp.ge.s32.totalorder %s15, 4
      %s25 = sphi 0, %s27
      %s28 = sphi 0, %s25
      %s29 = sphi 0, %s28
      %s45 = sphi 0, %s29
      %s51 = sphi 0, %s53
      %s54 = sphi 0, %s51
      %s55 = sphi 0, %s54
      %s71 = sphi 0, %s55
      %s75 = sphi 0, %s75
      %s77 = sphi 0, %s75
      %s78 = sphi 0, %s77
      %s92 = sphi 0, %s78
      %s96 = sphi 0, %s96
      %s98 = sphi 0, %s96
      %s99 = sphi 0, %s98
      %s113 = sphi 0, %s99
      %s117 = sphi 0, %s117
      %s119 = sphi 0, %s117
      %s120 = sphi 0, %s119
      %s134 = sphi 0, %s120
      %s138 = sphi 0, %s138
      %s140 = sphi 0, %s138
      %s141 = sphi 0, %s140
      %s155 = sphi 0, %s141
      %s161 = sphi 0, %s163
      %s164 = sphi 0, %s161
      %s165 = sphi 0, %s164
      %s181 = sphi 0, %s165
    $region4: #{flux_transformer_forward.7} parent=1 // loop_header_branch
      %18 = sbr.rel (%p16) target = $region8
    $region5: #{flux_transformer_forward.7} parent=1 // loop_body
      %s20 = ssub.s32 %s15, 1
      %s21 = ssub.s32 %s15, 2
      %s22 = sadd.s32 %s15, 1
      %s23 = ssub.s32 %s15, %s22
      %p24 = scmp.eq.s32.totalorder %s23, 0
      %s26 = sadd.s32 %s25, 1
      %s27 = scalar_select %p24, %s25, %s26
      %p30 = pneg %p24
      %p31 = scmp.eq.s32.totalorder %s15, 1
      %p32 = por %p30, %p31
      %p33 = scmp.ne.s32.totalorder %s25, %s28
      %p34 = scmp.eq.s32.totalorder %s15, 0
      %p35 = por %p33, %p34
      %p36 = scmp.ne.s32.totalorder %s25, %s28
      %p37 = scmp.eq.s32.totalorder %s20, 1
      %p38 = por %p36, %p37
      %p39 = scmp.ne.s32.totalorder %s28, %s29
      %p40 = scmp.eq.s32.totalorder %s20, 0
      %p41 = por %p39, %p40
      %p42 = scmp.ne.s32.totalorder %s28, %s29
      %p43 = scmp.eq.s32.totalorder %s21, 1
      %p44 = por %p42, %p43
      %p46 = scmp.ne.s32.totalorder %s29, %s45
      %p47 = scmp.eq.s32.totalorder %s21, 0
      %p48 = por %p46, %p47
      %s49 = ssub.s32 %s15, %s22
      %p50 = scmp.eq.s32.totalorder %s49, 0
      %s52 = sadd.s32 %s51, 1
      %s53 = scalar_select %p50, %s51, %s52
      %p56 = pneg %p50
      %p57 = scmp.eq.s32.totalorder %s15, 1
      %p58 = por %p56, %p57
      %p59 = scmp.ne.s32.totalorder %s51, %s54
      %p60 = scmp.eq.s32.totalorder %s15, 0
      %p61 = por %p59, %p60
      %p62 = scmp.ne.s32.totalorder %s51, %s54
      %p63 = scmp.eq.s32.totalorder %s20, 1
      %p64 = por %p62, %p63
      %p65 = scmp.ne.s32.totalorder %s54, %s55
      %p66 = scmp.eq.s32.totalorder %s20, 0
      %p67 = por %p65, %p66
      %p68 = scmp.ne.s32.totalorder %s54, %s55
      %p69 = scmp.eq.s32.totalorder %s21, 1
      %p70 = por %p68, %p69
      %p72 = scmp.ne.s32.totalorder %s55, %s71
      %p73 = scmp.eq.s32.totalorder %s21, 0
      %p74 = por %p72, %p73
      %s76 = sadd.s32 %s75, 1
      %p79 = scmp.eq.s32.totalorder %s15, 1
      %p80 = scmp.ne.s32.totalorder %s75, %s77
      %p81 = scmp.eq.s32.totalorder %s15, 0
      %p82 = por %p80, %p81
      %p83 = scmp.ne.s32.totalorder %s75, %s77
      %p84 = scmp.eq.s32.totalorder %s20, 1
      %p85 = por %p83, %p84
      %p86 = scmp.ne.s32.totalorder %s77, %s78
      %p87 = scmp.eq.s32.totalorder %s20, 0
      %p88 = por %p86, %p87
      %p89 = scmp.ne.s32.totalorder %s77, %s78
      %p90 = scmp.eq.s32.totalorder %s21, 1
      %p91 = por %p89, %p90
      %p93 = scmp.ne.s32.totalorder %s78, %s92
      %p94 = scmp.eq.s32.totalorder %s21, 0
      %p95 = por %p93, %p94
      %s97 = sadd.s32 %s96, 1
      %p100 = scmp.eq.s32.totalorder %s15, 1
      %p101 = scmp.ne.s32.totalorder %s96, %s98
      %p102 = scmp.eq.s32.totalorder %s15, 0
      %p103 = por %p101, %p102
      %p104 = scmp.ne.s32.totalorder %s96, %s98
      %p105 = scmp.eq.s32.totalorder %s20, 1
      %p106 = por %p104, %p105
      %p107 = scmp.ne.s32.totalorder %s98, %s99
      %p108 = scmp.eq.s32.totalorder %s20, 0
      %p109 = por %p107, %p108
      %p110 = scmp.ne.s32.totalorder %s98, %s99
      %p111 = scmp.eq.s32.totalorder %s21, 1
      %p112 = por %p110, %p111
      %p114 = scmp.ne.s32.totalorder %s99, %s113
      %p115 = scmp.eq.s32.totalorder %s21, 0
      %p116 = por %p114, %p115
      %s118 = sadd.s32 %s117, 1
      %p121 = scmp.eq.s32.totalorder %s15, 1
      %p122 = scmp.ne.s32.totalorder %s117, %s119
      %p123 = scmp.eq.s32.totalorder %s15, 0
      %p124 = por %p122, %p123
      %p125 = scmp.ne.s32.totalorder %s117, %s119
      %p126 = scmp.eq.s32.totalorder %s20, 1
      %p127 = por %p125, %p126
      %p128 = scmp.ne.s32.totalorder %s119, %s120
      %p129 = scmp.eq.s32.totalorder %s20, 0
      %p130 = por %p128, %p129
      %p131 = scmp.ne.s32.totalorder %s119, %s120
      %p132 = scmp.eq.s32.totalorder %s21, 1
      %p133 = por %p131, %p132
      %p135 = scmp.ne.s32.totalorder %s120, %s134
      %p136 = scmp.eq.s32.totalorder %s21, 0
      %p137 = por %p135, %p136
      %s139 = sadd.s32 %s138, 1
      %p142 = scmp.eq.s32.totalorder %s15, 1
      %p143 = scmp.ne.s32.totalorder %s138, %s140
      %p144 = scmp.eq.s32.totalorder %s15, 0
      %p145 = por %p143, %p144
      %p146 = scmp.ne.s32.totalorder %s138, %s140
      %p147 = scmp.eq.s32.totalorder %s20, 1
      %p148 = por %p146, %p147
      %p149 = scmp.ne.s32.totalorder %s140, %s141
      %p150 = scmp.eq.s32.totalorder %s20, 0
      %p151 = por %p149, %p150
      %p152 = scmp.ne.s32.totalorder %s140, %s141
      %p153 = scmp.eq.s32.totalorder %s21, 1
      %p154 = por %p152, %p153
      %p156 = scmp.ne.s32.totalorder %s141, %s155
      %p157 = scmp.eq.s32.totalorder %s21, 0
      %p158 = por %p156, %p157
      %s159 = ssub.s32 %s15, %s22
      %p160 = scmp.eq.s32.totalorder %s159, 0
      %s162 = sadd.s32 %s161, 1
      %s163 = scalar_select %p160, %s161, %s162
      %p166 = pneg %p160
      %p167 = scmp.eq.s32.totalorder %s15, 1
      %p168 = por %p166, %p167
      %p169 = scmp.ne.s32.totalorder %s161, %s164
      %p170 = scmp.eq.s32.totalorder %s15, 0
      %p171 = por %p169, %p170
      %p172 = scmp.ne.s32.totalorder %s161, %s164
      %p173 = scmp.eq.s32.totalorder %s20, 1
      %p174 = por %p172, %p173
      %p175 = scmp.ne.s32.totalorder %s164, %s165
      %p176 = scmp.eq.s32.totalorder %s20, 0
      %p177 = por %p175, %p176
      %p178 = scmp.ne.s32.totalorder %s164, %s165
      %p179 = scmp.eq.s32.totalorder %s21, 1
      %p180 = por %p178, %p179
      %p182 = scmp.ne.s32.totalorder %s165, %s181
      %p183 = scmp.eq.s32.totalorder %s21, 0
      %p184 = por %p182, %p183
      %p185 = scmp.le.s32.totalorder 1, %s15
      %p186 = scmp.lt.s32.totalorder %s15, 3
      %p187 = pnand %p185, %p186
      %p188 = pneg %p187
      // Predicated region
      $region9: #{flux_transformer_forward.7} parent=5 // pred_check
        _
      $region10: #{flux_transformer_forward.7} parent=5 // pred_check_branch
        %190 = sbr.rel (%p187) target = $region12
      $region11: #{flux_transformer_forward.7} parent=5 // pred_region
        %s191 = ssub.s32 %s15, 1
        // Predicated region
        $region13: #{flux_transformer_forward.7} parent=11 // pred_check
          %p192 = pneg %p88
        $region14: #{flux_transformer_forward.7} parent=11 // pred_check_branch
          %194 = sbr.rel (%p192) target = $region16
        $region15: #{flux_transformer_forward.7} parent=11 // pred_region
          _
        $region16: #{flux_transformer_forward.7} parent=11 // pred_fallthru
          _
        // Predicated region
        $region17: #{flux_transformer_forward.7} parent=11 // pred_check
          %p195 = pneg %p109
        $region18: #{flux_transformer_forward.7} parent=11 // pred_check_branch
          %197 = sbr.rel (%p195) target = $region20
        $region19: #{flux_transformer_forward.7} parent=11 // pred_region
          _
        $region20: #{flux_transformer_forward.7} parent=11 // pred_fallthru
          _
        // Predicated region
        $region21: #{flux_transformer_forward.7} parent=11 // pred_check
          %p198 = pneg %p130
        $region22: #{flux_transformer_forward.7} parent=11 // pred_check_branch
          %200 = sbr.rel (%p198) target = $region24
        $region23: #{flux_transformer_forward.7} parent=11 // pred_region
          _
        $region24: #{flux_transformer_forward.7} parent=11 // pred_fallthru
          _
        // Predicated region
        $region25: #{flux_transformer_forward.7} parent=11 // pred_check
          %p201 = pneg %p151
        $region26: #{flux_transformer_forward.7} parent=11 // pred_check_branch
          %203 = sbr.rel (%p201) target = $region28
        $region27: #{flux_transformer_forward.7} parent=11 // pred_region
          _
        $region28: #{flux_transformer_forward.7} parent=11 // pred_fallthru
          _
      $region12: #{flux_transformer_forward.7} parent=5 // pred_fallthru
        _
      %p204 = scmp.lt.s32.totalorder %s15, 2
      // Predicated region
      $region29: #{flux_transformer_forward.7} parent=5 // pred_check
        %p205 = pneg %p204
      $region30: #{flux_transformer_forward.7} parent=5 // pred_check_branch
        %207 = sbr.rel (%p205) target = $region32
      $region31: #{flux_transformer_forward.7} parent=5 // pred_region
        // Predicated region
        $region33: #{flux_transformer_forward.7} parent=31 // pred_check
          %p208 = pneg %p35
        $region34: #{flux_transformer_forward.7} parent=31 // pred_check_branch
          %210 = sbr.rel (%p208) target = $region36
        $region35: #{flux_transformer_forward.7} parent=31 // pred_region
          %p211 = scmp.lt.s32.totalorder %s15, 1
          %s212 = scalar_select %p211, %s15, 1
          %s213 = smul.addr %s212, 3
          %s214 = smul.addr %s213, 4
          %s215 = scalar_lea.vmem %s0, %s214
        $region36: #{flux_transformer_forward.7} parent=31 // pred_fallthru
          _
        // Predicated region
        $region37: #{flux_transformer_forward.7} parent=31 // pred_check
          %p216 = pneg %p61
        $region38: #{flux_transformer_forward.7} parent=31 // pred_check_branch
          %218 = sbr.rel (%p216) target = $region40
        $region39: #{flux_transformer_forward.7} parent=31 // pred_region
          %p219 = scmp.lt.s32.totalorder %s15, 1
          %s220 = scalar_select %p219, %s15, 1
          %s221 = scalar_lea.vmem %s1, %s220
        $region40: #{flux_transformer_forward.7} parent=31 // pred_fallthru
          _
      $region32: #{flux_transformer_forward.7} parent=5 // pred_fallthru
        _
      %p222 = scmp.le.s32.totalorder 1, %s15
      %p223 = scmp.lt.s32.totalorder %s15, 3
      %p224 = pnand %p222, %p223
      %p225 = pneg %p224
      // Predicated region
      $region41: #{flux_transformer_forward.7} parent=5 // pred_check
        _
      $region42: #{flux_transformer_forward.7} parent=5 // pred_check_branch
        %227 = sbr.rel (%p224) target = $region44
      $region43: #{flux_transformer_forward.7} parent=5 // pred_region
        %s228 = ssub.s32 %s15, 1
        %p229 = scmp.lt.s32.totalorder %s20, 1
        %s230 = scalar_select %p229, %s20, 1
        %s231 = smul.addr %s230, 3
        %s232 = smul.addr %s231, 4
        %s233 = scalar_lea.vmem %s0, %s232
        %p234 = pneg %p41
        %p235 = pneg %p38
        %p236 = scmp.lt.s32.totalorder %s20, 1
        %s237 = scalar_select %p236, %s20, 1
        %s238 = scalar_lea.vmem %s1, %s237
        %p239 = pneg %p67
        %p240 = pneg %p64
        %p241 = pneg %p88
        %p242 = pneg %p85
        %p243 = pneg %p109
        %p244 = pneg %p106
        %p245 = pneg %p130
        %p246 = pneg %p127
        %p247 = pneg %p151
        %p248 = pneg %p148
        %p249 = pneg %p177
        %p250 = pneg %p174
        %s251 = sand.u32 %s164, 1
        %s252 = scalar_lea.sflag [#allocation3], %s251
        %s253 = sand.u32 %s164, 1
        %s254 = smul.addr %s253, 8
        %s255 = scalar_lea.vmem [#allocation2], %s254
        %p256 = scmp.lt.s32.totalorder %s20, 1
        %s257 = scalar_select %p256, %s20, 1
        %s258 = smul.addr %s257, 3
        %s259 = smul.addr %s258, 4
        %s260 = scalar_lea.vmem %s0, %s259
        %p261 = scmp.lt.s32.totalorder %s20, 1
        %s262 = scalar_select %p261, %s20, 1
        %s263 = scalar_lea.vmem %s1, %s262
        %v265 = vld [vmem:[%s260 + $0x4] sm:$0xf]
        %v266 = vld [vmem:[%s260 + $0x8] sm:$0xf]
        %v267 = vunpack.c.l.bf16 %v265
        %v268 = vunpack.c.l.bf16 %v266
        %v269 = vld [vmem:[%s263] sm:$0x1]
        %v270 = vld [vmem:[%s2] sm:$0xf]
        %v271 = vld [vmem:[%s2 + $0x4] sm:$0xf]
        %v272 = vld [vmem:[%s2 + $0x8] sm:$0xf]
        %v273 = vld [vmem:[%s2 + $0xc] sm:$0xf]
        %v274 = vld [vmem:[%s2 + $0x10] sm:$0xf]
        %v275 = vld [vmem:[%s2 + $0x14] sm:$0xf]
        %v276 = vld [vmem:[%s2 + $0x18] sm:$0xf]
        %v277 = vld [vmem:[%s2 + $0x1c] sm:$0xf]
        %v278 = vld [vmem:[%s3] sm:$0x1]
        %v279 = vunpack.c.l.bf16 %v278
        %v288 = vunpack.c.l.b16 %v270
        %v289 = vunpack.c.l.b16 %v271
        %v290 = vunpack.c.l.b16 %v272
        %v291 = vunpack.c.l.b16 %v273
        %v292 = vunpack.c.l.b16 %v274
        %v293 = vunpack.c.l.b16 %v275
        %v294 = vunpack.c.l.b16 %v276
        %v295 = vunpack.c.l.b16 %v277
        %v296 = vpack.c.b16 %v289, %v288
        %v297 = vpack.c.b16 %v291, %v290
        %v298 = vpack.c.b16 %v293, %v292
        %v299 = vpack.c.b16 %v295, %v294
        %vm304 = vcmask 523264
        %v306 = vsel %vm304, %v269, 0
        %308 = vmatprep.subr.bf16.mxu0 0
        %309 = vmatpush1.bf16.msra.mxu0 %v296
        %310 = vmatprep.subr.bf16.mxu0 0
        %311 = vmatpush1.bf16.msra.mxu0 %v297
        %312 = vmatprep.subr.bf16.mxu0 0
        %313 = vmatpush1.bf16.msra.mxu0 %v298
        %314 = vmatprep.subr.bf16.mxu0 0
        %315 = vmatpush1.bf16.msra.mxu0 %v299
        %316 = vmatprep.subr.bf16.mxu0 0
        %317 = vmatpush1.bf16.msra.mxu0 0
        %318 = vmatprep.subr.bf16.mxu0 0
        %319 = vmatpush1.bf16.msra.mxu0 0
        %320 = vmatprep.subr.bf16.mxu0 0
        %321 = vmatpush1.bf16.msra.mxu0 0
        %322 = vmatprep.subr.bf16.mxu0 0
        %323 = vmatpush1.bf16.msra.mxu0 0
        %324 = vmatprep.subr.bf16.mxu0 0
        %325 = vmatpush1.bf16.msra.mxu0 0
        %326 = vmatprep.subr.bf16.mxu0 0
        %327 = vmatpush1.bf16.msra.mxu0 0
        %328 = vmatprep.subr.bf16.mxu0 0
        %329 = vmatpush1.bf16.msra.mxu0 0
        %330 = vmatprep.subr.bf16.mxu0 0
        %331 = vmatpush1.bf16.msra.mxu0 0
        %332 = vmatprep.subr.bf16.mxu0 0
        %333 = vmatpush1.bf16.msra.mxu0 0
        %334 = vmatprep.subr.bf16.mxu0 0
        %335 = vmatpush1.bf16.msra.mxu0 0
        %336 = vmatprep.subr.bf16.mxu0 0
        %337 = vmatpush1.bf16.msra.mxu0 0
        %338 = vmatprep.subr.bf16.mxu0 0
        %339 = vmatpush1.bf16.msra.mxu0 0
        %340 = vmatprep.mubr.bf16.mxu0 0
        %341 = vmatmul.mubr.bf16.gmra.mrb[0].mxu0 %v306
        %v342 = vpop.f32.mrb[0].mxu0
        %v343 = vadd.f32 %v279, %v342
        %v344 = vpop.f32.mrb[0].mxu0
        %v345 = vpop.f32.mrb[0].mxu0
        %v346 = vpop.f32.mrb[0].mxu0
        %347 = vdwg.mxu0
        %v348 = vsel %vm304, %v267, 0.0
        %349 = vadd.xlane.f32.xlu0 %v348
        %v350 = vpop.xlane.xlu0 %349
        %v351 = vsel %vm304, %v268, 0.0
        %352 = vadd.xlane.f32.xlu0 %v351
        %v353 = vpop.xlane.xlu0 %352
        %v354 = vrcp.pop 64.0
        %v355 = vmul.f32 %v350, %v354
        %v356 = vmul.f32 %v353, %v354
        %v357 = vsub.f32 %v267, %v355
        %v358 = vsub.f32 %v268, %v356
        %v359 = vmul.f32 %v357, %v357
        %v360 = vmul.f32 %v358, %v358
        %v361 = vsel %vm304, %v359, 0.0
        %362 = vadd.xlane.f32.xlu0 %v361
        %v363 = vpop.xlane.xlu0 %362
        %v364 = vsel %vm304, %v360, 0.0
        %365 = vadd.xlane.f32.xlu0 %v364
        %v366 = vpop.xlane.xlu0 %365
        %v367 = vmul.f32 %v363, %v354
        %v368 = vmul.f32 %v366, %v354
        %v369 = vadd.f32 %v367, 1e-06
        %v370 = vadd.f32 %v368, 1e-06
        %v371 = vrsqrt.pop %v369
        %v372 = vrsqrt.pop %v370
        %v373 = vmul.f32 %v357, %v371
        %v374 = vmul.f32 %v358, %v372
        %v375 = vadd.f32 %v343, 1.0
        %v376 = vlaneseq
        %v377 = vshrl.u32 %v376, 7
        %v378 = vsub.s32 0, %v377
        %v379 = vrot.slane %v375, %v378
        %v380 = vmul.f32 %v373, %v379
        %v381 = vmul.f32 %v374, %v379
        %v382 = vlaneseq
        %v383 = vshrl.u32 %v382, 7
        %v384 = vsub.s32 0, %v383
        %v385 = vrot.slane %v343, %v384
        %387 = vrot.lane.b32.xlu0 %v385, 64
        %v388 = vpop.permute.xlu0 %387
        %v390 = vadd.f32 %v380, %v388
        %v391 = vadd.f32 %v381, %v388
        %v392 = vpack.c.bf16 %v391, %v390
        %v393 = vld [vmem:[%s4] sm:$0xf]
        %v394 = vld [vmem:[%s4 + $0x4] sm:$0xf]
        %v395 = vld [vmem:[%s4 + $0x8] sm:$0xf]
        %v396 = vld [vmem:[%s4 + $0xc] sm:$0xf]
        %v397 = vld [vmem:[%s4 + $0x10] sm:$0xf]
        %v398 = vld [vmem:[%s4 + $0x14] sm:$0xf]
        %v399 = vld [vmem:[%s4 + $0x18] sm:$0xf]
        %v400 = vld [vmem:[%s4 + $0x1c] sm:$0xf]
        %v401 = vld [vmem:[%s5] sm:$0x1]
        %v402 = vunpack.c.l.bf16 %v401
        %v403 = vlaneseq
        %v404 = vshrl.u32 %v403, 7
        %v405 = vsub.s32 0, %v404
        %v406 = vrot.slane %v402, %v405
        %v415 = vunpack.c.l.b16 %v393
        %v416 = vunpack.c.l.b16 %v394
        %v417 = vunpack.c.l.b16 %v395
        %v418 = vunpack.c.l.b16 %v396
        %v419 = vunpack.c.l.b16 %v397
        %v420 = vunpack.c.l.b16 %v398
        %v421 = vunpack.c.l.b16 %v399
        %v422 = vunpack.c.l.b16 %v400
        %v423 = vpack.c.b16 %v416, %v415
        %v424 = vpack.c.b16 %v418, %v417
        %v425 = vpack.c.b16 %v420, %v419
        %v426 = vpack.c.b16 %v422, %v421
        %v432 = vsel %vm304, %v392, 0
        %434 = vmatprep.subr.bf16.mxu0 0
        %435 = vmatpush1.bf16.msra.mxu0 %v423
        %436 = vmatprep.subr.bf16.mxu0 0
        %437 = vmatpush1.bf16.msra.mxu0 %v424
        %438 = vmatprep.subr.bf16.mxu0 0
        %439 = vmatpush1.bf16.msra.mxu0 %v425
        %440 = vmatprep.subr.bf16.mxu0 0
        %441 = vmatpush1.bf16.msra.mxu0 %v426
        %442 = vmatprep.subr.bf16.mxu0 0
        %443 = vmatpush1.bf16.msra.mxu0 0
        %444 = vmatprep.subr.bf16.mxu0 0
        %445 = vmatpush1.bf16.msra.mxu0 0
        %446 = vmatprep.subr.bf16.mxu0 0
        %447 = vmatpush1.bf16.msra.mxu0 0
        %448 = vmatprep.subr.bf16.mxu0 0
        %449 = vmatpush1.bf16.msra.mxu0 0
        %450 = vmatprep.subr.bf16.mxu0 0
        %451 = vmatpush1.bf16.msra.mxu0 0
        %452 = vmatprep.subr.bf16.mxu0 0
        %453 = vmatpush1.bf16.msra.mxu0 0
        %454 = vmatprep.subr.bf16.mxu0 0
        %455 = vmatpush1.bf16.msra.mxu0 0
        %456 = vmatprep.subr.bf16.mxu0 0
        %457 = vmatpush1.bf16.msra.mxu0 0
        %458 = vmatprep.subr.bf16.mxu0 0
        %459 = vmatpush1.bf16.msra.mxu0 0
        %460 = vmatprep.subr.bf16.mxu0 0
        %461 = vmatpush1.bf16.msra.mxu0 0
        %462 = vmatprep.subr.bf16.mxu0 0
        %463 = vmatpush1.bf16.msra.mxu0 0
        %464 = vmatprep.subr.bf16.mxu0 0
        %465 = vmatpush1.bf16.msra.mxu0 0
        %466 = vmatprep.mubr.bf16.mxu0 0
        %467 = vmatmul.mubr.bf16.gmra.mrb[0].mxu0 %v432
        %v468 = vpop.f32.mrb[0].mxu0
        %v469 = vadd.f32 %v406, %v468
        %v470 = vpop.f32.mrb[0].mxu0
        %v471 = vpop.f32.mrb[0].mxu0
        %v472 = vadd.f32 %v406, %v471
        %v473 = vpop.f32.mrb[0].mxu0
        %474 = vdwg.mxu0
        %v475 = vpack.c.bf16 %v472, %v469
        %v477 = vunpack.c.l.b16 %v475
        %v478 = vunpack.c.h.b16 %v475
        %v479 = vpack.c.b16 %v477, %v477
        %v480 = vpack.c.b16 %v478, %v478
        %vm483 = vcmask 125952
        %484 = vst.msk [vmem:[%s255] sm:$0xf] %vm483, %v479
        %485 = vst.msk [vmem:[%s255 + $0x4] sm:$0xf] %vm483, %v480
        %s486 = sand.u32 %s164, 1
        %s487 = scalar_lea.sflag [#allocation3], %s486
        %s488 = sand.u32 %s164, 1
        %s489 = smul.addr %s488, 8
        %s490 = scalar_lea.vmem [#allocation2], %s489
        // Predicated region
        $region45: #{flux_transformer_forward.7} parent=43 // pred_check
          %p491 = pneg %p174
        $region46: #{flux_transformer_forward.7} parent=43 // pred_check_branch
          %493 = sbr.rel (%p491) target = $region48
        $region47: #{flux_transformer_forward.7} parent=43 // pred_region
          %s495 = ssub.s32 128, 128
          %496 = vsyncadd %s487, %s495
          %s497 = smul.addr %s20, 2
          %s498 = smul.addr %s497, 64
          %s499 = scalar_lea.hbm %s6, %s498
          %s500 = sshll.u32 %s490, 4
          %s501 = int_to_ptr.vmem [resolvable:$true] %s500
          %506 = dma.vmem_to_hbm [thread:$0]  %s501, 128, %s499, %s487, 64, 64, 4
        $region48: #{flux_transformer_forward.7} parent=43 // pred_fallthru
          _
      $region44: #{flux_transformer_forward.7} parent=5 // pred_fallthru
        _
      %p507 = scmp.le.s32.totalorder 2, %s15
      // Predicated region
      $region49: #{flux_transformer_forward.7} parent=5 // pred_check
        %p508 = pneg %p507
      $region50: #{flux_transformer_forward.7} parent=5 // pred_check_branch
        %510 = sbr.rel (%p508) target = $region52
      $region51: #{flux_transformer_forward.7} parent=5 // pred_region
        %s511 = ssub.s32 %s15, 2
        // Predicated region
        $region53: #{flux_transformer_forward.7} parent=51 // pred_check
          %p512 = pneg %p180
        $region54: #{flux_transformer_forward.7} parent=51 // pred_check_branch
          %514 = sbr.rel (%p512) target = $region56
        $region55: #{flux_transformer_forward.7} parent=51 // pred_region
          %s515 = sand.u32 %s165, 1
          %s516 = scalar_lea.sflag [#allocation3], %s515
          %s517 = sand.u32 %s165, 1
          %s518 = smul.addr %s517, 8
          %s519 = scalar_lea.vmem [#allocation2], %s518
          %520 = dma.done %s516, 128
        $region56: #{flux_transformer_forward.7} parent=51 // pred_fallthru
          _
      $region52: #{flux_transformer_forward.7} parent=5 // pred_fallthru
        _
    $region6: #{flux_transformer_forward.7} parent=1 // loop_footer
      %s19 = sadd.s32 1, %s15
    $region7: #{flux_transformer_forward.7} parent=1 // loop_footer_branch
      %14 = sbr.rel target = $region3
    $region8: #{flux_transformer_forward.7} parent=1 // loop_exit
      _
    %521 = vsyncpa [#allocation3], 1
    %s522 = scalar_lea.sflag [#allocation3], 1
    %523 = vsyncpa %s522, 1

// kernel: flux_transformer_forward.4
$region0: #{flux_transformer_forward.4}
  #allocation0 [shape = 'u32[]', space=smem, size = 0x4, offset = 0x4, fixed_abs, tag = 'smem constant byte address 0x4 - core index']
  #allocation1 [shape = 'u32[144,128]{1,0:T(1,128)}', space=vmem, size = 0x12000, scoped, tag = 'internal scratch']
  %s0 = inlined_call_operand.vmem [shape: bf16[2,16,16], index: 0, kind: input, shape index: {}]
  %s1 = inlined_call_operand.vmem [shape: bf16[2,8,32], index: 1, kind: input, shape index: {}]
  %s2 = inlined_call_operand.vmem [shape: bf16[2,1,32], index: 2, kind: input, shape index: {}]
  %s3 = inlined_call_operand.vmem [shape: bf16[2,1,32], index: 3, kind: input, shape index: {}]
  %s4 = inlined_call_operand.vmem [shape: bf16[2,1,32], index: 4, kind: input, shape index: {}]
  %s5 = inlined_call_operand.vmem [shape: bf16[16,64], index: 5, kind: input, shape index: {}]
  %s6 = inlined_call_operand.vmem [shape: bf16[1,64], index: 6, kind: input, shape index: {}]
  %s7 = inlined_call_operand.vmem [shape: bf16[32,64], index: 7, kind: input, shape index: {}]
  %s8 = inlined_call_operand.vmem [shape: bf16[1,64], index: 8, kind: input, shape index: {}]
  %s9 = inlined_call_operand.vmem [shape: bf16[32,64], index: 9, kind: input, shape index: {}]
  %s10 = inlined_call_operand.vmem [shape: bf16[1,64], index: 10, kind: input, shape index: {}]
  %s11 = inlined_call_operand.vmem [shape: bf16[32,64], index: 11, kind: input, shape index: {}]
  %s12 = inlined_call_operand.vmem [shape: bf16[1,64], index: 12, kind: input, shape index: {}]
  %s13 = inlined_call_operand.vmem [shape: bf16[32,64], index: 13, kind: input, shape index: {}]
  %s14 = inlined_call_operand.vmem [shape: bf16[1,64], index: 14, kind: input, shape index: {}]
  %s15 = inlined_call_operand.vmem [shape: bf16[192,64], index: 15, kind: input, shape index: {}]
  %s16 = inlined_call_operand.vmem [shape: bf16[1,64], index: 16, kind: input, shape index: {}]
  %s17 = inlined_call_operand.vmem [shape: bf16[2,24,64], index: 17, kind: output, shape index: {0}]
  %s18 = inlined_call_operand.vmem [shape: bf16[2,1,64], index: 18, kind: output, shape index: {1}]
  %19 = xla_tuple %s17, %s18
  %s20 = sld [smem:[#allocation0]]
  $region109: #{flux_transformer_forward.4} parent=0
    _
  %s22 = ssub.s32 1, %s20
  %s23 = scalar_select 0, %s22, %s20
  loop: start=0, step=1, limit=4
  $region2: #{flux_transformer_forward.4} parent=0 // loop_pre_header
    _
  $region3: #{flux_transformer_forward.4} parent=0 // loop_header
    %s25 = sphi 0, %s29
    %p26 = scmp.ge.s32.totalorder %s25, 4
    %s35 = sphi 0, %s37
    %s38 = sphi 0, %s35
    %s39 = sphi 0, %s38
    %s55 = sphi 0, %s39
    %s61 = sphi 0, %s63
    %s64 = sphi 0, %s61
    %s65 = sphi 0, %s64
    %s81 = sphi 0, %s65
    %s87 = sphi 0, %s89
    %s90 = sphi 0, %s87
    %s91 = sphi 0, %s90
    %s107 = sphi 0, %s91
    %s113 = sphi 0, %s115
    %s116 = sphi 0, %s113
    %s117 = sphi 0, %s116
    %s133 = sphi 0, %s117
    %s139 = sphi 0, %s141
    %s142 = sphi 0, %s139
    %s143 = sphi 0, %s142
    %s159 = sphi 0, %s143
    %s163 = sphi 0, %s163
    %s165 = sphi 0, %s163
    %s166 = sphi 0, %s165
    %s180 = sphi 0, %s166
    %s184 = sphi 0, %s184
    %s186 = sphi 0, %s184
    %s187 = sphi 0, %s186
    %s201 = sphi 0, %s187
    %s205 = sphi 0, %s205
    %s207 = sphi 0, %s205
    %s208 = sphi 0, %s207
    %s222 = sphi 0, %s208
    %s226 = sphi 0, %s226
    %s228 = sphi 0, %s226
    %s229 = sphi 0, %s228
    %s243 = sphi 0, %s229
    %s247 = sphi 0, %s247
    %s249 = sphi 0, %s247
    %s250 = sphi 0, %s249
    %s264 = sphi 0, %s250
    %s268 = sphi 0, %s268
    %s270 = sphi 0, %s268
    %s271 = sphi 0, %s270
    %s285 = sphi 0, %s271
    %s289 = sphi 0, %s289
    %s291 = sphi 0, %s289
    %s292 = sphi 0, %s291
    %s306 = sphi 0, %s292
    %s310 = sphi 0, %s310
    %s312 = sphi 0, %s310
    %s313 = sphi 0, %s312
    %s327 = sphi 0, %s313
    %s331 = sphi 0, %s331
    %s333 = sphi 0, %s331
    %s334 = sphi 0, %s333
    %s348 = sphi 0, %s334
    %s352 = sphi 0, %s352
    %s354 = sphi 0, %s352
    %s355 = sphi 0, %s354
    %s369 = sphi 0, %s355
    %s373 = sphi 0, %s373
    %s375 = sphi 0, %s373
    %s376 = sphi 0, %s375
    %s390 = sphi 0, %s376
    %s394 = sphi 0, %s394
    %s396 = sphi 0, %s394
    %s397 = sphi 0, %s396
    %s411 = sphi 0, %s397
    %s417 = sphi 0, %s419
    %s420 = sphi 0, %s417
    %s421 = sphi 0, %s420
    %s437 = sphi 0, %s421
    %s443 = sphi 0, %s445
    %s446 = sphi 0, %s443
    %s447 = sphi 0, %s446
    %s463 = sphi 0, %s447
  $region4: #{flux_transformer_forward.4} parent=0 // loop_header_branch
    %28 = sbr.rel (%p26) target = $region8
  $region5: #{flux_transformer_forward.4} parent=0 // loop_body
    %s30 = ssub.s32 %s25, 1
    %s31 = ssub.s32 %s25, 2
    %s32 = sadd.s32 %s25, 1
    %s33 = ssub.s32 %s25, %s32
    %p34 = scmp.eq.s32.totalorder %s33, 0
    %s36 = sadd.s32 %s35, 1
    %s37 = scalar_select %p34, %s35, %s36
    %p40 = pneg %p34
    %p41 = scmp.eq.s32.totalorder %s25, 1
    %p42 = por %p40, %p41
    %p43 = scmp.ne.s32.totalorder %s35, %s38
    %p44 = scmp.eq.s32.totalorder %s25, 0
    %p45 = por %p43, %p44
    %p46 = scmp.ne.s32.totalorder %s35, %s38
    %p47 = scmp.eq.s32.totalorder %s30, 1
    %p48 = por %p46, %p47
    %p49 = scmp.ne.s32.totalorder %s38, %s39
    %p50 = scmp.eq.s32.totalorder %s30, 0
    %p51 = por %p49, %p50
    %p52 = scmp.ne.s32.totalorder %s38, %s39
    %p53 = scmp.eq.s32.totalorder %s31, 1
    %p54 = por %p52, %p53
    %p56 = scmp.ne.s32.totalorder %s39, %s55
    %p57 = scmp.eq.s32.totalorder %s31, 0
    %p58 = por %p56, %p57
    %s59 = ssub.s32 %s25, %s32
    %p60 = scmp.eq.s32.totalorder %s59, 0
    %s62 = sadd.s32 %s61, 1
    %s63 = scalar_select %p60, %s61, %s62
    %p66 = pneg %p60
    %p67 = scmp.eq.s32.totalorder %s25, 1
    %p68 = por %p66, %p67
    %p69 = scmp.ne.s32.totalorder %s61, %s64
    %p70 = scmp.eq.s32.totalorder %s25, 0
    %p71 = por %p69, %p70
    %p72 = scmp.ne.s32.totalorder %s61, %s64
    %p73 = scmp.eq.s32.totalorder %s30, 1
    %p74 = por %p72, %p73
    %p75 = scmp.ne.s32.totalorder %s64, %s65
    %p76 = scmp.eq.s32.totalorder %s30, 0
    %p77 = por %p75, %p76
    %p78 = scmp.ne.s32.totalorder %s64, %s65
    %p79 = scmp.eq.s32.totalorder %s31, 1
    %p80 = por %p78, %p79
    %p82 = scmp.ne.s32.totalorder %s65, %s81
    %p83 = scmp.eq.s32.totalorder %s31, 0
    %p84 = por %p82, %p83
    %s85 = ssub.s32 %s25, %s32
    %p86 = scmp.eq.s32.totalorder %s85, 0
    %s88 = sadd.s32 %s87, 1
    %s89 = scalar_select %p86, %s87, %s88
    %p92 = pneg %p86
    %p93 = scmp.eq.s32.totalorder %s25, 1
    %p94 = por %p92, %p93
    %p95 = scmp.ne.s32.totalorder %s87, %s90
    %p96 = scmp.eq.s32.totalorder %s25, 0
    %p97 = por %p95, %p96
    %p98 = scmp.ne.s32.totalorder %s87, %s90
    %p99 = scmp.eq.s32.totalorder %s30, 1
    %p100 = por %p98, %p99
    %p101 = scmp.ne.s32.totalorder %s90, %s91
    %p102 = scmp.eq.s32.totalorder %s30, 0
    %p103 = por %p101, %p102
    %p104 = scmp.ne.s32.totalorder %s90, %s91
    %p105 = scmp.eq.s32.totalorder %s31, 1
    %p106 = por %p104, %p105
    %p108 = scmp.ne.s32.totalorder %s91, %s107
    %p109 = scmp.eq.s32.totalorder %s31, 0
    %p110 = por %p108, %p109
    %s111 = ssub.s32 %s25, %s32
    %p112 = scmp.eq.s32.totalorder %s111, 0
    %s114 = sadd.s32 %s113, 1
    %s115 = scalar_select %p112, %s113, %s114
    %p118 = pneg %p112
    %p119 = scmp.eq.s32.totalorder %s25, 1
    %p120 = por %p118, %p119
    %p121 = scmp.ne.s32.totalorder %s113, %s116
    %p122 = scmp.eq.s32.totalorder %s25, 0
    %p123 = por %p121, %p122
    %p124 = scmp.ne.s32.totalorder %s113, %s116
    %p125 = scmp.eq.s32.totalorder %s30, 1
    %p126 = por %p124, %p125
    %p127 = scmp.ne.s32.totalorder %s116, %s117
    %p128 = scmp.eq.s32.totalorder %s30, 0
    %p129 = por %p127, %p128
    %p130 = scmp.ne.s32.totalorder %s116, %s117
    %p131 = scmp.eq.s32.totalorder %s31, 1
    %p132 = por %p130, %p131
    %p134 = scmp.ne.s32.totalorder %s117, %s133
    %p135 = scmp.eq.s32.totalorder %s31, 0
    %p136 = por %p134, %p135
    %s137 = ssub.s32 %s25, %s32
    %p138 = scmp.eq.s32.totalorder %s137, 0
    %s140 = sadd.s32 %s139, 1
    %s141 = scalar_select %p138, %s139, %s140
    %p144 = pneg %p138
    %p145 = scmp.eq.s32.totalorder %s25, 1
    %p146 = por %p144, %p145
    %p147 = scmp.ne.s32.totalorder %s139, %s142
    %p148 = scmp.eq.s32.totalorder %s25, 0
    %p149 = por %p147, %p148
    %p150 = scmp.ne.s32.totalorder %s139, %s142
    %p151 = scmp.eq.s32.totalorder %s30, 1
    %p152 = por %p150, %p151
    %p153 = scmp.ne.s32.totalorder %s142, %s143
    %p154 = scmp.eq.s32.totalorder %s30, 0
    %p155 = por %p153, %p154
    %p156 = scmp.ne.s32.totalorder %s142, %s143
    %p157 = scmp.eq.s32.totalorder %s31, 1
    %p158 = por %p156, %p157
    %p160 = scmp.ne.s32.totalorder %s143, %s159
    %p161 = scmp.eq.s32.totalorder %s31, 0
    %p162 = por %p160, %p161
    %s164 = sadd.s32 %s163, 1
    %p167 = scmp.eq.s32.totalorder %s25, 1
    %p168 = scmp.ne.s32.totalorder %s163, %s165
    %p169 = scmp.eq.s32.totalorder %s25, 0
    %p170 = por %p168, %p169
    %p171 = scmp.ne.s32.totalorder %s163, %s165
    %p172 = scmp.eq.s32.totalorder %s30, 1
    %p173 = por %p171, %p172
    %p174 = scmp.ne.s32.totalorder %s165, %s166
    %p175 = scmp.eq.s32.totalorder %s30, 0
    %p176 = por %p174, %p175
    %p177 = scmp.ne.s32.totalorder %s165, %s166
    %p178 = scmp.eq.s32.totalorder %s31, 1
    %p179 = por %p177, %p178
    %p181 = scmp.ne.s32.totalorder %s166, %s180
    %p182 = scmp.eq.s32.totalorder %s31, 0
    %p183 = por %p181, %p182
    %s185 = sadd.s32 %s184, 1
    %p188 = scmp.eq.s32.totalorder %s25, 1
    %p189 = scmp.ne.s32.totalorder %s184, %s186
    %p190 = scmp.eq.s32.totalorder %s25, 0
    %p191 = por %p189, %p190
    %p192 = scmp.ne.s32.totalorder %s184, %s186
    %p193 = scmp.eq.s32.totalorder %s30, 1
    %p194 = por %p192, %p193
    %p195 = scmp.ne.s32.totalorder %s186, %s187
    %p196 = scmp.eq.s32.totalorder %s30, 0
    %p197 = por %p195, %p196
    %p198 = scmp.ne.s32.totalorder %s186, %s187
    %p199 = scmp.eq.s32.totalorder %s31, 1
    %p200 = por %p198, %p199
    %p202 = scmp.ne.s32.totalorder %s187, %s201
    %p203 = scmp.eq.s32.totalorder %s31, 0
    %p204 = por %p202, %p203
    %s206 = sadd.s32 %s205, 1
    %p209 = scmp.eq.s32.totalorder %s25, 1
    %p210 = scmp.ne.s32.totalorder %s205, %s207
    %p211 = scmp.eq.s32.totalorder %s25, 0
    %p212 = por %p210, %p211
    %p213 = scmp.ne.s32.totalorder %s205, %s207
    %p214 = scmp.eq.s32.totalorder %s30, 1
    %p215 = por %p213, %p214
    %p216 = scmp.ne.s32.totalorder %s207, %s208
    %p217 = scmp.eq.s32.totalorder %s30, 0
    %p218 = por %p216, %p217
    %p219 = scmp.ne.s32.totalorder %s207, %s208
    %p220 = scmp.eq.s32.totalorder %s31, 1
    %p221 = por %p219, %p220
    %p223 = scmp.ne.s32.totalorder %s208, %s222
    %p224 = scmp.eq.s32.totalorder %s31, 0
    %p225 = por %p223, %p224
    %s227 = sadd.s32 %s226, 1
    %p230 = scmp.eq.s32.totalorder %s25, 1
    %p231 = scmp.ne.s32.totalorder %s226, %s228
    %p232 = scmp.eq.s32.totalorder %s25, 0
    %p233 = por %p231, %p232
    %p234 = scmp.ne.s32.totalorder %s226, %s228
    %p235 = scmp.eq.s32.totalorder %s30, 1
    %p236 = por %p234, %p235
    %p237 = scmp.ne.s32.totalorder %s228, %s229
    %p238 = scmp.eq.s32.totalorder %s30, 0
    %p239 = por %p237, %p238
    %p240 = scmp.ne.s32.totalorder %s228, %s229
    %p241 = scmp.eq.s32.totalorder %s31, 1
    %p242 = por %p240, %p241
    %p244 = scmp.ne.s32.totalorder %s229, %s243
    %p245 = scmp.eq.s32.totalorder %s31, 0
    %p246 = por %p244, %p245
    %s248 = sadd.s32 %s247, 1
    %p251 = scmp.eq.s32.totalorder %s25, 1
    %p252 = scmp.ne.s32.totalorder %s247, %s249
    %p253 = scmp.eq.s32.totalorder %s25, 0
    %p254 = por %p252, %p253
    %p255 = scmp.ne.s32.totalorder %s247, %s249
    %p256 = scmp.eq.s32.totalorder %s30, 1
    %p257 = por %p255, %p256
    %p258 = scmp.ne.s32.totalorder %s249, %s250
    %p259 = scmp.eq.s32.totalorder %s30, 0
    %p260 = por %p258, %p259
    %p261 = scmp.ne.s32.totalorder %s249, %s250
    %p262 = scmp.eq.s32.totalorder %s31, 1
    %p263 = por %p261, %p262
    %p265 = scmp.ne.s32.totalorder %s250, %s264
    %p266 = scmp.eq.s32.totalorder %s31, 0
    %p267 = por %p265, %p266
    %s269 = sadd.s32 %s268, 1
    %p272 = scmp.eq.s32.totalorder %s25, 1
    %p273 = scmp.ne.s32.totalorder %s268, %s270
    %p274 = scmp.eq.s32.totalorder %s25, 0
    %p275 = por %p273, %p274
    %p276 = scmp.ne.s32.totalorder %s268, %s270
    %p277 = scmp.eq.s32.totalorder %s30, 1
    %p278 = por %p276, %p277
    %p279 = scmp.ne.s32.totalorder %s270, %s271
    %p280 = scmp.eq.s32.totalorder %s30, 0
    %p281 = por %p279, %p280
    %p282 = scmp.ne.s32.totalorder %s270, %s271
    %p283 = scmp.eq.s32.totalorder %s31, 1
    %p284 = por %p282, %p283
    %p286 = scmp.ne.s32.totalorder %s271, %s285
    %p287 = scmp.eq.s32.totalorder %s31, 0
    %p288 = por %p286, %p287
    %s290 = sadd.s32 %s289, 1
    %p293 = scmp.eq.s32.totalorder %s25, 1
    %p294 = scmp.ne.s32.totalorder %s289, %s291
    %p295 = scmp.eq.s32.totalorder %s25, 0
    %p296 = por %p294, %p295
    %p297 = scmp.ne.s32.totalorder %s289, %s291
    %p298 = scmp.eq.s32.totalorder %s30, 1
    %p299 = por %p297, %p298
    %p300 = scmp.ne.s32.totalorder %s291, %s292
    %p301 = scmp.eq.s32.totalorder %s30, 0
    %p302 = por %p300, %p301
    %p303 = scmp.ne.s32.totalorder %s291, %s292
    %p304 = scmp.eq.s32.totalorder %s31, 1
    %p305 = por %p303, %p304
    %p307 = scmp.ne.s32.totalorder %s292, %s306
    %p308 = scmp.eq.s32.totalorder %s31, 0
    %p309 = por %p307, %p308
    %s311 = sadd.s32 %s310, 1
    %p314 = scmp.eq.s32.totalorder %s25, 1
    %p315 = scmp.ne.s32.totalorder %s310, %s312
    %p316 = scmp.eq.s32.totalorder %s25, 0
    %p317 = por %p315, %p316
    %p318 = scmp.ne.s32.totalorder %s310, %s312
    %p319 = scmp.eq.s32.totalorder %s30, 1
    %p320 = por %p318, %p319
    %p321 = scmp.ne.s32.totalorder %s312, %s313
    %p322 = scmp.eq.s32.totalorder %s30, 0
    %p323 = por %p321, %p322
    %p324 = scmp.ne.s32.totalorder %s312, %s313
    %p325 = scmp.eq.s32.totalorder %s31, 1
    %p326 = por %p324, %p325
    %p328 = scmp.ne.s32.totalorder %s313, %s327
    %p329 = scmp.eq.s32.totalorder %s31, 0
    %p330 = por %p328, %p329
    %s332 = sadd.s32 %s331, 1
    %p335 = scmp.eq.s32.totalorder %s25, 1
    %p336 = scmp.ne.s32.totalorder %s331, %s333
    %p337 = scmp.eq.s32.totalorder %s25, 0
    %p338 = por %p336, %p337
    %p339 = scmp.ne.s32.totalorder %s331, %s333
    %p340 = scmp.eq.s32.totalorder %s30, 1
    %p341 = por %p339, %p340
    %p342 = scmp.ne.s32.totalorder %s333, %s334
    %p343 = scmp.eq.s32.totalorder %s30, 0
    %p344 = por %p342, %p343
    %p345 = scmp.ne.s32.totalorder %s333, %s334
    %p346 = scmp.eq.s32.totalorder %s31, 1
    %p347 = por %p345, %p346
    %p349 = scmp.ne.s32.totalorder %s334, %s348
    %p350 = scmp.eq.s32.totalorder %s31, 0
    %p351 = por %p349, %p350
    %s353 = sadd.s32 %s352, 1
    %p356 = scmp.eq.s32.totalorder %s25, 1
    %p357 = scmp.ne.s32.totalorder %s352, %s354
    %p358 = scmp.eq.s32.totalorder %s25, 0
    %p359 = por %p357, %p358
    %p360 = scmp.ne.s32.totalorder %s352, %s354
    %p361 = scmp.eq.s32.totalorder %s30, 1
    %p362 = por %p360, %p361
    %p363 = scmp.ne.s32.totalorder %s354, %s355
    %p364 = scmp.eq.s32.totalorder %s30, 0
    %p365 = por %p363, %p364
    %p366 = scmp.ne.s32.totalorder %s354, %s355
    %p367 = scmp.eq.s32.totalorder %s31, 1
    %p368 = por %p366, %p367
    %p370 = scmp.ne.s32.totalorder %s355, %s369
    %p371 = scmp.eq.s32.totalorder %s31, 0
    %p372 = por %p370, %p371
    %s374 = sadd.s32 %s373, 1
    %p377 = scmp.eq.s32.totalorder %s25, 1
    %p378 = scmp.ne.s32.totalorder %s373, %s375
    %p379 = scmp.eq.s32.totalorder %s25, 0
    %p380 = por %p378, %p379
    %p381 = scmp.ne.s32.totalorder %s373, %s375
    %p382 = scmp.eq.s32.totalorder %s30, 1
    %p383 = por %p381, %p382
    %p384 = scmp.ne.s32.totalorder %s375, %s376
    %p385 = scmp.eq.s32.totalorder %s30, 0
    %p386 = por %p384, %p385
    %p387 = scmp.ne.s32.totalorder %s375, %s376
    %p388 = scmp.eq.s32.totalorder %s31, 1
    %p389 = por %p387, %p388
    %p391 = scmp.ne.s32.totalorder %s376, %s390
    %p392 = scmp.eq.s32.totalorder %s31, 0
    %p393 = por %p391, %p392
    %s395 = sadd.s32 %s394, 1
    %p398 = scmp.eq.s32.totalorder %s25, 1
    %p399 = scmp.ne.s32.totalorder %s394, %s396
    %p400 = scmp.eq.s32.totalorder %s25, 0
    %p401 = por %p399, %p400
    %p402 = scmp.ne.s32.totalorder %s394, %s396
    %p403 = scmp.eq.s32.totalorder %s30, 1
    %p404 = por %p402, %p403
    %p405 = scmp.ne.s32.totalorder %s396, %s397
    %p406 = scmp.eq.s32.totalorder %s30, 0
    %p407 = por %p405, %p406
    %p408 = scmp.ne.s32.totalorder %s396, %s397
    %p409 = scmp.eq.s32.totalorder %s31, 1
    %p410 = por %p408, %p409
    %p412 = scmp.ne.s32.totalorder %s397, %s411
    %p413 = scmp.eq.s32.totalorder %s31, 0
    %p414 = por %p412, %p413
    %s415 = ssub.s32 %s25, %s32
    %p416 = scmp.eq.s32.totalorder %s415, 0
    %s418 = sadd.s32 %s417, 1
    %s419 = scalar_select %p416, %s417, %s418
    %p422 = pneg %p416
    %p423 = scmp.eq.s32.totalorder %s25, 1
    %p424 = por %p422, %p423
    %p425 = scmp.ne.s32.totalorder %s417, %s420
    %p426 = scmp.eq.s32.totalorder %s25, 0
    %p427 = por %p425, %p426
    %p428 = scmp.ne.s32.totalorder %s417, %s420
    %p429 = scmp.eq.s32.totalorder %s30, 1
    %p430 = por %p428, %p429
    %p431 = scmp.ne.s32.totalorder %s420, %s421
    %p432 = scmp.eq.s32.totalorder %s30, 0
    %p433 = por %p431, %p432
    %p434 = scmp.ne.s32.totalorder %s420, %s421
    %p435 = scmp.eq.s32.totalorder %s31, 1
    %p436 = por %p434, %p435
    %p438 = scmp.ne.s32.totalorder %s421, %s437
    %p439 = scmp.eq.s32.totalorder %s31, 0
    %p440 = por %p438, %p439
    %s441 = ssub.s32 %s25, %s32
    %p442 = scmp.eq.s32.totalorder %s441, 0
    %s444 = sadd.s32 %s443, 1
    %s445 = scalar_select %p442, %s443, %s444
    %p448 = pneg %p442
    %p449 = scmp.eq.s32.totalorder %s25, 1
    %p450 = por %p448, %p449
    %p451 = scmp.ne.s32.totalorder %s443, %s446
    %p452 = scmp.eq.s32.totalorder %s25, 0
    %p453 = por %p451, %p452
    %p454 = scmp.ne.s32.totalorder %s443, %s446
    %p455 = scmp.eq.s32.totalorder %s30, 1
    %p456 = por %p454, %p455
    %p457 = scmp.ne.s32.totalorder %s446, %s447
    %p458 = scmp.eq.s32.totalorder %s30, 0
    %p459 = por %p457, %p458
    %p460 = scmp.ne.s32.totalorder %s446, %s447
    %p461 = scmp.eq.s32.totalorder %s31, 1
    %p462 = por %p460, %p461
    %p464 = scmp.ne.s32.totalorder %s447, %s463
    %p465 = scmp.eq.s32.totalorder %s31, 0
    %p466 = por %p464, %p465
    %p467 = scmp.le.s32.totalorder 1, %s25
    %p468 = scmp.lt.s32.totalorder %s25, 3
    %p469 = pnand %p467, %p468
    %p470 = pneg %p469
    // Predicated region
    $region9: #{flux_transformer_forward.4} parent=5 // pred_check
      _
    $region10: #{flux_transformer_forward.4} parent=5 // pred_check_branch
      %472 = sbr.rel (%p469) target = $region12
    $region11: #{flux_transformer_forward.4} parent=5 // pred_region
      %s473 = ssub.s32 %s25, 1
      // Predicated region
      $region13: #{flux_transformer_forward.4} parent=11 // pred_check
        %p474 = pneg %p176
      $region14: #{flux_transformer_forward.4} parent=11 // pred_check_branch
        %476 = sbr.rel (%p474) target = $region16
      $region15: #{flux_transformer_forward.4} parent=11 // pred_region
        _
      $region16: #{flux_transformer_forward.4} parent=11 // pred_fallthru
        _
      // Predicated region
      $region17: #{flux_transformer_forward.4} parent=11 // pred_check
        %p477 = pneg %p197
      $region18: #{flux_transformer_forward.4} parent=11 // pred_check_branch
        %479 = sbr.rel (%p477) target = $region20
      $region19: #{flux_transformer_forward.4} parent=11 // pred_region
        _
      $region20: #{flux_transformer_forward.4} parent=11 // pred_fallthru
        _
      // Predicated region
      $region21: #{flux_transformer_forward.4} parent=11 // pred_check
        %p480 = pneg %p218
      $region22: #{flux_transformer_forward.4} parent=11 // pred_check_branch
        %482 = sbr.rel (%p480) target = $region24
      $region23: #{flux_transformer_forward.4} parent=11 // pred_region
        _
      $region24: #{flux_transformer_forward.4} parent=11 // pred_fallthru
        _
      // Predicated region
      $region25: #{flux_transformer_forward.4} parent=11 // pred_check
        %p483 = pneg %p239
      $region26: #{flux_transformer_forward.4} parent=11 // pred_check_branch
        %485 = sbr.rel (%p483) target = $region28
      $region27: #{flux_transformer_forward.4} parent=11 // pred_region
        _
      $region28: #{flux_transformer_forward.4} parent=11 // pred_fallthru
        _
      // Predicated region
      $region29: #{flux_transformer_forward.4} parent=11 // pred_check
        %p486 = pneg %p260
      $region30: #{flux_transformer_forward.4} parent=11 // pred_check_branch
        %488 = sbr.rel (%p486) target = $region32
      $region31: #{flux_transformer_forward.4} parent=11 // pred_region
        _
      $region32: #{flux_transformer_forward.4} parent=11 // pred_fallthru
        _
      // Predicated region
      $region33: #{flux_transformer_forward.4} parent=11 // pred_check
        %p489 = pneg %p281
      $region34: #{flux_transformer_forward.4} parent=11 // pred_check_branch
        %491 = sbr.rel (%p489) target = $region36
      $region35: #{flux_transformer_forward.4} parent=11 // pred_region
        _
      $region36: #{flux_transformer_forward.4} parent=11 // pred_fallthru
        _
      // Predicated region
      $region37: #{flux_transformer_forward.4} parent=11 // pred_check
        %p492 = pneg %p302
      $region38: #{flux_transformer_forward.4} parent=11 // pred_check_branch
        %494 = sbr.rel (%p492) target = $region40
      $region39: #{flux_transformer_forward.4} parent=11 // pred_region
        _
      $region40: #{flux_transformer_forward.4} parent=11 // pred_fallthru
        _
      // Predicated region
      $region41: #{flux_transformer_forward.4} parent=11 // pred_check
        %p495 = pneg %p323
      $region42: #{flux_transformer_forward.4} parent=11 // pred_check_branch
        %497 = sbr.rel (%p495) target = $region44
      $region43: #{flux_transformer_forward.4} parent=11 // pred_region
        _
      $region44: #{flux_transformer_forward.4} parent=11 // pred_fallthru
        _
      // Predicated region
      $region45: #{flux_transformer_forward.4} parent=11 // pred_check
        %p498 = pneg %p344
      $region46: #{flux_transformer_forward.4} parent=11 // pred_check_branch
        %500 = sbr.rel (%p498) target = $region48
      $region47: #{flux_transformer_forward.4} parent=11 // pred_region
        _
      $region48: #{flux_transformer_forward.4} parent=11 // pred_fallthru
        _
      // Predicated region
      $region49: #{flux_transformer_forward.4} parent=11 // pred_check
        %p501 = pneg %p365
      $region50: #{flux_transformer_forward.4} parent=11 // pred_check_branch
        %503 = sbr.rel (%p501) target = $region52
      $region51: #{flux_transformer_forward.4} parent=11 // pred_region
        _
      $region52: #{flux_transformer_forward.4} parent=11 // pred_fallthru
        _
      // Predicated region
      $region53: #{flux_transformer_forward.4} parent=11 // pred_check
        %p504 = pneg %p386
      $region54: #{flux_transformer_forward.4} parent=11 // pred_check_branch
        %506 = sbr.rel (%p504) target = $region56
      $region55: #{flux_transformer_forward.4} parent=11 // pred_region
        _
      $region56: #{flux_transformer_forward.4} parent=11 // pred_fallthru
        _
      // Predicated region
      $region57: #{flux_transformer_forward.4} parent=11 // pred_check
        %p507 = pneg %p407
      $region58: #{flux_transformer_forward.4} parent=11 // pred_check_branch
        %509 = sbr.rel (%p507) target = $region60
      $region59: #{flux_transformer_forward.4} parent=11 // pred_region
        _
      $region60: #{flux_transformer_forward.4} parent=11 // pred_fallthru
        _
    $region12: #{flux_transformer_forward.4} parent=5 // pred_fallthru
      _
    %p510 = scmp.lt.s32.totalorder %s25, 2
    // Predicated region
    $region61: #{flux_transformer_forward.4} parent=5 // pred_check
      %p511 = pneg %p510
    $region62: #{flux_transformer_forward.4} parent=5 // pred_check_branch
      %513 = sbr.rel (%p511) target = $region64
    $region63: #{flux_transformer_forward.4} parent=5 // pred_region
      // Predicated region
      $region65: #{flux_transformer_forward.4} parent=63 // pred_check
        %p514 = pneg %p45
      $region66: #{flux_transformer_forward.4} parent=63 // pred_check_branch
        %516 = sbr.rel (%p514) target = $region68
      $region67: #{flux_transformer_forward.4} parent=63 // pred_region
        %p517 = scmp.lt.s32.totalorder %s25, 1
        %s518 = scalar_select %p517, %s25, 1
        %s519 = smul.addr %s518, 2
        %s520 = smul.addr %s519, 4
        %s521 = scalar_lea.vmem %s0, %s520
      $region68: #{flux_transformer_forward.4} parent=63 // pred_fallthru
        _
      // Predicated region
      $region69: #{flux_transformer_forward.4} parent=63 // pred_check
        %p522 = pneg %p71
      $region70: #{flux_transformer_forward.4} parent=63 // pred_check_branch
        %524 = sbr.rel (%p522) target = $region72
      $region71: #{flux_transformer_forward.4} parent=63 // pred_region
        %p525 = scmp.lt.s32.totalorder %s25, 1
        %s526 = scalar_select %p525, %s25, 1
        %s527 = smul.addr %s526, 4
        %s528 = scalar_lea.vmem %s1, %s527
      $region72: #{flux_transformer_forward.4} parent=63 // pred_fallthru
        _
      // Predicated region
      $region73: #{flux_transformer_forward.4} parent=63 // pred_check
        %p529 = pneg %p97
      $region74: #{flux_transformer_forward.4} parent=63 // pred_check_branch
        %531 = sbr.rel (%p529) target = $region76
      $region75: #{flux_transformer_forward.4} parent=63 // pred_region
        %p532 = scmp.lt.s32.totalorder %s25, 1
        %s533 = scalar_select %p532, %s25, 1
        %s534 = scalar_lea.vmem %s2, %s533
      $region76: #{flux_transformer_forward.4} parent=63 // pred_fallthru
        _
      // Predicated region
      $region77: #{flux_transformer_forward.4} parent=63 // pred_check
        %p535 = pneg %p123
      $region78: #{flux_transformer_forward.4} parent=63 // pred_check_branch
        %537 = sbr.rel (%p535) target = $region80
      $region79: #{flux_transformer_forward.4} parent=63 // pred_region
        %p538 = scmp.lt.s32.totalorder %s25, 1
        %s539 = scalar_select %p538, %s25, 1
        %s540 = scalar_lea.vmem %s3, %s539
      $region80: #{flux_transformer_forward.4} parent=63 // pred_fallthru
        _
      // Predicated region
      $region81: #{flux_transformer_forward.4} parent=63 // pred_check
        %p541 = pneg %p149
      $region82: #{flux_transformer_forward.4} parent=63 // pred_check_branch
        %543 = sbr.rel (%p541) target = $region84
      $region83: #{flux_transformer_forward.4} parent=63 // pred_region
        %p544 = scmp.lt.s32.totalorder %s25, 1
        %s545 = scalar_select %p544, %s25, 1
        %s546 = scalar_lea.vmem %s4, %s545
      $region84: #{flux_transformer_forward.4} parent=63 // pred_fallthru
        _
    $region64: #{flux_transformer_forward.4} parent=5 // pred_fallthru
      _
    %p547 = scmp.le.s32.totalorder 1, %s25
    %p548 = scmp.lt.s32.totalorder %s25, 3
    %p549 = pnand %p547, %p548
    %p550 = pneg %p549
    // Predicated region
    $region85: #{flux_transformer_forward.4} parent=5 // pred_check
      _
    $region86: #{flux_transformer_forward.4} parent=5 // pred_check_branch
      %552 = sbr.rel (%p549) target = $region88
    $region87: #{flux_transformer_forward.4} parent=5 // pred_region
      %s553 = ssub.s32 %s25, 1
      %p554 = scmp.lt.s32.totalorder %s30, 1
      %s555 = scalar_select %p554, %s30, 1
      %s556 = smul.addr %s555, 2
      %s557 = smul.addr %s556, 4
      %s558 = scalar_lea.vmem %s0, %s557
      %p559 = pneg %p51
      %p560 = pneg %p48
      %p561 = scmp.lt.s32.totalorder %s30, 1
      %s562 = scalar_select %p561, %s30, 1
      %s563 = smul.addr %s562, 4
      %s564 = scalar_lea.vmem %s1, %s563
      %p565 = pneg %p77
      %p566 = pneg %p74
      %p567 = scmp.lt.s32.totalorder %s30, 1
      %s568 = scalar_select %p567, %s30, 1
      %s569 = scalar_lea.vmem %s2, %s568
      %p570 = pneg %p103
      %p571 = pneg %p100
      %p572 = scmp.lt.s32.totalorder %s30, 1
      %s573 = scalar_select %p572, %s30, 1
      %s574 = scalar_lea.vmem %s3, %s573
      %p575 = pneg %p129
      %p576 = pneg %p126
      %p577 = scmp.lt.s32.totalorder %s30, 1
      %s578 = scalar_select %p577, %s30, 1
      %s579 = scalar_lea.vmem %s4, %s578
      %p580 = pneg %p155
      %p581 = pneg %p152
      %p582 = pneg %p176
      %p583 = pneg %p173
      %p584 = pneg %p197
      %p585 = pneg %p194
      %p586 = pneg %p218
      %p587 = pneg %p215
      %p588 = pneg %p239
      %p589 = pneg %p236
      %p590 = pneg %p260
      %p591 = pneg %p257
      %p592 = pneg %p281
      %p593 = pneg %p278
      %p594 = pneg %p302
      %p595 = pneg %p299
      %p596 = pneg %p323
      %p597 = pneg %p320
      %p598 = pneg %p344
      %p599 = pneg %p341
      %p600 = pneg %p365
      %p601 = pneg %p362
      %p602 = pneg %p386
      %p603 = pneg %p383
      %p604 = pneg %p407
      %p605 = pneg %p404
      %p606 = pneg %p433
      %p607 = pneg %p430
      %p608 = scmp.lt.s32.totalorder %s30, 1
      %s609 = scalar_select %p608, %s30, 1
      %s610 = smul.addr %s609, 3
      %s611 = smul.addr %s610, 4
      %s612 = scalar_lea.vmem %s17, %s611
      %p613 = pneg %p459
      %p614 = pneg %p456
      %p615 = scmp.lt.s32.totalorder %s30, 1
      %s616 = scalar_select %p615, %s30, 1
      %s617 = scalar_lea.vmem %s18, %s616
      %p618 = scmp.lt.s32.totalorder %s30, 1
      %s619 = scalar_select %p618, %s30, 1
      %s620 = smul.addr %s619, 2
      %s621 = smul.addr %s620, 4
      %s622 = scalar_lea.vmem %s0, %s621
      %p623 = scmp.lt.s32.totalorder %s30, 1
      %s624 = scalar_select %p623, %s30, 1
      %s625 = smul.addr %s624, 4
      %s626 = scalar_lea.vmem %s1, %s625
      %p627 = scmp.lt.s32.totalorder %s30, 1
      %s628 = scalar_select %p627, %s30, 1
      %s629 = scalar_lea.vmem %s2, %s628
      %p630 = scmp.lt.s32.totalorder %s30, 1
      %s631 = scalar_select %p630, %s30, 1
      %s632 = scalar_lea.vmem %s3, %s631
      %p633 = scmp.lt.s32.totalorder %s30, 1
      %s634 = scalar_select %p633, %s30, 1
      %s635 = scalar_lea.vmem %s4, %s634
      %p636 = scmp.lt.s32.totalorder %s30, 1
      %s637 = scalar_select %p636, %s30, 1
      %s638 = smul.addr %s637, 3
      %s639 = smul.addr %s638, 4
      %s640 = scalar_lea.vmem %s17, %s639
      %p641 = scmp.lt.s32.totalorder %s30, 1
      %s642 = scalar_select %p641, %s30, 1
      %s643 = scalar_lea.vmem %s18, %s642
      %v645 = vld [vmem:[%s622] sm:$0xf]
      %v646 = vld [vmem:[%s622 + $0x4] sm:$0xf]
      %v647 = vld [vmem:[%s5] sm:$0xf]
      %v648 = vld [vmem:[%s5 + $0x4] sm:$0xf]
      %v649 = vld [vmem:[%s6] sm:$0x1]
      %v650 = vunpack.c.l.bf16 %v649
      %v651 = vlaneseq
      %v652 = vshrl.u32 %v651, 7
      %v653 = vsub.s32 0, %v652
      %v654 = vrot.slane %v650, %v653
      %v657 = vunpack.c.l.b16 %v645
      %v658 = vunpack.c.l.b16 %v646
      %v659 = vpack.c.b16 %v658, %v657
      %v662 = vunpack.c.l.b16 %v647
      %v663 = vunpack.c.l.b16 %v648
      %v664 = vpack.c.b16 %v663, %v662
      %vm666 = vcmask 130048
      %v668 = vsel %vm666, %v659, 0
      %670 = vmatprep.subr.bf16.mxu0 0
      %671 = vmatpush1.bf16.msra.mxu0 %v664
      %672 = vmatprep.subr.bf16.mxu0 0
      %673 = vmatpush1.bf16.msra.mxu0 0
      %674 = vmatprep.subr.bf16.mxu0 0
      %675 = vmatpush1.bf16.msra.mxu0 0
      %676 = vmatprep.subr.bf16.mxu0 0
      %677 = vmatpush1.bf16.msra.mxu0 0
      %678 = vmatprep.subr.bf16.mxu0 0
      %679 = vmatpush1.bf16.msra.mxu0 0
      %680 = vmatprep.subr.bf16.mxu0 0
      %681 = vmatpush1.bf16.msra.mxu0 0
      %682 = vmatprep.subr.bf16.mxu0 0
      %683 = vmatpush1.bf16.msra.mxu0 0
      %684 = vmatprep.subr.bf16.mxu0 0
      %685 = vmatpush1.bf16.msra.mxu0 0
      %686 = vmatprep.subr.bf16.mxu0 0
      %687 = vmatpush1.bf16.msra.mxu0 0
      %688 = vmatprep.subr.bf16.mxu0 0
      %689 = vmatpush1.bf16.msra.mxu0 0
      %690 = vmatprep.subr.bf16.mxu0 0
      %691 = vmatpush1.bf16.msra.mxu0 0
      %692 = vmatprep.subr.bf16.mxu0 0
      %693 = vmatpush1.bf16.msra.mxu0 0
      %694 = vmatprep.subr.bf16.mxu0 0
      %695 = vmatpush1.bf16.msra.mxu0 0
      %696 = vmatprep.subr.bf16.mxu0 0
      %697 = vmatpush1.bf16.msra.mxu0 0
      %698 = vmatprep.subr.bf16.mxu0 0
      %699 = vmatpush1.bf16.msra.mxu0 0
      %700 = vmatprep.subr.bf16.mxu0 0
      %701 = vmatpush1.bf16.msra.mxu0 0
      %702 = vmatprep.mubr.bf16.mxu0 0
      %703 = vmatmul.mubr.bf16.gmra.mrb[0].mxu0 %v668
      %v704 = vpop.f32.mrb[0].mxu0
      %v705 = vadd.f32 %v654, %v704
      %v706 = vpop.f32.mrb[0].mxu0
      %v707 = vpop.f32.mrb[0].mxu0
      %v708 = vadd.f32 %v654, %v707
      %v709 = vpop.f32.mrb[0].mxu0
      %710 = vdwg.mxu0
      %v711 = vld [vmem:[%s626] sm:$0xf]
      %v712 = vld [vmem:[%s7] sm:$0xf]
      %v713 = vld [vmem:[%s7 + $0x4] sm:$0xf]
      %v714 = vld [vmem:[%s7 + $0x8] sm:$0xf]
      %v715 = vld [vmem:[%s7 + $0xc] sm:$0xf]
      %v716 = vld [vmem:[%s8] sm:$0x1]
      %v717 = vunpack.c.l.bf16 %v716
      %v718 = vlaneseq
      %v719 = vshrl.u32 %v718, 7
      %v720 = vsub.s32 0, %v719
      %v721 = vrot.slane %v717, %v720
      %v726 = vunpack.c.l.b16 %v712
      %v727 = vunpack.c.l.b16 %v713
      %v728 = vunpack.c.l.b16 %v714
      %v729 = vunpack.c.l.b16 %v715
      %v730 = vpack.c.b16 %v727, %v726
      %v731 = vpack.c.b16 %v729, %v728
      %vm734 = vcmask 261120
      %v736 = vsel %vm734, %v711, 0
      %738 = vmatprep.subr.bf16.mxu0 0
      %739 = vmatpush1.bf16.msra.mxu0 %v730
      %740 = vmatprep.subr.bf16.mxu0 0
      %741 = vmatpush1.bf16.msra.mxu0 %v731
      %742 = vmatprep.subr.bf16.mxu0 0
      %743 = vmatpush1.bf16.msra.mxu0 0
      %744 = vmatprep.subr.bf16.mxu0 0
      %745 = vmatpush1.bf16.msra.mxu0 0
      %746 = vmatprep.subr.bf16.mxu0 0
      %747 = vmatpush1.bf16.msra.mxu0 0
      %748 = vmatprep.subr.bf16.mxu0 0
      %749 = vmatpush1.bf16.msra.mxu0 0
      %750 = vmatprep.subr.bf16.mxu0 0
      %751 = vmatpush1.bf16.msra.mxu0 0
      %752 = vmatprep.subr.bf16.mxu0 0
      %753 = vmatpush1.bf16.msra.mxu0 0
      %754 = vmatprep.subr.bf16.mxu0 0
      %755 = vmatpush1.bf16.msra.mxu0 0
      %756 = vmatprep.subr.bf16.mxu0 0
      %757 = vmatpush1.bf16.msra.mxu0 0
      %758 = vmatprep.subr.bf16.mxu0 0
      %759 = vmatpush1.bf16.msra.mxu0 0
      %760 = vmatprep.subr.bf16.mxu0 0
      %761 = vmatpush1.bf16.msra.mxu0 0
      %762 = vmatprep.subr.bf16.mxu0 0
      %763 = vmatpush1.bf16.msra.mxu0 0
      %764 = vmatprep.subr.bf16.mxu0 0
      %765 = vmatpush1.bf16.msra.mxu0 0
      %766 = vmatprep.subr.bf16.mxu0 0
      %767 = vmatpush1.bf16.msra.mxu0 0
      %768 = vmatprep.subr.bf16.mxu0 0
      %769 = vmatpush1.bf16.msra.mxu0 0
      %770 = vmatprep.mubr.bf16.mxu0 0
      %771 = vmatmul.mubr.bf16.gmra.mrb[0].mxu0 %v736
      %v772 = vpop.f32.mrb[0].mxu0
      %v773 = vadd.f32 %v721, %v772
      %v774 = vpop.f32.mrb[0].mxu0
      %v775 = vpop.f32.mrb[0].mxu0
      %v776 = vpop.f32.mrb[0].mxu0
      %777 = vdwg.mxu0
      %v778 = vld [vmem:[%s629] sm:$0x1]
      %v779 = vld [vmem:[%s9] sm:$0xf]
      %v780 = vld [vmem:[%s9 + $0x4] sm:$0xf]
      %v781 = vld [vmem:[%s9 + $0x8] sm:$0xf]
      %v782 = vld [vmem:[%s9 + $0xc] sm:$0xf]
      %v783 = vld [vmem:[%s10] sm:$0x1]
      %v784 = vunpack.c.l.bf16 %v783
      %v789 = vunpack.c.l.b16 %v779
      %v790 = vunpack.c.l.b16 %v780
      %v791 = vunpack.c.l.b16 %v781
      %v792 = vunpack.c.l.b16 %v782
      %v793 = vpack.c.b16 %v790, %v789
      %v794 = vpack.c.b16 %v792, %v791
      %v798 = vsel %vm734, %v778, 0
      %800 = vmatprep.subr.bf16.mxu0 0
      %801 = vmatpush1.bf16.msra.mxu0 %v793
      %802 = vmatprep.subr.bf16.mxu0 0
      %803 = vmatpush1.bf16.msra.mxu0 %v794
      %804 = vmatprep.subr.bf16.mxu0 0
      %805 = vmatpush1.bf16.msra.mxu0 0
      %806 = vmatprep.subr.bf16.mxu0 0
      %807 = vmatpush1.bf16.msra.mxu0 0
      %808 = vmatprep.subr.bf16.mxu0 0
      %809 = vmatpush1.bf16.msra.mxu0 0
      %810 = vmatprep.subr.bf16.mxu0 0
      %811 = vmatpush1.bf16.msra.mxu0 0
      %812 = vmatprep.subr.bf16.mxu0 0
      %813 = vmatpush1.bf16.msra.mxu0 0
      %814 = vmatprep.subr.bf16.mxu0 0
      %815 = vmatpush1.bf16.msra.mxu0 0
      %816 = vmatprep.subr.bf16.mxu0 0
      %817 = vmatpush1.bf16.msra.mxu0 0
      %818 = vmatprep.subr.bf16.mxu0 0
      %819 = vmatpush1.bf16.msra.mxu0 0
      %820 = vmatprep.subr.bf16.mxu0 0
      %821 = vmatpush1.bf16.msra.mxu0 0
      %822 = vmatprep.subr.bf16.mxu0 0
      %823 = vmatpush1.bf16.msra.mxu0 0
      %824 = vmatprep.subr.bf16.mxu0 0
      %825 = vmatpush1.bf16.msra.mxu0 0
      %826 = vmatprep.subr.bf16.mxu0 0
      %827 = vmatpush1.bf16.msra.mxu0 0
      %828 = vmatprep.subr.bf16.mxu0 0
      %829 = vmatpush1.bf16.msra.mxu0 0
      %830 = vmatprep.subr.bf16.mxu0 0
      %831 = vmatpush1.bf16.msra.mxu0 0
      %832 = vmatprep.mubr.bf16.mxu0 0
      %833 = vmatmul.mubr.bf16.gmra.mrb[0].mxu0 %v798
      %v834 = vpop.f32.mrb[0].mxu0
      %v835 = vadd.f32 %v784, %v834
      %v836 = vpop.f32.mrb[0].mxu0
      %v837 = vpop.f32.mrb[0].mxu0
      %v838 = vpop.f32.mrb[0].mxu0
      %839 = vdwg.mxu0
      %v840 = vxor.u32 %v835, 2147483648
      %v841 = vmul.f32 %v840, 1.442695
      %v842 = vpow.pop %v841
      %v843 = vadd.f32 %v842, 1.0
      %v844 = vrcp.pop %v843
      %v845 = vmul.f32 1.0, %v844
      %v846 = vmul.f32 %v835, %v845
      %v847 = vld [vmem:[%s632] sm:$0x1]
      %v848 = vld [vmem:[%s11] sm:$0xf]
      %v849 = vld [vmem:[%s11 + $0x4] sm:$0xf]
      %v850 = vld [vmem:[%s11 + $0x8] sm:$0xf]
      %v851 = vld [vmem:[%s11 + $0xc] sm:$0xf]
      %v852 = vld [vmem:[%s12] sm:$0x1]
      %v853 = vunpack.c.l.bf16 %v852
      %v858 = vunpack.c.l.b16 %v848
      %v859 = vunpack.c.l.b16 %v849
      %v860 = vunpack.c.l.b16 %v850
      %v861 = vunpack.c.l.b16 %v851
      %v862 = vpack.c.b16 %v859, %v858
      %v863 = vpack.c.b16 %v861, %v860
      %v867 = vsel %vm734, %v847, 0
      %869 = vmatprep.subr.bf16.mxu0 0
      %870 = vmatpush1.bf16.msra.mxu0 %v862
      %871 = vmatprep.subr.bf16.mxu0 0
      %872 = vmatpush1.bf16.msra.mxu0 %v863
      %873 = vmatprep.subr.bf16.mxu0 0
      %874 = vmatpush1.bf16.msra.mxu0 0
      %875 = vmatprep.subr.bf16.mxu0 0
      %876 = vmatpush1.bf16.msra.mxu0 0
      %877 = vmatprep.subr.bf16.mxu0 0
      %878 = vmatpush1.bf16.msra.mxu0 0
      %879 = vmatprep.subr.bf16.mxu0 0
      %880 = vmatpush1.bf16.msra.mxu0 0
      %881 = vmatprep.subr.bf16.mxu0 0
      %882 = vmatpush1.bf16.msra.mxu0 0
      %883 = vmatprep.subr.bf16.mxu0 0
      %884 = vmatpush1.bf16.msra.mxu0 0
      %885 = vmatprep.subr.bf16.mxu0 0
      %886 = vmatpush1.bf16.msra.mxu0 0
      %887 = vmatprep.subr.bf16.mxu0 0
      %888 = vmatpush1.bf16.msra.mxu0 0
      %889 = vmatprep.subr.bf16.mxu0 0
      %890 = vmatpush1.bf16.msra.mxu0 0
      %891 = vmatprep.subr.bf16.mxu0 0
      %892 = vmatpush1.bf16.msra.mxu0 0
      %893 = vmatprep.subr.bf16.mxu0 0
      %894 = vmatpush1.bf16.msra.mxu0 0
      %895 = vmatprep.subr.bf16.mxu0 0
      %896 = vmatpush1.bf16.msra.mxu0 0
      %897 = vmatprep.subr.bf16.mxu0 0
      %898 = vmatpush1.bf16.msra.mxu0 0
      %899 = vmatprep.subr.bf16.mxu0 0
      %900 = vmatpush1.bf16.msra.mxu0 0
      %901 = vmatprep.mubr.bf16.mxu0 0
      %902 = vmatmul.mubr.bf16.gmra.mrb[0].mxu0 %v867
      %v903 = vpop.f32.mrb[0].mxu0
      %v904 = vadd.f32 %v853, %v903
      %v905 = vpop.f32.mrb[0].mxu0
      %v906 = vpop.f32.mrb[0].mxu0
      %v907 = vpop.f32.mrb[0].mxu0
      %908 = vdwg.mxu0
      %v909 = vxor.u32 %v904, 2147483648
      %v910 = vmul.f32 %v909, 1.442695
      %v911 = vpow.pop %v910
      %v912 = vadd.f32 %v911, 1.0
      %v913 = vrcp.pop %v912
      %v914 = vmul.f32 1.0, %v913
      %v915 = vmul.f32 %v904, %v914
      %v916 = vld [vmem:[%s635] sm:$0x1]
      %v917 = vld [vmem:[%s13] sm:$0xf]
      %v918 = vld [vmem:[%s13 + $0x4] sm:$0xf]
      %v919 = vld [vmem:[%s13 + $0x8] sm:$0xf]
      %v920 = vld [vmem:[%s13 + $0xc] sm:$0xf]
      %v921 = vld [vmem:[%s14] sm:$0x1]
      %v922 = vunpack.c.l.bf16 %v921
      %v927 = vunpack.c.l.b16 %v917
      %v928 = vunpack.c.l.b16 %v918
      %v929 = vunpack.c.l.b16 %v919
      %v930 = vunpack.c.l.b16 %v920
      %v931 = vpack.c.b16 %v928, %v927
      %v932 = vpack.c.b16 %v930, %v929
      %v936 = vsel %vm734, %v916, 0
      %938 = vmatprep.subr.bf16.mxu0 0
      %939 = vmatpush1.bf16.msra.mxu0 %v931
      %940 = vmatprep.subr.bf16.mxu0 0
      %941 = vmatpush1.bf16.msra.mxu0 %v932
      %942 = vmatprep.subr.bf16.mxu0 0
      %943 = vmatpush1.bf16.msra.mxu0 0
      %944 = vmatprep.subr.bf16.mxu0 0
      %945 = vmatpush1.bf16.msra.mxu0 0
      %946 = vmatprep.subr.bf16.mxu0 0
      %947 = vmatpush1.bf16.msra.mxu0 0
      %948 = vmatprep.subr.bf16.mxu0 0
      %949 = vmatpush1.bf16.msra.mxu0 0
      %950 = vmatprep.subr.bf16.mxu0 0
      %951 = vmatpush1.bf16.msra.mxu0 0
      %952 = vmatprep.subr.bf16.mxu0 0
      %953 = vmatpush1.bf16.msra.mxu0 0
      %954 = vmatprep.subr.bf16.mxu0 0
      %955 = vmatpush1.bf16.msra.mxu0 0
      %956 = vmatprep.subr.bf16.mxu0 0
      %957 = vmatpush1.bf16.msra.mxu0 0
      %958 = vmatprep.subr.bf16.mxu0 0
      %959 = vmatpush1.bf16.msra.mxu0 0
      %960 = vmatprep.subr.bf16.mxu0 0
      %961 = vmatpush1.bf16.msra.mxu0 0
      %962 = vmatprep.subr.bf16.mxu0 0
      %963 = vmatpush1.bf16.msra.mxu0 0
      %964 = vmatprep.subr.bf16.mxu0 0
      %965 = vmatpush1.bf16.msra.mxu0 0
      %966 = vmatprep.subr.bf16.mxu0 0
      %967 = vmatpush1.bf16.msra.mxu0 0
      %968 = vmatprep.subr.bf16.mxu0 0
      %969 = vmatpush1.bf16.msra.mxu0 0
      %970 = vmatprep.mubr.bf16.mxu0 0
      %971 = vmatmul.mubr.bf16.gmra.mrb[0].mxu0 %v936
      %v972 = vpop.f32.mrb[0].mxu0
      %v973 = vadd.f32 %v922, %v972
      %v974 = vpop.f32.mrb[0].mxu0
      %v975 = vpop.f32.mrb[0].mxu0
      %v976 = vpop.f32.mrb[0].mxu0
      %977 = vdwg.mxu0
      %v978 = vxor.u32 %v973, 2147483648
      %v979 = vmul.f32 %v978, 1.442695
      %v980 = vpow.pop %v979
      %v981 = vadd.f32 %v980, 1.0
      %v982 = vrcp.pop %v981
      %v983 = vmul.f32 1.0, %v982
      %v984 = vmul.f32 %v973, %v983
      %986 = vrot.lane.b32.xlu0 %v915, 64
      %v987 = vpop.permute.xlu0 %986
      %vm989 = vcmask 523264
      %v990 = vsel %vm989, %v846, %v987
      %v991 = vpack.c.bf16 %v990, %v990
      %v992 = vpack.c.bf16 %v984, %v984
      %v993 = vld [vmem:[%s15] sm:$0xf]
      %v994 = vld [vmem:[%s15 + $0x4] sm:$0xf]
      %v995 = vld [vmem:[%s15 + $0x8] sm:$0xf]
      %v996 = vld [vmem:[%s15 + $0xc] sm:$0xf]
      %v997 = vld [vmem:[%s15 + $0x10] sm:$0xf]
      %v998 = vld [vmem:[%s15 + $0x14] sm:$0xf]
      %v999 = vld [vmem:[%s15 + $0x18] sm:$0xf]
      %v1000 = vld [vmem:[%s15 + $0x1c] sm:$0xf]
      %v1001 = vld [vmem:[%s15 + $0x20] sm:$0xf]
      %v1002 = vld [vmem:[%s15 + $0x24] sm:$0xf]
      %v1003 = vld [vmem:[%s15 + $0x28] sm:$0xf]
      %v1004 = vld [vmem:[%s15 + $0x2c] sm:$0xf]
      %v1005 = vld [vmem:[%s15 + $0x30] sm:$0xf]
      %v1006 = vld [vmem:[%s15 + $0x34] sm:$0xf]
      %v1007 = vld [vmem:[%s15 + $0x38] sm:$0xf]
      %v1008 = vld [vmem:[%s15 + $0x3c] sm:$0xf]
      %v1009 = vld [vmem:[%s15 + $0x40] sm:$0xf]
      %v1010 = vld [vmem:[%s15 + $0x44] sm:$0xf]
      %v1011 = vld [vmem:[%s15 + $0x48] sm:$0xf]
      %v1012 = vld [vmem:[%s15 + $0x4c] sm:$0xf]
      %v1013 = vld [vmem:[%s15 + $0x50] sm:$0xf]
      %v1014 = vld [vmem:[%s15 + $0x54] sm:$0xf]
      %v1015 = vld [vmem:[%s15 + $0x58] sm:$0xf]
      %v1016 = vld [vmem:[%s15 + $0x5c] sm:$0xf]
      %v1017 = vld [vmem:[%s16] sm:$0x1]
      %v1018 = vunpack.c.l.bf16 %v1017
      %v1043 = vunpack.c.l.b16 %v993
      %v1044 = vunpack.c.l.b16 %v994
      %v1045 = vunpack.c.l.b16 %v995
      %v1046 = vunpack.c.l.b16 %v996
      %v1047 = vunpack.c.l.b16 %v997
      %v1048 = vunpack.c.l.b16 %v998
      %v1049 = vunpack.c.l.b16 %v999
      %v1050 = vunpack.c.l.b16 %v1000
      %v1051 = vunpack.c.l.b16 %v1001
      %v1052 = vunpack.c.l.b16 %v1002
      %v1053 = vunpack.c.l.b16 %v1003
      %v1054 = vunpack.c.l.b16 %v1004
      %v1055 = vunpack.c.l.b16 %v1005
      %v1056 = vunpack.c.l.b16 %v1006
      %v1057 = vunpack.c.l.b16 %v1007
      %v1058 = vunpack.c.l.b16 %v1008
      %v1059 = vunpack.c.l.b16 %v1009
      %v1060 = vunpack.c.l.b16 %v1010
      %v1061 = vunpack.c.l.b16 %v1011
      %v1062 = vunpack.c.l.b16 %v1012
      %v1063 = vunpack.c.l.b16 %v1013
      %v1064 = vunpack.c.l.b16 %v1014
      %v1065 = vunpack.c.l.b16 %v1015
      %v1066 = vunpack.c.l.b16 %v1016
      %v1067 = vpack.c.b16 %v1044, %v1043
      %v1068 = vpack.c.b16 %v1046, %v1045
      %v1069 = vpack.c.b16 %v1048, %v1047
      %v1070 = vpack.c.b16 %v1050, %v1049
      %v1071 = vpack.c.b16 %v1052, %v1051
      %v1072 = vpack.c.b16 %v1054, %v1053
      %v1073 = vpack.c.b16 %v1056, %v1055
      %v1074 = vpack.c.b16 %v1058, %v1057
      %v1075 = vpack.c.b16 %v1060, %v1059
      %v1076 = vpack.c.b16 %v1062, %v1061
      %v1077 = vpack.c.b16 %v1064, %v1063
      %v1078 = vpack.c.b16 %v1066, %v1065
      %v1092 = vsel %vm989, %v992, 0
      %1094 = vmatprep.subr.bf16.mxu0 0
      %1095 = vmatpush1.bf16.msra.mxu0 %v1067
      %1096 = vmatprep.subr.bf16.mxu0 0
      %1097 = vmatpush1.bf16.msra.mxu0 %v1068
      %1098 = vmatprep.subr.bf16.mxu0 0
      %1099 = vmatpush1.bf16.msra.mxu0 %v1069
      %1100 = vmatprep.subr.bf16.mxu0 0
      %1101 = vmatpush1.bf16.msra.mxu0 %v1070
      %1102 = vmatprep.subr.bf16.mxu0 0
      %1103 = vmatpush1.bf16.msra.mxu0 %v1071
      %1104 = vmatprep.subr.bf16.mxu0 0
      %1105 = vmatpush1.bf16.msra.mxu0 %v1072
      %1106 = vmatprep.subr.bf16.mxu0 0
      %1107 = vmatpush1.bf16.msra.mxu0 %v1073
      %1108 = vmatprep.subr.bf16.mxu0 0
      %1109 = vmatpush1.bf16.msra.mxu0 %v1074
      %1110 = vmatprep.subr.bf16.mxu0 0
      %1111 = vmatpush1.bf16.msra.mxu0 %v1075
      %1112 = vmatprep.subr.bf16.mxu0 0
      %1113 = vmatpush1.bf16.msra.mxu0 %v1076
      %1114 = vmatprep.subr.bf16.mxu0 0
      %1115 = vmatpush1.bf16.msra.mxu0 %v1077
      %1116 = vmatprep.subr.bf16.mxu0 0
      %1117 = vmatpush1.bf16.msra.mxu0 %v1078
      %1118 = vmatprep.subr.bf16.mxu0 0
      %1119 = vmatpush1.bf16.msra.mxu0 0
      %1120 = vmatprep.subr.bf16.mxu0 0
      %1121 = vmatpush1.bf16.msra.mxu0 0
      %1122 = vmatprep.subr.bf16.mxu0 0
      %1123 = vmatpush1.bf16.msra.mxu0 0
      %1124 = vmatprep.subr.bf16.mxu0 0
      %1125 = vmatpush1.bf16.msra.mxu0 0
      %1126 = vmatprep.mubr.bf16.mxu0 %v1092
      %1127 = vmatmul.mubr.bf16.gmra.mrb[0].mxu0 %v991
      %v1128 = vpop.f32.mrb[0].mxu0
      %v1129 = vadd.f32 %v1018, %v1128
      %v1130 = vpop.f32.mrb[0].mxu0
      %v1131 = vpop.f32.mrb[0].mxu0
      %v1132 = vpop.f32.mrb[0].mxu0
      %1133 = vdwg.mxu0
      %v1134 = vpack.c.bf16 %v705, %v773
      %v1135 = vpack.c.bf16 %v708, %v708
      %v1138 = vunpack.c.l.b16 %v1134
      %v1139 = vunpack.c.h.b16 %v1134
      %v1140 = vunpack.c.l.b16 %v1135
      %v1141 = vpack.c.b16 %v1138, %v1138
      %v1142 = vpack.c.b16 %v1139, %v1139
      %v1143 = vpack.c.b16 %v1140, %v1140
      %vm1147 = vcmask 519168
      %1148 = vst.msk [vmem:[%s640] sm:$0xf] %vm1147, %v1141
      %1149 = vst.msk [vmem:[%s640 + $0x4] sm:$0xf] %vm1147, %v1142
      %1150 = vst.msk [vmem:[%s640 + $0x8] sm:$0xf] %vm1147, %v1143
      %v1151 = vxor.u32 %v1129, 2147483648
      %v1152 = vmul.f32 %v1151, 1.442695
      %v1153 = vpow.pop %v1152
      %v1154 = vadd.f32 %v1153, 1.0
      %v1155 = vrcp.pop %v1154
      %v1156 = vmul.f32 1.0, %v1155
      %v1157 = vmul.f32 %v1129, %v1156
      %v1158 = vpack.c.bf16 %v1157, %v1157
      %vm1159 = vcmask 516096
      %vm1160 = vsmask.f32 256
      %vm1161 = vmand %vm1159, %vm1160
      %v1162 = vld [vmem:[%s643] sm:$0x1]
      %v1163 = vsel %vm1161, %v1158, %v1162
      %1164 = vst [vmem:[%s643] sm:$0x1] %v1163
      %p1165 = scmp.lt.s32.totalorder %s30, 1
      %s1166 = scalar_select %p1165, %s30, 1
      %s1167 = smul.addr %s1166, 3
      %s1168 = smul.addr %s1167, 4
      %s1169 = scalar_lea.vmem %s17, %s1168
      %p1170 = scmp.lt.s32.totalorder %s30, 1
      %s1171 = scalar_select %p1170, %s30, 1
      %s1172 = scalar_lea.vmem %s18, %s1171
      // Predicated region
      $region89: #{flux_transformer_forward.4} parent=87 // pred_check
        %p1173 = pneg %p430
      $region90: #{flux_transformer_forward.4} parent=87 // pred_check_branch
        %1175 = sbr.rel (%p1173) target = $region92
      $region91: #{flux_transformer_forward.4} parent=87 // pred_region
        _
      $region92: #{flux_transformer_forward.4} parent=87 // pred_fallthru
        _
      // Predicated region
      $region93: #{flux_transformer_forward.4} parent=87 // pred_check
        %p1176 = pneg %p456
      $region94: #{flux_transformer_forward.4} parent=87 // pred_check_branch
        %1178 = sbr.rel (%p1176) target = $region96
      $region95: #{flux_transformer_forward.4} parent=87 // pred_region
        _
      $region96: #{flux_transformer_forward.4} parent=87 // pred_fallthru
        _
    $region88: #{flux_transformer_forward.4} parent=5 // pred_fallthru
      _
    %p1179 = scmp.le.s32.totalorder 2, %s25
    // Predicated region
    $region97: #{flux_transformer_forward.4} parent=5 // pred_check
      %p1180 = pneg %p1179
    $region98: #{flux_transformer_forward.4} parent=5 // pred_check_branch
      %1182 = sbr.rel (%p1180) target = $region100
    $region99: #{flux_transformer_forward.4} parent=5 // pred_region
      %s1183 = ssub.s32 %s25, 2
      // Predicated region
      $region101: #{flux_transformer_forward.4} parent=99 // pred_check
        %p1184 = pneg %p436
      $region102: #{flux_transformer_forward.4} parent=99 // pred_check_branch
        %1186 = sbr.rel (%p1184) target = $region104
      $region103: #{flux_transformer_forward.4} parent=99 // pred_region
        %p1187 = scmp.lt.s32.totalorder %s31, 1
        %s1188 = scalar_select %p1187, %s31, 1
        %s1189 = smul.addr %s1188, 3
        %s1190 = smul.addr %s1189, 4
        %s1191 = scalar_lea.vmem %s17, %s1190
      $region104: #{flux_transformer_forward.4} parent=99 // pred_fallthru
        _
      // Predicated region
      $region105: #{flux_transformer_forward.4} parent=99 // pred_check
        %p1192 = pneg %p462
      $region106: #{flux_transformer_forward.4} parent=99 // pred_check_branch
        %1194 = sbr.rel (%p1192) target = $region108
      $region107: #{flux_transformer_forward.4} parent=99 // pred_region
        %p1195 = scmp.lt.s32.totalorder %s31, 1
        %s1196 = scalar_select %p1195, %s31, 1
        %s1197 = scalar_lea.vmem %s18, %s1196
      $region108: #{flux_transformer_forward.4} parent=99 // pred_fallthru
        _
    $region100: #{flux_transformer_forward.4} parent=5 // pred_fallthru
      _
  $region6: #{flux_transformer_forward.4} parent=0 // loop_footer
    %s29 = sadd.s32 1, %s25
  $region7: #{flux_transformer_forward.4} parent=0 // loop_footer_branch
    %24 = sbr.rel target = $region3
  $region8: #{flux_transformer_forward.4} parent=0 // loop_exit
    _

// kernel: flux_transformer_forward.6
$region0: #{flux_transformer_forward.6}
  #allocation0 [shape = 'u32[]', space=smem, size = 0x4, offset = 0x4, fixed_abs, tag = 'smem constant byte address 0x4 - core index']
  #allocation1 [shape = 'u32[144,128]{1,0:T(1,128)}', space=vmem, size = 0x12000, scoped, tag = 'internal scratch']
  %s0 = inlined_call_operand.vmem [shape: bf16[2,24,64], index: 0, kind: input, shape index: {}]
  %s1 = inlined_call_operand.vmem [shape: bf16[2,1,64], index: 1, kind: input, shape index: {}]
  %s2 = inlined_call_operand.vmem [shape: bf16[3,24,32], index: 2, kind: input, shape index: {}]
  %s3 = inlined_call_operand.vmem [shape: bf16[64,192], index: 3, kind: input, shape index: {}]
  %s4 = inlined_call_operand.vmem [shape: bf16[1,192], index: 4, kind: input, shape index: {}]
  %s5 = inlined_call_operand.vmem [shape: bf16[64,448], index: 5, kind: input, shape index: {}]
  %s6 = inlined_call_operand.vmem [shape: bf16[1,448], index: 6, kind: input, shape index: {}]
  %s7 = inlined_call_operand.vmem [shape: bf16[2,1,32], index: 7, kind: input, shape index: {}]
  %s8 = inlined_call_operand.vmem [shape: bf16[320,64], index: 8, kind: input, shape index: {}]
  %s9 = inlined_call_operand.vmem [shape: bf16[1,64], index: 9, kind: input, shape index: {}]
  %s10 = inlined_call_operand.vmem [shape: bf16[2,24,64], index: 10, kind: output, shape index: {}]
  %s11 = sld [smem:[#allocation0]]
  $region73: #{flux_transformer_forward.6} parent=0
    _
  %s13 = ssub.s32 1, %s11
  %s14 = scalar_select 0, %s13, %s11
  loop: start=0, step=1, limit=4
  $region2: #{flux_transformer_forward.6} parent=0 // loop_pre_header
    _
  $region3: #{flux_transformer_forward.6} parent=0 // loop_header
    %s16 = sphi 0, %s20
    %p17 = scmp.ge.s32.totalorder %s16, 4
    %s26 = sphi 0, %s28
    %s29 = sphi 0, %s26
    %s30 = sphi 0, %s29
    %s46 = sphi 0, %s30
    %s52 = sphi 0, %s54
    %s55 = sphi 0, %s52
    %s56 = sphi 0, %s55
    %s72 = sphi 0, %s56
    %s76 = sphi 0, %s76
    %s78 = sphi 0, %s76
    %s79 = sphi 0, %s78
    %s93 = sphi 0, %s79
    %s97 = sphi 0, %s97
    %s99 = sphi 0, %s97
    %s100 = sphi 0, %s99
    %s114 = sphi 0, %s100
    %s118 = sphi 0, %s118
    %s120 = sphi 0, %s118
    %s121 = sphi 0, %s120
    %s135 = sphi 0, %s121
    %s139 = sphi 0, %s139
    %s141 = sphi 0, %s139
    %s142 = sphi 0, %s141
    %s156 = sphi 0, %s142
    %s160 = sphi 0, %s160
    %s162 = sphi 0, %s160
    %s163 = sphi 0, %s162
    %s177 = sphi 0, %s163
    %s181 = sphi 0, %s181
    %s183 = sphi 0, %s181
    %s184 = sphi 0, %s183
    %s198 = sphi 0, %s184
    %s202 = sphi 0, %s202
    %s204 = sphi 0, %s202
    %s205 = sphi 0, %s204
    %s219 = sphi 0, %s205
    %s223 = sphi 0, %s223
    %s225 = sphi 0, %s223
    %s226 = sphi 0, %s225
    %s240 = sphi 0, %s226
    %s246 = sphi 0, %s248
    %s249 = sphi 0, %s246
    %s250 = sphi 0, %s249
    %s266 = sphi 0, %s250
  $region4: #{flux_transformer_forward.6} parent=0 // loop_header_branch
    %19 = sbr.rel (%p17) target = $region8
  $region5: #{flux_transformer_forward.6} parent=0 // loop_body
    %s21 = ssub.s32 %s16, 1
    %s22 = ssub.s32 %s16, 2
    %s23 = sadd.s32 %s16, 1
    %s24 = ssub.s32 %s16, %s23
    %p25 = scmp.eq.s32.totalorder %s24, 0
    %s27 = sadd.s32 %s26, 1
    %s28 = scalar_select %p25, %s26, %s27
    %p31 = pneg %p25
    %p32 = scmp.eq.s32.totalorder %s16, 1
    %p33 = por %p31, %p32
    %p34 = scmp.ne.s32.totalorder %s26, %s29
    %p35 = scmp.eq.s32.totalorder %s16, 0
    %p36 = por %p34, %p35
    %p37 = scmp.ne.s32.totalorder %s26, %s29
    %p38 = scmp.eq.s32.totalorder %s21, 1
    %p39 = por %p37, %p38
    %p40 = scmp.ne.s32.totalorder %s29, %s30
    %p41 = scmp.eq.s32.totalorder %s21, 0
    %p42 = por %p40, %p41
    %p43 = scmp.ne.s32.totalorder %s29, %s30
    %p44 = scmp.eq.s32.totalorder %s22, 1
    %p45 = por %p43, %p44
    %p47 = scmp.ne.s32.totalorder %s30, %s46
    %p48 = scmp.eq.s32.totalorder %s22, 0
    %p49 = por %p47, %p48
    %s50 = ssub.s32 %s16, %s23
    %p51 = scmp.eq.s32.totalorder %s50, 0
    %s53 = sadd.s32 %s52, 1
    %s54 = scalar_select %p51, %s52, %s53
    %p57 = pneg %p51
    %p58 = scmp.eq.s32.totalorder %s16, 1
    %p59 = por %p57, %p58
    %p60 = scmp.ne.s32.totalorder %s52, %s55
    %p61 = scmp.eq.s32.totalorder %s16, 0
    %p62 = por %p60, %p61
    %p63 = scmp.ne.s32.totalorder %s52, %s55
    %p64 = scmp.eq.s32.totalorder %s21, 1
    %p65 = por %p63, %p64
    %p66 = scmp.ne.s32.totalorder %s55, %s56
    %p67 = scmp.eq.s32.totalorder %s21, 0
    %p68 = por %p66, %p67
    %p69 = scmp.ne.s32.totalorder %s55, %s56
    %p70 = scmp.eq.s32.totalorder %s22, 1
    %p71 = por %p69, %p70
    %p73 = scmp.ne.s32.totalorder %s56, %s72
    %p74 = scmp.eq.s32.totalorder %s22, 0
    %p75 = por %p73, %p74
    %s77 = sadd.s32 %s76, 1
    %p80 = scmp.eq.s32.totalorder %s16, 1
    %p81 = scmp.ne.s32.totalorder %s76, %s78
    %p82 = scmp.eq.s32.totalorder %s16, 0
    %p83 = por %p81, %p82
    %p84 = scmp.ne.s32.totalorder %s76, %s78
    %p85 = scmp.eq.s32.totalorder %s21, 1
    %p86 = por %p84, %p85
    %p87 = scmp.ne.s32.totalorder %s78, %s79
    %p88 = scmp.eq.s32.totalorder %s21, 0
    %p89 = por %p87, %p88
    %p90 = scmp.ne.s32.totalorder %s78, %s79
    %p91 = scmp.eq.s32.totalorder %s22, 1
    %p92 = por %p90, %p91
    %p94 = scmp.ne.s32.totalorder %s79, %s93
    %p95 = scmp.eq.s32.totalorder %s22, 0
    %p96 = por %p94, %p95
    %s98 = sadd.s32 %s97, 1
    %p101 = scmp.eq.s32.totalorder %s16, 1
    %p102 = scmp.ne.s32.totalorder %s97, %s99
    %p103 = scmp.eq.s32.totalorder %s16, 0
    %p104 = por %p102, %p103
    %p105 = scmp.ne.s32.totalorder %s97, %s99
    %p106 = scmp.eq.s32.totalorder %s21, 1
    %p107 = por %p105, %p106
    %p108 = scmp.ne.s32.totalorder %s99, %s100
    %p109 = scmp.eq.s32.totalorder %s21, 0
    %p110 = por %p108, %p109
    %p111 = scmp.ne.s32.totalorder %s99, %s100
    %p112 = scmp.eq.s32.totalorder %s22, 1
    %p113 = por %p111, %p112
    %p115 = scmp.ne.s32.totalorder %s100, %s114
    %p116 = scmp.eq.s32.totalorder %s22, 0
    %p117 = por %p115, %p116
    %s119 = sadd.s32 %s118, 1
    %p122 = scmp.eq.s32.totalorder %s16, 1
    %p123 = scmp.ne.s32.totalorder %s118, %s120
    %p124 = scmp.eq.s32.totalorder %s16, 0
    %p125 = por %p123, %p124
    %p126 = scmp.ne.s32.totalorder %s118, %s120
    %p127 = scmp.eq.s32.totalorder %s21, 1
    %p128 = por %p126, %p127
    %p129 = scmp.ne.s32.totalorder %s120, %s121
    %p130 = scmp.eq.s32.totalorder %s21, 0
    %p131 = por %p129, %p130
    %p132 = scmp.ne.s32.totalorder %s120, %s121
    %p133 = scmp.eq.s32.totalorder %s22, 1
    %p134 = por %p132, %p133
    %p136 = scmp.ne.s32.totalorder %s121, %s135
    %p137 = scmp.eq.s32.totalorder %s22, 0
    %p138 = por %p136, %p137
    %s140 = sadd.s32 %s139, 1
    %p143 = scmp.eq.s32.totalorder %s16, 1
    %p144 = scmp.ne.s32.totalorder %s139, %s141
    %p145 = scmp.eq.s32.totalorder %s16, 0
    %p146 = por %p144, %p145
    %p147 = scmp.ne.s32.totalorder %s139, %s141
    %p148 = scmp.eq.s32.totalorder %s21, 1
    %p149 = por %p147, %p148
    %p150 = scmp.ne.s32.totalorder %s141, %s142
    %p151 = scmp.eq.s32.totalorder %s21, 0
    %p152 = por %p150, %p151
    %p153 = scmp.ne.s32.totalorder %s141, %s142
    %p154 = scmp.eq.s32.totalorder %s22, 1
    %p155 = por %p153, %p154
    %p157 = scmp.ne.s32.totalorder %s142, %s156
    %p158 = scmp.eq.s32.totalorder %s22, 0
    %p159 = por %p157, %p158
    %s161 = sadd.s32 %s160, 1
    %p164 = scmp.eq.s32.totalorder %s16, 1
    %p165 = scmp.ne.s32.totalorder %s160, %s162
    %p166 = scmp.eq.s32.totalorder %s16, 0
    %p167 = por %p165, %p166
    %p168 = scmp.ne.s32.totalorder %s160, %s162
    %p169 = scmp.eq.s32.totalorder %s21, 1
    %p170 = por %p168, %p169
    %p171 = scmp.ne.s32.totalorder %s162, %s163
    %p172 = scmp.eq.s32.totalorder %s21, 0
    %p173 = por %p171, %p172
    %p174 = scmp.ne.s32.totalorder %s162, %s163
    %p175 = scmp.eq.s32.totalorder %s22, 1
    %p176 = por %p174, %p175
    %p178 = scmp.ne.s32.totalorder %s163, %s177
    %p179 = scmp.eq.s32.totalorder %s22, 0
    %p180 = por %p178, %p179
    %s182 = sadd.s32 %s181, 1
    %p185 = scmp.eq.s32.totalorder %s16, 1
    %p186 = scmp.ne.s32.totalorder %s181, %s183
    %p187 = scmp.eq.s32.totalorder %s16, 0
    %p188 = por %p186, %p187
    %p189 = scmp.ne.s32.totalorder %s181, %s183
    %p190 = scmp.eq.s32.totalorder %s21, 1
    %p191 = por %p189, %p190
    %p192 = scmp.ne.s32.totalorder %s183, %s184
    %p193 = scmp.eq.s32.totalorder %s21, 0
    %p194 = por %p192, %p193
    %p195 = scmp.ne.s32.totalorder %s183, %s184
    %p196 = scmp.eq.s32.totalorder %s22, 1
    %p197 = por %p195, %p196
    %p199 = scmp.ne.s32.totalorder %s184, %s198
    %p200 = scmp.eq.s32.totalorder %s22, 0
    %p201 = por %p199, %p200
    %s203 = sadd.s32 %s202, 1
    %p206 = scmp.eq.s32.totalorder %s16, 1
    %p207 = scmp.ne.s32.totalorder %s202, %s204
    %p208 = scmp.eq.s32.totalorder %s16, 0
    %p209 = por %p207, %p208
    %p210 = scmp.ne.s32.totalorder %s202, %s204
    %p211 = scmp.eq.s32.totalorder %s21, 1
    %p212 = por %p210, %p211
    %p213 = scmp.ne.s32.totalorder %s204, %s205
    %p214 = scmp.eq.s32.totalorder %s21, 0
    %p215 = por %p213, %p214
    %p216 = scmp.ne.s32.totalorder %s204, %s205
    %p217 = scmp.eq.s32.totalorder %s22, 1
    %p218 = por %p216, %p217
    %p220 = scmp.ne.s32.totalorder %s205, %s219
    %p221 = scmp.eq.s32.totalorder %s22, 0
    %p222 = por %p220, %p221
    %s224 = sadd.s32 %s223, 1
    %p227 = scmp.eq.s32.totalorder %s16, 1
    %p228 = scmp.ne.s32.totalorder %s223, %s225
    %p229 = scmp.eq.s32.totalorder %s16, 0
    %p230 = por %p228, %p229
    %p231 = scmp.ne.s32.totalorder %s223, %s225
    %p232 = scmp.eq.s32.totalorder %s21, 1
    %p233 = por %p231, %p232
    %p234 = scmp.ne.s32.totalorder %s225, %s226
    %p235 = scmp.eq.s32.totalorder %s21, 0
    %p236 = por %p234, %p235
    %p237 = scmp.ne.s32.totalorder %s225, %s226
    %p238 = scmp.eq.s32.totalorder %s22, 1
    %p239 = por %p237, %p238
    %p241 = scmp.ne.s32.totalorder %s226, %s240
    %p242 = scmp.eq.s32.totalorder %s22, 0
    %p243 = por %p241, %p242
    %s244 = ssub.s32 %s16, %s23
    %p245 = scmp.eq.s32.totalorder %s244, 0
    %s247 = sadd.s32 %s246, 1
    %s248 = scalar_select %p245, %s246, %s247
    %p251 = pneg %p245
    %p252 = scmp.eq.s32.totalorder %s16, 1
    %p253 = por %p251, %p252
    %p254 = scmp.ne.s32.totalorder %s246, %s249
    %p255 = scmp.eq.s32.totalorder %s16, 0
    %p256 = por %p254, %p255
    %p257 = scmp.ne.s32.totalorder %s246, %s249
    %p258 = scmp.eq.s32.totalorder %s21, 1
    %p259 = por %p257, %p258
    %p260 = scmp.ne.s32.totalorder %s249, %s250
    %p261 = scmp.eq.s32.totalorder %s21, 0
    %p262 = por %p260, %p261
    %p263 = scmp.ne.s32.totalorder %s249, %s250
    %p264 = scmp.eq.s32.totalorder %s22, 1
    %p265 = por %p263, %p264
    %p267 = scmp.ne.s32.totalorder %s250, %s266
    %p268 = scmp.eq.s32.totalorder %s22, 0
    %p269 = por %p267, %p268
    %p270 = scmp.le.s32.totalorder 1, %s16
    %p271 = scmp.lt.s32.totalorder %s16, 3
    %p272 = pnand %p270, %p271
    %p273 = pneg %p272
    // Predicated region
    $region9: #{flux_transformer_forward.6} parent=5 // pred_check
      _
    $region10: #{flux_transformer_forward.6} parent=5 // pred_check_branch
      %275 = sbr.rel (%p272) target = $region12
    $region11: #{flux_transformer_forward.6} parent=5 // pred_region
      %s276 = ssub.s32 %s16, 1
      // Predicated region
      $region13: #{flux_transformer_forward.6} parent=11 // pred_check
        %p277 = pneg %p89
      $region14: #{flux_transformer_forward.6} parent=11 // pred_check_branch
        %279 = sbr.rel (%p277) target = $region16
      $region15: #{flux_transformer_forward.6} parent=11 // pred_region
        _
      $region16: #{flux_transformer_forward.6} parent=11 // pred_fallthru
        _
      // Predicated region
      $region17: #{flux_transformer_forward.6} parent=11 // pred_check
        %p280 = pneg %p110
      $region18: #{flux_transformer_forward.6} parent=11 // pred_check_branch
        %282 = sbr.rel (%p280) target = $region20
      $region19: #{flux_transformer_forward.6} parent=11 // pred_region
        _
      $region20: #{flux_transformer_forward.6} parent=11 // pred_fallthru
        _
      // Predicated region
      $region21: #{flux_transformer_forward.6} parent=11 // pred_check
        %p283 = pneg %p131
      $region22: #{flux_transformer_forward.6} parent=11 // pred_check_branch
        %285 = sbr.rel (%p283) target = $region24
      $region23: #{flux_transformer_forward.6} parent=11 // pred_region
        _
      $region24: #{flux_transformer_forward.6} parent=11 // pred_fallthru
        _
      // Predicated region
      $region25: #{flux_transformer_forward.6} parent=11 // pred_check
        %p286 = pneg %p152
      $region26: #{flux_transformer_forward.6} parent=11 // pred_check_branch
        %288 = sbr.rel (%p286) target = $region28
      $region27: #{flux_transformer_forward.6} parent=11 // pred_region
        _
      $region28: #{flux_transformer_forward.6} parent=11 // pred_fallthru
        _
      // Predicated region
      $region29: #{flux_transformer_forward.6} parent=11 // pred_check
        %p289 = pneg %p173
      $region30: #{flux_transformer_forward.6} parent=11 // pred_check_branch
        %291 = sbr.rel (%p289) target = $region32
      $region31: #{flux_transformer_forward.6} parent=11 // pred_region
        _
      $region32: #{flux_transformer_forward.6} parent=11 // pred_fallthru
        _
      // Predicated region
      $region33: #{flux_transformer_forward.6} parent=11 // pred_check
        %p292 = pneg %p194
      $region34: #{flux_transformer_forward.6} parent=11 // pred_check_branch
        %294 = sbr.rel (%p292) target = $region36
      $region35: #{flux_transformer_forward.6} parent=11 // pred_region
        _
      $region36: #{flux_transformer_forward.6} parent=11 // pred_fallthru
        _
      // Predicated region
      $region37: #{flux_transformer_forward.6} parent=11 // pred_check
        %p295 = pneg %p215
      $region38: #{flux_transformer_forward.6} parent=11 // pred_check_branch
        %297 = sbr.rel (%p295) target = $region40
      $region39: #{flux_transformer_forward.6} parent=11 // pred_region
        _
      $region40: #{flux_transformer_forward.6} parent=11 // pred_fallthru
        _
      // Predicated region
      $region41: #{flux_transformer_forward.6} parent=11 // pred_check
        %p298 = pneg %p236
      $region42: #{flux_transformer_forward.6} parent=11 // pred_check_branch
        %300 = sbr.rel (%p298) target = $region44
      $region43: #{flux_transformer_forward.6} parent=11 // pred_region
        _
      $region44: #{flux_transformer_forward.6} parent=11 // pred_fallthru
        _
    $region12: #{flux_transformer_forward.6} parent=5 // pred_fallthru
      _
    %p301 = scmp.lt.s32.totalorder %s16, 2
    // Predicated region
    $region45: #{flux_transformer_forward.6} parent=5 // pred_check
      %p302 = pneg %p301
    $region46: #{flux_transformer_forward.6} parent=5 // pred_check_branch
      %304 = sbr.rel (%p302) target = $region48
    $region47: #{flux_transformer_forward.6} parent=5 // pred_region
      // Predicated region
      $region49: #{flux_transformer_forward.6} parent=47 // pred_check
        %p305 = pneg %p36
      $region50: #{flux_transformer_forward.6} parent=47 // pred_check_branch
        %307 = sbr.rel (%p305) target = $region52
      $region51: #{flux_transformer_forward.6} parent=47 // pred_region
        %p308 = scmp.lt.s32.totalorder %s16, 1
        %s309 = scalar_select %p308, %s16, 1
        %s310 = smul.addr %s309, 3
        %s311 = smul.addr %s310, 4
        %s312 = scalar_lea.vmem %s0, %s311
      $region52: #{flux_transformer_forward.6} parent=47 // pred_fallthru
        _
      // Predicated region
      $region53: #{flux_transformer_forward.6} parent=47 // pred_check
        %p313 = pneg %p62
      $region54: #{flux_transformer_forward.6} parent=47 // pred_check_branch
        %315 = sbr.rel (%p313) target = $region56
      $region55: #{flux_transformer_forward.6} parent=47 // pred_region
        %p316 = scmp.lt.s32.totalorder %s16, 1
        %s317 = scalar_select %p316, %s16, 1
        %s318 = scalar_lea.vmem %s1, %s317
      $region56: #{flux_transformer_forward.6} parent=47 // pred_fallthru
        _
    $region48: #{flux_transformer_forward.6} parent=5 // pred_fallthru
      _
    %p319 = scmp.le.s32.totalorder 1, %s16
    %p320 = scmp.lt.s32.totalorder %s16, 3
    %p321 = pnand %p319, %p320
    %p322 = pneg %p321
    // Predicated region
    $region57: #{flux_transformer_forward.6} parent=5 // pred_check
      _
    $region58: #{flux_transformer_forward.6} parent=5 // pred_check_branch
      %324 = sbr.rel (%p321) target = $region60
    $region59: #{flux_transformer_forward.6} parent=5 // pred_region
      %s325 = ssub.s32 %s16, 1
      %p326 = scmp.lt.s32.totalorder %s21, 1
      %s327 = scalar_select %p326, %s21, 1
      %s328 = smul.addr %s327, 3
      %s329 = smul.addr %s328, 4
      %s330 = scalar_lea.vmem %s0, %s329
      %p331 = pneg %p42
      %p332 = pneg %p39
      %p333 = scmp.lt.s32.totalorder %s21, 1
      %s334 = scalar_select %p333, %s21, 1
      %s335 = scalar_lea.vmem %s1, %s334
      %p336 = pneg %p68
      %p337 = pneg %p65
      %p338 = pneg %p89
      %p339 = pneg %p86
      %p340 = pneg %p110
      %p341 = pneg %p107
      %p342 = pneg %p131
      %p343 = pneg %p128
      %p344 = pneg %p152
      %p345 = pneg %p149
      %p346 = pneg %p173
      %p347 = pneg %p170
      %p348 = pneg %p194
      %p349 = pneg %p191
      %p350 = pneg %p215
      %p351 = pneg %p212
      %p352 = pneg %p236
      %p353 = pneg %p233
      %p354 = pneg %p262
      %p355 = pneg %p259
      %p356 = scmp.lt.s32.totalorder %s21, 1
      %s357 = scalar_select %p356, %s21, 1
      %s358 = smul.addr %s357, 3
      %s359 = smul.addr %s358, 4
      %s360 = scalar_lea.vmem %s10, %s359
      %p361 = scmp.lt.s32.totalorder %s21, 1
      %s362 = scalar_select %p361, %s21, 1
      %s363 = smul.addr %s362, 3
      %s364 = smul.addr %s363, 4
      %s365 = scalar_lea.vmem %s0, %s364
      %p366 = scmp.lt.s32.totalorder %s21, 1
      %s367 = scalar_select %p366, %s21, 1
      %s368 = scalar_lea.vmem %s1, %s367
      %p369 = scmp.lt.s32.totalorder %s21, 1
      %s370 = scalar_select %p369, %s21, 1
      %s371 = smul.addr %s370, 3
      %s372 = smul.addr %s371, 4
      %s373 = scalar_lea.vmem %s10, %s372
      %v375 = vld [vmem:[%s365] sm:$0xf]
      %v376 = vld [vmem:[%s365 + $0x4] sm:$0xf]
      %v377 = vld [vmem:[%s365 + $0x8] sm:$0xf]
      %v378 = vunpack.c.l.bf16 %v375
      %v379 = vunpack.c.l.bf16 %v376
      %v380 = vunpack.c.l.bf16 %v377
      %v381 = vld [vmem:[%s368] sm:$0x1]
      %v382 = vld [vmem:[%s3] sm:$0xff]
      %v383 = vld [vmem:[%s3 + $0x8] sm:$0xff]
      %v384 = vld [vmem:[%s3 + $0x10] sm:$0xff]
      %v385 = vld [vmem:[%s3 + $0x18] sm:$0xff]
      %v386 = vld [vmem:[%s3 + $0x20] sm:$0xff]
      %v387 = vld [vmem:[%s3 + $0x28] sm:$0xff]
      %v388 = vld [vmem:[%s3 + $0x30] sm:$0xff]
      %v389 = vld [vmem:[%s3 + $0x38] sm:$0xff]
      %v390 = vld [vmem:[%s4] sm:$0x3]
      %v391 = vunpack.c.l.bf16 %v390
      %v400 = vunpack.c.l.b16 %v382
      %v401 = vunpack.c.h.b16 %v382
      %v402 = vunpack.c.l.b16 %v383
      %v403 = vunpack.c.h.b16 %v383
      %v404 = vunpack.c.l.b16 %v384
      %v405 = vunpack.c.h.b16 %v384
      %v406 = vunpack.c.l.b16 %v385
      %v407 = vunpack.c.h.b16 %v385
      %v408 = vunpack.c.l.b16 %v386
      %v409 = vunpack.c.h.b16 %v386
      %v410 = vunpack.c.l.b16 %v387
      %v411 = vunpack.c.h.b16 %v387
      %v412 = vunpack.c.l.b16 %v388
      %v413 = vunpack.c.h.b16 %v388
      %v414 = vunpack.c.l.b16 %v389
      %v415 = vunpack.c.h.b16 %v389
      %v416 = vpack.c.b16 %v402, %v400
      %v417 = vpack.c.b16 %v403, %v401
      %v418 = vpack.c.b16 %v406, %v404
      %v419 = vpack.c.b16 %v407, %v405
      %v420 = vpack.c.b16 %v410, %v408
      %v421 = vpack.c.b16 %v411, %v409
      %v422 = vpack.c.b16 %v414, %v412
      %v423 = vpack.c.b16 %v415, %v413
      %v433 = vlaneseq
      %v434 = vshrl.u32 %v433, 7
      %v435 = vsub.s32 0, %v434
      %v436 = vrot.slane %v391, %v435
      %v437 = vlaneseq
      %v438 = vshrl.u32 %v437, 7
      %v439 = vsub.s32 2, %v438
      %v440 = vrot.slane %v391, %v439
      %vm443 = vcmask 523264
      %v445 = vsel %vm443, %v381, 0
      %447 = vmatprep.subr.bf16.mxu0 %v417
      %448 = vmatpush1.bf16.msra.mxu0 %v416
      %449 = vmatprep.subr.bf16.mxu0 %v419
      %450 = vmatpush1.bf16.msra.mxu0 %v418
      %451 = vmatprep.subr.bf16.mxu0 %v421
      %452 = vmatpush1.bf16.msra.mxu0 %v420
      %453 = vmatprep.subr.bf16.mxu0 %v423
      %454 = vmatpush1.bf16.msra.mxu0 %v422
      %455 = vmatprep.subr.bf16.mxu0 0
      %456 = vmatpush1.bf16.msra.mxu0 0
      %457 = vmatprep.subr.bf16.mxu0 0
      %458 = vmatpush1.bf16.msra.mxu0 0
      %459 = vmatprep.subr.bf16.mxu0 0
      %460 = vmatpush1.bf16.msra.mxu0 0
      %461 = vmatprep.subr.bf16.mxu0 0
      %462 = vmatpush1.bf16.msra.mxu0 0
      %463 = vmatprep.subr.bf16.mxu0 0
      %464 = vmatpush1.bf16.msra.mxu0 0
      %465 = vmatprep.subr.bf16.mxu0 0
      %466 = vmatpush1.bf16.msra.mxu0 0
      %467 = vmatprep.subr.bf16.mxu0 0
      %468 = vmatpush1.bf16.msra.mxu0 0
      %469 = vmatprep.subr.bf16.mxu0 0
      %470 = vmatpush1.bf16.msra.mxu0 0
      %471 = vmatprep.subr.bf16.mxu0 0
      %472 = vmatpush1.bf16.msra.mxu0 0
      %473 = vmatprep.subr.bf16.mxu0 0
      %474 = vmatpush1.bf16.msra.mxu0 0
      %475 = vmatprep.subr.bf16.mxu0 0
      %476 = vmatpush1.bf16.msra.mxu0 0
      %477 = vmatprep.subr.bf16.mxu0 0
      %478 = vmatpush1.bf16.msra.mxu0 0
      %479 = vmatprep.mubr.bf16.mxu0 0
      %480 = vmatmul.mubr.bf16.gmra.mrb[0].mxu0 %v445
      %v481 = vpop.f32.mrb[0].mxu0
      %v482 = vadd.f32 %v436, %v481
      %v483 = vpop.f32.mrb[0].mxu0
      %v484 = vadd.f32 %v440, %v483
      %v485 = vpop.f32.mrb[0].mxu0
      %v486 = vpop.f32.mrb[0].mxu0
      %487 = vdwg.mxu0
      %v488 = vsel %vm443, %v378, 0.0
      %489 = vadd.xlane.f32.xlu0 %v488
      %v490 = vpop.xlane.xlu0 %489
      %v491 = vsel %vm443, %v379, 0.0
      %492 = vadd.xlane.f32.xlu0 %v491
      %v493 = vpop.xlane.xlu0 %492
      %v494 = vsel %vm443, %v380, 0.0
      %495 = vadd.xlane.f32.xlu0 %v494
      %v496 = vpop.xlane.xlu0 %495
      %v497 = vrcp.pop 64.0
      %v498 = vmul.f32 %v490, %v497
      %v499 = vmul.f32 %v493, %v497
      %v500 = vmul.f32 %v496, %v497
      %v501 = vsub.f32 %v378, %v498
      %v502 = vsub.f32 %v379, %v499
      %v503 = vsub.f32 %v380, %v500
      %v504 = vmul.f32 %v501, %v501
      %v505 = vmul.f32 %v502, %v502
      %v506 = vmul.f32 %v503, %v503
      %v507 = vsel %vm443, %v504, 0.0
      %508 = vadd.xlane.f32.xlu0 %v507
      %v509 = vpop.xlane.xlu0 %508
      %v510 = vsel %vm443, %v505, 0.0
      %511 = vadd.xlane.f32.xlu0 %v510
      %v512 = vpop.xlane.xlu0 %511
      %v513 = vsel %vm443, %v506, 0.0
      %514 = vadd.xlane.f32.xlu0 %v513
      %v515 = vpop.xlane.xlu0 %514
      %v516 = vmul.f32 %v509, %v497
      %v517 = vmul.f32 %v512, %v497
      %v518 = vmul.f32 %v515, %v497
      %v519 = vadd.f32 %v516, 1e-06
      %v520 = vadd.f32 %v517, 1e-06
      %v521 = vadd.f32 %v518, 1e-06
      %v522 = vrsqrt.pop %v519
      %v523 = vrsqrt.pop %v520
      %v524 = vrsqrt.pop %v521
      %v525 = vmul.f32 %v501, %v522
      %v526 = vmul.f32 %v502, %v523
      %v527 = vmul.f32 %v503, %v524
      %v528 = vadd.f32 %v482, 1.0
      %v529 = vlaneseq
      %v530 = vshrl.u32 %v529, 7
      %v531 = vsub.s32 0, %v530
      %v532 = vrot.slane %v528, %v531
      %534 = vrot.lane.b32.xlu0 %v532, 64
      %v535 = vpop.permute.xlu0 %534
      %v537 = vmul.f32 %v525, %v535
      %v538 = vmul.f32 %v526, %v535
      %v539 = vmul.f32 %v527, %v535
      %v540 = vlaneseq
      %v541 = vshrl.u32 %v540, 7
      %v542 = vsub.s32 0, %v541
      %v543 = vrot.slane %v482, %v542
      %v544 = vadd.f32 %v537, %v543
      %v545 = vadd.f32 %v538, %v543
      %v546 = vadd.f32 %v539, %v543
      %v547 = vpack.c.bf16 %v545, %v544
      %v548 = vpack.c.bf16 %v546, %v546
      %v549 = vld [vmem:[%s5] sm:$0xff]
      %v550 = vld [vmem:[%s5 + $0x8] sm:$0xff]
      %v551 = vld [vmem:[%s5 + $0x10] sm:$0xff]
      %v552 = vld [vmem:[%s5 + $0x18] sm:$0xff]
      %v553 = vld [vmem:[%s5 + $0x20] sm:$0xff]
      %v554 = vld [vmem:[%s5 + $0x28] sm:$0xff]
      %v555 = vld [vmem:[%s5 + $0x30] sm:$0xff]
      %v556 = vld [vmem:[%s5 + $0x38] sm:$0xff]
      %v557 = vld [vmem:[%s5 + $0x40] sm:$0xff]
      %v558 = vld [vmem:[%s5 + $0x48] sm:$0xff]
      %v559 = vld [vmem:[%s5 + $0x50] sm:$0xff]
      %v560 = vld [vmem:[%s5 + $0x58] sm:$0xff]
      %v561 = vld [vmem:[%s5 + $0x60] sm:$0xff]
      %v562 = vld [vmem:[%s5 + $0x68] sm:$0xff]
      %v563 = vld [vmem:[%s5 + $0x70] sm:$0xff]
      %v564 = vld [vmem:[%s5 + $0x78] sm:$0xff]
      %v565 = vld [vmem:[%s6] sm:$0xf]
      %v566 = vunpack.c.l.bf16 %v565
      %v568 = vlaneseq
      %v569 = vshrl.u32 %v568, 7
      %v570 = vsub.s32 0, %v569
      %v571 = vrot.slane %v566, %v570
      %v572 = vlaneseq
      %v573 = vshrl.u32 %v572, 7
      %v574 = vsub.s32 2, %v573
      %v575 = vrot.slane %v566, %v574
      %v576 = vlaneseq
      %v577 = vshrl.u32 %v576, 7
      %v578 = vsub.s32 4, %v577
      %v579 = vrot.slane %v566, %v578
      %v580 = vlaneseq
      %v581 = vshrl.u32 %v580, 7
      %v582 = vsub.s32 6, %v581
      %v583 = vrot.slane %v566, %v582
      %v588 = vlaneseq
      %v589 = vshrl.u32 %v588, 7
      %v590 = vsub.s32 0, %v589
      %v591 = vrot.slane %v571, %v590
      %v592 = vlaneseq
      %v593 = vshrl.u32 %v592, 7
      %v594 = vsub.s32 0, %v593
      %v595 = vrot.slane %v575, %v594
      %v596 = vlaneseq
      %v597 = vshrl.u32 %v596, 7
      %v598 = vsub.s32 0, %v597
      %v599 = vrot.slane %v579, %v598
      %v600 = vlaneseq
      %v601 = vshrl.u32 %v600, 7
      %v602 = vsub.s32 0, %v601
      %v603 = vrot.slane %v583, %v602
      %v620 = vunpack.c.l.b16 %v549
      %v621 = vunpack.c.h.b16 %v549
      %v622 = vunpack.c.l.b16 %v550
      %v623 = vunpack.c.h.b16 %v550
      %v624 = vunpack.c.l.b16 %v551
      %v625 = vunpack.c.h.b16 %v551
      %v626 = vunpack.c.l.b16 %v552
      %v627 = vunpack.c.h.b16 %v552
      %v628 = vunpack.c.l.b16 %v553
      %v629 = vunpack.c.h.b16 %v553
      %v630 = vunpack.c.l.b16 %v554
      %v631 = vunpack.c.h.b16 %v554
      %v632 = vunpack.c.l.b16 %v555
      %v633 = vunpack.c.h.b16 %v555
      %v634 = vunpack.c.l.b16 %v556
      %v635 = vunpack.c.h.b16 %v556
      %v636 = vunpack.c.l.b16 %v557
      %v637 = vunpack.c.h.b16 %v557
      %v638 = vunpack.c.l.b16 %v558
      %v639 = vunpack.c.h.b16 %v558
      %v640 = vunpack.c.l.b16 %v559
      %v641 = vunpack.c.h.b16 %v559
      %v642 = vunpack.c.l.b16 %v560
      %v643 = vunpack.c.h.b16 %v560
      %v644 = vunpack.c.l.b16 %v561
      %v645 = vunpack.c.h.b16 %v561
      %v646 = vunpack.c.l.b16 %v562
      %v647 = vunpack.c.h.b16 %v562
      %v648 = vunpack.c.l.b16 %v563
      %v649 = vunpack.c.h.b16 %v563
      %v650 = vunpack.c.l.b16 %v564
      %v651 = vunpack.c.h.b16 %v564
      %v652 = vpack.c.b16 %v624, %v620
      %v653 = vpack.c.b16 %v625, %v621
      %v654 = vpack.c.b16 %v626, %v622
      %v655 = vpack.c.b16 %v627, %v623
      %v656 = vpack.c.b16 %v632, %v628
      %v657 = vpack.c.b16 %v633, %v629
      %v658 = vpack.c.b16 %v634, %v630
      %v659 = vpack.c.b16 %v635, %v631
      %v660 = vpack.c.b16 %v640, %v636
      %v661 = vpack.c.b16 %v641, %v637
      %v662 = vpack.c.b16 %v642, %v638
      %v663 = vpack.c.b16 %v643, %v639
      %v664 = vpack.c.b16 %v648, %v644
      %v665 = vpack.c.b16 %v649, %v645
      %v666 = vpack.c.b16 %v650, %v646
      %v667 = vpack.c.b16 %v651, %v647
      %v685 = vsel %vm443, %v547, 0
      %v688 = vsel %vm443, %v548, 0
      %690 = vmatprep.subr.bf16.mxu0 %v653
      %691 = vmatpush1.bf16.msra.mxu0 %v652
      %692 = vmatprep.subr.bf16.mxu0 %v657
      %693 = vmatpush1.bf16.msra.mxu0 %v656
      %694 = vmatprep.subr.bf16.mxu0 %v661
      %695 = vmatpush1.bf16.msra.mxu0 %v660
      %696 = vmatprep.subr.bf16.mxu0 %v665
      %697 = vmatpush1.bf16.msra.mxu0 %v664
      %698 = vmatprep.subr.bf16.mxu0 0
      %699 = vmatpush1.bf16.msra.mxu0 0
      %700 = vmatprep.subr.bf16.mxu0 0
      %701 = vmatpush1.bf16.msra.mxu0 0
      %702 = vmatprep.subr.bf16.mxu0 0
      %703 = vmatpush1.bf16.msra.mxu0 0
      %704 = vmatprep.subr.bf16.mxu0 0
      %705 = vmatpush1.bf16.msra.mxu0 0
      %706 = vmatprep.subr.bf16.mxu0 0
      %707 = vmatpush1.bf16.msra.mxu0 0
      %708 = vmatprep.subr.bf16.mxu0 0
      %709 = vmatpush1.bf16.msra.mxu0 0
      %710 = vmatprep.subr.bf16.mxu0 0
      %711 = vmatpush1.bf16.msra.mxu0 0
      %712 = vmatprep.subr.bf16.mxu0 0
      %713 = vmatpush1.bf16.msra.mxu0 0
      %714 = vmatprep.subr.bf16.mxu0 0
      %715 = vmatpush1.bf16.msra.mxu0 0
      %716 = vmatprep.subr.bf16.mxu0 0
      %717 = vmatpush1.bf16.msra.mxu0 0
      %718 = vmatprep.subr.bf16.mxu0 0
      %719 = vmatpush1.bf16.msra.mxu0 0
      %720 = vmatprep.subr.bf16.mxu0 0
      %721 = vmatpush1.bf16.msra.mxu0 0
      %722 = vmatprep.mubr.bf16.mxu0 0
      %723 = vmatmul.mubr.bf16.gmra.mrb[0].mxu0 %v685
      %v724 = vpop.f32.mrb[0].mxu0
      %v725 = vadd.f32 %v591, %v724
      %v726 = vpop.f32.mrb[0].mxu0
      %v727 = vadd.f32 %v595, %v726
      %v728 = vpop.f32.mrb[0].mxu0
      %v729 = vadd.f32 %v591, %v728
      %v730 = vpop.f32.mrb[0].mxu0
      %v731 = vadd.f32 %v595, %v730
      %732 = vmatprep.mubr.bf16.mxu0 0
      %733 = vmatmul.mubr.bf16.gmra.mrb[0].mxu0 %v688
      %v734 = vpop.f32.mrb[0].mxu0
      %v735 = vadd.f32 %v591, %v734
      %v736 = vpop.f32.mrb[0].mxu0
      %v737 = vadd.f32 %v595, %v736
      %v738 = vpop.f32.mrb[0].mxu0
      %v739 = vpop.f32.mrb[0].mxu0
      %740 = vdwg.mxu0
      %741 = vmatprep.subr.bf16.mxu0 %v655
      %742 = vmatpush1.bf16.msra.mxu0 %v654
      %743 = vmatprep.subr.bf16.mxu0 %v659
      %744 = vmatpush1.bf16.msra.mxu0 %v658
      %745 = vmatprep.subr.bf16.mxu0 %v663
      %746 = vmatpush1.bf16.msra.mxu0 %v662
      %747 = vmatprep.subr.bf16.mxu0 %v667
      %748 = vmatpush1.bf16.msra.mxu0 %v666
      %749 = vmatprep.subr.bf16.mxu0 0
      %750 = vmatpush1.bf16.msra.mxu0 0
      %751 = vmatprep.subr.bf16.mxu0 0
      %752 = vmatpush1.bf16.msra.mxu0 0
      %753 = vmatprep.subr.bf16.mxu0 0
      %754 = vmatpush1.bf16.msra.mxu0 0
      %755 = vmatprep.subr.bf16.mxu0 0
      %756 = vmatpush1.bf16.msra.mxu0 0
      %757 = vmatprep.subr.bf16.mxu0 0
      %758 = vmatpush1.bf16.msra.mxu0 0
      %759 = vmatprep.subr.bf16.mxu0 0
      %760 = vmatpush1.bf16.msra.mxu0 0
      %761 = vmatprep.subr.bf16.mxu0 0
      %762 = vmatpush1.bf16.msra.mxu0 0
      %763 = vmatprep.subr.bf16.mxu0 0
      %764 = vmatpush1.bf16.msra.mxu0 0
      %765 = vmatprep.subr.bf16.mxu0 0
      %766 = vmatpush1.bf16.msra.mxu0 0
      %767 = vmatprep.subr.bf16.mxu0 0
      %768 = vmatpush1.bf16.msra.mxu0 0
      %769 = vmatprep.subr.bf16.mxu0 0
      %770 = vmatpush1.bf16.msra.mxu0 0
      %771 = vmatprep.subr.bf16.mxu0 0
      %772 = vmatpush1.bf16.msra.mxu0 0
      %773 = vmatprep.mubr.bf16.mxu0 0
      %774 = vmatmul.mubr.bf16.gmra.mrb[0].mxu0 %v685
      %v775 = vpop.f32.mrb[0].mxu0
      %v776 = vadd.f32 %v599, %v775
      %v777 = vpop.f32.mrb[0].mxu0
      %v778 = vadd.f32 %v603, %v777
      %v779 = vpop.f32.mrb[0].mxu0
      %v780 = vadd.f32 %v599, %v779
      %v781 = vpop.f32.mrb[0].mxu0
      %v782 = vadd.f32 %v603, %v781
      %783 = vmatprep.mubr.bf16.mxu0 0
      %784 = vmatmul.mubr.bf16.gmra.mrb[0].mxu0 %v688
      %v785 = vpop.f32.mrb[0].mxu0
      %v786 = vadd.f32 %v599, %v785
      %v787 = vpop.f32.mrb[0].mxu0
      %v788 = vadd.f32 %v603, %v787
      %v789 = vpop.f32.mrb[0].mxu0
      %v790 = vpop.f32.mrb[0].mxu0
      %791 = vdwg.mxu0
      %v792 = vmul.f32 %v727, 0.5
      %v793 = vmul.f32 %v776, 0.5
      %v794 = vmul.f32 %v778, 0.5
      %v795 = vmul.f32 %v731, 0.5
      %v796 = vmul.f32 %v780, 0.5
      %v797 = vmul.f32 %v782, 0.5
      %v798 = vmul.f32 %v737, 0.5
      %v799 = vmul.f32 %v786, 0.5
      %v800 = vmul.f32 %v788, 0.5
      %v801 = vmul.f32 %v727, 0.044715
      %v802 = vmul.f32 %v776, 0.044715
      %v803 = vmul.f32 %v778, 0.044715
      %v804 = vmul.f32 %v731, 0.044715
      %v805 = vmul.f32 %v780, 0.044715
      %v806 = vmul.f32 %v782, 0.044715
      %v807 = vmul.f32 %v737, 0.044715
      %v808 = vmul.f32 %v786, 0.044715
      %v809 = vmul.f32 %v788, 0.044715
      %v810 = vmul.f32 %v801, %v727
      %v811 = vmul.f32 %v802, %v776
      %v812 = vmul.f32 %v803, %v778
      %v813 = vmul.f32 %v804, %v731
      %v814 = vmul.f32 %v805, %v780
      %v815 = vmul.f32 %v806, %v782
      %v816 = vmul.f32 %v807, %v737
      %v817 = vmul.f32 %v808, %v786
      %v818 = vmul.f32 %v809, %v788
      %v819 = vmul.f32 %v810, %v727
      %v820 = vmul.f32 %v811, %v776
      %v821 = vmul.f32 %v812, %v778
      %v822 = vmul.f32 %v813, %v731
      %v823 = vmul.f32 %v814, %v780
      %v824 = vmul.f32 %v815, %v782
      %v825 = vmul.f32 %v816, %v737
      %v826 = vmul.f32 %v817, %v786
      %v827 = vmul.f32 %v818, %v788
      %v828 = vadd.f32 %v727, %v819
      %v829 = vadd.f32 %v776, %v820
      %v830 = vadd.f32 %v778, %v821
      %v831 = vadd.f32 %v731, %v822
      %v832 = vadd.f32 %v780, %v823
      %v833 = vadd.f32 %v782, %v824
      %v834 = vadd.f32 %v737, %v825
      %v835 = vadd.f32 %v786, %v826
      %v836 = vadd.f32 %v788, %v827
      %v837 = vmul.f32 %v828, 0.7978846
      %v838 = vmul.f32 %v829, 0.7978846
      %v839 = vmul.f32 %v830, 0.7978846
      %v840 = vmul.f32 %v831, 0.7978846
      %v841 = vmul.f32 %v832, 0.7978846
      %v842 = vmul.f32 %v833, 0.7978846
      %v843 = vmul.f32 %v834, 0.7978846
      %v844 = vmul.f32 %v835, 0.7978846
      %v845 = vmul.f32 %v836, 0.7978846
      %v846 = vtanh.pop %v837
      %v847 = vtanh.pop %v838
      %v848 = vtanh.pop %v839
      %v849 = vtanh.pop %v840
      %v850 = vtanh.pop %v841
      %v851 = vtanh.pop %v842
      %v852 = vtanh.pop %v843
      %v853 = vtanh.pop %v844
      %v854 = vtanh.pop %v845
      %v855 = vadd.f32 %v846, 1.0
      %v856 = vadd.f32 %v847, 1.0
      %v857 = vadd.f32 %v848, 1.0
      %v858 = vadd.f32 %v849, 1.0
      %v859 = vadd.f32 %v850, 1.0
      %v860 = vadd.f32 %v851, 1.0
      %v861 = vadd.f32 %v852, 1.0
      %v862 = vadd.f32 %v853, 1.0
      %v863 = vadd.f32 %v854, 1.0
      %v864 = vmul.f32 %v792, %v855
      %v865 = vmul.f32 %v793, %v856
      %v866 = vmul.f32 %v794, %v857
      %v867 = vmul.f32 %v795, %v858
      %v868 = vmul.f32 %v796, %v859
      %v869 = vmul.f32 %v797, %v860
      %v870 = vmul.f32 %v798, %v861
      %v871 = vmul.f32 %v799, %v862
      %v872 = vmul.f32 %v800, %v863
      %v873 = vld [vmem:[%s2] sm:$0xf]
      %v874 = vld [vmem:[%s2 + $0x4] sm:$0xf]
      %v875 = vld [vmem:[%s2 + $0x8] sm:$0xf]
      %v876 = vunpack.c.l.bf16 %v873
      %v877 = vunpack.c.l.bf16 %v874
      %v878 = vunpack.c.l.bf16 %v875
      %s879 = scalar_lea.vmem %s2, 12
      %v880 = vld [vmem:[%s879] sm:$0xf]
      %v881 = vld [vmem:[%s879 + $0x4] sm:$0xf]
      %v882 = vld [vmem:[%s879 + $0x8] sm:$0xf]
      %v883 = vunpack.c.l.bf16 %v880
      %v884 = vunpack.c.l.bf16 %v881
      %v885 = vunpack.c.l.bf16 %v882
      %s886 = scalar_lea.vmem %s2, 24
      %v887 = vld [vmem:[%s886] sm:$0xf]
      %v888 = vld [vmem:[%s886 + $0x4] sm:$0xf]
      %v889 = vld [vmem:[%s886 + $0x8] sm:$0xf]
      %v890 = vunpack.c.l.bf16 %v887
      %v891 = vunpack.c.l.bf16 %v888
      %v892 = vunpack.c.l.bf16 %v889
      %v893 = vld [vmem:[%s7] sm:$0x1]
      %v894 = vunpack.c.l.bf16 %v893
      %s895 = scalar_lea.vmem %s7, 1
      %v896 = vld [vmem:[%s895] sm:$0x1]
      %v897 = vunpack.c.l.bf16 %v896
      %v898 = vmul.f32 %v725, %v725
      %v899 = vmul.f32 %v729, %v729
      %v900 = vmul.f32 %v735, %v735
      %vm901 = vcmask 261120
      %v902 = vsel %vm901, %v898, 0.0
      %903 = vadd.xlane.f32.xlu0 %v902
      %v904 = vpop.xlane.xlu0 %903
      %v905 = vsel %vm901, %v899, 0.0
      %906 = vadd.xlane.f32.xlu0 %v905
      %v907 = vpop.xlane.xlu0 %906
      %v908 = vsel %vm901, %v900, 0.0
      %909 = vadd.xlane.f32.xlu0 %v908
      %v910 = vpop.xlane.xlu0 %909
      %v911 = vrcp.pop 32.0
      %v912 = vmul.f32 %v904, %v911
      %v913 = vmul.f32 %v907, %v911
      %v914 = vmul.f32 %v910, %v911
      %v915 = vadd.f32 %v912, 1e-06
      %v916 = vadd.f32 %v913, 1e-06
      %v917 = vadd.f32 %v914, 1e-06
      %v918 = vrsqrt.pop %v915
      %v919 = vrsqrt.pop %v916
      %v920 = vrsqrt.pop %v917
      %v921 = vmul.f32 %v725, %v918
      %v922 = vmul.f32 %v729, %v919
      %v923 = vmul.f32 %v735, %v920
      %v924 = vlaneseq
      %v925 = vshrl.u32 %v924, 7
      %v926 = vsub.s32 0, %v925
      %v927 = vrot.slane %v894, %v926
      %v928 = vmul.f32 %v921, %v927
      %v929 = vmul.f32 %v922, %v927
      %v930 = vmul.f32 %v923, %v927
      %v931 = vmul.f32 %v928, %v876
      %v932 = vmul.f32 %v929, %v877
      %v933 = vmul.f32 %v930, %v878
      %937 = vrot.lane.b32.xlu0 %v928, 127
      %v938 = vpop.permute.xlu0 %937
      %939 = vrot.lane.b32.xlu0 %v929, 127
      %v940 = vpop.permute.xlu0 %939
      %941 = vrot.lane.b32.xlu0 %v930, 127
      %v942 = vpop.permute.xlu0 %941
      %946 = vrot.lane.b32.xlu0 %v928, 31
      %v947 = vpop.permute.xlu0 %946
      %948 = vrot.lane.b32.xlu0 %v929, 31
      %v949 = vpop.permute.xlu0 %948
      %950 = vrot.lane.b32.xlu0 %v930, 31
      %v951 = vpop.permute.xlu0 %950
      %vm955 = vcmask 252928
      %v956 = vsel %vm955, %v938, %v947
      %v957 = vsel %vm955, %v940, %v949
      %v958 = vsel %vm955, %v942, %v951
      %v959 = vmul.f32 %v956, %v883
      %v960 = vmul.f32 %v957, %v884
      %v961 = vmul.f32 %v958, %v885
      %v962 = vadd.f32 %v931, %v959
      %v963 = vadd.f32 %v932, %v960
      %v964 = vadd.f32 %v933, %v961
      %965 = vrot.lane.b32.xlu0 %v928, 97
      %v966 = vpop.permute.xlu0 %965
      %967 = vrot.lane.b32.xlu0 %v929, 97
      %v968 = vpop.permute.xlu0 %967
      %969 = vrot.lane.b32.xlu0 %v930, 97
      %v970 = vpop.permute.xlu0 %969
      %974 = vrot.lane.b32.xlu0 %v928, 1
      %v975 = vpop.permute.xlu0 %974
      %976 = vrot.lane.b32.xlu0 %v929, 1
      %v977 = vpop.permute.xlu0 %976
      %978 = vrot.lane.b32.xlu0 %v930, 1
      %v979 = vpop.permute.xlu0 %978
      %vm983 = vcmask 7168
      %v984 = vsel %vm983, %v966, %v975
      %v985 = vsel %vm983, %v968, %v977
      %v986 = vsel %vm983, %v970, %v979
      %v987 = vmul.f32 %v984, %v890
      %v988 = vmul.f32 %v985, %v891
      %v989 = vmul.f32 %v986, %v892
      %v990 = vadd.f32 %v962, %v987
      %v991 = vadd.f32 %v963, %v988
      %v992 = vadd.f32 %v964, %v989
      %996 = vrot.lane.b32.xlu0 %v898, 64
      %v997 = vpop.permute.xlu0 %996
      %998 = vrot.lane.b32.xlu0 %v899, 64
      %v999 = vpop.permute.xlu0 %998
      %1000 = vrot.lane.b32.xlu0 %v900, 64
      %v1001 = vpop.permute.xlu0 %1000
      %v1005 = vsel %vm901, %v997, 0.0
      %1006 = vadd.xlane.f32.xlu0 %v1005
      %v1007 = vpop.xlane.xlu0 %1006
      %v1008 = vsel %vm901, %v999, 0.0
      %1009 = vadd.xlane.f32.xlu0 %v1008
      %v1010 = vpop.xlane.xlu0 %1009
      %v1011 = vsel %vm901, %v1001, 0.0
      %1012 = vadd.xlane.f32.xlu0 %v1011
      %v1013 = vpop.xlane.xlu0 %1012
      %v1014 = vmul.f32 %v1007, %v911
      %v1015 = vmul.f32 %v1010, %v911
      %v1016 = vmul.f32 %v1013, %v911
      %v1017 = vadd.f32 %v1014, 1e-06
      %v1018 = vadd.f32 %v1015, 1e-06
      %v1019 = vadd.f32 %v1016, 1e-06
      %v1020 = vrsqrt.pop %v1017
      %v1021 = vrsqrt.pop %v1018
      %v1022 = vrsqrt.pop %v1019
      %v1023 = vmul.f32 %v725, %v1020
      %v1024 = vmul.f32 %v729, %v1021
      %v1025 = vmul.f32 %v735, %v1022
      %v1026 = vlaneseq
      %v1027 = vshrl.u32 %v1026, 7
      %v1028 = vsub.s32 0, %v1027
      %v1029 = vrot.slane %v897, %v1028
      %1031 = vrot.lane.b32.xlu0 %v1029, 64
      %v1032 = vpop.permute.xlu0 %1031
      %v1034 = vmul.f32 %v1023, %v1032
      %v1035 = vmul.f32 %v1024, %v1032
      %v1036 = vmul.f32 %v1025, %v1032
      %1040 = vrot.lane.b32.xlu0 %v876, 64
      %v1041 = vpop.permute.xlu0 %1040
      %1042 = vrot.lane.b32.xlu0 %v877, 64
      %v1043 = vpop.permute.xlu0 %1042
      %1044 = vrot.lane.b32.xlu0 %v878, 64
      %v1045 = vpop.permute.xlu0 %1044
      %v1049 = vmul.f32 %v1034, %v1041
      %v1050 = vmul.f32 %v1035, %v1043
      %v1051 = vmul.f32 %v1036, %v1045
      %1055 = vrot.lane.b32.xlu0 %v1034, 63
      %v1056 = vpop.permute.xlu0 %1055
      %1057 = vrot.lane.b32.xlu0 %v1035, 63
      %v1058 = vpop.permute.xlu0 %1057
      %1059 = vrot.lane.b32.xlu0 %v1036, 63
      %v1060 = vpop.permute.xlu0 %1059
      %1064 = vrot.lane.b32.xlu0 %v1034, 95
      %v1065 = vpop.permute.xlu0 %1064
      %1066 = vrot.lane.b32.xlu0 %v1035, 95
      %v1067 = vpop.permute.xlu0 %1066
      %1068 = vrot.lane.b32.xlu0 %v1036, 95
      %v1069 = vpop.permute.xlu0 %1068
      %v1073 = vsel %vm955, %v1056, %v1065
      %v1074 = vsel %vm955, %v1058, %v1067
      %v1075 = vsel %vm955, %v1060, %v1069
      %v1076 = vmul.f32 %v1073, %v883
      %v1077 = vmul.f32 %v1074, %v884
      %v1078 = vmul.f32 %v1075, %v885
      %1082 = vrot.lane.b32.xlu0 %v1076, 64
      %v1083 = vpop.permute.xlu0 %1082
      %1084 = vrot.lane.b32.xlu0 %v1077, 64
      %v1085 = vpop.permute.xlu0 %1084
      %1086 = vrot.lane.b32.xlu0 %v1078, 64
      %v1087 = vpop.permute.xlu0 %1086
      %v1091 = vadd.f32 %v1049, %v1083
      %v1092 = vadd.f32 %v1050, %v1085
      %v1093 = vadd.f32 %v1051, %v1087
      %1094 = vrot.lane.b32.xlu0 %v1034, 33
      %v1095 = vpop.permute.xlu0 %1094
      %1096 = vrot.lane.b32.xlu0 %v1035, 33
      %v1097 = vpop.permute.xlu0 %1096
      %1098 = vrot.lane.b32.xlu0 %v1036, 33
      %v1099 = vpop.permute.xlu0 %1098
      %1103 = vrot.lane.b32.xlu0 %v1034, 65
      %v1104 = vpop.permute.xlu0 %1103
      %1105 = vrot.lane.b32.xlu0 %v1035, 65
      %v1106 = vpop.permute.xlu0 %1105
      %1107 = vrot.lane.b32.xlu0 %v1036, 65
      %v1108 = vpop.permute.xlu0 %1107
      %v1112 = vsel %vm983, %v1095, %v1104
      %v1113 = vsel %vm983, %v1097, %v1106
      %v1114 = vsel %vm983, %v1099, %v1108
      %v1115 = vmul.f32 %v1112, %v890
      %v1116 = vmul.f32 %v1113, %v891
      %v1117 = vmul.f32 %v1114, %v892
      %1121 = vrot.lane.b32.xlu0 %v1115, 64
      %v1122 = vpop.permute.xlu0 %1121
      %1123 = vrot.lane.b32.xlu0 %v1116, 64
      %v1124 = vpop.permute.xlu0 %1123
      %1125 = vrot.lane.b32.xlu0 %v1117, 64
      %v1126 = vpop.permute.xlu0 %1125
      %v1130 = vadd.f32 %v1091, %v1122
      %v1131 = vadd.f32 %v1092, %v1124
      %v1132 = vadd.f32 %v1093, %v1126
      %v1133 = vpack.c.bf16 %v991, %v990
      %v1134 = vpack.c.bf16 %v992, %v992
      %v1135 = vpack.c.bf16 %v1131, %v1130
      %v1136 = vpack.c.bf16 %v1132, %v1132
      %1139 = vrot.lane.b32.xlu0 %v1135, 64
      %v1140 = vpop.permute.xlu0 %1139
      %1141 = vrot.lane.b32.xlu0 %v1136, 64
      %v1142 = vpop.permute.xlu0 %1141
      %v1144 = vsel %vm901, %v1133, 0
      %v1147 = vsel %vm901, %v1134, 0
      %v1150 = vsel %vm901, %v1140, 0
      %v1153 = vsel %vm901, %v1142, 0
      %1155 = vmatprep.subr.bf16.mxu0 0
      %1156 = vmatpush1.bf16.xpose.msra.mxu0 %v1150
      %1157 = vmatprep.subr.bf16.mxu0 0
      %1158 = vmatpush1.bf16.xpose.msra.mxu0 %v1153
      %1159 = vmatprep.subr.bf16.mxu0 0
      %1160 = vmatpush1.bf16.xpose.msra.mxu0 0
      %1161 = vmatprep.subr.bf16.mxu0 0
      %1162 = vmatpush1.bf16.xpose.msra.mxu0 0
      %1163 = vmatprep.subr.bf16.mxu0 0
      %1164 = vmatpush1.bf16.xpose.msra.mxu0 0
      %1165 = vmatprep.subr.bf16.mxu0 0
      %1166 = vmatpush1.bf16.xpose.msra.mxu0 0
      %1167 = vmatprep.subr.bf16.mxu0 0
      %1168 = vmatpush1.bf16.xpose.msra.mxu0 0
      %1169 = vmatprep.subr.bf16.mxu0 0
      %1170 = vmatpush1.bf16.xpose.msra.mxu0 0
      %1171 = vmatprep.subr.bf16.mxu0 0
      %1172 = vmatpush1.bf16.xpose.msra.mxu0 0
      %1173 = vmatprep.subr.bf16.mxu0 0
      %1174 = vmatpush1.bf16.xpose.msra.mxu0 0
      %1175 = vmatprep.subr.bf16.mxu0 0
      %1176 = vmatpush1.bf16.xpose.msra.mxu0 0
      %1177 = vmatprep.subr.bf16.mxu0 0
      %1178 = vmatpush1.bf16.xpose.msra.mxu0 0
      %1179 = vmatprep.subr.bf16.mxu0 0
      %1180 = vmatpush1.bf16.xpose.msra.mxu0 0
      %1181 = vmatprep.subr.bf16.mxu0 0
      %1182 = vmatpush1.bf16.xpose.msra.mxu0 0
      %1183 = vmatprep.subr.bf16.mxu0 0
      %1184 = vmatpush1.bf16.xpose.msra.mxu0 0
      %1185 = vmatprep.subr.bf16.mxu0 0
      %1186 = vmatpush1.bf16.xpose.msra.mxu0 0
      %1187 = vmatprep.mubr.bf16.mxu0 0
      %1188 = vmatmul.mubr.bf16.gmra.mrb[0].mxu0 %v1144
      %v1189 = vpop.f32.mrb[0].mxu0
      %v1190 = vadd.f32 0.0, %v1189
      %v1191 = vpop.f32.mrb[0].mxu0
      %v1192 = vpop.f32.mrb[0].mxu0
      %v1193 = vadd.f32 0.0, %v1192
      %v1194 = vpop.f32.mrb[0].mxu0
      %1195 = vmatprep.mubr.bf16.mxu0 0
      %1196 = vmatmul.mubr.bf16.gmra.mrb[0].mxu0 %v1147
      %v1197 = vpop.f32.mrb[0].mxu0
      %v1198 = vadd.f32 0.0, %v1197
      %v1199 = vpop.f32.mrb[0].mxu0
      %v1200 = vpop.f32.mrb[0].mxu0
      %v1201 = vpop.f32.mrb[0].mxu0
      %1202 = vdwg.mxu0
      %v1203 = vmul.f32 %v1190, 0.17677669
      %v1204 = vmul.f32 %v1193, 0.17677669
      %v1205 = vmul.f32 %v1198, 0.17677669
      %vm1206 = vcmask 195584
      %v1207 = vsel %vm1206, %v1203, -inf
      %1208 = vmax.xlane.f32.xlu0 %v1207
      %v1209 = vpop.xlane.xlu0 %1208
      %v1210 = vsel %vm1206, %v1204, -inf
      %1211 = vmax.xlane.f32.xlu0 %v1210
      %v1212 = vpop.xlane.xlu0 %1211
      %v1213 = vsel %vm1206, %v1205, -inf
      %1214 = vmax.xlane.f32.xlu0 %v1213
      %v1215 = vpop.xlane.xlu0 %1214
      %v1216 = vsub.f32 %v1203, %v1209
      %v1217 = vsub.f32 %v1204, %v1212
      %v1218 = vsub.f32 %v1205, %v1215
      %v1219 = vmul.f32 %v1216, 1.442695
      %v1220 = vpow.pop %v1219
      %v1221 = vmul.f32 %v1217, 1.442695
      %v1222 = vpow.pop %v1221
      %v1223 = vmul.f32 %v1218, 1.442695
      %v1224 = vpow.pop %v1223
      %v1225 = vsel %vm1206, %v1220, 0.0
      %1226 = vadd.xlane.f32.xlu0 %v1225
      %v1227 = vpop.xlane.xlu0 %1226
      %v1228 = vsel %vm1206, %v1222, 0.0
      %1229 = vadd.xlane.f32.xlu0 %v1228
      %v1230 = vpop.xlane.xlu0 %1229
      %v1231 = vsel %vm1206, %v1224, 0.0
      %1232 = vadd.xlane.f32.xlu0 %v1231
      %v1233 = vpop.xlane.xlu0 %1232
      %v1234 = vrcp.pop %v1227
      %v1235 = vrcp.pop %v1230
      %v1236 = vrcp.pop %v1233
      %v1237 = vpack.c.bf16 %v1222, %v1220
      %v1238 = vpack.c.bf16 %v1224, %v1224
      %v1239 = vpack.c.bf16 %v731, %v727
      %v1240 = vpack.c.bf16 %v737, %v737
      %v1242 = vsel %vm1206, %v1237, 0
      %v1245 = vsel %vm1206, %v1238, 0
      %vm1247 = vcmask 1043456
      %v1249 = vsel %vm1247, %v1240, 0
      %1251 = vmatprep.subr.bf16.mxu0 0
      %1252 = vmatpush1.bf16.msra.mxu0 %v1239
      %1253 = vmatprep.subr.bf16.mxu0 0
      %1254 = vmatpush1.bf16.msra.mxu0 %v1249
      %1255 = vmatprep.subr.bf16.mxu0 0
      %1256 = vmatpush1.bf16.msra.mxu0 0
      %1257 = vmatprep.subr.bf16.mxu0 0
      %1258 = vmatpush1.bf16.msra.mxu0 0
      %1259 = vmatprep.subr.bf16.mxu0 0
      %1260 = vmatpush1.bf16.msra.mxu0 0
      %1261 = vmatprep.subr.bf16.mxu0 0
      %1262 = vmatpush1.bf16.msra.mxu0 0
      %1263 = vmatprep.subr.bf16.mxu0 0
      %1264 = vmatpush1.bf16.msra.mxu0 0
      %1265 = vmatprep.subr.bf16.mxu0 0
      %1266 = vmatpush1.bf16.msra.mxu0 0
      %1267 = vmatprep.subr.bf16.mxu0 0
      %1268 = vmatpush1.bf16.msra.mxu0 0
      %1269 = vmatprep.subr.bf16.mxu0 0
      %1270 = vmatpush1.bf16.msra.mxu0 0
      %1271 = vmatprep.subr.bf16.mxu0 0
      %1272 = vmatpush1.bf16.msra.mxu0 0
      %1273 = vmatprep.subr.bf16.mxu0 0
      %1274 = vmatpush1.bf16.msra.mxu0 0
      %1275 = vmatprep.subr.bf16.mxu0 0
      %1276 = vmatpush1.bf16.msra.mxu0 0
      %1277 = vmatprep.subr.bf16.mxu0 0
      %1278 = vmatpush1.bf16.msra.mxu0 0
      %1279 = vmatprep.subr.bf16.mxu0 0
      %1280 = vmatpush1.bf16.msra.mxu0 0
      %1281 = vmatprep.subr.bf16.mxu0 0
      %1282 = vmatpush1.bf16.msra.mxu0 0
      %1283 = vmatprep.mubr.bf16.mxu0 0
      %1284 = vmatmul.mubr.bf16.gmra.mrb[0].mxu0 %v1242
      %v1285 = vpop.f32.mrb[0].mxu0
      %v1286 = vadd.f32 0.0, %v1285
      %v1287 = vpop.f32.mrb[0].mxu0
      %v1288 = vpop.f32.mrb[0].mxu0
      %v1289 = vadd.f32 0.0, %v1288
      %v1290 = vpop.f32.mrb[0].mxu0
      %1291 = vmatprep.mubr.bf16.mxu0 0
      %1292 = vmatmul.mubr.bf16.gmra.mrb[0].mxu0 %v1245
      %v1293 = vpop.f32.mrb[0].mxu0
      %v1294 = vadd.f32 0.0, %v1293
      %v1295 = vpop.f32.mrb[0].mxu0
      %v1296 = vpop.f32.mrb[0].mxu0
      %v1297 = vpop.f32.mrb[0].mxu0
      %1298 = vdwg.mxu0
      %v1299 = vmul.f32 %v1286, %v1234
      %v1300 = vmul.f32 %v1289, %v1235
      %v1301 = vmul.f32 %v1294, %v1236
      %1302 = vrot.lane.b32.xlu0 %v898, 96
      %v1303 = vpop.permute.xlu0 %1302
      %1304 = vrot.lane.b32.xlu0 %v899, 96
      %v1305 = vpop.permute.xlu0 %1304
      %1306 = vrot.lane.b32.xlu0 %v900, 96
      %v1307 = vpop.permute.xlu0 %1306
      %v1311 = vsel %vm901, %v1303, 0.0
      %1312 = vadd.xlane.f32.xlu0 %v1311
      %v1313 = vpop.xlane.xlu0 %1312
      %v1314 = vsel %vm901, %v1305, 0.0
      %1315 = vadd.xlane.f32.xlu0 %v1314
      %v1316 = vpop.xlane.xlu0 %1315
      %v1317 = vsel %vm901, %v1307, 0.0
      %1318 = vadd.xlane.f32.xlu0 %v1317
      %v1319 = vpop.xlane.xlu0 %1318
      %v1320 = vmul.f32 %v1313, %v911
      %v1321 = vmul.f32 %v1316, %v911
      %v1322 = vmul.f32 %v1319, %v911
      %v1323 = vadd.f32 %v1320, 1e-06
      %v1324 = vadd.f32 %v1321, 1e-06
      %v1325 = vadd.f32 %v1322, 1e-06
      %v1326 = vrsqrt.pop %v1323
      %v1327 = vrsqrt.pop %v1324
      %v1328 = vrsqrt.pop %v1325
      %v1329 = vmul.f32 %v725, %v1326
      %v1330 = vmul.f32 %v729, %v1327
      %v1331 = vmul.f32 %v735, %v1328
      %1333 = vrot.lane.b32.xlu0 %v927, 32
      %v1334 = vpop.permute.xlu0 %1333
      %v1336 = vmul.f32 %v1329, %v1334
      %v1337 = vmul.f32 %v1330, %v1334
      %v1338 = vmul.f32 %v1331, %v1334
      %1339 = vrot.lane.b32.xlu0 %v876, 32
      %v1340 = vpop.permute.xlu0 %1339
      %1341 = vrot.lane.b32.xlu0 %v877, 32
      %v1342 = vpop.permute.xlu0 %1341
      %1343 = vrot.lane.b32.xlu0 %v878, 32
      %v1344 = vpop.permute.xlu0 %1343
      %v1348 = vmul.f32 %v1336, %v1340
      %v1349 = vmul.f32 %v1337, %v1342
      %v1350 = vmul.f32 %v1338, %v1344
      %1354 = vrot.lane.b32.xlu0 %v1336, 95
      %v1355 = vpop.permute.xlu0 %1354
      %1356 = vrot.lane.b32.xlu0 %v1337, 95
      %v1357 = vpop.permute.xlu0 %1356
      %1358 = vrot.lane.b32.xlu0 %v1338, 95
      %v1359 = vpop.permute.xlu0 %1358
      %1363 = vrot.lane.b32.xlu0 %v1336, 127
      %v1364 = vpop.permute.xlu0 %1363
      %1365 = vrot.lane.b32.xlu0 %v1337, 127
      %v1366 = vpop.permute.xlu0 %1365
      %1367 = vrot.lane.b32.xlu0 %v1338, 127
      %v1368 = vpop.permute.xlu0 %1367
      %v1372 = vsel %vm955, %v1355, %v1364
      %v1373 = vsel %vm955, %v1357, %v1366
      %v1374 = vsel %vm955, %v1359, %v1368
      %v1375 = vmul.f32 %v1372, %v883
      %v1376 = vmul.f32 %v1373, %v884
      %v1377 = vmul.f32 %v1374, %v885
      %1381 = vrot.lane.b32.xlu0 %v1375, 32
      %v1382 = vpop.permute.xlu0 %1381
      %1383 = vrot.lane.b32.xlu0 %v1376, 32
      %v1384 = vpop.permute.xlu0 %1383
      %1385 = vrot.lane.b32.xlu0 %v1377, 32
      %v1386 = vpop.permute.xlu0 %1385
      %v1390 = vadd.f32 %v1348, %v1382
      %v1391 = vadd.f32 %v1349, %v1384
      %v1392 = vadd.f32 %v1350, %v1386
      %1393 = vrot.lane.b32.xlu0 %v1336, 65
      %v1394 = vpop.permute.xlu0 %1393
      %1395 = vrot.lane.b32.xlu0 %v1337, 65
      %v1396 = vpop.permute.xlu0 %1395
      %1397 = vrot.lane.b32.xlu0 %v1338, 65
      %v1398 = vpop.permute.xlu0 %1397
      %1402 = vrot.lane.b32.xlu0 %v1336, 97
      %v1403 = vpop.permute.xlu0 %1402
      %1404 = vrot.lane.b32.xlu0 %v1337, 97
      %v1405 = vpop.permute.xlu0 %1404
      %1406 = vrot.lane.b32.xlu0 %v1338, 97
      %v1407 = vpop.permute.xlu0 %1406
      %v1411 = vsel %vm983, %v1394, %v1403
      %v1412 = vsel %vm983, %v1396, %v1405
      %v1413 = vsel %vm983, %v1398, %v1407
      %v1414 = vmul.f32 %v1411, %v890
      %v1415 = vmul.f32 %v1412, %v891
      %v1416 = vmul.f32 %v1413, %v892
      %1420 = vrot.lane.b32.xlu0 %v1414, 32
      %v1421 = vpop.permute.xlu0 %1420
      %1422 = vrot.lane.b32.xlu0 %v1415, 32
      %v1423 = vpop.permute.xlu0 %1422
      %1424 = vrot.lane.b32.xlu0 %v1416, 32
      %v1425 = vpop.permute.xlu0 %1424
      %v1429 = vadd.f32 %v1390, %v1421
      %v1430 = vadd.f32 %v1391, %v1423
      %v1431 = vadd.f32 %v1392, %v1425
      %1432 = vrot.lane.b32.xlu0 %v898, 32
      %v1433 = vpop.permute.xlu0 %1432
      %1434 = vrot.lane.b32.xlu0 %v899, 32
      %v1435 = vpop.permute.xlu0 %1434
      %1436 = vrot.lane.b32.xlu0 %v900, 32
      %v1437 = vpop.permute.xlu0 %1436
      %v1441 = vsel %vm901, %v1433, 0.0
      %1442 = vadd.xlane.f32.xlu0 %v1441
      %v1443 = vpop.xlane.xlu0 %1442
      %v1444 = vsel %vm901, %v1435, 0.0
      %1445 = vadd.xlane.f32.xlu0 %v1444
      %v1446 = vpop.xlane.xlu0 %1445
      %v1447 = vsel %vm901, %v1437, 0.0
      %1448 = vadd.xlane.f32.xlu0 %v1447
      %v1449 = vpop.xlane.xlu0 %1448
      %v1450 = vmul.f32 %v1443, %v911
      %v1451 = vmul.f32 %v1446, %v911
      %v1452 = vmul.f32 %v1449, %v911
      %v1453 = vadd.f32 %v1450, 1e-06
      %v1454 = vadd.f32 %v1451, 1e-06
      %v1455 = vadd.f32 %v1452, 1e-06
      %v1456 = vrsqrt.pop %v1453
      %v1457 = vrsqrt.pop %v1454
      %v1458 = vrsqrt.pop %v1455
      %v1459 = vmul.f32 %v725, %v1456
      %v1460 = vmul.f32 %v729, %v1457
      %v1461 = vmul.f32 %v735, %v1458
      %1462 = vrot.lane.b32.xlu0 %v1029, 96
      %v1463 = vpop.permute.xlu0 %1462
      %v1465 = vmul.f32 %v1459, %v1463
      %v1466 = vmul.f32 %v1460, %v1463
      %v1467 = vmul.f32 %v1461, %v1463
      %1468 = vrot.lane.b32.xlu0 %v876, 96
      %v1469 = vpop.permute.xlu0 %1468
      %1470 = vrot.lane.b32.xlu0 %v877, 96
      %v1471 = vpop.permute.xlu0 %1470
      %1472 = vrot.lane.b32.xlu0 %v878, 96
      %v1473 = vpop.permute.xlu0 %1472
      %v1477 = vmul.f32 %v1465, %v1469
      %v1478 = vmul.f32 %v1466, %v1471
      %v1479 = vmul.f32 %v1467, %v1473
      %1483 = vrot.lane.b32.xlu0 %v1465, 31
      %v1484 = vpop.permute.xlu0 %1483
      %1485 = vrot.lane.b32.xlu0 %v1466, 31
      %v1486 = vpop.permute.xlu0 %1485
      %1487 = vrot.lane.b32.xlu0 %v1467, 31
      %v1488 = vpop.permute.xlu0 %1487
      %1492 = vrot.lane.b32.xlu0 %v1465, 63
      %v1493 = vpop.permute.xlu0 %1492
      %1494 = vrot.lane.b32.xlu0 %v1466, 63
      %v1495 = vpop.permute.xlu0 %1494
      %1496 = vrot.lane.b32.xlu0 %v1467, 63
      %v1497 = vpop.permute.xlu0 %1496
      %v1501 = vsel %vm955, %v1484, %v1493
      %v1502 = vsel %vm955, %v1486, %v1495
      %v1503 = vsel %vm955, %v1488, %v1497
      %v1504 = vmul.f32 %v1501, %v883
      %v1505 = vmul.f32 %v1502, %v884
      %v1506 = vmul.f32 %v1503, %v885
      %1510 = vrot.lane.b32.xlu0 %v1504, 96
      %v1511 = vpop.permute.xlu0 %1510
      %1512 = vrot.lane.b32.xlu0 %v1505, 96
      %v1513 = vpop.permute.xlu0 %1512
      %1514 = vrot.lane.b32.xlu0 %v1506, 96
      %v1515 = vpop.permute.xlu0 %1514
      %v1519 = vadd.f32 %v1477, %v1511
      %v1520 = vadd.f32 %v1478, %v1513
      %v1521 = vadd.f32 %v1479, %v1515
      %1522 = vrot.lane.b32.xlu0 %v1465, 1
      %v1523 = vpop.permute.xlu0 %1522
      %1524 = vrot.lane.b32.xlu0 %v1466, 1
      %v1525 = vpop.permute.xlu0 %1524
      %1526 = vrot.lane.b32.xlu0 %v1467, 1
      %v1527 = vpop.permute.xlu0 %1526
      %1531 = vrot.lane.b32.xlu0 %v1465, 33
      %v1532 = vpop.permute.xlu0 %1531
      %1533 = vrot.lane.b32.xlu0 %v1466, 33
      %v1534 = vpop.permute.xlu0 %1533
      %1535 = vrot.lane.b32.xlu0 %v1467, 33
      %v1536 = vpop.permute.xlu0 %1535
      %v1540 = vsel %vm983, %v1523, %v1532
      %v1541 = vsel %vm983, %v1525, %v1534
      %v1542 = vsel %vm983, %v1527, %v1536
      %v1543 = vmul.f32 %v1540, %v890
      %v1544 = vmul.f32 %v1541, %v891
      %v1545 = vmul.f32 %v1542, %v892
      %1549 = vrot.lane.b32.xlu0 %v1543, 96
      %v1550 = vpop.permute.xlu0 %1549
      %1551 = vrot.lane.b32.xlu0 %v1544, 96
      %v1552 = vpop.permute.xlu0 %1551
      %1553 = vrot.lane.b32.xlu0 %v1545, 96
      %v1554 = vpop.permute.xlu0 %1553
      %v1558 = vadd.f32 %v1519, %v1550
      %v1559 = vadd.f32 %v1520, %v1552
      %v1560 = vadd.f32 %v1521, %v1554
      %v1561 = vpack.c.bf16 %v1430, %v1429
      %v1562 = vpack.c.bf16 %v1431, %v1431
      %v1563 = vpack.c.bf16 %v1559, %v1558
      %v1564 = vpack.c.bf16 %v1560, %v1560
      %1567 = vrot.lane.b32.xlu0 %v1561, 96
      %v1568 = vpop.permute.xlu0 %1567
      %1569 = vrot.lane.b32.xlu0 %v1562, 96
      %v1570 = vpop.permute.xlu0 %1569
      %1573 = vrot.lane.b32.xlu0 %v1563, 32
      %v1574 = vpop.permute.xlu0 %1573
      %1575 = vrot.lane.b32.xlu0 %v1564, 32
      %v1576 = vpop.permute.xlu0 %1575
      %v1578 = vsel %vm901, %v1568, 0
      %v1581 = vsel %vm901, %v1570, 0
      %v1584 = vsel %vm901, %v1574, 0
      %v1587 = vsel %vm901, %v1576, 0
      %1589 = vmatprep.subr.bf16.mxu0 0
      %1590 = vmatpush1.bf16.xpose.msra.mxu0 %v1584
      %1591 = vmatprep.subr.bf16.mxu0 0
      %1592 = vmatpush1.bf16.xpose.msra.mxu0 %v1587
      %1593 = vmatprep.subr.bf16.mxu0 0
      %1594 = vmatpush1.bf16.xpose.msra.mxu0 0
      %1595 = vmatprep.subr.bf16.mxu0 0
      %1596 = vmatpush1.bf16.xpose.msra.mxu0 0
      %1597 = vmatprep.subr.bf16.mxu0 0
      %1598 = vmatpush1.bf16.xpose.msra.mxu0 0
      %1599 = vmatprep.subr.bf16.mxu0 0
      %1600 = vmatpush1.bf16.xpose.msra.mxu0 0
      %1601 = vmatprep.subr.bf16.mxu0 0
      %1602 = vmatpush1.bf16.xpose.msra.mxu0 0
      %1603 = vmatprep.subr.bf16.mxu0 0
      %1604 = vmatpush1.bf16.xpose.msra.mxu0 0
      %1605 = vmatprep.subr.bf16.mxu0 0
      %1606 = vmatpush1.bf16.xpose.msra.mxu0 0
      %1607 = vmatprep.subr.bf16.mxu0 0
      %1608 = vmatpush1.bf16.xpose.msra.mxu0 0
      %1609 = vmatprep.subr.bf16.mxu0 0
      %1610 = vmatpush1.bf16.xpose.msra.mxu0 0
      %1611 = vmatprep.subr.bf16.mxu0 0
      %1612 = vmatpush1.bf16.xpose.msra.mxu0 0
      %1613 = vmatprep.subr.bf16.mxu0 0
      %1614 = vmatpush1.bf16.xpose.msra.mxu0 0
      %1615 = vmatprep.subr.bf16.mxu0 0
      %1616 = vmatpush1.bf16.xpose.msra.mxu0 0
      %1617 = vmatprep.subr.bf16.mxu0 0
      %1618 = vmatpush1.bf16.xpose.msra.mxu0 0
      %1619 = vmatprep.subr.bf16.mxu0 0
      %1620 = vmatpush1.bf16.xpose.msra.mxu0 0
      %1621 = vmatprep.mubr.bf16.mxu0 0
      %1622 = vmatmul.mubr.bf16.gmra.mrb[0].mxu0 %v1578
      %v1623 = vpop.f32.mrb[0].mxu0
      %v1624 = vadd.f32 0.0, %v1623
      %v1625 = vpop.f32.mrb[0].mxu0
      %v1626 = vpop.f32.mrb[0].mxu0
      %v1627 = vadd.f32 0.0, %v1626
      %v1628 = vpop.f32.mrb[0].mxu0
      %1629 = vmatprep.mubr.bf16.mxu0 0
      %1630 = vmatmul.mubr.bf16.gmra.mrb[0].mxu0 %v1581
      %v1631 = vpop.f32.mrb[0].mxu0
      %v1632 = vadd.f32 0.0, %v1631
      %v1633 = vpop.f32.mrb[0].mxu0
      %v1634 = vpop.f32.mrb[0].mxu0
      %v1635 = vpop.f32.mrb[0].mxu0
      %1636 = vdwg.mxu0
      %v1637 = vmul.f32 %v1624, 0.17677669
      %v1638 = vmul.f32 %v1627, 0.17677669
      %v1639 = vmul.f32 %v1632, 0.17677669
      %v1640 = vsel %vm1206, %v1637, -inf
      %1641 = vmax.xlane.f32.xlu0 %v1640
      %v1642 = vpop.xlane.xlu0 %1641
      %v1643 = vsel %vm1206, %v1638, -inf
      %1644 = vmax.xlane.f32.xlu0 %v1643
      %v1645 = vpop.xlane.xlu0 %1644
      %v1646 = vsel %vm1206, %v1639, -inf
      %1647 = vmax.xlane.f32.xlu0 %v1646
      %v1648 = vpop.xlane.xlu0 %1647
      %v1649 = vsub.f32 %v1637, %v1642
      %v1650 = vsub.f32 %v1638, %v1645
      %v1651 = vsub.f32 %v1639, %v1648
      %v1652 = vmul.f32 %v1649, 1.442695
      %v1653 = vpow.pop %v1652
      %v1654 = vmul.f32 %v1650, 1.442695
      %v1655 = vpow.pop %v1654
      %v1656 = vmul.f32 %v1651, 1.442695
      %v1657 = vpow.pop %v1656
      %v1658 = vsel %vm1206, %v1653, 0.0
      %1659 = vadd.xlane.f32.xlu0 %v1658
      %v1660 = vpop.xlane.xlu0 %1659
      %v1661 = vsel %vm1206, %v1655, 0.0
      %1662 = vadd.xlane.f32.xlu0 %v1661
      %v1663 = vpop.xlane.xlu0 %1662
      %v1664 = vsel %vm1206, %v1657, 0.0
      %1665 = vadd.xlane.f32.xlu0 %v1664
      %v1666 = vpop.xlane.xlu0 %1665
      %v1667 = vrcp.pop %v1660
      %v1668 = vrcp.pop %v1663
      %v1669 = vrcp.pop %v1666
      %v1670 = vpack.c.bf16 %v1655, %v1653
      %v1671 = vpack.c.bf16 %v1657, %v1657
      %1674 = vrot.lane.b32.xlu0 %v1239, 96
      %v1675 = vpop.permute.xlu0 %1674
      %1676 = vrot.lane.b32.xlu0 %v1240, 96
      %v1677 = vpop.permute.xlu0 %1676
      %v1680 = vsel %vm1206, %v1670, 0
      %v1683 = vsel %vm1206, %v1671, 0
      %v1686 = vsel %vm1247, %v1677, 0
      %1688 = vmatprep.subr.bf16.mxu0 0
      %1689 = vmatpush1.bf16.msra.mxu0 %v1675
      %1690 = vmatprep.subr.bf16.mxu0 0
      %1691 = vmatpush1.bf16.msra.mxu0 %v1686
      %1692 = vmatprep.subr.bf16.mxu0 0
      %1693 = vmatpush1.bf16.msra.mxu0 0
      %1694 = vmatprep.subr.bf16.mxu0 0
      %1695 = vmatpush1.bf16.msra.mxu0 0
      %1696 = vmatprep.subr.bf16.mxu0 0
      %1697 = vmatpush1.bf16.msra.mxu0 0
      %1698 = vmatprep.subr.bf16.mxu0 0
      %1699 = vmatpush1.bf16.msra.mxu0 0
      %1700 = vmatprep.subr.bf16.mxu0 0
      %1701 = vmatpush1.bf16.msra.mxu0 0
      %1702 = vmatprep.subr.bf16.mxu0 0
      %1703 = vmatpush1.bf16.msra.mxu0 0
      %1704 = vmatprep.subr.bf16.mxu0 0
      %1705 = vmatpush1.bf16.msra.mxu0 0
      %1706 = vmatprep.subr.bf16.mxu0 0
      %1707 = vmatpush1.bf16.msra.mxu0 0
      %1708 = vmatprep.subr.bf16.mxu0 0
      %1709 = vmatpush1.bf16.msra.mxu0 0
      %1710 = vmatprep.subr.bf16.mxu0 0
      %1711 = vmatpush1.bf16.msra.mxu0 0
      %1712 = vmatprep.subr.bf16.mxu0 0
      %1713 = vmatpush1.bf16.msra.mxu0 0
      %1714 = vmatprep.subr.bf16.mxu0 0
      %1715 = vmatpush1.bf16.msra.mxu0 0
      %1716 = vmatprep.subr.bf16.mxu0 0
      %1717 = vmatpush1.bf16.msra.mxu0 0
      %1718 = vmatprep.subr.bf16.mxu0 0
      %1719 = vmatpush1.bf16.msra.mxu0 0
      %1720 = vmatprep.mubr.bf16.mxu0 0
      %1721 = vmatmul.mubr.bf16.gmra.mrb[0].mxu0 %v1680
      %v1722 = vpop.f32.mrb[0].mxu0
      %v1723 = vadd.f32 0.0, %v1722
      %v1724 = vpop.f32.mrb[0].mxu0
      %v1725 = vpop.f32.mrb[0].mxu0
      %v1726 = vadd.f32 0.0, %v1725
      %v1727 = vpop.f32.mrb[0].mxu0
      %1728 = vmatprep.mubr.bf16.mxu0 0
      %1729 = vmatmul.mubr.bf16.gmra.mrb[0].mxu0 %v1683
      %v1730 = vpop.f32.mrb[0].mxu0
      %v1731 = vadd.f32 0.0, %v1730
      %v1732 = vpop.f32.mrb[0].mxu0
      %v1733 = vpop.f32.mrb[0].mxu0
      %v1734 = vpop.f32.mrb[0].mxu0
      %1735 = vdwg.mxu0
      %v1736 = vmul.f32 %v1723, %v1667
      %v1737 = vmul.f32 %v1726, %v1668
      %v1738 = vmul.f32 %v1731, %v1669
      %1742 = vrot.lane.b32.xlu0 %v1736, 32
      %v1743 = vpop.permute.xlu0 %1742
      %1744 = vrot.lane.b32.xlu0 %v1737, 32
      %v1745 = vpop.permute.xlu0 %1744
      %1746 = vrot.lane.b32.xlu0 %v1738, 32
      %v1747 = vpop.permute.xlu0 %1746
      %v1751 = vsel %vm901, %v1299, %v1743
      %v1752 = vsel %vm901, %v1300, %v1745
      %v1753 = vsel %vm901, %v1301, %v1747
      %v1754 = vsel %vm443, %v1751, %v864
      %v1755 = vsel %vm443, %v1752, %v867
      %v1756 = vsel %vm443, %v1753, %v870
      %v1757 = vpack.c.bf16 %v1755, %v1754
      %v1758 = vpack.c.bf16 %v868, %v865
      %v1759 = vpack.c.bf16 %v869, %v866
      %v1760 = vpack.c.bf16 %v1756, %v1756
      %v1761 = vpack.c.bf16 %v871, %v871
      %v1762 = vpack.c.bf16 %v872, %v872
      %v1763 = vld [vmem:[%s8] sm:$0xf]
      %v1764 = vld [vmem:[%s8 + $0x4] sm:$0xf]
      %v1765 = vld [vmem:[%s8 + $0x8] sm:$0xf]
      %v1766 = vld [vmem:[%s8 + $0xc] sm:$0xf]
      %v1767 = vld [vmem:[%s8 + $0x10] sm:$0xf]
      %v1768 = vld [vmem:[%s8 + $0x14] sm:$0xf]
      %v1769 = vld [vmem:[%s8 + $0x18] sm:$0xf]
      %v1770 = vld [vmem:[%s8 + $0x1c] sm:$0xf]
      %v1771 = vld [vmem:[%s8 + $0x20] sm:$0xf]
      %v1772 = vld [vmem:[%s8 + $0x24] sm:$0xf]
      %v1773 = vld [vmem:[%s8 + $0x28] sm:$0xf]
      %v1774 = vld [vmem:[%s8 + $0x2c] sm:$0xf]
      %v1775 = vld [vmem:[%s8 + $0x30] sm:$0xf]
      %v1776 = vld [vmem:[%s8 + $0x34] sm:$0xf]
      %v1777 = vld [vmem:[%s8 + $0x38] sm:$0xf]
      %v1778 = vld [vmem:[%s8 + $0x3c] sm:$0xf]
      %v1779 = vld [vmem:[%s8 + $0x40] sm:$0xf]
      %v1780 = vld [vmem:[%s8 + $0x44] sm:$0xf]
      %v1781 = vld [vmem:[%s8 + $0x48] sm:$0xf]
      %v1782 = vld [vmem:[%s8 + $0x4c] sm:$0xf]
      %v1783 = vld [vmem:[%s8 + $0x50] sm:$0xf]
      %v1784 = vld [vmem:[%s8 + $0x54] sm:$0xf]
      %v1785 = vld [vmem:[%s8 + $0x58] sm:$0xf]
      %v1786 = vld [vmem:[%s8 + $0x5c] sm:$0xf]
      %v1787 = vld [vmem:[%s8 + $0x60] sm:$0xf]
      %v1788 = vld [vmem:[%s8 + $0x64] sm:$0xf]
      %v1789 = vld [vmem:[%s8 + $0x68] sm:$0xf]
      %v1790 = vld [vmem:[%s8 + $0x6c] sm:$0xf]
      %v1791 = vld [vmem:[%s8 + $0x70] sm:$0xf]
      %v1792 = vld [vmem:[%s8 + $0x74] sm:$0xf]
      %v1793 = vld [vmem:[%s8 + $0x78] sm:$0xf]
      %v1794 = vld [vmem:[%s8 + $0x7c] sm:$0xf]
      %v1795 = vld [vmem:[%s8 + $0x80] sm:$0xf]
      %v1796 = vld [vmem:[%s8 + $0x84] sm:$0xf]
      %v1797 = vld [vmem:[%s8 + $0x88] sm:$0xf]
      %v1798 = vld [vmem:[%s8 + $0x8c] sm:$0xf]
      %v1799 = vld [vmem:[%s8 + $0x90] sm:$0xf]
      %v1800 = vld [vmem:[%s8 + $0x94] sm:$0xf]
      %v1801 = vld [vmem:[%s8 + $0x98] sm:$0xf]
      %v1802 = vld [vmem:[%s8 + $0x9c] sm:$0xf]
      %v1803 = vld [vmem:[%s9] sm:$0x1]
      %v1804 = vunpack.c.l.bf16 %v1803
      %v1805 = vlaneseq
      %v1806 = vshrl.u32 %v1805, 7
      %v1807 = vsub.s32 0, %v1806
      %v1808 = vrot.slane %v1804, %v1807
      %v1849 = vunpack.c.l.b16 %v1763
      %v1850 = vunpack.c.l.b16 %v1764
      %v1851 = vunpack.c.l.b16 %v1765
      %v1852 = vunpack.c.l.b16 %v1766
      %v1853 = vunpack.c.l.b16 %v1767
      %v1854 = vunpack.c.l.b16 %v1768
      %v1855 = vunpack.c.l.b16 %v1769
      %v1856 = vunpack.c.l.b16 %v1770
      %v1857 = vunpack.c.l.b16 %v1771
      %v1858 = vunpack.c.l.b16 %v1772
      %v1859 = vunpack.c.l.b16 %v1773
      %v1860 = vunpack.c.l.b16 %v1774
      %v1861 = vunpack.c.l.b16 %v1775
      %v1862 = vunpack.c.l.b16 %v1776
      %v1863 = vunpack.c.l.b16 %v1777
      %v1864 = vunpack.c.l.b16 %v1778
      %v1865 = vunpack.c.l.b16 %v1779
      %v1866 = vunpack.c.l.b16 %v1780
      %v1867 = vunpack.c.l.b16 %v1781
      %v1868 = vunpack.c.l.b16 %v1782
      %v1869 = vunpack.c.l.b16 %v1783
      %v1870 = vunpack.c.l.b16 %v1784
      %v1871 = vunpack.c.l.b16 %v1785
      %v1872 = vunpack.c.l.b16 %v1786
      %v1873 = vunpack.c.l.b16 %v1787
      %v1874 = vunpack.c.l.b16 %v1788
      %v1875 = vunpack.c.l.b16 %v1789
      %v1876 = vunpack.c.l.b16 %v1790
      %v1877 = vunpack.c.l.b16 %v1791
      %v1878 = vunpack.c.l.b16 %v1792
      %v1879 = vunpack.c.l.b16 %v1793
      %v1880 = vunpack.c.l.b16 %v1794
      %v1881 = vunpack.c.l.b16 %v1795
      %v1882 = vunpack.c.l.b16 %v1796
      %v1883 = vunpack.c.l.b16 %v1797
      %v1884 = vunpack.c.l.b16 %v1798
      %v1885 = vunpack.c.l.b16 %v1799
      %v1886 = vunpack.c.l.b16 %v1800
      %v1887 = vunpack.c.l.b16 %v1801
      %v1888 = vunpack.c.l.b16 %v1802
      %v1889 = vpack.c.b16 %v1850, %v1849
      %v1890 = vpack.c.b16 %v1852, %v1851
      %v1891 = vpack.c.b16 %v1854, %v1853
      %v1892 = vpack.c.b16 %v1856, %v1855
      %v1893 = vpack.c.b16 %v1858, %v1857
      %v1894 = vpack.c.b16 %v1860, %v1859
      %v1895 = vpack.c.b16 %v1862, %v1861
      %v1896 = vpack.c.b16 %v1864, %v1863
      %v1897 = vpack.c.b16 %v1866, %v1865
      %v1898 = vpack.c.b16 %v1868, %v1867
      %v1899 = vpack.c.b16 %v1870, %v1869
      %v1900 = vpack.c.b16 %v1872, %v1871
      %v1901 = vpack.c.b16 %v1874, %v1873
      %v1902 = vpack.c.b16 %v1876, %v1875
      %v1903 = vpack.c.b16 %v1878, %v1877
      %v1904 = vpack.c.b16 %v1880, %v1879
      %v1905 = vpack.c.b16 %v1882, %v1881
      %v1906 = vpack.c.b16 %v1884, %v1883
      %v1907 = vpack.c.b16 %v1886, %v1885
      %v1908 = vpack.c.b16 %v1888, %v1887
      %v1930 = vsel %vm443, %v1759, 0
      %v1933 = vsel %vm443, %v1762, 0
      %1935 = vmatprep.subr.bf16.mxu0 0
      %1936 = vmatpush1.bf16.msra.mxu0 %v1889
      %1937 = vmatprep.subr.bf16.mxu0 0
      %1938 = vmatpush1.bf16.msra.mxu0 %v1890
      %1939 = vmatprep.subr.bf16.mxu0 0
      %1940 = vmatpush1.bf16.msra.mxu0 %v1891
      %1941 = vmatprep.subr.bf16.mxu0 0
      %1942 = vmatpush1.bf16.msra.mxu0 %v1892
      %1943 = vmatprep.subr.bf16.mxu0 0
      %1944 = vmatpush1.bf16.msra.mxu0 %v1893
      %1945 = vmatprep.subr.bf16.mxu0 0
      %1946 = vmatpush1.bf16.msra.mxu0 %v1894
      %1947 = vmatprep.subr.bf16.mxu0 0
      %1948 = vmatpush1.bf16.msra.mxu0 %v1895
      %1949 = vmatprep.subr.bf16.mxu0 0
      %1950 = vmatpush1.bf16.msra.mxu0 %v1896
      %1951 = vmatprep.subr.bf16.mxu0 0
      %1952 = vmatpush1.bf16.msra.mxu0 %v1897
      %1953 = vmatprep.subr.bf16.mxu0 0
      %1954 = vmatpush1.bf16.msra.mxu0 %v1898
      %1955 = vmatprep.subr.bf16.mxu0 0
      %1956 = vmatpush1.bf16.msra.mxu0 %v1899
      %1957 = vmatprep.subr.bf16.mxu0 0
      %1958 = vmatpush1.bf16.msra.mxu0 %v1900
      %1959 = vmatprep.subr.bf16.mxu0 0
      %1960 = vmatpush1.bf16.msra.mxu0 %v1901
      %1961 = vmatprep.subr.bf16.mxu0 0
      %1962 = vmatpush1.bf16.msra.mxu0 %v1902
      %1963 = vmatprep.subr.bf16.mxu0 0
      %1964 = vmatpush1.bf16.msra.mxu0 %v1903
      %1965 = vmatprep.subr.bf16.mxu0 0
      %1966 = vmatpush1.bf16.msra.mxu0 %v1904
      %1967 = vmatprep.mubr.bf16.mxu0 %v1758
      %1968 = vmatmul.mubr.bf16.gmra.mrb[0].mxu0 %v1757
      %v1969 = vpop.f32.mrb[0].mxu0
      %v1970 = vadd.f32 %v1808, %v1969
      %v1971 = vpop.f32.mrb[0].mxu0
      %v1972 = vpop.f32.mrb[0].mxu0
      %v1973 = vadd.f32 %v1808, %v1972
      %v1974 = vpop.f32.mrb[0].mxu0
      %1975 = vmatprep.mubr.bf16.mxu0 %v1761
      %1976 = vmatmul.mubr.bf16.gmra.mrb[0].mxu0 %v1760
      %v1977 = vpop.f32.mrb[0].mxu0
      %v1978 = vadd.f32 %v1808, %v1977
      %v1979 = vpop.f32.mrb[0].mxu0
      %v1980 = vpop.f32.mrb[0].mxu0
      %v1981 = vpop.f32.mrb[0].mxu0
      %1982 = vdwg.mxu0
      %1983 = vmatprep.subr.bf16.mxu0 0
      %1984 = vmatpush1.bf16.msra.mxu0 %v1905
      %1985 = vmatprep.subr.bf16.mxu0 0
      %1986 = vmatpush1.bf16.msra.mxu0 %v1906
      %1987 = vmatprep.subr.bf16.mxu0 0
      %1988 = vmatpush1.bf16.msra.mxu0 %v1907
      %1989 = vmatprep.subr.bf16.mxu0 0
      %1990 = vmatpush1.bf16.msra.mxu0 %v1908
      %1991 = vmatprep.subr.bf16.mxu0 0
      %1992 = vmatpush1.bf16.msra.mxu0 0
      %1993 = vmatprep.subr.bf16.mxu0 0
      %1994 = vmatpush1.bf16.msra.mxu0 0
      %1995 = vmatprep.subr.bf16.mxu0 0
      %1996 = vmatpush1.bf16.msra.mxu0 0
      %1997 = vmatprep.subr.bf16.mxu0 0
      %1998 = vmatpush1.bf16.msra.mxu0 0
      %1999 = vmatprep.subr.bf16.mxu0 0
      %2000 = vmatpush1.bf16.msra.mxu0 0
      %2001 = vmatprep.subr.bf16.mxu0 0
      %2002 = vmatpush1.bf16.msra.mxu0 0
      %2003 = vmatprep.subr.bf16.mxu0 0
      %2004 = vmatpush1.bf16.msra.mxu0 0
      %2005 = vmatprep.subr.bf16.mxu0 0
      %2006 = vmatpush1.bf16.msra.mxu0 0
      %2007 = vmatprep.subr.bf16.mxu0 0
      %2008 = vmatpush1.bf16.msra.mxu0 0
      %2009 = vmatprep.subr.bf16.mxu0 0
      %2010 = vmatpush1.bf16.msra.mxu0 0
      %2011 = vmatprep.subr.bf16.mxu0 0
      %2012 = vmatpush1.bf16.msra.mxu0 0
      %2013 = vmatprep.subr.bf16.mxu0 0
      %2014 = vmatpush1.bf16.msra.mxu0 0
      %2015 = vmatprep.mubr.bf16.mxu0 0
      %2016 = vmatmul.mubr.bf16.gmra.mrb[0].mxu0 %v1930
      %v2017 = vpop.f32.mrb[0].mxu0
      %v2018 = vadd.f32 %v1970, %v2017
      %v2019 = vpop.f32.mrb[0].mxu0
      %v2020 = vpop.f32.mrb[0].mxu0
      %v2021 = vadd.f32 %v1973, %v2020
      %v2022 = vpop.f32.mrb[0].mxu0
      %2023 = vmatprep.mubr.bf16.mxu0 0
      %2024 = vmatmul.mubr.bf16.gmra.mrb[0].mxu0 %v1933
      %v2025 = vpop.f32.mrb[0].mxu0
      %v2026 = vadd.f32 %v1978, %v2025
      %v2027 = vpop.f32.mrb[0].mxu0
      %v2028 = vpop.f32.mrb[0].mxu0
      %v2029 = vpop.f32.mrb[0].mxu0
      %2030 = vdwg.mxu0
      %v2031 = vlaneseq
      %v2032 = vshrl.u32 %v2031, 7
      %v2033 = vsub.s32 0, %v2032
      %v2034 = vrot.slane %v484, %v2033
      %v2035 = vmul.f32 %v2034, %v2018
      %v2036 = vmul.f32 %v2034, %v2021
      %v2037 = vmul.f32 %v2034, %v2026
      %v2038 = vadd.f32 %v378, %v2035
      %v2039 = vadd.f32 %v379, %v2036
      %v2040 = vadd.f32 %v380, %v2037
      %v2041 = vpack.c.bf16 %v2039, %v2038
      %v2042 = vpack.c.bf16 %v2040, %v2040
      %v2045 = vunpack.c.l.b16 %v2041
      %v2046 = vunpack.c.h.b16 %v2041
      %v2047 = vunpack.c.l.b16 %v2042
      %v2048 = vpack.c.b16 %v2045, %v2045
      %v2049 = vpack.c.b16 %v2046, %v2046
      %v2050 = vpack.c.b16 %v2047, %v2047
      %vm2054 = vcmask 519168
      %2055 = vst.msk [vmem:[%s373] sm:$0xf] %vm2054, %v2048
      %2056 = vst.msk [vmem:[%s373 + $0x4] sm:$0xf] %vm2054, %v2049
      %2057 = vst.msk [vmem:[%s373 + $0x8] sm:$0xf] %vm2054, %v2050
      %p2058 = scmp.lt.s32.totalorder %s21, 1
      %s2059 = scalar_select %p2058, %s21, 1
      %s2060 = smul.addr %s2059, 3
      %s2061 = smul.addr %s2060, 4
      %s2062 = scalar_lea.vmem %s10, %s2061
      // Predicated region
      $region61: #{flux_transformer_forward.6} parent=59 // pred_check
        %p2063 = pneg %p259
      $region62: #{flux_transformer_forward.6} parent=59 // pred_check_branch
        %2065 = sbr.rel (%p2063) target = $region64
      $region63: #{flux_transformer_forward.6} parent=59 // pred_region
        _
      $region64: #{flux_transformer_forward.6} parent=59 // pred_fallthru
        _
    $region60: #{flux_transformer_forward.6} parent=5 // pred_fallthru
      _
    %p2066 = scmp.le.s32.totalorder 2, %s16
    // Predicated region
    $region65: #{flux_transformer_forward.6} parent=5 // pred_check
      %p2067 = pneg %p2066
    $region66: #{flux_transformer_forward.6} parent=5 // pred_check_branch
      %2069 = sbr.rel (%p2067) target = $region68
    $region67: #{flux_transformer_forward.6} parent=5 // pred_region
      %s2070 = ssub.s32 %s16, 2
      // Predicated region
      $region69: #{flux_transformer_forward.6} parent=67 // pred_check
        %p2071 = pneg %p265
      $region70: #{flux_transformer_forward.6} parent=67 // pred_check_branch
        %2073 = sbr.rel (%p2071) target = $region72
      $region71: #{flux_transformer_forward.6} parent=67 // pred_region
        %p2074 = scmp.lt.s32.totalorder %s22, 1
        %s2075 = scalar_select %p2074, %s22, 1
        %s2076 = smul.addr %s2075, 3
        %s2077 = smul.addr %s2076, 4
        %s2078 = scalar_lea.vmem %s10, %s2077
      $region72: #{flux_transformer_forward.6} parent=67 // pred_fallthru
        _
    $region68: #{flux_transformer_forward.6} parent=5 // pred_fallthru
      _
  $region6: #{flux_transformer_forward.6} parent=0 // loop_footer
    %s20 = sadd.s32 1, %s16
  $region7: #{flux_transformer_forward.6} parent=0 // loop_footer_branch
    %15 = sbr.rel target = $region3
  $region8: #{flux_transformer_forward.6} parent=0 // loop_exit
    _

// kernel: flux_transformer_forward.5
$region0: #{flux_transformer_forward.5}
  #allocation0 [shape = 'u32[]', space=smem, size = 0x4, offset = 0x4, fixed_abs, tag = 'smem constant byte address 0x4 - core index']
  #allocation1 [shape = 'u32[144,128]{1,0:T(1,128)}', space=vmem, size = 0x12000, scoped, tag = 'internal scratch']
  %s0 = inlined_call_operand.vmem [shape: bf16[2,24,64], index: 0, kind: input, shape index: {}]
  %s1 = inlined_call_operand.vmem [shape: bf16[2,1,64], index: 1, kind: input, shape index: {}]
  %s2 = inlined_call_operand.vmem [shape: bf16[3,24,32], index: 2, kind: input, shape index: {}]
  %s3 = inlined_call_operand.vmem [shape: bf16[64,768], index: 3, kind: input, shape index: {}]
  %s4 = inlined_call_operand.vmem [shape: bf16[1,768], index: 4, kind: input, shape index: {}]
  %s5 = inlined_call_operand.vmem [shape: bf16[64,192], index: 5, kind: input, shape index: {}]
  %s6 = inlined_call_operand.vmem [shape: bf16[1,192], index: 6, kind: input, shape index: {}]
  %s7 = inlined_call_operand.vmem [shape: bf16[64,192], index: 7, kind: input, shape index: {}]
  %s8 = inlined_call_operand.vmem [shape: bf16[1,192], index: 8, kind: input, shape index: {}]
  %s9 = inlined_call_operand.vmem [shape: bf16[4,1,32], index: 9, kind: input, shape index: {}]
  %s10 = inlined_call_operand.vmem [shape: bf16[64,64], index: 10, kind: input, shape index: {}]
  %s11 = inlined_call_operand.vmem [shape: bf16[1,64], index: 11, kind: input, shape index: {}]
  %s12 = inlined_call_operand.vmem [shape: bf16[64,64], index: 12, kind: input, shape index: {}]
  %s13 = inlined_call_operand.vmem [shape: bf16[1,64], index: 13, kind: input, shape index: {}]
  %s14 = inlined_call_operand.vmem [shape: bf16[64,256], index: 14, kind: input, shape index: {}]
  %s15 = inlined_call_operand.vmem [shape: bf16[1,256], index: 15, kind: input, shape index: {}]
  %s16 = inlined_call_operand.vmem [shape: bf16[256,64], index: 16, kind: input, shape index: {}]
  %s17 = inlined_call_operand.vmem [shape: bf16[1,64], index: 17, kind: input, shape index: {}]
  %s18 = inlined_call_operand.vmem [shape: bf16[64,256], index: 18, kind: input, shape index: {}]
  %s19 = inlined_call_operand.vmem [shape: bf16[1,256], index: 19, kind: input, shape index: {}]
  %s20 = inlined_call_operand.vmem [shape: bf16[256,64], index: 20, kind: input, shape index: {}]
  %s21 = inlined_call_operand.vmem [shape: bf16[1,64], index: 21, kind: input, shape index: {}]
  %s22 = inlined_call_operand.vmem [shape: bf16[2,24,64], index: 22, kind: output, shape index: {}]
  %s23 = sld [smem:[#allocation0]]
  $region121: #{flux_transformer_forward.5} parent=0
    _
  %s25 = ssub.s32 1, %s23
  %s26 = scalar_select 0, %s25, %s23
  loop: start=0, step=1, limit=4
  $region2: #{flux_transformer_forward.5} parent=0 // loop_pre_header
    _
  $region3: #{flux_transformer_forward.5} parent=0 // loop_header
    %s28 = sphi 0, %s32
    %p29 = scmp.ge.s32.totalorder %s28, 4
    %s38 = sphi 0, %s40
    %s41 = sphi 0, %s38
    %s42 = sphi 0, %s41
    %s58 = sphi 0, %s42
    %s64 = sphi 0, %s66
    %s67 = sphi 0, %s64
    %s68 = sphi 0, %s67
    %s84 = sphi 0, %s68
    %s88 = sphi 0, %s88
    %s90 = sphi 0, %s88
    %s91 = sphi 0, %s90
    %s105 = sphi 0, %s91
    %s109 = sphi 0, %s109
    %s111 = sphi 0, %s109
    %s112 = sphi 0, %s111
    %s126 = sphi 0, %s112
    %s130 = sphi 0, %s130
    %s132 = sphi 0, %s130
    %s133 = sphi 0, %s132
    %s147 = sphi 0, %s133
    %s151 = sphi 0, %s151
    %s153 = sphi 0, %s151
    %s154 = sphi 0, %s153
    %s168 = sphi 0, %s154
    %s172 = sphi 0, %s172
    %s174 = sphi 0, %s172
    %s175 = sphi 0, %s174
    %s189 = sphi 0, %s175
    %s193 = sphi 0, %s193
    %s195 = sphi 0, %s193
    %s196 = sphi 0, %s195
    %s210 = sphi 0, %s196
    %s214 = sphi 0, %s214
    %s216 = sphi 0, %s214
    %s217 = sphi 0, %s216
    %s231 = sphi 0, %s217
    %s235 = sphi 0, %s235
    %s237 = sphi 0, %s235
    %s238 = sphi 0, %s237
    %s252 = sphi 0, %s238
    %s256 = sphi 0, %s256
    %s258 = sphi 0, %s256
    %s259 = sphi 0, %s258
    %s273 = sphi 0, %s259
    %s277 = sphi 0, %s277
    %s279 = sphi 0, %s277
    %s280 = sphi 0, %s279
    %s294 = sphi 0, %s280
    %s298 = sphi 0, %s298
    %s300 = sphi 0, %s298
    %s301 = sphi 0, %s300
    %s315 = sphi 0, %s301
    %s319 = sphi 0, %s319
    %s321 = sphi 0, %s319
    %s322 = sphi 0, %s321
    %s336 = sphi 0, %s322
    %s340 = sphi 0, %s340
    %s342 = sphi 0, %s340
    %s343 = sphi 0, %s342
    %s357 = sphi 0, %s343
    %s361 = sphi 0, %s361
    %s363 = sphi 0, %s361
    %s364 = sphi 0, %s363
    %s378 = sphi 0, %s364
    %s382 = sphi 0, %s382
    %s384 = sphi 0, %s382
    %s385 = sphi 0, %s384
    %s399 = sphi 0, %s385
    %s403 = sphi 0, %s403
    %s405 = sphi 0, %s403
    %s406 = sphi 0, %s405
    %s420 = sphi 0, %s406
    %s424 = sphi 0, %s424
    %s426 = sphi 0, %s424
    %s427 = sphi 0, %s426
    %s441 = sphi 0, %s427
    %s445 = sphi 0, %s445
    %s447 = sphi 0, %s445
    %s448 = sphi 0, %s447
    %s462 = sphi 0, %s448
    %s466 = sphi 0, %s466
    %s468 = sphi 0, %s466
    %s469 = sphi 0, %s468
    %s483 = sphi 0, %s469
    %s487 = sphi 0, %s487
    %s489 = sphi 0, %s487
    %s490 = sphi 0, %s489
    %s504 = sphi 0, %s490
    %s510 = sphi 0, %s512
    %s513 = sphi 0, %s510
    %s514 = sphi 0, %s513
    %s530 = sphi 0, %s514
  $region4: #{flux_transformer_forward.5} parent=0 // loop_header_branch
    %31 = sbr.rel (%p29) target = $region8
  $region5: #{flux_transformer_forward.5} parent=0 // loop_body
    %s33 = ssub.s32 %s28, 1
    %s34 = ssub.s32 %s28, 2
    %s35 = sadd.s32 %s28, 1
    %s36 = ssub.s32 %s28, %s35
    %p37 = scmp.eq.s32.totalorder %s36, 0
    %s39 = sadd.s32 %s38, 1
    %s40 = scalar_select %p37, %s38, %s39
    %p43 = pneg %p37
    %p44 = scmp.eq.s32.totalorder %s28, 1
    %p45 = por %p43, %p44
    %p46 = scmp.ne.s32.totalorder %s38, %s41
    %p47 = scmp.eq.s32.totalorder %s28, 0
    %p48 = por %p46, %p47
    %p49 = scmp.ne.s32.totalorder %s38, %s41
    %p50 = scmp.eq.s32.totalorder %s33, 1
    %p51 = por %p49, %p50
    %p52 = scmp.ne.s32.totalorder %s41, %s42
    %p53 = scmp.eq.s32.totalorder %s33, 0
    %p54 = por %p52, %p53
    %p55 = scmp.ne.s32.totalorder %s41, %s42
    %p56 = scmp.eq.s32.totalorder %s34, 1
    %p57 = por %p55, %p56
    %p59 = scmp.ne.s32.totalorder %s42, %s58
    %p60 = scmp.eq.s32.totalorder %s34, 0
    %p61 = por %p59, %p60
    %s62 = ssub.s32 %s28, %s35
    %p63 = scmp.eq.s32.totalorder %s62, 0
    %s65 = sadd.s32 %s64, 1
    %s66 = scalar_select %p63, %s64, %s65
    %p69 = pneg %p63
    %p70 = scmp.eq.s32.totalorder %s28, 1
    %p71 = por %p69, %p70
    %p72 = scmp.ne.s32.totalorder %s64, %s67
    %p73 = scmp.eq.s32.totalorder %s28, 0
    %p74 = por %p72, %p73
    %p75 = scmp.ne.s32.totalorder %s64, %s67
    %p76 = scmp.eq.s32.totalorder %s33, 1
    %p77 = por %p75, %p76
    %p78 = scmp.ne.s32.totalorder %s67, %s68
    %p79 = scmp.eq.s32.totalorder %s33, 0
    %p80 = por %p78, %p79
    %p81 = scmp.ne.s32.totalorder %s67, %s68
    %p82 = scmp.eq.s32.totalorder %s34, 1
    %p83 = por %p81, %p82
    %p85 = scmp.ne.s32.totalorder %s68, %s84
    %p86 = scmp.eq.s32.totalorder %s34, 0
    %p87 = por %p85, %p86
    %s89 = sadd.s32 %s88, 1
    %p92 = scmp.eq.s32.totalorder %s28, 1
    %p93 = scmp.ne.s32.totalorder %s88, %s90
    %p94 = scmp.eq.s32.totalorder %s28, 0
    %p95 = por %p93, %p94
    %p96 = scmp.ne.s32.totalorder %s88, %s90
    %p97 = scmp.eq.s32.totalorder %s33, 1
    %p98 = por %p96, %p97
    %p99 = scmp.ne.s32.totalorder %s90, %s91
    %p100 = scmp.eq.s32.totalorder %s33, 0
    %p101 = por %p99, %p100
    %p102 = scmp.ne.s32.totalorder %s90, %s91
    %p103 = scmp.eq.s32.totalorder %s34, 1
    %p104 = por %p102, %p103
    %p106 = scmp.ne.s32.totalorder %s91, %s105
    %p107 = scmp.eq.s32.totalorder %s34, 0
    %p108 = por %p106, %p107
    %s110 = sadd.s32 %s109, 1
    %p113 = scmp.eq.s32.totalorder %s28, 1
    %p114 = scmp.ne.s32.totalorder %s109, %s111
    %p115 = scmp.eq.s32.totalorder %s28, 0
    %p116 = por %p114, %p115
    %p117 = scmp.ne.s32.totalorder %s109, %s111
    %p118 = scmp.eq.s32.totalorder %s33, 1
    %p119 = por %p117, %p118
    %p120 = scmp.ne.s32.totalorder %s111, %s112
    %p121 = scmp.eq.s32.totalorder %s33, 0
    %p122 = por %p120, %p121
    %p123 = scmp.ne.s32.totalorder %s111, %s112
    %p124 = scmp.eq.s32.totalorder %s34, 1
    %p125 = por %p123, %p124
    %p127 = scmp.ne.s32.totalorder %s112, %s126
    %p128 = scmp.eq.s32.totalorder %s34, 0
    %p129 = por %p127, %p128
    %s131 = sadd.s32 %s130, 1
    %p134 = scmp.eq.s32.totalorder %s28, 1
    %p135 = scmp.ne.s32.totalorder %s130, %s132
    %p136 = scmp.eq.s32.totalorder %s28, 0
    %p137 = por %p135, %p136
    %p138 = scmp.ne.s32.totalorder %s130, %s132
    %p139 = scmp.eq.s32.totalorder %s33, 1
    %p140 = por %p138, %p139
    %p141 = scmp.ne.s32.totalorder %s132, %s133
    %p142 = scmp.eq.s32.totalorder %s33, 0
    %p143 = por %p141, %p142
    %p144 = scmp.ne.s32.totalorder %s132, %s133
    %p145 = scmp.eq.s32.totalorder %s34, 1
    %p146 = por %p144, %p145
    %p148 = scmp.ne.s32.totalorder %s133, %s147
    %p149 = scmp.eq.s32.totalorder %s34, 0
    %p150 = por %p148, %p149
    %s152 = sadd.s32 %s151, 1
    %p155 = scmp.eq.s32.totalorder %s28, 1
    %p156 = scmp.ne.s32.totalorder %s151, %s153
    %p157 = scmp.eq.s32.totalorder %s28, 0
    %p158 = por %p156, %p157
    %p159 = scmp.ne.s32.totalorder %s151, %s153
    %p160 = scmp.eq.s32.totalorder %s33, 1
    %p161 = por %p159, %p160
    %p162 = scmp.ne.s32.totalorder %s153, %s154
    %p163 = scmp.eq.s32.totalorder %s33, 0
    %p164 = por %p162, %p163
    %p165 = scmp.ne.s32.totalorder %s153, %s154
    %p166 = scmp.eq.s32.totalorder %s34, 1
    %p167 = por %p165, %p166
    %p169 = scmp.ne.s32.totalorder %s154, %s168
    %p170 = scmp.eq.s32.totalorder %s34, 0
    %p171 = por %p169, %p170
    %s173 = sadd.s32 %s172, 1
    %p176 = scmp.eq.s32.totalorder %s28, 1
    %p177 = scmp.ne.s32.totalorder %s172, %s174
    %p178 = scmp.eq.s32.totalorder %s28, 0
    %p179 = por %p177, %p178
    %p180 = scmp.ne.s32.totalorder %s172, %s174
    %p181 = scmp.eq.s32.totalorder %s33, 1
    %p182 = por %p180, %p181
    %p183 = scmp.ne.s32.totalorder %s174, %s175
    %p184 = scmp.eq.s32.totalorder %s33, 0
    %p185 = por %p183, %p184
    %p186 = scmp.ne.s32.totalorder %s174, %s175
    %p187 = scmp.eq.s32.totalorder %s34, 1
    %p188 = por %p186, %p187
    %p190 = scmp.ne.s32.totalorder %s175, %s189
    %p191 = scmp.eq.s32.totalorder %s34, 0
    %p192 = por %p190, %p191
    %s194 = sadd.s32 %s193, 1
    %p197 = scmp.eq.s32.totalorder %s28, 1
    %p198 = scmp.ne.s32.totalorder %s193, %s195
    %p199 = scmp.eq.s32.totalorder %s28, 0
    %p200 = por %p198, %p199
    %p201 = scmp.ne.s32.totalorder %s193, %s195
    %p202 = scmp.eq.s32.totalorder %s33, 1
    %p203 = por %p201, %p202
    %p204 = scmp.ne.s32.totalorder %s195, %s196
    %p205 = scmp.eq.s32.totalorder %s33, 0
    %p206 = por %p204, %p205
    %p207 = scmp.ne.s32.totalorder %s195, %s196
    %p208 = scmp.eq.s32.totalorder %s34, 1
    %p209 = por %p207, %p208
    %p211 = scmp.ne.s32.totalorder %s196, %s210
    %p212 = scmp.eq.s32.totalorder %s34, 0
    %p213 = por %p211, %p212
    %s215 = sadd.s32 %s214, 1
    %p218 = scmp.eq.s32.totalorder %s28, 1
    %p219 = scmp.ne.s32.totalorder %s214, %s216
    %p220 = scmp.eq.s32.totalorder %s28, 0
    %p221 = por %p219, %p220
    %p222 = scmp.ne.s32.totalorder %s214, %s216
    %p223 = scmp.eq.s32.totalorder %s33, 1
    %p224 = por %p222, %p223
    %p225 = scmp.ne.s32.totalorder %s216, %s217
    %p226 = scmp.eq.s32.totalorder %s33, 0
    %p227 = por %p225, %p226
    %p228 = scmp.ne.s32.totalorder %s216, %s217
    %p229 = scmp.eq.s32.totalorder %s34, 1
    %p230 = por %p228, %p229
    %p232 = scmp.ne.s32.totalorder %s217, %s231
    %p233 = scmp.eq.s32.totalorder %s34, 0
    %p234 = por %p232, %p233
    %s236 = sadd.s32 %s235, 1
    %p239 = scmp.eq.s32.totalorder %s28, 1
    %p240 = scmp.ne.s32.totalorder %s235, %s237
    %p241 = scmp.eq.s32.totalorder %s28, 0
    %p242 = por %p240, %p241
    %p243 = scmp.ne.s32.totalorder %s235, %s237
    %p244 = scmp.eq.s32.totalorder %s33, 1
    %p245 = por %p243, %p244
    %p246 = scmp.ne.s32.totalorder %s237, %s238
    %p247 = scmp.eq.s32.totalorder %s33, 0
    %p248 = por %p246, %p247
    %p249 = scmp.ne.s32.totalorder %s237, %s238
    %p250 = scmp.eq.s32.totalorder %s34, 1
    %p251 = por %p249, %p250
    %p253 = scmp.ne.s32.totalorder %s238, %s252
    %p254 = scmp.eq.s32.totalorder %s34, 0
    %p255 = por %p253, %p254
    %s257 = sadd.s32 %s256, 1
    %p260 = scmp.eq.s32.totalorder %s28, 1
    %p261 = scmp.ne.s32.totalorder %s256, %s258
    %p262 = scmp.eq.s32.totalorder %s28, 0
    %p263 = por %p261, %p262
    %p264 = scmp.ne.s32.totalorder %s256, %s258
    %p265 = scmp.eq.s32.totalorder %s33, 1
    %p266 = por %p264, %p265
    %p267 = scmp.ne.s32.totalorder %s258, %s259
    %p268 = scmp.eq.s32.totalorder %s33, 0
    %p269 = por %p267, %p268
    %p270 = scmp.ne.s32.totalorder %s258, %s259
    %p271 = scmp.eq.s32.totalorder %s34, 1
    %p272 = por %p270, %p271
    %p274 = scmp.ne.s32.totalorder %s259, %s273
    %p275 = scmp.eq.s32.totalorder %s34, 0
    %p276 = por %p274, %p275
    %s278 = sadd.s32 %s277, 1
    %p281 = scmp.eq.s32.totalorder %s28, 1
    %p282 = scmp.ne.s32.totalorder %s277, %s279
    %p283 = scmp.eq.s32.totalorder %s28, 0
    %p284 = por %p282, %p283
    %p285 = scmp.ne.s32.totalorder %s277, %s279
    %p286 = scmp.eq.s32.totalorder %s33, 1
    %p287 = por %p285, %p286
    %p288 = scmp.ne.s32.totalorder %s279, %s280
    %p289 = scmp.eq.s32.totalorder %s33, 0
    %p290 = por %p288, %p289
    %p291 = scmp.ne.s32.totalorder %s279, %s280
    %p292 = scmp.eq.s32.totalorder %s34, 1
    %p293 = por %p291, %p292
    %p295 = scmp.ne.s32.totalorder %s280, %s294
    %p296 = scmp.eq.s32.totalorder %s34, 0
    %p297 = por %p295, %p296
    %s299 = sadd.s32 %s298, 1
    %p302 = scmp.eq.s32.totalorder %s28, 1
    %p303 = scmp.ne.s32.totalorder %s298, %s300
    %p304 = scmp.eq.s32.totalorder %s28, 0
    %p305 = por %p303, %p304
    %p306 = scmp.ne.s32.totalorder %s298, %s300
    %p307 = scmp.eq.s32.totalorder %s33, 1
    %p308 = por %p306, %p307
    %p309 = scmp.ne.s32.totalorder %s300, %s301
    %p310 = scmp.eq.s32.totalorder %s33, 0
    %p311 = por %p309, %p310
    %p312 = scmp.ne.s32.totalorder %s300, %s301
    %p313 = scmp.eq.s32.totalorder %s34, 1
    %p314 = por %p312, %p313
    %p316 = scmp.ne.s32.totalorder %s301, %s315
    %p317 = scmp.eq.s32.totalorder %s34, 0
    %p318 = por %p316, %p317
    %s320 = sadd.s32 %s319, 1
    %p323 = scmp.eq.s32.totalorder %s28, 1
    %p324 = scmp.ne.s32.totalorder %s319, %s321
    %p325 = scmp.eq.s32.totalorder %s28, 0
    %p326 = por %p324, %p325
    %p327 = scmp.ne.s32.totalorder %s319, %s321
    %p328 = scmp.eq.s32.totalorder %s33, 1
    %p329 = por %p327, %p328
    %p330 = scmp.ne.s32.totalorder %s321, %s322
    %p331 = scmp.eq.s32.totalorder %s33, 0
    %p332 = por %p330, %p331
    %p333 = scmp.ne.s32.totalorder %s321, %s322
    %p334 = scmp.eq.s32.totalorder %s34, 1
    %p335 = por %p333, %p334
    %p337 = scmp.ne.s32.totalorder %s322, %s336
    %p338 = scmp.eq.s32.totalorder %s34, 0
    %p339 = por %p337, %p338
    %s341 = sadd.s32 %s340, 1
    %p344 = scmp.eq.s32.totalorder %s28, 1
    %p345 = scmp.ne.s32.totalorder %s340, %s342
    %p346 = scmp.eq.s32.totalorder %s28, 0
    %p347 = por %p345, %p346
    %p348 = scmp.ne.s32.totalorder %s340, %s342
    %p349 = scmp.eq.s32.totalorder %s33, 1
    %p350 = por %p348, %p349
    %p351 = scmp.ne.s32.totalorder %s342, %s343
    %p352 = scmp.eq.s32.totalorder %s33, 0
    %p353 = por %p351, %p352
    %p354 = scmp.ne.s32.totalorder %s342, %s343
    %p355 = scmp.eq.s32.totalorder %s34, 1
    %p356 = por %p354, %p355
    %p358 = scmp.ne.s32.totalorder %s343, %s357
    %p359 = scmp.eq.s32.totalorder %s34, 0
    %p360 = por %p358, %p359
    %s362 = sadd.s32 %s361, 1
    %p365 = scmp.eq.s32.totalorder %s28, 1
    %p366 = scmp.ne.s32.totalorder %s361, %s363
    %p367 = scmp.eq.s32.totalorder %s28, 0
    %p368 = por %p366, %p367
    %p369 = scmp.ne.s32.totalorder %s361, %s363
    %p370 = scmp.eq.s32.totalorder %s33, 1
    %p371 = por %p369, %p370
    %p372 = scmp.ne.s32.totalorder %s363, %s364
    %p373 = scmp.eq.s32.totalorder %s33, 0
    %p374 = por %p372, %p373
    %p375 = scmp.ne.s32.totalorder %s363, %s364
    %p376 = scmp.eq.s32.totalorder %s34, 1
    %p377 = por %p375, %p376
    %p379 = scmp.ne.s32.totalorder %s364, %s378
    %p380 = scmp.eq.s32.totalorder %s34, 0
    %p381 = por %p379, %p380
    %s383 = sadd.s32 %s382, 1
    %p386 = scmp.eq.s32.totalorder %s28, 1
    %p387 = scmp.ne.s32.totalorder %s382, %s384
    %p388 = scmp.eq.s32.totalorder %s28, 0
    %p389 = por %p387, %p388
    %p390 = scmp.ne.s32.totalorder %s382, %s384
    %p391 = scmp.eq.s32.totalorder %s33, 1
    %p392 = por %p390, %p391
    %p393 = scmp.ne.s32.totalorder %s384, %s385
    %p394 = scmp.eq.s32.totalorder %s33, 0
    %p395 = por %p393, %p394
    %p396 = scmp.ne.s32.totalorder %s384, %s385
    %p397 = scmp.eq.s32.totalorder %s34, 1
    %p398 = por %p396, %p397
    %p400 = scmp.ne.s32.totalorder %s385, %s399
    %p401 = scmp.eq.s32.totalorder %s34, 0
    %p402 = por %p400, %p401
    %s404 = sadd.s32 %s403, 1
    %p407 = scmp.eq.s32.totalorder %s28, 1
    %p408 = scmp.ne.s32.totalorder %s403, %s405
    %p409 = scmp.eq.s32.totalorder %s28, 0
    %p410 = por %p408, %p409
    %p411 = scmp.ne.s32.totalorder %s403, %s405
    %p412 = scmp.eq.s32.totalorder %s33, 1
    %p413 = por %p411, %p412
    %p414 = scmp.ne.s32.totalorder %s405, %s406
    %p415 = scmp.eq.s32.totalorder %s33, 0
    %p416 = por %p414, %p415
    %p417 = scmp.ne.s32.totalorder %s405, %s406
    %p418 = scmp.eq.s32.totalorder %s34, 1
    %p419 = por %p417, %p418
    %p421 = scmp.ne.s32.totalorder %s406, %s420
    %p422 = scmp.eq.s32.totalorder %s34, 0
    %p423 = por %p421, %p422
    %s425 = sadd.s32 %s424, 1
    %p428 = scmp.eq.s32.totalorder %s28, 1
    %p429 = scmp.ne.s32.totalorder %s424, %s426
    %p430 = scmp.eq.s32.totalorder %s28, 0
    %p431 = por %p429, %p430
    %p432 = scmp.ne.s32.totalorder %s424, %s426
    %p433 = scmp.eq.s32.totalorder %s33, 1
    %p434 = por %p432, %p433
    %p435 = scmp.ne.s32.totalorder %s426, %s427
    %p436 = scmp.eq.s32.totalorder %s33, 0
    %p437 = por %p435, %p436
    %p438 = scmp.ne.s32.totalorder %s426, %s427
    %p439 = scmp.eq.s32.totalorder %s34, 1
    %p440 = por %p438, %p439
    %p442 = scmp.ne.s32.totalorder %s427, %s441
    %p443 = scmp.eq.s32.totalorder %s34, 0
    %p444 = por %p442, %p443
    %s446 = sadd.s32 %s445, 1
    %p449 = scmp.eq.s32.totalorder %s28, 1
    %p450 = scmp.ne.s32.totalorder %s445, %s447
    %p451 = scmp.eq.s32.totalorder %s28, 0
    %p452 = por %p450, %p451
    %p453 = scmp.ne.s32.totalorder %s445, %s447
    %p454 = scmp.eq.s32.totalorder %s33, 1
    %p455 = por %p453, %p454
    %p456 = scmp.ne.s32.totalorder %s447, %s448
    %p457 = scmp.eq.s32.totalorder %s33, 0
    %p458 = por %p456, %p457
    %p459 = scmp.ne.s32.totalorder %s447, %s448
    %p460 = scmp.eq.s32.totalorder %s34, 1
    %p461 = por %p459, %p460
    %p463 = scmp.ne.s32.totalorder %s448, %s462
    %p464 = scmp.eq.s32.totalorder %s34, 0
    %p465 = por %p463, %p464
    %s467 = sadd.s32 %s466, 1
    %p470 = scmp.eq.s32.totalorder %s28, 1
    %p471 = scmp.ne.s32.totalorder %s466, %s468
    %p472 = scmp.eq.s32.totalorder %s28, 0
    %p473 = por %p471, %p472
    %p474 = scmp.ne.s32.totalorder %s466, %s468
    %p475 = scmp.eq.s32.totalorder %s33, 1
    %p476 = por %p474, %p475
    %p477 = scmp.ne.s32.totalorder %s468, %s469
    %p478 = scmp.eq.s32.totalorder %s33, 0
    %p479 = por %p477, %p478
    %p480 = scmp.ne.s32.totalorder %s468, %s469
    %p481 = scmp.eq.s32.totalorder %s34, 1
    %p482 = por %p480, %p481
    %p484 = scmp.ne.s32.totalorder %s469, %s483
    %p485 = scmp.eq.s32.totalorder %s34, 0
    %p486 = por %p484, %p485
    %s488 = sadd.s32 %s487, 1
    %p491 = scmp.eq.s32.totalorder %s28, 1
    %p492 = scmp.ne.s32.totalorder %s487, %s489
    %p493 = scmp.eq.s32.totalorder %s28, 0
    %p494 = por %p492, %p493
    %p495 = scmp.ne.s32.totalorder %s487, %s489
    %p496 = scmp.eq.s32.totalorder %s33, 1
    %p497 = por %p495, %p496
    %p498 = scmp.ne.s32.totalorder %s489, %s490
    %p499 = scmp.eq.s32.totalorder %s33, 0
    %p500 = por %p498, %p499
    %p501 = scmp.ne.s32.totalorder %s489, %s490
    %p502 = scmp.eq.s32.totalorder %s34, 1
    %p503 = por %p501, %p502
    %p505 = scmp.ne.s32.totalorder %s490, %s504
    %p506 = scmp.eq.s32.totalorder %s34, 0
    %p507 = por %p505, %p506
    %s508 = ssub.s32 %s28, %s35
    %p509 = scmp.eq.s32.totalorder %s508, 0
    %s511 = sadd.s32 %s510, 1
    %s512 = scalar_select %p509, %s510, %s511
    %p515 = pneg %p509
    %p516 = scmp.eq.s32.totalorder %s28, 1
    %p517 = por %p515, %p516
    %p518 = scmp.ne.s32.totalorder %s510, %s513
    %p519 = scmp.eq.s32.totalorder %s28, 0
    %p520 = por %p518, %p519
    %p521 = scmp.ne.s32.totalorder %s510, %s513
    %p522 = scmp.eq.s32.totalorder %s33, 1
    %p523 = por %p521, %p522
    %p524 = scmp.ne.s32.totalorder %s513, %s514
    %p525 = scmp.eq.s32.totalorder %s33, 0
    %p526 = por %p524, %p525
    %p527 = scmp.ne.s32.totalorder %s513, %s514
    %p528 = scmp.eq.s32.totalorder %s34, 1
    %p529 = por %p527, %p528
    %p531 = scmp.ne.s32.totalorder %s514, %s530
    %p532 = scmp.eq.s32.totalorder %s34, 0
    %p533 = por %p531, %p532
    %p534 = scmp.le.s32.totalorder 1, %s28
    %p535 = scmp.lt.s32.totalorder %s28, 3
    %p536 = pnand %p534, %p535
    %p537 = pneg %p536
    // Predicated region
    $region9: #{flux_transformer_forward.5} parent=5 // pred_check
      _
    $region10: #{flux_transformer_forward.5} parent=5 // pred_check_branch
      %539 = sbr.rel (%p536) target = $region12
    $region11: #{flux_transformer_forward.5} parent=5 // pred_region
      %s540 = ssub.s32 %s28, 1
      // Predicated region
      $region13: #{flux_transformer_forward.5} parent=11 // pred_check
        %p541 = pneg %p101
      $region14: #{flux_transformer_forward.5} parent=11 // pred_check_branch
        %543 = sbr.rel (%p541) target = $region16
      $region15: #{flux_transformer_forward.5} parent=11 // pred_region
        _
      $region16: #{flux_transformer_forward.5} parent=11 // pred_fallthru
        _
      // Predicated region
      $region17: #{flux_transformer_forward.5} parent=11 // pred_check
        %p544 = pneg %p122
      $region18: #{flux_transformer_forward.5} parent=11 // pred_check_branch
        %546 = sbr.rel (%p544) target = $region20
      $region19: #{flux_transformer_forward.5} parent=11 // pred_region
        _
      $region20: #{flux_transformer_forward.5} parent=11 // pred_fallthru
        _
      // Predicated region
      $region21: #{flux_transformer_forward.5} parent=11 // pred_check
        %p547 = pneg %p143
      $region22: #{flux_transformer_forward.5} parent=11 // pred_check_branch
        %549 = sbr.rel (%p547) target = $region24
      $region23: #{flux_transformer_forward.5} parent=11 // pred_region
        _
      $region24: #{flux_transformer_forward.5} parent=11 // pred_fallthru
        _
      // Predicated region
      $region25: #{flux_transformer_forward.5} parent=11 // pred_check
        %p550 = pneg %p164
      $region26: #{flux_transformer_forward.5} parent=11 // pred_check_branch
        %552 = sbr.rel (%p550) target = $region28
      $region27: #{flux_transformer_forward.5} parent=11 // pred_region
        _
      $region28: #{flux_transformer_forward.5} parent=11 // pred_fallthru
        _
      // Predicated region
      $region29: #{flux_transformer_forward.5} parent=11 // pred_check
        %p553 = pneg %p185
      $region30: #{flux_transformer_forward.5} parent=11 // pred_check_branch
        %555 = sbr.rel (%p553) target = $region32
      $region31: #{flux_transformer_forward.5} parent=11 // pred_region
        _
      $region32: #{flux_transformer_forward.5} parent=11 // pred_fallthru
        _
      // Predicated region
      $region33: #{flux_transformer_forward.5} parent=11 // pred_check
        %p556 = pneg %p206
      $region34: #{flux_transformer_forward.5} parent=11 // pred_check_branch
        %558 = sbr.rel (%p556) target = $region36
      $region35: #{flux_transformer_forward.5} parent=11 // pred_region
        _
      $region36: #{flux_transformer_forward.5} parent=11 // pred_fallthru
        _
      // Predicated region
      $region37: #{flux_transformer_forward.5} parent=11 // pred_check
        %p559 = pneg %p227
      $region38: #{flux_transformer_forward.5} parent=11 // pred_check_branch
        %561 = sbr.rel (%p559) target = $region40
      $region39: #{flux_transformer_forward.5} parent=11 // pred_region
        _
      $region40: #{flux_transformer_forward.5} parent=11 // pred_fallthru
        _
      // Predicated region
      $region41: #{flux_transformer_forward.5} parent=11 // pred_check
        %p562 = pneg %p248
      $region42: #{flux_transformer_forward.5} parent=11 // pred_check_branch
        %564 = sbr.rel (%p562) target = $region44
      $region43: #{flux_transformer_forward.5} parent=11 // pred_region
        _
      $region44: #{flux_transformer_forward.5} parent=11 // pred_fallthru
        _
      // Predicated region
      $region45: #{flux_transformer_forward.5} parent=11 // pred_check
        %p565 = pneg %p269
      $region46: #{flux_transformer_forward.5} parent=11 // pred_check_branch
        %567 = sbr.rel (%p565) target = $region48
      $region47: #{flux_transformer_forward.5} parent=11 // pred_region
        _
      $region48: #{flux_transformer_forward.5} parent=11 // pred_fallthru
        _
      // Predicated region
      $region49: #{flux_transformer_forward.5} parent=11 // pred_check
        %p568 = pneg %p290
      $region50: #{flux_transformer_forward.5} parent=11 // pred_check_branch
        %570 = sbr.rel (%p568) target = $region52
      $region51: #{flux_transformer_forward.5} parent=11 // pred_region
        _
      $region52: #{flux_transformer_forward.5} parent=11 // pred_fallthru
        _
      // Predicated region
      $region53: #{flux_transformer_forward.5} parent=11 // pred_check
        %p571 = pneg %p311
      $region54: #{flux_transformer_forward.5} parent=11 // pred_check_branch
        %573 = sbr.rel (%p571) target = $region56
      $region55: #{flux_transformer_forward.5} parent=11 // pred_region
        _
      $region56: #{flux_transformer_forward.5} parent=11 // pred_fallthru
        _
      // Predicated region
      $region57: #{flux_transformer_forward.5} parent=11 // pred_check
        %p574 = pneg %p332
      $region58: #{flux_transformer_forward.5} parent=11 // pred_check_branch
        %576 = sbr.rel (%p574) target = $region60
      $region59: #{flux_transformer_forward.5} parent=11 // pred_region
        _
      $region60: #{flux_transformer_forward.5} parent=11 // pred_fallthru
        _
      // Predicated region
      $region61: #{flux_transformer_forward.5} parent=11 // pred_check
        %p577 = pneg %p353
      $region62: #{flux_transformer_forward.5} parent=11 // pred_check_branch
        %579 = sbr.rel (%p577) target = $region64
      $region63: #{flux_transformer_forward.5} parent=11 // pred_region
        _
      $region64: #{flux_transformer_forward.5} parent=11 // pred_fallthru
        _
      // Predicated region
      $region65: #{flux_transformer_forward.5} parent=11 // pred_check
        %p580 = pneg %p374
      $region66: #{flux_transformer_forward.5} parent=11 // pred_check_branch
        %582 = sbr.rel (%p580) target = $region68
      $region67: #{flux_transformer_forward.5} parent=11 // pred_region
        _
      $region68: #{flux_transformer_forward.5} parent=11 // pred_fallthru
        _
      // Predicated region
      $region69: #{flux_transformer_forward.5} parent=11 // pred_check
        %p583 = pneg %p395
      $region70: #{flux_transformer_forward.5} parent=11 // pred_check_branch
        %585 = sbr.rel (%p583) target = $region72
      $region71: #{flux_transformer_forward.5} parent=11 // pred_region
        _
      $region72: #{flux_transformer_forward.5} parent=11 // pred_fallthru
        _
      // Predicated region
      $region73: #{flux_transformer_forward.5} parent=11 // pred_check
        %p586 = pneg %p416
      $region74: #{flux_transformer_forward.5} parent=11 // pred_check_branch
        %588 = sbr.rel (%p586) target = $region76
      $region75: #{flux_transformer_forward.5} parent=11 // pred_region
        _
      $region76: #{flux_transformer_forward.5} parent=11 // pred_fallthru
        _
      // Predicated region
      $region77: #{flux_transformer_forward.5} parent=11 // pred_check
        %p589 = pneg %p437
      $region78: #{flux_transformer_forward.5} parent=11 // pred_check_branch
        %591 = sbr.rel (%p589) target = $region80
      $region79: #{flux_transformer_forward.5} parent=11 // pred_region
        _
      $region80: #{flux_transformer_forward.5} parent=11 // pred_fallthru
        _
      // Predicated region
      $region81: #{flux_transformer_forward.5} parent=11 // pred_check
        %p592 = pneg %p458
      $region82: #{flux_transformer_forward.5} parent=11 // pred_check_branch
        %594 = sbr.rel (%p592) target = $region84
      $region83: #{flux_transformer_forward.5} parent=11 // pred_region
        _
      $region84: #{flux_transformer_forward.5} parent=11 // pred_fallthru
        _
      // Predicated region
      $region85: #{flux_transformer_forward.5} parent=11 // pred_check
        %p595 = pneg %p479
      $region86: #{flux_transformer_forward.5} parent=11 // pred_check_branch
        %597 = sbr.rel (%p595) target = $region88
      $region87: #{flux_transformer_forward.5} parent=11 // pred_region
        _
      $region88: #{flux_transformer_forward.5} parent=11 // pred_fallthru
        _
      // Predicated region
      $region89: #{flux_transformer_forward.5} parent=11 // pred_check
        %p598 = pneg %p500
      $region90: #{flux_transformer_forward.5} parent=11 // pred_check_branch
        %600 = sbr.rel (%p598) target = $region92
      $region91: #{flux_transformer_forward.5} parent=11 // pred_region
        _
      $region92: #{flux_transformer_forward.5} parent=11 // pred_fallthru
        _
    $region12: #{flux_transformer_forward.5} parent=5 // pred_fallthru
      _
    %p601 = scmp.lt.s32.totalorder %s28, 2
    // Predicated region
    $region93: #{flux_transformer_forward.5} parent=5 // pred_check
      %p602 = pneg %p601
    $region94: #{flux_transformer_forward.5} parent=5 // pred_check_branch
      %604 = sbr.rel (%p602) target = $region96
    $region95: #{flux_transformer_forward.5} parent=5 // pred_region
      // Predicated region
      $region97: #{flux_transformer_forward.5} parent=95 // pred_check
        %p605 = pneg %p48
      $region98: #{flux_transformer_forward.5} parent=95 // pred_check_branch
        %607 = sbr.rel (%p605) target = $region100
      $region99: #{flux_transformer_forward.5} parent=95 // pred_region
        %p608 = scmp.lt.s32.totalorder %s28, 1
        %s609 = scalar_select %p608, %s28, 1
        %s610 = smul.addr %s609, 3
        %s611 = smul.addr %s610, 4
        %s612 = scalar_lea.vmem %s0, %s611
      $region100: #{flux_transformer_forward.5} parent=95 // pred_fallthru
        _
      // Predicated region
      $region101: #{flux_transformer_forward.5} parent=95 // pred_check
        %p613 = pneg %p74
      $region102: #{flux_transformer_forward.5} parent=95 // pred_check_branch
        %615 = sbr.rel (%p613) target = $region104
      $region103: #{flux_transformer_forward.5} parent=95 // pred_region
        %p616 = scmp.lt.s32.totalorder %s28, 1
        %s617 = scalar_select %p616, %s28, 1
        %s618 = scalar_lea.vmem %s1, %s617
      $region104: #{flux_transformer_forward.5} parent=95 // pred_fallthru
        _
    $region96: #{flux_transformer_forward.5} parent=5 // pred_fallthru
      _
    %p619 = scmp.le.s32.totalorder 1, %s28
    %p620 = scmp.lt.s32.totalorder %s28, 3
    %p621 = pnand %p619, %p620
    %p622 = pneg %p621
    // Predicated region
    $region105: #{flux_transformer_forward.5} parent=5 // pred_check
      _
    $region106: #{flux_transformer_forward.5} parent=5 // pred_check_branch
      %624 = sbr.rel (%p621) target = $region108
    $region107: #{flux_transformer_forward.5} parent=5 // pred_region
      %s625 = ssub.s32 %s28, 1
      %p626 = scmp.lt.s32.totalorder %s33, 1
      %s627 = scalar_select %p626, %s33, 1
      %s628 = smul.addr %s627, 3
      %s629 = smul.addr %s628, 4
      %s630 = scalar_lea.vmem %s0, %s629
      %p631 = pneg %p54
      %p632 = pneg %p51
      %p633 = scmp.lt.s32.totalorder %s33, 1
      %s634 = scalar_select %p633, %s33, 1
      %s635 = scalar_lea.vmem %s1, %s634
      %p636 = pneg %p80
      %p637 = pneg %p77
      %p638 = pneg %p101
      %p639 = pneg %p98
      %p640 = pneg %p122
      %p641 = pneg %p119
      %p642 = pneg %p143
      %p643 = pneg %p140
      %p644 = pneg %p164
      %p645 = pneg %p161
      %p646 = pneg %p185
      %p647 = pneg %p182
      %p648 = pneg %p206
      %p649 = pneg %p203
      %p650 = pneg %p227
      %p651 = pneg %p224
      %p652 = pneg %p248
      %p653 = pneg %p245
      %p654 = pneg %p269
      %p655 = pneg %p266
      %p656 = pneg %p290
      %p657 = pneg %p287
      %p658 = pneg %p311
      %p659 = pneg %p308
      %p660 = pneg %p332
      %p661 = pneg %p329
      %p662 = pneg %p353
      %p663 = pneg %p350
      %p664 = pneg %p374
      %p665 = pneg %p371
      %p666 = pneg %p395
      %p667 = pneg %p392
      %p668 = pneg %p416
      %p669 = pneg %p413
      %p670 = pneg %p437
      %p671 = pneg %p434
      %p672 = pneg %p458
      %p673 = pneg %p455
      %p674 = pneg %p479
      %p675 = pneg %p476
      %p676 = pneg %p500
      %p677 = pneg %p497
      %p678 = pneg %p526
      %p679 = pneg %p523
      %p680 = scmp.lt.s32.totalorder %s33, 1
      %s681 = scalar_select %p680, %s33, 1
      %s682 = smul.addr %s681, 3
      %s683 = smul.addr %s682, 4
      %s684 = scalar_lea.vmem %s22, %s683
      %p685 = scmp.lt.s32.totalorder %s33, 1
      %s686 = scalar_select %p685, %s33, 1
      %s687 = smul.addr %s686, 3
      %s688 = smul.addr %s687, 4
      %s689 = scalar_lea.vmem %s0, %s688
      %p690 = scmp.lt.s32.totalorder %s33, 1
      %s691 = scalar_select %p690, %s33, 1
      %s692 = scalar_lea.vmem %s1, %s691
      %p693 = scmp.lt.s32.totalorder %s33, 1
      %s694 = scalar_select %p693, %s33, 1
      %s695 = smul.addr %s694, 3
      %s696 = smul.addr %s695, 4
      %s697 = scalar_lea.vmem %s22, %s696
      %v699 = vld [vmem:[%s689] sm:$0xf]
      %v700 = vld [vmem:[%s689 + $0x4] sm:$0xf]
      %v701 = vld [vmem:[%s689 + $0x8] sm:$0xf]
      %v702 = vunpack.c.l.bf16 %v699
      %v703 = vunpack.c.l.bf16 %v700
      %v704 = vunpack.c.l.bf16 %v701
      %v705 = vld [vmem:[%s692] sm:$0x1]
      %v706 = vld [vmem:[%s3] sm:$0xff]
      %v707 = vld [vmem:[%s3 + $0x8] sm:$0xff]
      %v708 = vld [vmem:[%s3 + $0x10] sm:$0xff]
      %v709 = vld [vmem:[%s3 + $0x18] sm:$0xff]
      %v710 = vld [vmem:[%s3 + $0x20] sm:$0xff]
      %v711 = vld [vmem:[%s3 + $0x28] sm:$0xff]
      %v712 = vld [vmem:[%s3 + $0x30] sm:$0xff]
      %v713 = vld [vmem:[%s3 + $0x38] sm:$0xff]
      %v714 = vld [vmem:[%s3 + $0x40] sm:$0xff]
      %v715 = vld [vmem:[%s3 + $0x48] sm:$0xff]
      %v716 = vld [vmem:[%s3 + $0x50] sm:$0xff]
      %v717 = vld [vmem:[%s3 + $0x58] sm:$0xff]
      %v718 = vld [vmem:[%s3 + $0x60] sm:$0xff]
      %v719 = vld [vmem:[%s3 + $0x68] sm:$0xff]
      %v720 = vld [vmem:[%s3 + $0x70] sm:$0xff]
      %v721 = vld [vmem:[%s3 + $0x78] sm:$0xff]
      %v722 = vld [vmem:[%s3 + $0x80] sm:$0xff]
      %v723 = vld [vmem:[%s3 + $0x88] sm:$0xff]
      %v724 = vld [vmem:[%s3 + $0x90] sm:$0xff]
      %v725 = vld [vmem:[%s3 + $0x98] sm:$0xff]
      %v726 = vld [vmem:[%s3 + $0xa0] sm:$0xff]
      %v727 = vld [vmem:[%s3 + $0xa8] sm:$0xff]
      %v728 = vld [vmem:[%s3 + $0xb0] sm:$0xff]
      %v729 = vld [vmem:[%s3 + $0xb8] sm:$0xff]
      %v730 = vld [vmem:[%s4] sm:$0x3f]
      %v731 = vunpack.c.l.bf16 %v730
      %v732 = vunpack.c.h.bf16 %v730
      %v757 = vunpack.c.l.b16 %v706
      %v758 = vunpack.c.h.b16 %v706
      %v759 = vunpack.c.l.b16 %v707
      %v760 = vunpack.c.h.b16 %v707
      %v761 = vunpack.c.l.b16 %v708
      %v762 = vunpack.c.h.b16 %v708
      %v763 = vunpack.c.l.b16 %v709
      %v764 = vunpack.c.h.b16 %v709
      %v765 = vunpack.c.l.b16 %v710
      %v766 = vunpack.c.h.b16 %v710
      %v767 = vunpack.c.l.b16 %v711
      %v768 = vunpack.c.h.b16 %v711
      %v769 = vunpack.c.l.b16 %v712
      %v770 = vunpack.c.h.b16 %v712
      %v771 = vunpack.c.l.b16 %v713
      %v772 = vunpack.c.h.b16 %v713
      %v773 = vunpack.c.l.b16 %v714
      %v774 = vunpack.c.h.b16 %v714
      %v775 = vunpack.c.l.b16 %v715
      %v776 = vunpack.c.h.b16 %v715
      %v777 = vunpack.c.l.b16 %v716
      %v778 = vunpack.c.h.b16 %v716
      %v779 = vunpack.c.l.b16 %v717
      %v780 = vunpack.c.h.b16 %v717
      %v781 = vunpack.c.l.b16 %v718
      %v782 = vunpack.c.h.b16 %v718
      %v783 = vunpack.c.l.b16 %v719
      %v784 = vunpack.c.h.b16 %v719
      %v785 = vunpack.c.l.b16 %v720
      %v786 = vunpack.c.h.b16 %v720
      %v787 = vunpack.c.l.b16 %v721
      %v788 = vunpack.c.h.b16 %v721
      %v789 = vunpack.c.l.b16 %v722
      %v790 = vunpack.c.h.b16 %v722
      %v791 = vunpack.c.l.b16 %v723
      %v792 = vunpack.c.h.b16 %v723
      %v793 = vunpack.c.l.b16 %v724
      %v794 = vunpack.c.h.b16 %v724
      %v795 = vunpack.c.l.b16 %v725
      %v796 = vunpack.c.h.b16 %v725
      %v797 = vunpack.c.l.b16 %v726
      %v798 = vunpack.c.h.b16 %v726
      %v799 = vunpack.c.l.b16 %v727
      %v800 = vunpack.c.h.b16 %v727
      %v801 = vunpack.c.l.b16 %v728
      %v802 = vunpack.c.h.b16 %v728
      %v803 = vunpack.c.l.b16 %v729
      %v804 = vunpack.c.h.b16 %v729
      %v805 = vpack.c.b16 %v763, %v757
      %v806 = vpack.c.b16 %v764, %v758
      %v807 = vpack.c.b16 %v765, %v759
      %v808 = vpack.c.b16 %v766, %v760
      %v809 = vpack.c.b16 %v767, %v761
      %v810 = vpack.c.b16 %v768, %v762
      %v811 = vpack.c.b16 %v775, %v769
      %v812 = vpack.c.b16 %v776, %v770
      %v813 = vpack.c.b16 %v777, %v771
      %v814 = vpack.c.b16 %v778, %v772
      %v815 = vpack.c.b16 %v779, %v773
      %v816 = vpack.c.b16 %v780, %v774
      %v817 = vpack.c.b16 %v787, %v781
      %v818 = vpack.c.b16 %v788, %v782
      %v819 = vpack.c.b16 %v789, %v783
      %v820 = vpack.c.b16 %v790, %v784
      %v821 = vpack.c.b16 %v791, %v785
      %v822 = vpack.c.b16 %v792, %v786
      %v823 = vpack.c.b16 %v799, %v793
      %v824 = vpack.c.b16 %v800, %v794
      %v825 = vpack.c.b16 %v801, %v795
      %v826 = vpack.c.b16 %v802, %v796
      %v827 = vpack.c.b16 %v803, %v797
      %v828 = vpack.c.b16 %v804, %v798
      %v855 = vlaneseq
      %v856 = vshrl.u32 %v855, 7
      %v857 = vsub.s32 0, %v856
      %v858 = vrot.slane %v731, %v857
      %v859 = vlaneseq
      %v860 = vshrl.u32 %v859, 7
      %v861 = vsub.s32 2, %v860
      %v862 = vrot.slane %v731, %v861
      %v863 = vlaneseq
      %v864 = vshrl.u32 %v863, 7
      %v865 = vsub.s32 4, %v864
      %v866 = vrot.slane %v731, %v865
      %v867 = vlaneseq
      %v868 = vshrl.u32 %v867, 7
      %v869 = vsub.s32 6, %v868
      %v870 = vrot.slane %v731, %v869
      %v871 = vlaneseq
      %v872 = vshrl.u32 %v871, 7
      %v873 = vsub.s32 0, %v872
      %v874 = vrot.slane %v732, %v873
      %v875 = vlaneseq
      %v876 = vshrl.u32 %v875, 7
      %v877 = vsub.s32 2, %v876
      %v878 = vrot.slane %v732, %v877
      %vm885 = vcmask 523264
      %v887 = vsel %vm885, %v705, 0
      %889 = vmatprep.subr.bf16.mxu0 %v806
      %890 = vmatpush1.bf16.msra.mxu0 %v805
      %891 = vmatprep.subr.bf16.mxu0 %v812
      %892 = vmatpush1.bf16.msra.mxu0 %v811
      %893 = vmatprep.subr.bf16.mxu0 %v818
      %894 = vmatpush1.bf16.msra.mxu0 %v817
      %895 = vmatprep.subr.bf16.mxu0 %v824
      %896 = vmatpush1.bf16.msra.mxu0 %v823
      %897 = vmatprep.subr.bf16.mxu0 0
      %898 = vmatpush1.bf16.msra.mxu0 0
      %899 = vmatprep.subr.bf16.mxu0 0
      %900 = vmatpush1.bf16.msra.mxu0 0
      %901 = vmatprep.subr.bf16.mxu0 0
      %902 = vmatpush1.bf16.msra.mxu0 0
      %903 = vmatprep.subr.bf16.mxu0 0
      %904 = vmatpush1.bf16.msra.mxu0 0
      %905 = vmatprep.subr.bf16.mxu0 0
      %906 = vmatpush1.bf16.msra.mxu0 0
      %907 = vmatprep.subr.bf16.mxu0 0
      %908 = vmatpush1.bf16.msra.mxu0 0
      %909 = vmatprep.subr.bf16.mxu0 0
      %910 = vmatpush1.bf16.msra.mxu0 0
      %911 = vmatprep.subr.bf16.mxu0 0
      %912 = vmatpush1.bf16.msra.mxu0 0
      %913 = vmatprep.subr.bf16.mxu0 0
      %914 = vmatpush1.bf16.msra.mxu0 0
      %915 = vmatprep.subr.bf16.mxu0 0
      %916 = vmatpush1.bf16.msra.mxu0 0
      %917 = vmatprep.subr.bf16.mxu0 0
      %918 = vmatpush1.bf16.msra.mxu0 0
      %919 = vmatprep.subr.bf16.mxu0 0
      %920 = vmatpush1.bf16.msra.mxu0 0
      %921 = vmatprep.mubr.bf16.mxu0 0
      %922 = vmatmul.mubr.bf16.gmra.mrb[0].mxu0 %v887
      %v923 = vpop.f32.mrb[0].mxu0
      %v924 = vadd.f32 %v858, %v923
      %v925 = vpop.f32.mrb[0].mxu0
      %v926 = vadd.f32 %v862, %v925
      %v927 = vpop.f32.mrb[0].mxu0
      %v928 = vpop.f32.mrb[0].mxu0
      %929 = vdwg.mxu0
      %930 = vmatprep.subr.bf16.mxu0 %v808
      %931 = vmatpush1.bf16.msra.mxu0 %v807
      %932 = vmatprep.subr.bf16.mxu0 %v814
      %933 = vmatpush1.bf16.msra.mxu0 %v813
      %934 = vmatprep.subr.bf16.mxu0 %v820
      %935 = vmatpush1.bf16.msra.mxu0 %v819
      %936 = vmatprep.subr.bf16.mxu0 %v826
      %937 = vmatpush1.bf16.msra.mxu0 %v825
      %938 = vmatprep.subr.bf16.mxu0 0
      %939 = vmatpush1.bf16.msra.mxu0 0
      %940 = vmatprep.subr.bf16.mxu0 0
      %941 = vmatpush1.bf16.msra.mxu0 0
      %942 = vmatprep.subr.bf16.mxu0 0
      %943 = vmatpush1.bf16.msra.mxu0 0
      %944 = vmatprep.subr.bf16.mxu0 0
      %945 = vmatpush1.bf16.msra.mxu0 0
      %946 = vmatprep.subr.bf16.mxu0 0
      %947 = vmatpush1.bf16.msra.mxu0 0
      %948 = vmatprep.subr.bf16.mxu0 0
      %949 = vmatpush1.bf16.msra.mxu0 0
      %950 = vmatprep.subr.bf16.mxu0 0
      %951 = vmatpush1.bf16.msra.mxu0 0
      %952 = vmatprep.subr.bf16.mxu0 0
      %953 = vmatpush1.bf16.msra.mxu0 0
      %954 = vmatprep.subr.bf16.mxu0 0
      %955 = vmatpush1.bf16.msra.mxu0 0
      %956 = vmatprep.subr.bf16.mxu0 0
      %957 = vmatpush1.bf16.msra.mxu0 0
      %958 = vmatprep.subr.bf16.mxu0 0
      %959 = vmatpush1.bf16.msra.mxu0 0
      %960 = vmatprep.subr.bf16.mxu0 0
      %961 = vmatpush1.bf16.msra.mxu0 0
      %962 = vmatprep.mubr.bf16.mxu0 0
      %963 = vmatmul.mubr.bf16.gmra.mrb[0].mxu0 %v887
      %v964 = vpop.f32.mrb[0].mxu0
      %v965 = vadd.f32 %v866, %v964
      %v966 = vpop.f32.mrb[0].mxu0
      %v967 = vadd.f32 %v870, %v966
      %v968 = vpop.f32.mrb[0].mxu0
      %v969 = vpop.f32.mrb[0].mxu0
      %970 = vdwg.mxu0
      %971 = vmatprep.subr.bf16.mxu0 %v810
      %972 = vmatpush1.bf16.msra.mxu0 %v809
      %973 = vmatprep.subr.bf16.mxu0 %v816
      %974 = vmatpush1.bf16.msra.mxu0 %v815
      %975 = vmatprep.subr.bf16.mxu0 %v822
      %976 = vmatpush1.bf16.msra.mxu0 %v821
      %977 = vmatprep.subr.bf16.mxu0 %v828
      %978 = vmatpush1.bf16.msra.mxu0 %v827
      %979 = vmatprep.subr.bf16.mxu0 0
      %980 = vmatpush1.bf16.msra.mxu0 0
      %981 = vmatprep.subr.bf16.mxu0 0
      %982 = vmatpush1.bf16.msra.mxu0 0
      %983 = vmatprep.subr.bf16.mxu0 0
      %984 = vmatpush1.bf16.msra.mxu0 0
      %985 = vmatprep.subr.bf16.mxu0 0
      %986 = vmatpush1.bf16.msra.mxu0 0
      %987 = vmatprep.subr.bf16.mxu0 0
      %988 = vmatpush1.bf16.msra.mxu0 0
      %989 = vmatprep.subr.bf16.mxu0 0
      %990 = vmatpush1.bf16.msra.mxu0 0
      %991 = vmatprep.subr.bf16.mxu0 0
      %992 = vmatpush1.bf16.msra.mxu0 0
      %993 = vmatprep.subr.bf16.mxu0 0
      %994 = vmatpush1.bf16.msra.mxu0 0
      %995 = vmatprep.subr.bf16.mxu0 0
      %996 = vmatpush1.bf16.msra.mxu0 0
      %997 = vmatprep.subr.bf16.mxu0 0
      %998 = vmatpush1.bf16.msra.mxu0 0
      %999 = vmatprep.subr.bf16.mxu0 0
      %1000 = vmatpush1.bf16.msra.mxu0 0
      %1001 = vmatprep.subr.bf16.mxu0 0
      %1002 = vmatpush1.bf16.msra.mxu0 0
      %1003 = vmatprep.mubr.bf16.mxu0 0
      %1004 = vmatmul.mubr.bf16.gmra.mrb[0].mxu0 %v887
      %v1005 = vpop.f32.mrb[0].mxu0
      %v1006 = vadd.f32 %v874, %v1005
      %v1007 = vpop.f32.mrb[0].mxu0
      %v1008 = vadd.f32 %v878, %v1007
      %v1009 = vpop.f32.mrb[0].mxu0
      %v1010 = vpop.f32.mrb[0].mxu0
      %1011 = vdwg.mxu0
      %v1012 = vsel %vm885, %v703, 0.0
      %1013 = vadd.xlane.f32.xlu0 %v1012
      %v1014 = vpop.xlane.xlu0 %1013
      %v1015 = vsel %vm885, %v704, 0.0
      %1016 = vadd.xlane.f32.xlu0 %v1015
      %v1017 = vpop.xlane.xlu0 %1016
      %v1018 = vrcp.pop 64.0
      %v1019 = vmul.f32 %v1014, %v1018
      %v1020 = vmul.f32 %v1017, %v1018
      %v1021 = vsub.f32 %v703, %v1019
      %v1022 = vsub.f32 %v704, %v1020
      %v1023 = vmul.f32 %v1021, %v1021
      %v1024 = vmul.f32 %v1022, %v1022
      %v1025 = vsel %vm885, %v1023, 0.0
      %1026 = vadd.xlane.f32.xlu0 %v1025
      %v1027 = vpop.xlane.xlu0 %1026
      %v1028 = vsel %vm885, %v1024, 0.0
      %1029 = vadd.xlane.f32.xlu0 %v1028
      %v1030 = vpop.xlane.xlu0 %1029
      %v1031 = vmul.f32 %v1027, %v1018
      %v1032 = vmul.f32 %v1030, %v1018
      %v1033 = vadd.f32 %v1031, 1e-06
      %v1034 = vadd.f32 %v1032, 1e-06
      %v1035 = vrsqrt.pop %v1033
      %v1036 = vrsqrt.pop %v1034
      %v1037 = vmul.f32 %v1021, %v1035
      %v1038 = vmul.f32 %v1022, %v1036
      %v1039 = vadd.f32 %v924, 1.0
      %v1040 = vlaneseq
      %v1041 = vshrl.u32 %v1040, 7
      %v1042 = vsub.s32 0, %v1041
      %v1043 = vrot.slane %v1039, %v1042
      %1045 = vrot.lane.b32.xlu0 %v1043, 64
      %v1046 = vpop.permute.xlu0 %1045
      %v1048 = vmul.f32 %v1037, %v1046
      %v1049 = vmul.f32 %v1038, %v1046
      %v1050 = vlaneseq
      %v1051 = vshrl.u32 %v1050, 7
      %v1052 = vsub.s32 0, %v1051
      %v1053 = vrot.slane %v924, %v1052
      %v1054 = vadd.f32 %v1048, %v1053
      %v1055 = vadd.f32 %v1049, %v1053
      %v1056 = vsel %vm885, %v702, 0.0
      %1057 = vadd.xlane.f32.xlu0 %v1056
      %v1058 = vpop.xlane.xlu0 %1057
      %v1059 = vmul.f32 %v1058, %v1018
      %v1060 = vsub.f32 %v702, %v1059
      %v1061 = vmul.f32 %v1060, %v1060
      %v1062 = vsel %vm885, %v1061, 0.0
      %1063 = vadd.xlane.f32.xlu0 %v1062
      %v1064 = vpop.xlane.xlu0 %1063
      %v1065 = vmul.f32 %v1064, %v1018
      %v1066 = vadd.f32 %v1065, 1e-06
      %v1067 = vrsqrt.pop %v1066
      %v1068 = vmul.f32 %v1060, %v1067
      %v1069 = vadd.f32 %v967, 1.0
      %v1070 = vlaneseq
      %v1071 = vshrl.u32 %v1070, 7
      %v1072 = vsub.s32 0, %v1071
      %v1073 = vrot.slane %v1069, %v1072
      %1075 = vrot.lane.b32.xlu0 %v1073, 64
      %v1076 = vpop.permute.xlu0 %1075
      %v1078 = vmul.f32 %v1068, %v1076
      %v1079 = vlaneseq
      %v1080 = vshrl.u32 %v1079, 7
      %v1081 = vsub.s32 0, %v1080
      %v1082 = vrot.slane %v967, %v1081
      %v1083 = vadd.f32 %v1078, %v1082
      %v1084 = vpack.c.bf16 %v1055, %v1054
      %v1085 = vld [vmem:[%s5] sm:$0xff]
      %v1086 = vld [vmem:[%s5 + $0x8] sm:$0xff]
      %v1087 = vld [vmem:[%s5 + $0x10] sm:$0xff]
      %v1088 = vld [vmem:[%s5 + $0x18] sm:$0xff]
      %v1089 = vld [vmem:[%s5 + $0x20] sm:$0xff]
      %v1090 = vld [vmem:[%s5 + $0x28] sm:$0xff]
      %v1091 = vld [vmem:[%s5 + $0x30] sm:$0xff]
      %v1092 = vld [vmem:[%s5 + $0x38] sm:$0xff]
      %v1093 = vld [vmem:[%s6] sm:$0x3]
      %v1094 = vunpack.c.l.bf16 %v1093
      %v1096 = vlaneseq
      %v1097 = vshrl.u32 %v1096, 7
      %v1098 = vsub.s32 0, %v1097
      %v1099 = vrot.slane %v1094, %v1098
      %v1100 = vlaneseq
      %v1101 = vshrl.u32 %v1100, 7
      %v1102 = vsub.s32 2, %v1101
      %v1103 = vrot.slane %v1094, %v1102
      %v1106 = vlaneseq
      %v1107 = vshrl.u32 %v1106, 7
      %v1108 = vsub.s32 0, %v1107
      %v1109 = vrot.slane %v1099, %v1108
      %v1110 = vlaneseq
      %v1111 = vshrl.u32 %v1110, 7
      %v1112 = vsub.s32 0, %v1111
      %v1113 = vrot.slane %v1103, %v1112
      %v1122 = vunpack.c.l.b16 %v1085
      %v1123 = vunpack.c.h.b16 %v1085
      %v1124 = vunpack.c.l.b16 %v1086
      %v1125 = vunpack.c.h.b16 %v1086
      %v1126 = vunpack.c.l.b16 %v1087
      %v1127 = vunpack.c.h.b16 %v1087
      %v1128 = vunpack.c.l.b16 %v1088
      %v1129 = vunpack.c.h.b16 %v1088
      %v1130 = vunpack.c.l.b16 %v1089
      %v1131 = vunpack.c.h.b16 %v1089
      %v1132 = vunpack.c.l.b16 %v1090
      %v1133 = vunpack.c.h.b16 %v1090
      %v1134 = vunpack.c.l.b16 %v1091
      %v1135 = vunpack.c.h.b16 %v1091
      %v1136 = vunpack.c.l.b16 %v1092
      %v1137 = vunpack.c.h.b16 %v1092
      %v1138 = vpack.c.b16 %v1124, %v1122
      %v1139 = vpack.c.b16 %v1125, %v1123
      %v1140 = vpack.c.b16 %v1128, %v1126
      %v1141 = vpack.c.b16 %v1129, %v1127
      %v1142 = vpack.c.b16 %v1132, %v1130
      %v1143 = vpack.c.b16 %v1133, %v1131
      %v1144 = vpack.c.b16 %v1136, %v1134
      %v1145 = vpack.c.b16 %v1137, %v1135
      %v1155 = vsel %vm885, %v1084, 0
      %1157 = vmatprep.subr.bf16.mxu0 %v1139
      %1158 = vmatpush1.bf16.msra.mxu0 %v1138
      %1159 = vmatprep.subr.bf16.mxu0 %v1141
      %1160 = vmatpush1.bf16.msra.mxu0 %v1140
      %1161 = vmatprep.subr.bf16.mxu0 %v1143
      %1162 = vmatpush1.bf16.msra.mxu0 %v1142
      %1163 = vmatprep.subr.bf16.mxu0 %v1145
      %1164 = vmatpush1.bf16.msra.mxu0 %v1144
      %1165 = vmatprep.subr.bf16.mxu0 0
      %1166 = vmatpush1.bf16.msra.mxu0 0
      %1167 = vmatprep.subr.bf16.mxu0 0
      %1168 = vmatpush1.bf16.msra.mxu0 0
      %1169 = vmatprep.subr.bf16.mxu0 0
      %1170 = vmatpush1.bf16.msra.mxu0 0
      %1171 = vmatprep.subr.bf16.mxu0 0
      %1172 = vmatpush1.bf16.msra.mxu0 0
      %1173 = vmatprep.subr.bf16.mxu0 0
      %1174 = vmatpush1.bf16.msra.mxu0 0
      %1175 = vmatprep.subr.bf16.mxu0 0
      %1176 = vmatpush1.bf16.msra.mxu0 0
      %1177 = vmatprep.subr.bf16.mxu0 0
      %1178 = vmatpush1.bf16.msra.mxu0 0
      %1179 = vmatprep.subr.bf16.mxu0 0
      %1180 = vmatpush1.bf16.msra.mxu0 0
      %1181 = vmatprep.subr.bf16.mxu0 0
      %1182 = vmatpush1.bf16.msra.mxu0 0
      %1183 = vmatprep.subr.bf16.mxu0 0
      %1184 = vmatpush1.bf16.msra.mxu0 0
      %1185 = vmatprep.subr.bf16.mxu0 0
      %1186 = vmatpush1.bf16.msra.mxu0 0
      %1187 = vmatprep.subr.bf16.mxu0 0
      %1188 = vmatpush1.bf16.msra.mxu0 0
      %1189 = vmatprep.mubr.bf16.mxu0 0
      %1190 = vmatmul.mubr.bf16.gmra.mrb[0].mxu0 %v1155
      %v1191 = vpop.f32.mrb[0].mxu0
      %v1192 = vadd.f32 %v1109, %v1191
      %v1193 = vpop.f32.mrb[0].mxu0
      %v1194 = vadd.f32 %v1113, %v1193
      %v1195 = vpop.f32.mrb[0].mxu0
      %v1196 = vadd.f32 %v1109, %v1195
      %v1197 = vpop.f32.mrb[0].mxu0
      %v1198 = vadd.f32 %v1113, %v1197
      %1199 = vdwg.mxu0
      %v1200 = vpack.c.bf16 %v1083, %v1083
      %v1201 = vld [vmem:[%s7] sm:$0xff]
      %v1202 = vld [vmem:[%s7 + $0x8] sm:$0xff]
      %v1203 = vld [vmem:[%s7 + $0x10] sm:$0xff]
      %v1204 = vld [vmem:[%s7 + $0x18] sm:$0xff]
      %v1205 = vld [vmem:[%s7 + $0x20] sm:$0xff]
      %v1206 = vld [vmem:[%s7 + $0x28] sm:$0xff]
      %v1207 = vld [vmem:[%s7 + $0x30] sm:$0xff]
      %v1208 = vld [vmem:[%s7 + $0x38] sm:$0xff]
      %v1209 = vld [vmem:[%s8] sm:$0x3]
      %v1210 = vunpack.c.l.bf16 %v1209
      %v1212 = vlaneseq
      %v1213 = vshrl.u32 %v1212, 7
      %v1214 = vsub.s32 0, %v1213
      %v1215 = vrot.slane %v1210, %v1214
      %v1216 = vlaneseq
      %v1217 = vshrl.u32 %v1216, 7
      %v1218 = vsub.s32 2, %v1217
      %v1219 = vrot.slane %v1210, %v1218
      %v1222 = vlaneseq
      %v1223 = vshrl.u32 %v1222, 7
      %v1224 = vsub.s32 0, %v1223
      %v1225 = vrot.slane %v1215, %v1224
      %v1226 = vlaneseq
      %v1227 = vshrl.u32 %v1226, 7
      %v1228 = vsub.s32 0, %v1227
      %v1229 = vrot.slane %v1219, %v1228
      %v1238 = vunpack.c.l.b16 %v1201
      %v1239 = vunpack.c.h.b16 %v1201
      %v1240 = vunpack.c.l.b16 %v1202
      %v1241 = vunpack.c.h.b16 %v1202
      %v1242 = vunpack.c.l.b16 %v1203
      %v1243 = vunpack.c.h.b16 %v1203
      %v1244 = vunpack.c.l.b16 %v1204
      %v1245 = vunpack.c.h.b16 %v1204
      %v1246 = vunpack.c.l.b16 %v1205
      %v1247 = vunpack.c.h.b16 %v1205
      %v1248 = vunpack.c.l.b16 %v1206
      %v1249 = vunpack.c.h.b16 %v1206
      %v1250 = vunpack.c.l.b16 %v1207
      %v1251 = vunpack.c.h.b16 %v1207
      %v1252 = vunpack.c.l.b16 %v1208
      %v1253 = vunpack.c.h.b16 %v1208
      %v1254 = vpack.c.b16 %v1240, %v1238
      %v1255 = vpack.c.b16 %v1241, %v1239
      %v1256 = vpack.c.b16 %v1244, %v1242
      %v1257 = vpack.c.b16 %v1245, %v1243
      %v1258 = vpack.c.b16 %v1248, %v1246
      %v1259 = vpack.c.b16 %v1249, %v1247
      %v1260 = vpack.c.b16 %v1252, %v1250
      %v1261 = vpack.c.b16 %v1253, %v1251
      %v1271 = vsel %vm885, %v1200, 0
      %1273 = vmatprep.subr.bf16.mxu0 %v1255
      %1274 = vmatpush1.bf16.msra.mxu0 %v1254
      %1275 = vmatprep.subr.bf16.mxu0 %v1257
      %1276 = vmatpush1.bf16.msra.mxu0 %v1256
      %1277 = vmatprep.subr.bf16.mxu0 %v1259
      %1278 = vmatpush1.bf16.msra.mxu0 %v1258
      %1279 = vmatprep.subr.bf16.mxu0 %v1261
      %1280 = vmatpush1.bf16.msra.mxu0 %v1260
      %1281 = vmatprep.subr.bf16.mxu0 0
      %1282 = vmatpush1.bf16.msra.mxu0 0
      %1283 = vmatprep.subr.bf16.mxu0 0
      %1284 = vmatpush1.bf16.msra.mxu0 0
      %1285 = vmatprep.subr.bf16.mxu0 0
      %1286 = vmatpush1.bf16.msra.mxu0 0
      %1287 = vmatprep.subr.bf16.mxu0 0
      %1288 = vmatpush1.bf16.msra.mxu0 0
      %1289 = vmatprep.subr.bf16.mxu0 0
      %1290 = vmatpush1.bf16.msra.mxu0 0
      %1291 = vmatprep.subr.bf16.mxu0 0
      %1292 = vmatpush1.bf16.msra.mxu0 0
      %1293 = vmatprep.subr.bf16.mxu0 0
      %1294 = vmatpush1.bf16.msra.mxu0 0
      %1295 = vmatprep.subr.bf16.mxu0 0
      %1296 = vmatpush1.bf16.msra.mxu0 0
      %1297 = vmatprep.subr.bf16.mxu0 0
      %1298 = vmatpush1.bf16.msra.mxu0 0
      %1299 = vmatprep.subr.bf16.mxu0 0
      %1300 = vmatpush1.bf16.msra.mxu0 0
      %1301 = vmatprep.subr.bf16.mxu0 0
      %1302 = vmatpush1.bf16.msra.mxu0 0
      %1303 = vmatprep.subr.bf16.mxu0 0
      %1304 = vmatpush1.bf16.msra.mxu0 0
      %1305 = vmatprep.mubr.bf16.mxu0 0
      %1306 = vmatmul.mubr.bf16.gmra.mrb[0].mxu0 %v1271
      %v1307 = vpop.f32.mrb[0].mxu0
      %v1308 = vadd.f32 %v1225, %v1307
      %v1309 = vpop.f32.mrb[0].mxu0
      %v1310 = vadd.f32 %v1229, %v1309
      %v1311 = vpop.f32.mrb[0].mxu0
      %v1312 = vpop.f32.mrb[0].mxu0
      %1313 = vdwg.mxu0
      %v1314 = vld [vmem:[%s2] sm:$0xf]
      %v1315 = vld [vmem:[%s2 + $0x4] sm:$0xf]
      %v1316 = vld [vmem:[%s2 + $0x8] sm:$0xf]
      %v1317 = vunpack.c.l.bf16 %v1314
      %v1318 = vunpack.c.l.bf16 %v1315
      %v1319 = vunpack.c.l.bf16 %v1316
      %s1320 = scalar_lea.vmem %s2, 12
      %v1321 = vld [vmem:[%s1320] sm:$0xf]
      %v1322 = vld [vmem:[%s1320 + $0x4] sm:$0xf]
      %v1323 = vld [vmem:[%s1320 + $0x8] sm:$0xf]
      %v1324 = vunpack.c.l.bf16 %v1321
      %v1325 = vunpack.c.l.bf16 %v1322
      %v1326 = vunpack.c.l.bf16 %v1323
      %s1327 = scalar_lea.vmem %s2, 24
      %v1328 = vld [vmem:[%s1327] sm:$0xf]
      %v1329 = vld [vmem:[%s1327 + $0x4] sm:$0xf]
      %v1330 = vld [vmem:[%s1327 + $0x8] sm:$0xf]
      %v1331 = vunpack.c.l.bf16 %v1328
      %v1332 = vunpack.c.l.bf16 %v1329
      %v1333 = vunpack.c.l.bf16 %v1330
      %v1334 = vld [vmem:[%s9] sm:$0x1]
      %v1335 = vunpack.c.l.bf16 %v1334
      %s1336 = scalar_lea.vmem %s9, 1
      %v1337 = vld [vmem:[%s1336] sm:$0x1]
      %v1338 = vunpack.c.l.bf16 %v1337
      %s1339 = scalar_lea.vmem %s9, 2
      %v1340 = vld [vmem:[%s1339] sm:$0x1]
      %v1341 = vunpack.c.l.bf16 %v1340
      %s1342 = scalar_lea.vmem %s9, 3
      %v1343 = vld [vmem:[%s1342] sm:$0x1]
      %v1344 = vunpack.c.l.bf16 %v1343
      %v1345 = vmul.f32 %v1308, %v1308
      %vm1346 = vcmask 261120
      %v1347 = vsel %vm1346, %v1345, 0.0
      %1348 = vadd.xlane.f32.xlu0 %v1347
      %v1349 = vpop.xlane.xlu0 %1348
      %v1350 = vrcp.pop 32.0
      %v1351 = vmul.f32 %v1349, %v1350
      %v1352 = vadd.f32 %v1351, 1e-06
      %v1353 = vrsqrt.pop %v1352
      %v1354 = vmul.f32 %v1308, %v1353
      %v1355 = vlaneseq
      %v1356 = vshrl.u32 %v1355, 7
      %v1357 = vsub.s32 0, %v1356
      %v1358 = vrot.slane %v1341, %v1357
      %v1359 = vmul.f32 %v1354, %v1358
      %v1360 = vmul.f32 %v1192, %v1192
      %v1361 = vmul.f32 %v1196, %v1196
      %v1362 = vsel %vm1346, %v1360, 0.0
      %1363 = vadd.xlane.f32.xlu0 %v1362
      %v1364 = vpop.xlane.xlu0 %1363
      %v1365 = vsel %vm1346, %v1361, 0.0
      %1366 = vadd.xlane.f32.xlu0 %v1365
      %v1367 = vpop.xlane.xlu0 %1366
      %v1368 = vmul.f32 %v1364, %v1350
      %v1369 = vmul.f32 %v1367, %v1350
      %v1370 = vadd.f32 %v1368, 1e-06
      %v1371 = vadd.f32 %v1369, 1e-06
      %v1372 = vrsqrt.pop %v1370
      %v1373 = vrsqrt.pop %v1371
      %v1374 = vmul.f32 %v1192, %v1372
      %v1375 = vmul.f32 %v1196, %v1373
      %v1376 = vlaneseq
      %v1377 = vshrl.u32 %v1376, 7
      %v1378 = vsub.s32 0, %v1377
      %v1379 = vrot.slane %v1335, %v1378
      %v1380 = vmul.f32 %v1374, %v1379
      %v1381 = vmul.f32 %v1375, %v1379
      %1383 = vrot.lane.b32.xlu0 %v1345, 64
      %v1384 = vpop.permute.xlu0 %1383
      %v1386 = vsel %vm1346, %v1384, 0.0
      %1387 = vadd.xlane.f32.xlu0 %v1386
      %v1388 = vpop.xlane.xlu0 %1387
      %v1389 = vmul.f32 %v1388, %v1350
      %v1390 = vadd.f32 %v1389, 1e-06
      %v1391 = vrsqrt.pop %v1390
      %v1392 = vmul.f32 %v1308, %v1391
      %v1393 = vlaneseq
      %v1394 = vshrl.u32 %v1393, 7
      %v1395 = vsub.s32 0, %v1394
      %v1396 = vrot.slane %v1344, %v1395
      %1398 = vrot.lane.b32.xlu0 %v1396, 64
      %v1399 = vpop.permute.xlu0 %1398
      %v1401 = vmul.f32 %v1392, %v1399
      %1404 = vrot.lane.b32.xlu0 %v1360, 64
      %v1405 = vpop.permute.xlu0 %1404
      %1406 = vrot.lane.b32.xlu0 %v1361, 64
      %v1407 = vpop.permute.xlu0 %1406
      %v1410 = vsel %vm1346, %v1405, 0.0
      %1411 = vadd.xlane.f32.xlu0 %v1410
      %v1412 = vpop.xlane.xlu0 %1411
      %v1413 = vsel %vm1346, %v1407, 0.0
      %1414 = vadd.xlane.f32.xlu0 %v1413
      %v1415 = vpop.xlane.xlu0 %1414
      %v1416 = vmul.f32 %v1412, %v1350
      %v1417 = vmul.f32 %v1415, %v1350
      %v1418 = vadd.f32 %v1416, 1e-06
      %v1419 = vadd.f32 %v1417, 1e-06
      %v1420 = vrsqrt.pop %v1418
      %v1421 = vrsqrt.pop %v1419
      %v1422 = vmul.f32 %v1192, %v1420
      %v1423 = vmul.f32 %v1196, %v1421
      %v1424 = vlaneseq
      %v1425 = vshrl.u32 %v1424, 7
      %v1426 = vsub.s32 0, %v1425
      %v1427 = vrot.slane %v1338, %v1426
      %1429 = vrot.lane.b32.xlu0 %v1427, 64
      %v1430 = vpop.permute.xlu0 %1429
      %v1432 = vmul.f32 %v1422, %v1430
      %v1433 = vmul.f32 %v1423, %v1430
      %v1434 = vmul.f32 %v1359, %v1317
      %v1435 = vmul.f32 %v1380, %v1318
      %v1436 = vmul.f32 %v1381, %v1319
      %1440 = vrot.lane.b32.xlu0 %v1359, 127
      %v1441 = vpop.permute.xlu0 %1440
      %1442 = vrot.lane.b32.xlu0 %v1380, 127
      %v1443 = vpop.permute.xlu0 %1442
      %1444 = vrot.lane.b32.xlu0 %v1381, 127
      %v1445 = vpop.permute.xlu0 %1444
      %1449 = vrot.lane.b32.xlu0 %v1359, 31
      %v1450 = vpop.permute.xlu0 %1449
      %1451 = vrot.lane.b32.xlu0 %v1380, 31
      %v1452 = vpop.permute.xlu0 %1451
      %1453 = vrot.lane.b32.xlu0 %v1381, 31
      %v1454 = vpop.permute.xlu0 %1453
      %vm1458 = vcmask 252928
      %v1459 = vsel %vm1458, %v1441, %v1450
      %v1460 = vsel %vm1458, %v1443, %v1452
      %v1461 = vsel %vm1458, %v1445, %v1454
      %v1462 = vmul.f32 %v1459, %v1324
      %v1463 = vmul.f32 %v1460, %v1325
      %v1464 = vmul.f32 %v1461, %v1326
      %v1465 = vadd.f32 %v1434, %v1462
      %v1466 = vadd.f32 %v1435, %v1463
      %v1467 = vadd.f32 %v1436, %v1464
      %1468 = vrot.lane.b32.xlu0 %v1359, 97
      %v1469 = vpop.permute.xlu0 %1468
      %1470 = vrot.lane.b32.xlu0 %v1380, 97
      %v1471 = vpop.permute.xlu0 %1470
      %1472 = vrot.lane.b32.xlu0 %v1381, 97
      %v1473 = vpop.permute.xlu0 %1472
      %1477 = vrot.lane.b32.xlu0 %v1359, 1
      %v1478 = vpop.permute.xlu0 %1477
      %1479 = vrot.lane.b32.xlu0 %v1380, 1
      %v1480 = vpop.permute.xlu0 %1479
      %1481 = vrot.lane.b32.xlu0 %v1381, 1
      %v1482 = vpop.permute.xlu0 %1481
      %vm1486 = vcmask 7168
      %v1487 = vsel %vm1486, %v1469, %v1478
      %v1488 = vsel %vm1486, %v1471, %v1480
      %v1489 = vsel %vm1486, %v1473, %v1482
      %v1490 = vmul.f32 %v1487, %v1331
      %v1491 = vmul.f32 %v1488, %v1332
      %v1492 = vmul.f32 %v1489, %v1333
      %v1493 = vadd.f32 %v1465, %v1490
      %v1494 = vadd.f32 %v1466, %v1491
      %v1495 = vadd.f32 %v1467, %v1492
      %1499 = vrot.lane.b32.xlu0 %v1317, 64
      %v1500 = vpop.permute.xlu0 %1499
      %1501 = vrot.lane.b32.xlu0 %v1318, 64
      %v1502 = vpop.permute.xlu0 %1501
      %1503 = vrot.lane.b32.xlu0 %v1319, 64
      %v1504 = vpop.permute.xlu0 %1503
      %v1508 = vmul.f32 %v1401, %v1500
      %v1509 = vmul.f32 %v1432, %v1502
      %v1510 = vmul.f32 %v1433, %v1504
      %1514 = vrot.lane.b32.xlu0 %v1401, 63
      %v1515 = vpop.permute.xlu0 %1514
      %1516 = vrot.lane.b32.xlu0 %v1432, 63
      %v1517 = vpop.permute.xlu0 %1516
      %1518 = vrot.lane.b32.xlu0 %v1433, 63
      %v1519 = vpop.permute.xlu0 %1518
      %1523 = vrot.lane.b32.xlu0 %v1401, 95
      %v1524 = vpop.permute.xlu0 %1523
      %1525 = vrot.lane.b32.xlu0 %v1432, 95
      %v1526 = vpop.permute.xlu0 %1525
      %1527 = vrot.lane.b32.xlu0 %v1433, 95
      %v1528 = vpop.permute.xlu0 %1527
      %v1532 = vsel %vm1458, %v1515, %v1524
      %v1533 = vsel %vm1458, %v1517, %v1526
      %v1534 = vsel %vm1458, %v1519, %v1528
      %v1535 = vmul.f32 %v1532, %v1324
      %v1536 = vmul.f32 %v1533, %v1325
      %v1537 = vmul.f32 %v1534, %v1326
      %1541 = vrot.lane.b32.xlu0 %v1535, 64
      %v1542 = vpop.permute.xlu0 %1541
      %1543 = vrot.lane.b32.xlu0 %v1536, 64
      %v1544 = vpop.permute.xlu0 %1543
      %1545 = vrot.lane.b32.xlu0 %v1537, 64
      %v1546 = vpop.permute.xlu0 %1545
      %v1550 = vadd.f32 %v1508, %v1542
      %v1551 = vadd.f32 %v1509, %v1544
      %v1552 = vadd.f32 %v1510, %v1546
      %1553 = vrot.lane.b32.xlu0 %v1401, 33
      %v1554 = vpop.permute.xlu0 %1553
      %1555 = vrot.lane.b32.xlu0 %v1432, 33
      %v1556 = vpop.permute.xlu0 %1555
      %1557 = vrot.lane.b32.xlu0 %v1433, 33
      %v1558 = vpop.permute.xlu0 %1557
      %1562 = vrot.lane.b32.xlu0 %v1401, 65
      %v1563 = vpop.permute.xlu0 %1562
      %1564 = vrot.lane.b32.xlu0 %v1432, 65
      %v1565 = vpop.permute.xlu0 %1564
      %1566 = vrot.lane.b32.xlu0 %v1433, 65
      %v1567 = vpop.permute.xlu0 %1566
      %v1571 = vsel %vm1486, %v1554, %v1563
      %v1572 = vsel %vm1486, %v1556, %v1565
      %v1573 = vsel %vm1486, %v1558, %v1567
      %v1574 = vmul.f32 %v1571, %v1331
      %v1575 = vmul.f32 %v1572, %v1332
      %v1576 = vmul.f32 %v1573, %v1333
      %1580 = vrot.lane.b32.xlu0 %v1574, 64
      %v1581 = vpop.permute.xlu0 %1580
      %1582 = vrot.lane.b32.xlu0 %v1575, 64
      %v1583 = vpop.permute.xlu0 %1582
      %1584 = vrot.lane.b32.xlu0 %v1576, 64
      %v1585 = vpop.permute.xlu0 %1584
      %v1589 = vadd.f32 %v1550, %v1581
      %v1590 = vadd.f32 %v1551, %v1583
      %v1591 = vadd.f32 %v1552, %v1585
      %v1592 = vpack.c.bf16 %v1494, %v1493
      %v1593 = vpack.c.bf16 %v1495, %v1495
      %v1594 = vpack.c.bf16 %v1590, %v1589
      %v1595 = vpack.c.bf16 %v1591, %v1591
      %1598 = vrot.lane.b32.xlu0 %v1594, 64
      %v1599 = vpop.permute.xlu0 %1598
      %1600 = vrot.lane.b32.xlu0 %v1595, 64
      %v1601 = vpop.permute.xlu0 %1600
      %v1603 = vsel %vm1346, %v1592, 0
      %v1606 = vsel %vm1346, %v1593, 0
      %v1609 = vsel %vm1346, %v1599, 0
      %v1612 = vsel %vm1346, %v1601, 0
      %1614 = vmatprep.subr.bf16.mxu0 0
      %1615 = vmatpush1.bf16.xpose.msra.mxu0 %v1609
      %1616 = vmatprep.subr.bf16.mxu0 0
      %1617 = vmatpush1.bf16.xpose.msra.mxu0 %v1612
      %1618 = vmatprep.subr.bf16.mxu0 0
      %1619 = vmatpush1.bf16.xpose.msra.mxu0 0
      %1620 = vmatprep.subr.bf16.mxu0 0
      %1621 = vmatpush1.bf16.xpose.msra.mxu0 0
      %1622 = vmatprep.subr.bf16.mxu0 0
      %1623 = vmatpush1.bf16.xpose.msra.mxu0 0
      %1624 = vmatprep.subr.bf16.mxu0 0
      %1625 = vmatpush1.bf16.xpose.msra.mxu0 0
      %1626 = vmatprep.subr.bf16.mxu0 0
      %1627 = vmatpush1.bf16.xpose.msra.mxu0 0
      %1628 = vmatprep.subr.bf16.mxu0 0
      %1629 = vmatpush1.bf16.xpose.msra.mxu0 0
      %1630 = vmatprep.subr.bf16.mxu0 0
      %1631 = vmatpush1.bf16.xpose.msra.mxu0 0
      %1632 = vmatprep.subr.bf16.mxu0 0
      %1633 = vmatpush1.bf16.xpose.msra.mxu0 0
      %1634 = vmatprep.subr.bf16.mxu0 0
      %1635 = vmatpush1.bf16.xpose.msra.mxu0 0
      %1636 = vmatprep.subr.bf16.mxu0 0
      %1637 = vmatpush1.bf16.xpose.msra.mxu0 0
      %1638 = vmatprep.subr.bf16.mxu0 0
      %1639 = vmatpush1.bf16.xpose.msra.mxu0 0
      %1640 = vmatprep.subr.bf16.mxu0 0
      %1641 = vmatpush1.bf16.xpose.msra.mxu0 0
      %1642 = vmatprep.subr.bf16.mxu0 0
      %1643 = vmatpush1.bf16.xpose.msra.mxu0 0
      %1644 = vmatprep.subr.bf16.mxu0 0
      %1645 = vmatpush1.bf16.xpose.msra.mxu0 0
      %1646 = vmatprep.mubr.bf16.mxu0 0
      %1647 = vmatmul.mubr.bf16.gmra.mrb[0].mxu0 %v1603
      %v1648 = vpop.f32.mrb[0].mxu0
      %v1649 = vadd.f32 0.0, %v1648
      %v1650 = vpop.f32.mrb[0].mxu0
      %v1651 = vpop.f32.mrb[0].mxu0
      %v1652 = vadd.f32 0.0, %v1651
      %v1653 = vpop.f32.mrb[0].mxu0
      %1654 = vmatprep.mubr.bf16.mxu0 0
      %1655 = vmatmul.mubr.bf16.gmra.mrb[0].mxu0 %v1606
      %v1656 = vpop.f32.mrb[0].mxu0
      %v1657 = vadd.f32 0.0, %v1656
      %v1658 = vpop.f32.mrb[0].mxu0
      %v1659 = vpop.f32.mrb[0].mxu0
      %v1660 = vpop.f32.mrb[0].mxu0
      %1661 = vdwg.mxu0
      %v1662 = vmul.f32 %v1649, 0.17677669
      %v1663 = vmul.f32 %v1652, 0.17677669
      %v1664 = vmul.f32 %v1657, 0.17677669
      %vm1665 = vcmask 195584
      %v1666 = vsel %vm1665, %v1662, -inf
      %1667 = vmax.xlane.f32.xlu0 %v1666
      %v1668 = vpop.xlane.xlu0 %1667
      %v1669 = vsel %vm1665, %v1663, -inf
      %1670 = vmax.xlane.f32.xlu0 %v1669
      %v1671 = vpop.xlane.xlu0 %1670
      %v1672 = vsel %vm1665, %v1664, -inf
      %1673 = vmax.xlane.f32.xlu0 %v1672
      %v1674 = vpop.xlane.xlu0 %1673
      %v1675 = vsub.f32 %v1662, %v1668
      %v1676 = vsub.f32 %v1663, %v1671
      %v1677 = vsub.f32 %v1664, %v1674
      %v1678 = vmul.f32 %v1675, 1.442695
      %v1679 = vpow.pop %v1678
      %v1680 = vmul.f32 %v1676, 1.442695
      %v1681 = vpow.pop %v1680
      %v1682 = vmul.f32 %v1677, 1.442695
      %v1683 = vpow.pop %v1682
      %v1684 = vsel %vm1665, %v1679, 0.0
      %1685 = vadd.xlane.f32.xlu0 %v1684
      %v1686 = vpop.xlane.xlu0 %1685
      %v1687 = vsel %vm1665, %v1681, 0.0
      %1688 = vadd.xlane.f32.xlu0 %v1687
      %v1689 = vpop.xlane.xlu0 %1688
      %v1690 = vsel %vm1665, %v1683, 0.0
      %1691 = vadd.xlane.f32.xlu0 %v1690
      %v1692 = vpop.xlane.xlu0 %1691
      %v1693 = vrcp.pop %v1686
      %v1694 = vrcp.pop %v1689
      %v1695 = vrcp.pop %v1692
      %v1696 = vpack.c.bf16 %v1681, %v1679
      %v1697 = vpack.c.bf16 %v1683, %v1683
      %v1698 = vpack.c.bf16 %v1194, %v1310
      %v1699 = vpack.c.bf16 %v1198, %v1198
      %v1701 = vsel %vm1665, %v1696, 0
      %v1704 = vsel %vm1665, %v1697, 0
      %vm1706 = vcmask 1043456
      %v1708 = vsel %vm1706, %v1699, 0
      %1710 = vmatprep.subr.bf16.mxu0 0
      %1711 = vmatpush1.bf16.msra.mxu0 %v1698
      %1712 = vmatprep.subr.bf16.mxu0 0
      %1713 = vmatpush1.bf16.msra.mxu0 %v1708
      %1714 = vmatprep.subr.bf16.mxu0 0
      %1715 = vmatpush1.bf16.msra.mxu0 0
      %1716 = vmatprep.subr.bf16.mxu0 0
      %1717 = vmatpush1.bf16.msra.mxu0 0
      %1718 = vmatprep.subr.bf16.mxu0 0
      %1719 = vmatpush1.bf16.msra.mxu0 0
      %1720 = vmatprep.subr.bf16.mxu0 0
      %1721 = vmatpush1.bf16.msra.mxu0 0
      %1722 = vmatprep.subr.bf16.mxu0 0
      %1723 = vmatpush1.bf16.msra.mxu0 0
      %1724 = vmatprep.subr.bf16.mxu0 0
      %1725 = vmatpush1.bf16.msra.mxu0 0
      %1726 = vmatprep.subr.bf16.mxu0 0
      %1727 = vmatpush1.bf16.msra.mxu0 0
      %1728 = vmatprep.subr.bf16.mxu0 0
      %1729 = vmatpush1.bf16.msra.mxu0 0
      %1730 = vmatprep.subr.bf16.mxu0 0
      %1731 = vmatpush1.bf16.msra.mxu0 0
      %1732 = vmatprep.subr.bf16.mxu0 0
      %1733 = vmatpush1.bf16.msra.mxu0 0
      %1734 = vmatprep.subr.bf16.mxu0 0
      %1735 = vmatpush1.bf16.msra.mxu0 0
      %1736 = vmatprep.subr.bf16.mxu0 0
      %1737 = vmatpush1.bf16.msra.mxu0 0
      %1738 = vmatprep.subr.bf16.mxu0 0
      %1739 = vmatpush1.bf16.msra.mxu0 0
      %1740 = vmatprep.subr.bf16.mxu0 0
      %1741 = vmatpush1.bf16.msra.mxu0 0
      %1742 = vmatprep.mubr.bf16.mxu0 0
      %1743 = vmatmul.mubr.bf16.gmra.mrb[0].mxu0 %v1701
      %v1744 = vpop.f32.mrb[0].mxu0
      %v1745 = vadd.f32 0.0, %v1744
      %v1746 = vpop.f32.mrb[0].mxu0
      %v1747 = vpop.f32.mrb[0].mxu0
      %v1748 = vadd.f32 0.0, %v1747
      %v1749 = vpop.f32.mrb[0].mxu0
      %1750 = vmatprep.mubr.bf16.mxu0 0
      %1751 = vmatmul.mubr.bf16.gmra.mrb[0].mxu0 %v1704
      %v1752 = vpop.f32.mrb[0].mxu0
      %v1753 = vadd.f32 0.0, %v1752
      %v1754 = vpop.f32.mrb[0].mxu0
      %v1755 = vpop.f32.mrb[0].mxu0
      %v1756 = vpop.f32.mrb[0].mxu0
      %1757 = vdwg.mxu0
      %v1758 = vmul.f32 %v1745, %v1693
      %v1759 = vmul.f32 %v1748, %v1694
      %v1760 = vmul.f32 %v1753, %v1695
      %1761 = vrot.lane.b32.xlu0 %v1345, 96
      %v1762 = vpop.permute.xlu0 %1761
      %v1764 = vsel %vm1346, %v1762, 0.0
      %1765 = vadd.xlane.f32.xlu0 %v1764
      %v1766 = vpop.xlane.xlu0 %1765
      %v1767 = vmul.f32 %v1766, %v1350
      %v1768 = vadd.f32 %v1767, 1e-06
      %v1769 = vrsqrt.pop %v1768
      %v1770 = vmul.f32 %v1308, %v1769
      %1772 = vrot.lane.b32.xlu0 %v1358, 32
      %v1773 = vpop.permute.xlu0 %1772
      %v1775 = vmul.f32 %v1770, %v1773
      %1776 = vrot.lane.b32.xlu0 %v1360, 96
      %v1777 = vpop.permute.xlu0 %1776
      %1778 = vrot.lane.b32.xlu0 %v1361, 96
      %v1779 = vpop.permute.xlu0 %1778
      %v1782 = vsel %vm1346, %v1777, 0.0
      %1783 = vadd.xlane.f32.xlu0 %v1782
      %v1784 = vpop.xlane.xlu0 %1783
      %v1785 = vsel %vm1346, %v1779, 0.0
      %1786 = vadd.xlane.f32.xlu0 %v1785
      %v1787 = vpop.xlane.xlu0 %1786
      %v1788 = vmul.f32 %v1784, %v1350
      %v1789 = vmul.f32 %v1787, %v1350
      %v1790 = vadd.f32 %v1788, 1e-06
      %v1791 = vadd.f32 %v1789, 1e-06
      %v1792 = vrsqrt.pop %v1790
      %v1793 = vrsqrt.pop %v1791
      %v1794 = vmul.f32 %v1192, %v1792
      %v1795 = vmul.f32 %v1196, %v1793
      %1797 = vrot.lane.b32.xlu0 %v1379, 32
      %v1798 = vpop.permute.xlu0 %1797
      %v1800 = vmul.f32 %v1794, %v1798
      %v1801 = vmul.f32 %v1795, %v1798
      %1802 = vrot.lane.b32.xlu0 %v1345, 32
      %v1803 = vpop.permute.xlu0 %1802
      %v1805 = vsel %vm1346, %v1803, 0.0
      %1806 = vadd.xlane.f32.xlu0 %v1805
      %v1807 = vpop.xlane.xlu0 %1806
      %v1808 = vmul.f32 %v1807, %v1350
      %v1809 = vadd.f32 %v1808, 1e-06
      %v1810 = vrsqrt.pop %v1809
      %v1811 = vmul.f32 %v1308, %v1810
      %1812 = vrot.lane.b32.xlu0 %v1396, 96
      %v1813 = vpop.permute.xlu0 %1812
      %v1815 = vmul.f32 %v1811, %v1813
      %1816 = vrot.lane.b32.xlu0 %v1360, 32
      %v1817 = vpop.permute.xlu0 %1816
      %1818 = vrot.lane.b32.xlu0 %v1361, 32
      %v1819 = vpop.permute.xlu0 %1818
      %v1822 = vsel %vm1346, %v1817, 0.0
      %1823 = vadd.xlane.f32.xlu0 %v1822
      %v1824 = vpop.xlane.xlu0 %1823
      %v1825 = vsel %vm1346, %v1819, 0.0
      %1826 = vadd.xlane.f32.xlu0 %v1825
      %v1827 = vpop.xlane.xlu0 %1826
      %v1828 = vmul.f32 %v1824, %v1350
      %v1829 = vmul.f32 %v1827, %v1350
      %v1830 = vadd.f32 %v1828, 1e-06
      %v1831 = vadd.f32 %v1829, 1e-06
      %v1832 = vrsqrt.pop %v1830
      %v1833 = vrsqrt.pop %v1831
      %v1834 = vmul.f32 %v1192, %v1832
      %v1835 = vmul.f32 %v1196, %v1833
      %1836 = vrot.lane.b32.xlu0 %v1427, 96
      %v1837 = vpop.permute.xlu0 %1836
      %v1839 = vmul.f32 %v1834, %v1837
      %v1840 = vmul.f32 %v1835, %v1837
      %1841 = vrot.lane.b32.xlu0 %v1317, 32
      %v1842 = vpop.permute.xlu0 %1841
      %1843 = vrot.lane.b32.xlu0 %v1318, 32
      %v1844 = vpop.permute.xlu0 %1843
      %1845 = vrot.lane.b32.xlu0 %v1319, 32
      %v1846 = vpop.permute.xlu0 %1845
      %v1850 = vmul.f32 %v1775, %v1842
      %v1851 = vmul.f32 %v1800, %v1844
      %v1852 = vmul.f32 %v1801, %v1846
      %1856 = vrot.lane.b32.xlu0 %v1775, 95
      %v1857 = vpop.permute.xlu0 %1856
      %1858 = vrot.lane.b32.xlu0 %v1800, 95
      %v1859 = vpop.permute.xlu0 %1858
      %1860 = vrot.lane.b32.xlu0 %v1801, 95
      %v1861 = vpop.permute.xlu0 %1860
      %1865 = vrot.lane.b32.xlu0 %v1775, 127
      %v1866 = vpop.permute.xlu0 %1865
      %1867 = vrot.lane.b32.xlu0 %v1800, 127
      %v1868 = vpop.permute.xlu0 %1867
      %1869 = vrot.lane.b32.xlu0 %v1801, 127
      %v1870 = vpop.permute.xlu0 %1869
      %v1874 = vsel %vm1458, %v1857, %v1866
      %v1875 = vsel %vm1458, %v1859, %v1868
      %v1876 = vsel %vm1458, %v1861, %v1870
      %v1877 = vmul.f32 %v1874, %v1324
      %v1878 = vmul.f32 %v1875, %v1325
      %v1879 = vmul.f32 %v1876, %v1326
      %1883 = vrot.lane.b32.xlu0 %v1877, 32
      %v1884 = vpop.permute.xlu0 %1883
      %1885 = vrot.lane.b32.xlu0 %v1878, 32
      %v1886 = vpop.permute.xlu0 %1885
      %1887 = vrot.lane.b32.xlu0 %v1879, 32
      %v1888 = vpop.permute.xlu0 %1887
      %v1892 = vadd.f32 %v1850, %v1884
      %v1893 = vadd.f32 %v1851, %v1886
      %v1894 = vadd.f32 %v1852, %v1888
      %1895 = vrot.lane.b32.xlu0 %v1775, 65
      %v1896 = vpop.permute.xlu0 %1895
      %1897 = vrot.lane.b32.xlu0 %v1800, 65
      %v1898 = vpop.permute.xlu0 %1897
      %1899 = vrot.lane.b32.xlu0 %v1801, 65
      %v1900 = vpop.permute.xlu0 %1899
      %1904 = vrot.lane.b32.xlu0 %v1775, 97
      %v1905 = vpop.permute.xlu0 %1904
      %1906 = vrot.lane.b32.xlu0 %v1800, 97
      %v1907 = vpop.permute.xlu0 %1906
      %1908 = vrot.lane.b32.xlu0 %v1801, 97
      %v1909 = vpop.permute.xlu0 %1908
      %v1913 = vsel %vm1486, %v1896, %v1905
      %v1914 = vsel %vm1486, %v1898, %v1907
      %v1915 = vsel %vm1486, %v1900, %v1909
      %v1916 = vmul.f32 %v1913, %v1331
      %v1917 = vmul.f32 %v1914, %v1332
      %v1918 = vmul.f32 %v1915, %v1333
      %1922 = vrot.lane.b32.xlu0 %v1916, 32
      %v1923 = vpop.permute.xlu0 %1922
      %1924 = vrot.lane.b32.xlu0 %v1917, 32
      %v1925 = vpop.permute.xlu0 %1924
      %1926 = vrot.lane.b32.xlu0 %v1918, 32
      %v1927 = vpop.permute.xlu0 %1926
      %v1931 = vadd.f32 %v1892, %v1923
      %v1932 = vadd.f32 %v1893, %v1925
      %v1933 = vadd.f32 %v1894, %v1927
      %1934 = vrot.lane.b32.xlu0 %v1317, 96
      %v1935 = vpop.permute.xlu0 %1934
      %1936 = vrot.lane.b32.xlu0 %v1318, 96
      %v1937 = vpop.permute.xlu0 %1936
      %1938 = vrot.lane.b32.xlu0 %v1319, 96
      %v1939 = vpop.permute.xlu0 %1938
      %v1943 = vmul.f32 %v1815, %v1935
      %v1944 = vmul.f32 %v1839, %v1937
      %v1945 = vmul.f32 %v1840, %v1939
      %1949 = vrot.lane.b32.xlu0 %v1815, 31
      %v1950 = vpop.permute.xlu0 %1949
      %1951 = vrot.lane.b32.xlu0 %v1839, 31
      %v1952 = vpop.permute.xlu0 %1951
      %1953 = vrot.lane.b32.xlu0 %v1840, 31
      %v1954 = vpop.permute.xlu0 %1953
      %1958 = vrot.lane.b32.xlu0 %v1815, 63
      %v1959 = vpop.permute.xlu0 %1958
      %1960 = vrot.lane.b32.xlu0 %v1839, 63
      %v1961 = vpop.permute.xlu0 %1960
      %1962 = vrot.lane.b32.xlu0 %v1840, 63
      %v1963 = vpop.permute.xlu0 %1962
      %v1967 = vsel %vm1458, %v1950, %v1959
      %v1968 = vsel %vm1458, %v1952, %v1961
      %v1969 = vsel %vm1458, %v1954, %v1963
      %v1970 = vmul.f32 %v1967, %v1324
      %v1971 = vmul.f32 %v1968, %v1325
      %v1972 = vmul.f32 %v1969, %v1326
      %1976 = vrot.lane.b32.xlu0 %v1970, 96
      %v1977 = vpop.permute.xlu0 %1976
      %1978 = vrot.lane.b32.xlu0 %v1971, 96
      %v1979 = vpop.permute.xlu0 %1978
      %1980 = vrot.lane.b32.xlu0 %v1972, 96
      %v1981 = vpop.permute.xlu0 %1980
      %v1985 = vadd.f32 %v1943, %v1977
      %v1986 = vadd.f32 %v1944, %v1979
      %v1987 = vadd.f32 %v1945, %v1981
      %1988 = vrot.lane.b32.xlu0 %v1815, 1
      %v1989 = vpop.permute.xlu0 %1988
      %1990 = vrot.lane.b32.xlu0 %v1839, 1
      %v1991 = vpop.permute.xlu0 %1990
      %1992 = vrot.lane.b32.xlu0 %v1840, 1
      %v1993 = vpop.permute.xlu0 %1992
      %1997 = vrot.lane.b32.xlu0 %v1815, 33
      %v1998 = vpop.permute.xlu0 %1997
      %1999 = vrot.lane.b32.xlu0 %v1839, 33
      %v2000 = vpop.permute.xlu0 %1999
      %2001 = vrot.lane.b32.xlu0 %v1840, 33
      %v2002 = vpop.permute.xlu0 %2001
      %v2006 = vsel %vm1486, %v1989, %v1998
      %v2007 = vsel %vm1486, %v1991, %v2000
      %v2008 = vsel %vm1486, %v1993, %v2002
      %v2009 = vmul.f32 %v2006, %v1331
      %v2010 = vmul.f32 %v2007, %v1332
      %v2011 = vmul.f32 %v2008, %v1333
      %2015 = vrot.lane.b32.xlu0 %v2009, 96
      %v2016 = vpop.permute.xlu0 %2015
      %2017 = vrot.lane.b32.xlu0 %v2010, 96
      %v2018 = vpop.permute.xlu0 %2017
      %2019 = vrot.lane.b32.xlu0 %v2011, 96
      %v2020 = vpop.permute.xlu0 %2019
      %v2024 = vadd.f32 %v1985, %v2016
      %v2025 = vadd.f32 %v1986, %v2018
      %v2026 = vadd.f32 %v1987, %v2020
      %v2027 = vpack.c.bf16 %v1932, %v1931
      %v2028 = vpack.c.bf16 %v1933, %v1933
      %v2029 = vpack.c.bf16 %v2025, %v2024
      %v2030 = vpack.c.bf16 %v2026, %v2026
      %2033 = vrot.lane.b32.xlu0 %v2027, 96
      %v2034 = vpop.permute.xlu0 %2033
      %2035 = vrot.lane.b32.xlu0 %v2028, 96
      %v2036 = vpop.permute.xlu0 %2035
      %2039 = vrot.lane.b32.xlu0 %v2029, 32
      %v2040 = vpop.permute.xlu0 %2039
      %2041 = vrot.lane.b32.xlu0 %v2030, 32
      %v2042 = vpop.permute.xlu0 %2041
      %v2044 = vsel %vm1346, %v2034, 0
      %v2047 = vsel %vm1346, %v2036, 0
      %v2050 = vsel %vm1346, %v2040, 0
      %v2053 = vsel %vm1346, %v2042, 0
      %2055 = vmatprep.subr.bf16.mxu0 0
      %2056 = vmatpush1.bf16.xpose.msra.mxu0 %v2050
      %2057 = vmatprep.subr.bf16.mxu0 0
      %2058 = vmatpush1.bf16.xpose.msra.mxu0 %v2053
      %2059 = vmatprep.subr.bf16.mxu0 0
      %2060 = vmatpush1.bf16.xpose.msra.mxu0 0
      %2061 = vmatprep.subr.bf16.mxu0 0
      %2062 = vmatpush1.bf16.xpose.msra.mxu0 0
      %2063 = vmatprep.subr.bf16.mxu0 0
      %2064 = vmatpush1.bf16.xpose.msra.mxu0 0
      %2065 = vmatprep.subr.bf16.mxu0 0
      %2066 = vmatpush1.bf16.xpose.msra.mxu0 0
      %2067 = vmatprep.subr.bf16.mxu0 0
      %2068 = vmatpush1.bf16.xpose.msra.mxu0 0
      %2069 = vmatprep.subr.bf16.mxu0 0
      %2070 = vmatpush1.bf16.xpose.msra.mxu0 0
      %2071 = vmatprep.subr.bf16.mxu0 0
      %2072 = vmatpush1.bf16.xpose.msra.mxu0 0
      %2073 = vmatprep.subr.bf16.mxu0 0
      %2074 = vmatpush1.bf16.xpose.msra.mxu0 0
      %2075 = vmatprep.subr.bf16.mxu0 0
      %2076 = vmatpush1.bf16.xpose.msra.mxu0 0
      %2077 = vmatprep.subr.bf16.mxu0 0
      %2078 = vmatpush1.bf16.xpose.msra.mxu0 0
      %2079 = vmatprep.subr.bf16.mxu0 0
      %2080 = vmatpush1.bf16.xpose.msra.mxu0 0
      %2081 = vmatprep.subr.bf16.mxu0 0
      %2082 = vmatpush1.bf16.xpose.msra.mxu0 0
      %2083 = vmatprep.subr.bf16.mxu0 0
      %2084 = vmatpush1.bf16.xpose.msra.mxu0 0
      %2085 = vmatprep.subr.bf16.mxu0 0
      %2086 = vmatpush1.bf16.xpose.msra.mxu0 0
      %2087 = vmatprep.mubr.bf16.mxu0 0
      %2088 = vmatmul.mubr.bf16.gmra.mrb[0].mxu0 %v2044
      %v2089 = vpop.f32.mrb[0].mxu0
      %v2090 = vadd.f32 0.0, %v2089
      %v2091 = vpop.f32.mrb[0].mxu0
      %v2092 = vpop.f32.mrb[0].mxu0
      %v2093 = vadd.f32 0.0, %v2092
      %v2094 = vpop.f32.mrb[0].mxu0
      %2095 = vmatprep.mubr.bf16.mxu0 0
      %2096 = vmatmul.mubr.bf16.gmra.mrb[0].mxu0 %v2047
      %v2097 = vpop.f32.mrb[0].mxu0
      %v2098 = vadd.f32 0.0, %v2097
      %v2099 = vpop.f32.mrb[0].mxu0
      %v2100 = vpop.f32.mrb[0].mxu0
      %v2101 = vpop.f32.mrb[0].mxu0
      %2102 = vdwg.mxu0
      %v2103 = vmul.f32 %v2090, 0.17677669
      %v2104 = vmul.f32 %v2093, 0.17677669
      %v2105 = vmul.f32 %v2098, 0.17677669
      %v2106 = vsel %vm1665, %v2103, -inf
      %2107 = vmax.xlane.f32.xlu0 %v2106
      %v2108 = vpop.xlane.xlu0 %2107
      %v2109 = vsel %vm1665, %v2104, -inf
      %2110 = vmax.xlane.f32.xlu0 %v2109
      %v2111 = vpop.xlane.xlu0 %2110
      %v2112 = vsel %vm1665, %v2105, -inf
      %2113 = vmax.xlane.f32.xlu0 %v2112
      %v2114 = vpop.xlane.xlu0 %2113
      %v2115 = vsub.f32 %v2103, %v2108
      %v2116 = vsub.f32 %v2104, %v2111
      %v2117 = vsub.f32 %v2105, %v2114
      %v2118 = vmul.f32 %v2115, 1.442695
      %v2119 = vpow.pop %v2118
      %v2120 = vmul.f32 %v2116, 1.442695
      %v2121 = vpow.pop %v2120
      %v2122 = vmul.f32 %v2117, 1.442695
      %v2123 = vpow.pop %v2122
      %v2124 = vsel %vm1665, %v2119, 0.0
      %2125 = vadd.xlane.f32.xlu0 %v2124
      %v2126 = vpop.xlane.xlu0 %2125
      %v2127 = vsel %vm1665, %v2121, 0.0
      %2128 = vadd.xlane.f32.xlu0 %v2127
      %v2129 = vpop.xlane.xlu0 %2128
      %v2130 = vsel %vm1665, %v2123, 0.0
      %2131 = vadd.xlane.f32.xlu0 %v2130
      %v2132 = vpop.xlane.xlu0 %2131
      %v2133 = vrcp.pop %v2126
      %v2134 = vrcp.pop %v2129
      %v2135 = vrcp.pop %v2132
      %v2136 = vpack.c.bf16 %v2121, %v2119
      %v2137 = vpack.c.bf16 %v2123, %v2123
      %2140 = vrot.lane.b32.xlu0 %v1698, 96
      %v2141 = vpop.permute.xlu0 %2140
      %2142 = vrot.lane.b32.xlu0 %v1699, 96
      %v2143 = vpop.permute.xlu0 %2142
      %v2146 = vsel %vm1665, %v2136, 0
      %v2149 = vsel %vm1665, %v2137, 0
      %v2152 = vsel %vm1706, %v2143, 0
      %2154 = vmatprep.subr.bf16.mxu0 0
      %2155 = vmatpush1.bf16.msra.mxu0 %v2141
      %2156 = vmatprep.subr.bf16.mxu0 0
      %2157 = vmatpush1.bf16.msra.mxu0 %v2152
      %2158 = vmatprep.subr.bf16.mxu0 0
      %2159 = vmatpush1.bf16.msra.mxu0 0
      %2160 = vmatprep.subr.bf16.mxu0 0
      %2161 = vmatpush1.bf16.msra.mxu0 0
      %2162 = vmatprep.subr.bf16.mxu0 0
      %2163 = vmatpush1.bf16.msra.mxu0 0
      %2164 = vmatprep.subr.bf16.mxu0 0
      %2165 = vmatpush1.bf16.msra.mxu0 0
      %2166 = vmatprep.subr.bf16.mxu0 0
      %2167 = vmatpush1.bf16.msra.mxu0 0
      %2168 = vmatprep.subr.bf16.mxu0 0
      %2169 = vmatpush1.bf16.msra.mxu0 0
      %2170 = vmatprep.subr.bf16.mxu0 0
      %2171 = vmatpush1.bf16.msra.mxu0 0
      %2172 = vmatprep.subr.bf16.mxu0 0
      %2173 = vmatpush1.bf16.msra.mxu0 0
      %2174 = vmatprep.subr.bf16.mxu0 0
      %2175 = vmatpush1.bf16.msra.mxu0 0
      %2176 = vmatprep.subr.bf16.mxu0 0
      %2177 = vmatpush1.bf16.msra.mxu0 0
      %2178 = vmatprep.subr.bf16.mxu0 0
      %2179 = vmatpush1.bf16.msra.mxu0 0
      %2180 = vmatprep.subr.bf16.mxu0 0
      %2181 = vmatpush1.bf16.msra.mxu0 0
      %2182 = vmatprep.subr.bf16.mxu0 0
      %2183 = vmatpush1.bf16.msra.mxu0 0
      %2184 = vmatprep.subr.bf16.mxu0 0
      %2185 = vmatpush1.bf16.msra.mxu0 0
      %2186 = vmatprep.mubr.bf16.mxu0 0
      %2187 = vmatmul.mubr.bf16.gmra.mrb[0].mxu0 %v2146
      %v2188 = vpop.f32.mrb[0].mxu0
      %v2189 = vadd.f32 0.0, %v2188
      %v2190 = vpop.f32.mrb[0].mxu0
      %v2191 = vpop.f32.mrb[0].mxu0
      %v2192 = vadd.f32 0.0, %v2191
      %v2193 = vpop.f32.mrb[0].mxu0
      %2194 = vmatprep.mubr.bf16.mxu0 0
      %2195 = vmatmul.mubr.bf16.gmra.mrb[0].mxu0 %v2149
      %v2196 = vpop.f32.mrb[0].mxu0
      %v2197 = vadd.f32 0.0, %v2196
      %v2198 = vpop.f32.mrb[0].mxu0
      %v2199 = vpop.f32.mrb[0].mxu0
      %v2200 = vpop.f32.mrb[0].mxu0
      %2201 = vdwg.mxu0
      %v2202 = vmul.f32 %v2189, %v2133
      %v2203 = vmul.f32 %v2192, %v2134
      %v2204 = vmul.f32 %v2197, %v2135
      %2208 = vrot.lane.b32.xlu0 %v2202, 32
      %v2209 = vpop.permute.xlu0 %2208
      %2210 = vrot.lane.b32.xlu0 %v2203, 32
      %v2211 = vpop.permute.xlu0 %2210
      %2212 = vrot.lane.b32.xlu0 %v2204, 32
      %v2213 = vpop.permute.xlu0 %2212
      %v2217 = vsel %vm1346, %v1758, %v2209
      %v2218 = vsel %vm1346, %v1759, %v2211
      %v2219 = vsel %vm1346, %v1760, %v2213
      %v2220 = vpack.c.bf16 %v2219, %v2218
      %v2221 = vld [vmem:[%s10] sm:$0xf]
      %v2222 = vld [vmem:[%s10 + $0x4] sm:$0xf]
      %v2223 = vld [vmem:[%s10 + $0x8] sm:$0xf]
      %v2224 = vld [vmem:[%s10 + $0xc] sm:$0xf]
      %v2225 = vld [vmem:[%s10 + $0x10] sm:$0xf]
      %v2226 = vld [vmem:[%s10 + $0x14] sm:$0xf]
      %v2227 = vld [vmem:[%s10 + $0x18] sm:$0xf]
      %v2228 = vld [vmem:[%s10 + $0x1c] sm:$0xf]
      %v2229 = vld [vmem:[%s11] sm:$0x1]
      %v2230 = vunpack.c.l.bf16 %v2229
      %v2231 = vlaneseq
      %v2232 = vshrl.u32 %v2231, 7
      %v2233 = vsub.s32 0, %v2232
      %v2234 = vrot.slane %v2230, %v2233
      %v2243 = vunpack.c.l.b16 %v2221
      %v2244 = vunpack.c.l.b16 %v2222
      %v2245 = vunpack.c.l.b16 %v2223
      %v2246 = vunpack.c.l.b16 %v2224
      %v2247 = vunpack.c.l.b16 %v2225
      %v2248 = vunpack.c.l.b16 %v2226
      %v2249 = vunpack.c.l.b16 %v2227
      %v2250 = vunpack.c.l.b16 %v2228
      %v2251 = vpack.c.b16 %v2244, %v2243
      %v2252 = vpack.c.b16 %v2246, %v2245
      %v2253 = vpack.c.b16 %v2248, %v2247
      %v2254 = vpack.c.b16 %v2250, %v2249
      %v2260 = vsel %vm885, %v2220, 0
      %2262 = vmatprep.subr.bf16.mxu0 0
      %2263 = vmatpush1.bf16.msra.mxu0 %v2251
      %2264 = vmatprep.subr.bf16.mxu0 0
      %2265 = vmatpush1.bf16.msra.mxu0 %v2252
      %2266 = vmatprep.subr.bf16.mxu0 0
      %2267 = vmatpush1.bf16.msra.mxu0 %v2253
      %2268 = vmatprep.subr.bf16.mxu0 0
      %2269 = vmatpush1.bf16.msra.mxu0 %v2254
      %2270 = vmatprep.subr.bf16.mxu0 0
      %2271 = vmatpush1.bf16.msra.mxu0 0
      %2272 = vmatprep.subr.bf16.mxu0 0
      %2273 = vmatpush1.bf16.msra.mxu0 0
      %2274 = vmatprep.subr.bf16.mxu0 0
      %2275 = vmatpush1.bf16.msra.mxu0 0
      %2276 = vmatprep.subr.bf16.mxu0 0
      %2277 = vmatpush1.bf16.msra.mxu0 0
      %2278 = vmatprep.subr.bf16.mxu0 0
      %2279 = vmatpush1.bf16.msra.mxu0 0
      %2280 = vmatprep.subr.bf16.mxu0 0
      %2281 = vmatpush1.bf16.msra.mxu0 0
      %2282 = vmatprep.subr.bf16.mxu0 0
      %2283 = vmatpush1.bf16.msra.mxu0 0
      %2284 = vmatprep.subr.bf16.mxu0 0
      %2285 = vmatpush1.bf16.msra.mxu0 0
      %2286 = vmatprep.subr.bf16.mxu0 0
      %2287 = vmatpush1.bf16.msra.mxu0 0
      %2288 = vmatprep.subr.bf16.mxu0 0
      %2289 = vmatpush1.bf16.msra.mxu0 0
      %2290 = vmatprep.subr.bf16.mxu0 0
      %2291 = vmatpush1.bf16.msra.mxu0 0
      %2292 = vmatprep.subr.bf16.mxu0 0
      %2293 = vmatpush1.bf16.msra.mxu0 0
      %2294 = vmatprep.mubr.bf16.mxu0 0
      %2295 = vmatmul.mubr.bf16.gmra.mrb[0].mxu0 %v2260
      %v2296 = vpop.f32.mrb[0].mxu0
      %v2297 = vadd.f32 %v2234, %v2296
      %v2298 = vpop.f32.mrb[0].mxu0
      %v2299 = vpop.f32.mrb[0].mxu0
      %v2300 = vadd.f32 %v2234, %v2299
      %v2301 = vpop.f32.mrb[0].mxu0
      %2302 = vdwg.mxu0
      %v2303 = vpack.c.bf16 %v2217, %v2217
      %v2304 = vld [vmem:[%s12] sm:$0xf]
      %v2305 = vld [vmem:[%s12 + $0x4] sm:$0xf]
      %v2306 = vld [vmem:[%s12 + $0x8] sm:$0xf]
      %v2307 = vld [vmem:[%s12 + $0xc] sm:$0xf]
      %v2308 = vld [vmem:[%s12 + $0x10] sm:$0xf]
      %v2309 = vld [vmem:[%s12 + $0x14] sm:$0xf]
      %v2310 = vld [vmem:[%s12 + $0x18] sm:$0xf]
      %v2311 = vld [vmem:[%s12 + $0x1c] sm:$0xf]
      %v2312 = vld [vmem:[%s13] sm:$0x1]
      %v2313 = vunpack.c.l.bf16 %v2312
      %v2314 = vlaneseq
      %v2315 = vshrl.u32 %v2314, 7
      %v2316 = vsub.s32 0, %v2315
      %v2317 = vrot.slane %v2313, %v2316
      %v2326 = vunpack.c.l.b16 %v2304
      %v2327 = vunpack.c.l.b16 %v2305
      %v2328 = vunpack.c.l.b16 %v2306
      %v2329 = vunpack.c.l.b16 %v2307
      %v2330 = vunpack.c.l.b16 %v2308
      %v2331 = vunpack.c.l.b16 %v2309
      %v2332 = vunpack.c.l.b16 %v2310
      %v2333 = vunpack.c.l.b16 %v2311
      %v2334 = vpack.c.b16 %v2327, %v2326
      %v2335 = vpack.c.b16 %v2329, %v2328
      %v2336 = vpack.c.b16 %v2331, %v2330
      %v2337 = vpack.c.b16 %v2333, %v2332
      %v2343 = vsel %vm885, %v2303, 0
      %2345 = vmatprep.subr.bf16.mxu0 0
      %2346 = vmatpush1.bf16.msra.mxu0 %v2334
      %2347 = vmatprep.subr.bf16.mxu0 0
      %2348 = vmatpush1.bf16.msra.mxu0 %v2335
      %2349 = vmatprep.subr.bf16.mxu0 0
      %2350 = vmatpush1.bf16.msra.mxu0 %v2336
      %2351 = vmatprep.subr.bf16.mxu0 0
      %2352 = vmatpush1.bf16.msra.mxu0 %v2337
      %2353 = vmatprep.subr.bf16.mxu0 0
      %2354 = vmatpush1.bf16.msra.mxu0 0
      %2355 = vmatprep.subr.bf16.mxu0 0
      %2356 = vmatpush1.bf16.msra.mxu0 0
      %2357 = vmatprep.subr.bf16.mxu0 0
      %2358 = vmatpush1.bf16.msra.mxu0 0
      %2359 = vmatprep.subr.bf16.mxu0 0
      %2360 = vmatpush1.bf16.msra.mxu0 0
      %2361 = vmatprep.subr.bf16.mxu0 0
      %2362 = vmatpush1.bf16.msra.mxu0 0
      %2363 = vmatprep.subr.bf16.mxu0 0
      %2364 = vmatpush1.bf16.msra.mxu0 0
      %2365 = vmatprep.subr.bf16.mxu0 0
      %2366 = vmatpush1.bf16.msra.mxu0 0
      %2367 = vmatprep.subr.bf16.mxu0 0
      %2368 = vmatpush1.bf16.msra.mxu0 0
      %2369 = vmatprep.subr.bf16.mxu0 0
      %2370 = vmatpush1.bf16.msra.mxu0 0
      %2371 = vmatprep.subr.bf16.mxu0 0
      %2372 = vmatpush1.bf16.msra.mxu0 0
      %2373 = vmatprep.subr.bf16.mxu0 0
      %2374 = vmatpush1.bf16.msra.mxu0 0
      %2375 = vmatprep.subr.bf16.mxu0 0
      %2376 = vmatpush1.bf16.msra.mxu0 0
      %2377 = vmatprep.mubr.bf16.mxu0 0
      %2378 = vmatmul.mubr.bf16.gmra.mrb[0].mxu0 %v2343
      %v2379 = vpop.f32.mrb[0].mxu0
      %v2380 = vadd.f32 %v2317, %v2379
      %v2381 = vpop.f32.mrb[0].mxu0
      %v2382 = vpop.f32.mrb[0].mxu0
      %v2383 = vpop.f32.mrb[0].mxu0
      %2384 = vdwg.mxu0
      %v2385 = vlaneseq
      %v2386 = vshrl.u32 %v2385, 7
      %v2387 = vsub.s32 0, %v2386
      %v2388 = vrot.slane %v926, %v2387
      %v2389 = vmul.f32 %v2388, %v2297
      %v2390 = vmul.f32 %v2388, %v2300
      %v2391 = vadd.f32 %v703, %v2389
      %v2392 = vadd.f32 %v704, %v2390
      %v2393 = vsel %vm885, %v2391, 0.0
      %2394 = vadd.xlane.f32.xlu0 %v2393
      %v2395 = vpop.xlane.xlu0 %2394
      %v2396 = vsel %vm885, %v2392, 0.0
      %2397 = vadd.xlane.f32.xlu0 %v2396
      %v2398 = vpop.xlane.xlu0 %2397
      %v2399 = vmul.f32 %v2395, %v1018
      %v2400 = vmul.f32 %v2398, %v1018
      %v2401 = vsub.f32 %v2391, %v2399
      %v2402 = vsub.f32 %v2392, %v2400
      %v2403 = vmul.f32 %v2401, %v2401
      %v2404 = vmul.f32 %v2402, %v2402
      %v2405 = vsel %vm885, %v2403, 0.0
      %2406 = vadd.xlane.f32.xlu0 %v2405
      %v2407 = vpop.xlane.xlu0 %2406
      %v2408 = vsel %vm885, %v2404, 0.0
      %2409 = vadd.xlane.f32.xlu0 %v2408
      %v2410 = vpop.xlane.xlu0 %2409
      %v2411 = vmul.f32 %v2407, %v1018
      %v2412 = vmul.f32 %v2410, %v1018
      %v2413 = vadd.f32 %v2411, 1e-06
      %v2414 = vadd.f32 %v2412, 1e-06
      %v2415 = vrsqrt.pop %v2413
      %v2416 = vrsqrt.pop %v2414
      %v2417 = vmul.f32 %v2401, %v2415
      %v2418 = vmul.f32 %v2402, %v2416
      %v2419 = vadd.f32 %v965, 1.0
      %v2420 = vlaneseq
      %v2421 = vshrl.u32 %v2420, 7
      %v2422 = vsub.s32 0, %v2421
      %v2423 = vrot.slane %v2419, %v2422
      %v2424 = vmul.f32 %v2417, %v2423
      %v2425 = vmul.f32 %v2418, %v2423
      %2427 = vrot.lane.b32.xlu0 %v2388, 64
      %v2428 = vpop.permute.xlu0 %2427
      %v2430 = vadd.f32 %v2424, %v2428
      %v2431 = vadd.f32 %v2425, %v2428
      %v2432 = vpack.c.bf16 %v2431, %v2430
      %v2433 = vld [vmem:[%s14] sm:$0xff]
      %v2434 = vld [vmem:[%s14 + $0x8] sm:$0xff]
      %v2435 = vld [vmem:[%s14 + $0x10] sm:$0xff]
      %v2436 = vld [vmem:[%s14 + $0x18] sm:$0xff]
      %v2437 = vld [vmem:[%s14 + $0x20] sm:$0xff]
      %v2438 = vld [vmem:[%s14 + $0x28] sm:$0xff]
      %v2439 = vld [vmem:[%s14 + $0x30] sm:$0xff]
      %v2440 = vld [vmem:[%s14 + $0x38] sm:$0xff]
      %v2441 = vld [vmem:[%s15] sm:$0x3]
      %v2442 = vunpack.c.l.bf16 %v2441
      %v2444 = vlaneseq
      %v2445 = vshrl.u32 %v2444, 7
      %v2446 = vsub.s32 0, %v2445
      %v2447 = vrot.slane %v2442, %v2446
      %v2448 = vlaneseq
      %v2449 = vshrl.u32 %v2448, 7
      %v2450 = vsub.s32 2, %v2449
      %v2451 = vrot.slane %v2442, %v2450
      %v2454 = vlaneseq
      %v2455 = vshrl.u32 %v2454, 7
      %v2456 = vsub.s32 0, %v2455
      %v2457 = vrot.slane %v2447, %v2456
      %v2458 = vlaneseq
      %v2459 = vshrl.u32 %v2458, 7
      %v2460 = vsub.s32 0, %v2459
      %v2461 = vrot.slane %v2451, %v2460
      %v2470 = vunpack.c.l.b16 %v2433
      %v2471 = vunpack.c.h.b16 %v2433
      %v2472 = vunpack.c.l.b16 %v2434
      %v2473 = vunpack.c.h.b16 %v2434
      %v2474 = vunpack.c.l.b16 %v2435
      %v2475 = vunpack.c.h.b16 %v2435
      %v2476 = vunpack.c.l.b16 %v2436
      %v2477 = vunpack.c.h.b16 %v2436
      %v2478 = vunpack.c.l.b16 %v2437
      %v2479 = vunpack.c.h.b16 %v2437
      %v2480 = vunpack.c.l.b16 %v2438
      %v2481 = vunpack.c.h.b16 %v2438
      %v2482 = vunpack.c.l.b16 %v2439
      %v2483 = vunpack.c.h.b16 %v2439
      %v2484 = vunpack.c.l.b16 %v2440
      %v2485 = vunpack.c.h.b16 %v2440
      %v2486 = vpack.c.b16 %v2472, %v2470
      %v2487 = vpack.c.b16 %v2473, %v2471
      %v2488 = vpack.c.b16 %v2476, %v2474
      %v2489 = vpack.c.b16 %v2477, %v2475
      %v2490 = vpack.c.b16 %v2480, %v2478
      %v2491 = vpack.c.b16 %v2481, %v2479
      %v2492 = vpack.c.b16 %v2484, %v2482
      %v2493 = vpack.c.b16 %v2485, %v2483
      %v2503 = vsel %vm885, %v2432, 0
      %2505 = vmatprep.subr.bf16.mxu0 %v2487
      %2506 = vmatpush1.bf16.msra.mxu0 %v2486
      %2507 = vmatprep.subr.bf16.mxu0 %v2489
      %2508 = vmatpush1.bf16.msra.mxu0 %v2488
      %2509 = vmatprep.subr.bf16.mxu0 %v2491
      %2510 = vmatpush1.bf16.msra.mxu0 %v2490
      %2511 = vmatprep.subr.bf16.mxu0 %v2493
      %2512 = vmatpush1.bf16.msra.mxu0 %v2492
      %2513 = vmatprep.subr.bf16.mxu0 0
      %2514 = vmatpush1.bf16.msra.mxu0 0
      %2515 = vmatprep.subr.bf16.mxu0 0
      %2516 = vmatpush1.bf16.msra.mxu0 0
      %2517 = vmatprep.subr.bf16.mxu0 0
      %2518 = vmatpush1.bf16.msra.mxu0 0
      %2519 = vmatprep.subr.bf16.mxu0 0
      %2520 = vmatpush1.bf16.msra.mxu0 0
      %2521 = vmatprep.subr.bf16.mxu0 0
      %2522 = vmatpush1.bf16.msra.mxu0 0
      %2523 = vmatprep.subr.bf16.mxu0 0
      %2524 = vmatpush1.bf16.msra.mxu0 0
      %2525 = vmatprep.subr.bf16.mxu0 0
      %2526 = vmatpush1.bf16.msra.mxu0 0
      %2527 = vmatprep.subr.bf16.mxu0 0
      %2528 = vmatpush1.bf16.msra.mxu0 0
      %2529 = vmatprep.subr.bf16.mxu0 0
      %2530 = vmatpush1.bf16.msra.mxu0 0
      %2531 = vmatprep.subr.bf16.mxu0 0
      %2532 = vmatpush1.bf16.msra.mxu0 0
      %2533 = vmatprep.subr.bf16.mxu0 0
      %2534 = vmatpush1.bf16.msra.mxu0 0
      %2535 = vmatprep.subr.bf16.mxu0 0
      %2536 = vmatpush1.bf16.msra.mxu0 0
      %2537 = vmatprep.mubr.bf16.mxu0 0
      %2538 = vmatmul.mubr.bf16.gmra.mrb[0].mxu0 %v2503
      %v2539 = vpop.f32.mrb[0].mxu0
      %v2540 = vadd.f32 %v2457, %v2539
      %v2541 = vpop.f32.mrb[0].mxu0
      %v2542 = vadd.f32 %v2461, %v2541
      %v2543 = vpop.f32.mrb[0].mxu0
      %v2544 = vadd.f32 %v2457, %v2543
      %v2545 = vpop.f32.mrb[0].mxu0
      %v2546 = vadd.f32 %v2461, %v2545
      %2547 = vdwg.mxu0
      %v2548 = vmul.f32 %v2540, 0.5
      %v2549 = vmul.f32 %v2542, 0.5
      %v2550 = vmul.f32 %v2544, 0.5
      %v2551 = vmul.f32 %v2546, 0.5
      %v2552 = vmul.f32 %v2540, 0.044715
      %v2553 = vmul.f32 %v2542, 0.044715
      %v2554 = vmul.f32 %v2544, 0.044715
      %v2555 = vmul.f32 %v2546, 0.044715
      %v2556 = vmul.f32 %v2552, %v2540
      %v2557 = vmul.f32 %v2553, %v2542
      %v2558 = vmul.f32 %v2554, %v2544
      %v2559 = vmul.f32 %v2555, %v2546
      %v2560 = vmul.f32 %v2556, %v2540
      %v2561 = vmul.f32 %v2557, %v2542
      %v2562 = vmul.f32 %v2558, %v2544
      %v2563 = vmul.f32 %v2559, %v2546
      %v2564 = vadd.f32 %v2540, %v2560
      %v2565 = vadd.f32 %v2542, %v2561
      %v2566 = vadd.f32 %v2544, %v2562
      %v2567 = vadd.f32 %v2546, %v2563
      %v2568 = vmul.f32 %v2564, 0.7978846
      %v2569 = vmul.f32 %v2565, 0.7978846
      %v2570 = vmul.f32 %v2566, 0.7978846
      %v2571 = vmul.f32 %v2567, 0.7978846
      %v2572 = vtanh.pop %v2568
      %v2573 = vtanh.pop %v2569
      %v2574 = vtanh.pop %v2570
      %v2575 = vtanh.pop %v2571
      %v2576 = vadd.f32 %v2572, 1.0
      %v2577 = vadd.f32 %v2573, 1.0
      %v2578 = vadd.f32 %v2574, 1.0
      %v2579 = vadd.f32 %v2575, 1.0
      %v2580 = vmul.f32 %v2548, %v2576
      %v2581 = vmul.f32 %v2549, %v2577
      %v2582 = vmul.f32 %v2550, %v2578
      %v2583 = vmul.f32 %v2551, %v2579
      %v2584 = vpack.c.bf16 %v2582, %v2580
      %v2585 = vpack.c.bf16 %v2583, %v2581
      %v2586 = vld [vmem:[%s16] sm:$0xf]
      %v2587 = vld [vmem:[%s16 + $0x4] sm:$0xf]
      %v2588 = vld [vmem:[%s16 + $0x8] sm:$0xf]
      %v2589 = vld [vmem:[%s16 + $0xc] sm:$0xf]
      %v2590 = vld [vmem:[%s16 + $0x10] sm:$0xf]
      %v2591 = vld [vmem:[%s16 + $0x14] sm:$0xf]
      %v2592 = vld [vmem:[%s16 + $0x18] sm:$0xf]
      %v2593 = vld [vmem:[%s16 + $0x1c] sm:$0xf]
      %v2594 = vld [vmem:[%s16 + $0x20] sm:$0xf]
      %v2595 = vld [vmem:[%s16 + $0x24] sm:$0xf]
      %v2596 = vld [vmem:[%s16 + $0x28] sm:$0xf]
      %v2597 = vld [vmem:[%s16 + $0x2c] sm:$0xf]
      %v2598 = vld [vmem:[%s16 + $0x30] sm:$0xf]
      %v2599 = vld [vmem:[%s16 + $0x34] sm:$0xf]
      %v2600 = vld [vmem:[%s16 + $0x38] sm:$0xf]
      %v2601 = vld [vmem:[%s16 + $0x3c] sm:$0xf]
      %v2602 = vld [vmem:[%s16 + $0x40] sm:$0xf]
      %v2603 = vld [vmem:[%s16 + $0x44] sm:$0xf]
      %v2604 = vld [vmem:[%s16 + $0x48] sm:$0xf]
      %v2605 = vld [vmem:[%s16 + $0x4c] sm:$0xf]
      %v2606 = vld [vmem:[%s16 + $0x50] sm:$0xf]
      %v2607 = vld [vmem:[%s16 + $0x54] sm:$0xf]
      %v2608 = vld [vmem:[%s16 + $0x58] sm:$0xf]
      %v2609 = vld [vmem:[%s16 + $0x5c] sm:$0xf]
      %v2610 = vld [vmem:[%s16 + $0x60] sm:$0xf]
      %v2611 = vld [vmem:[%s16 + $0x64] sm:$0xf]
      %v2612 = vld [vmem:[%s16 + $0x68] sm:$0xf]
      %v2613 = vld [vmem:[%s16 + $0x6c] sm:$0xf]
      %v2614 = vld [vmem:[%s16 + $0x70] sm:$0xf]
      %v2615 = vld [vmem:[%s16 + $0x74] sm:$0xf]
      %v2616 = vld [vmem:[%s16 + $0x78] sm:$0xf]
      %v2617 = vld [vmem:[%s16 + $0x7c] sm:$0xf]
      %v2618 = vld [vmem:[%s17] sm:$0x1]
      %v2619 = vunpack.c.l.bf16 %v2618
      %v2620 = vlaneseq
      %v2621 = vshrl.u32 %v2620, 7
      %v2622 = vsub.s32 0, %v2621
      %v2623 = vrot.slane %v2619, %v2622
      %v2656 = vunpack.c.l.b16 %v2586
      %v2657 = vunpack.c.l.b16 %v2587
      %v2658 = vunpack.c.l.b16 %v2588
      %v2659 = vunpack.c.l.b16 %v2589
      %v2660 = vunpack.c.l.b16 %v2590
      %v2661 = vunpack.c.l.b16 %v2591
      %v2662 = vunpack.c.l.b16 %v2592
      %v2663 = vunpack.c.l.b16 %v2593
      %v2664 = vunpack.c.l.b16 %v2594
      %v2665 = vunpack.c.l.b16 %v2595
      %v2666 = vunpack.c.l.b16 %v2596
      %v2667 = vunpack.c.l.b16 %v2597
      %v2668 = vunpack.c.l.b16 %v2598
      %v2669 = vunpack.c.l.b16 %v2599
      %v2670 = vunpack.c.l.b16 %v2600
      %v2671 = vunpack.c.l.b16 %v2601
      %v2672 = vunpack.c.l.b16 %v2602
      %v2673 = vunpack.c.l.b16 %v2603
      %v2674 = vunpack.c.l.b16 %v2604
      %v2675 = vunpack.c.l.b16 %v2605
      %v2676 = vunpack.c.l.b16 %v2606
      %v2677 = vunpack.c.l.b16 %v2607
      %v2678 = vunpack.c.l.b16 %v2608
      %v2679 = vunpack.c.l.b16 %v2609
      %v2680 = vunpack.c.l.b16 %v2610
      %v2681 = vunpack.c.l.b16 %v2611
      %v2682 = vunpack.c.l.b16 %v2612
      %v2683 = vunpack.c.l.b16 %v2613
      %v2684 = vunpack.c.l.b16 %v2614
      %v2685 = vunpack.c.l.b16 %v2615
      %v2686 = vunpack.c.l.b16 %v2616
      %v2687 = vunpack.c.l.b16 %v2617
      %v2688 = vpack.c.b16 %v2657, %v2656
      %v2689 = vpack.c.b16 %v2659, %v2658
      %v2690 = vpack.c.b16 %v2661, %v2660
      %v2691 = vpack.c.b16 %v2663, %v2662
      %v2692 = vpack.c.b16 %v2665, %v2664
      %v2693 = vpack.c.b16 %v2667, %v2666
      %v2694 = vpack.c.b16 %v2669, %v2668
      %v2695 = vpack.c.b16 %v2671, %v2670
      %v2696 = vpack.c.b16 %v2673, %v2672
      %v2697 = vpack.c.b16 %v2675, %v2674
      %v2698 = vpack.c.b16 %v2677, %v2676
      %v2699 = vpack.c.b16 %v2679, %v2678
      %v2700 = vpack.c.b16 %v2681, %v2680
      %v2701 = vpack.c.b16 %v2683, %v2682
      %v2702 = vpack.c.b16 %v2685, %v2684
      %v2703 = vpack.c.b16 %v2687, %v2686
      %2720 = vmatprep.subr.bf16.mxu0 0
      %2721 = vmatpush1.bf16.msra.mxu0 %v2688
      %2722 = vmatprep.subr.bf16.mxu0 0
      %2723 = vmatpush1.bf16.msra.mxu0 %v2689
      %2724 = vmatprep.subr.bf16.mxu0 0
      %2725 = vmatpush1.bf16.msra.mxu0 %v2690
      %2726 = vmatprep.subr.bf16.mxu0 0
      %2727 = vmatpush1.bf16.msra.mxu0 %v2691
      %2728 = vmatprep.subr.bf16.mxu0 0
      %2729 = vmatpush1.bf16.msra.mxu0 %v2692
      %2730 = vmatprep.subr.bf16.mxu0 0
      %2731 = vmatpush1.bf16.msra.mxu0 %v2693
      %2732 = vmatprep.subr.bf16.mxu0 0
      %2733 = vmatpush1.bf16.msra.mxu0 %v2694
      %2734 = vmatprep.subr.bf16.mxu0 0
      %2735 = vmatpush1.bf16.msra.mxu0 %v2695
      %2736 = vmatprep.subr.bf16.mxu0 0
      %2737 = vmatpush1.bf16.msra.mxu0 %v2696
      %2738 = vmatprep.subr.bf16.mxu0 0
      %2739 = vmatpush1.bf16.msra.mxu0 %v2697
      %2740 = vmatprep.subr.bf16.mxu0 0
      %2741 = vmatpush1.bf16.msra.mxu0 %v2698
      %2742 = vmatprep.subr.bf16.mxu0 0
      %2743 = vmatpush1.bf16.msra.mxu0 %v2699
      %2744 = vmatprep.subr.bf16.mxu0 0
      %2745 = vmatpush1.bf16.msra.mxu0 %v2700
      %2746 = vmatprep.subr.bf16.mxu0 0
      %2747 = vmatpush1.bf16.msra.mxu0 %v2701
      %2748 = vmatprep.subr.bf16.mxu0 0
      %2749 = vmatpush1.bf16.msra.mxu0 %v2702
      %2750 = vmatprep.subr.bf16.mxu0 0
      %2751 = vmatpush1.bf16.msra.mxu0 %v2703
      %2752 = vmatprep.mubr.bf16.mxu0 %v2585
      %2753 = vmatmul.mubr.bf16.gmra.mrb[0].mxu0 %v2584
      %v2754 = vpop.f32.mrb[0].mxu0
      %v2755 = vadd.f32 %v2623, %v2754
      %v2756 = vpop.f32.mrb[0].mxu0
      %v2757 = vpop.f32.mrb[0].mxu0
      %v2758 = vadd.f32 %v2623, %v2757
      %v2759 = vpop.f32.mrb[0].mxu0
      %2760 = vdwg.mxu0
      %v2761 = vlaneseq
      %v2762 = vshrl.u32 %v2761, 7
      %v2763 = vsub.s32 0, %v2762
      %v2764 = vrot.slane %v965, %v2763
      %2767 = vrot.lane.b32.xlu0 %v2755, 64
      %v2768 = vpop.permute.xlu0 %2767
      %2769 = vrot.lane.b32.xlu0 %v2758, 64
      %v2770 = vpop.permute.xlu0 %2769
      %v2773 = vmul.f32 %v2764, %v2768
      %v2774 = vmul.f32 %v2764, %v2770
      %2777 = vrot.lane.b32.xlu0 %v2773, 64
      %v2778 = vpop.permute.xlu0 %2777
      %2779 = vrot.lane.b32.xlu0 %v2774, 64
      %v2780 = vpop.permute.xlu0 %2779
      %v2783 = vadd.f32 %v2391, %v2778
      %v2784 = vadd.f32 %v2392, %v2780
      %v2785 = vlaneseq
      %v2786 = vshrl.u32 %v2785, 7
      %v2787 = vsub.s32 0, %v2786
      %v2788 = vrot.slane %v1006, %v2787
      %v2789 = vmul.f32 %v2788, %v2380
      %v2790 = vadd.f32 %v702, %v2789
      %v2791 = vsel %vm885, %v2790, 0.0
      %2792 = vadd.xlane.f32.xlu0 %v2791
      %v2793 = vpop.xlane.xlu0 %2792
      %v2794 = vmul.f32 %v2793, %v1018
      %v2795 = vsub.f32 %v2790, %v2794
      %v2796 = vmul.f32 %v2795, %v2795
      %v2797 = vsel %vm885, %v2796, 0.0
      %2798 = vadd.xlane.f32.xlu0 %v2797
      %v2799 = vpop.xlane.xlu0 %2798
      %v2800 = vmul.f32 %v2799, %v1018
      %v2801 = vadd.f32 %v2800, 1e-06
      %v2802 = vrsqrt.pop %v2801
      %v2803 = vmul.f32 %v2795, %v2802
      %v2804 = vadd.f32 %v1008, 1.0
      %v2805 = vlaneseq
      %v2806 = vshrl.u32 %v2805, 7
      %v2807 = vsub.s32 0, %v2806
      %v2808 = vrot.slane %v2804, %v2807
      %v2809 = vmul.f32 %v2803, %v2808
      %2811 = vrot.lane.b32.xlu0 %v2788, 64
      %v2812 = vpop.permute.xlu0 %2811
      %v2814 = vadd.f32 %v2809, %v2812
      %v2815 = vpack.c.bf16 %v2814, %v2814
      %v2816 = vld [vmem:[%s18] sm:$0xff]
      %v2817 = vld [vmem:[%s18 + $0x8] sm:$0xff]
      %v2818 = vld [vmem:[%s18 + $0x10] sm:$0xff]
      %v2819 = vld [vmem:[%s18 + $0x18] sm:$0xff]
      %v2820 = vld [vmem:[%s18 + $0x20] sm:$0xff]
      %v2821 = vld [vmem:[%s18 + $0x28] sm:$0xff]
      %v2822 = vld [vmem:[%s18 + $0x30] sm:$0xff]
      %v2823 = vld [vmem:[%s18 + $0x38] sm:$0xff]
      %v2824 = vld [vmem:[%s19] sm:$0x3]
      %v2825 = vunpack.c.l.bf16 %v2824
      %v2827 = vlaneseq
      %v2828 = vshrl.u32 %v2827, 7
      %v2829 = vsub.s32 0, %v2828
      %v2830 = vrot.slane %v2825, %v2829
      %v2831 = vlaneseq
      %v2832 = vshrl.u32 %v2831, 7
      %v2833 = vsub.s32 2, %v2832
      %v2834 = vrot.slane %v2825, %v2833
      %v2837 = vlaneseq
      %v2838 = vshrl.u32 %v2837, 7
      %v2839 = vsub.s32 0, %v2838
      %v2840 = vrot.slane %v2830, %v2839
      %v2841 = vlaneseq
      %v2842 = vshrl.u32 %v2841, 7
      %v2843 = vsub.s32 0, %v2842
      %v2844 = vrot.slane %v2834, %v2843
      %v2853 = vunpack.c.l.b16 %v2816
      %v2854 = vunpack.c.h.b16 %v2816
      %v2855 = vunpack.c.l.b16 %v2817
      %v2856 = vunpack.c.h.b16 %v2817
      %v2857 = vunpack.c.l.b16 %v2818
      %v2858 = vunpack.c.h.b16 %v2818
      %v2859 = vunpack.c.l.b16 %v2819
      %v2860 = vunpack.c.h.b16 %v2819
      %v2861 = vunpack.c.l.b16 %v2820
      %v2862 = vunpack.c.h.b16 %v2820
      %v2863 = vunpack.c.l.b16 %v2821
      %v2864 = vunpack.c.h.b16 %v2821
      %v2865 = vunpack.c.l.b16 %v2822
      %v2866 = vunpack.c.h.b16 %v2822
      %v2867 = vunpack.c.l.b16 %v2823
      %v2868 = vunpack.c.h.b16 %v2823
      %v2869 = vpack.c.b16 %v2855, %v2853
      %v2870 = vpack.c.b16 %v2856, %v2854
      %v2871 = vpack.c.b16 %v2859, %v2857
      %v2872 = vpack.c.b16 %v2860, %v2858
      %v2873 = vpack.c.b16 %v2863, %v2861
      %v2874 = vpack.c.b16 %v2864, %v2862
      %v2875 = vpack.c.b16 %v2867, %v2865
      %v2876 = vpack.c.b16 %v2868, %v2866
      %v2886 = vsel %vm885, %v2815, 0
      %2888 = vmatprep.subr.bf16.mxu0 %v2870
      %2889 = vmatpush1.bf16.msra.mxu0 %v2869
      %2890 = vmatprep.subr.bf16.mxu0 %v2872
      %2891 = vmatpush1.bf16.msra.mxu0 %v2871
      %2892 = vmatprep.subr.bf16.mxu0 %v2874
      %2893 = vmatpush1.bf16.msra.mxu0 %v2873
      %2894 = vmatprep.subr.bf16.mxu0 %v2876
      %2895 = vmatpush1.bf16.msra.mxu0 %v2875
      %2896 = vmatprep.subr.bf16.mxu0 0
      %2897 = vmatpush1.bf16.msra.mxu0 0
      %2898 = vmatprep.subr.bf16.mxu0 0
      %2899 = vmatpush1.bf16.msra.mxu0 0
      %2900 = vmatprep.subr.bf16.mxu0 0
      %2901 = vmatpush1.bf16.msra.mxu0 0
      %2902 = vmatprep.subr.bf16.mxu0 0
      %2903 = vmatpush1.bf16.msra.mxu0 0
      %2904 = vmatprep.subr.bf16.mxu0 0
      %2905 = vmatpush1.bf16.msra.mxu0 0
      %2906 = vmatprep.subr.bf16.mxu0 0
      %2907 = vmatpush1.bf16.msra.mxu0 0
      %2908 = vmatprep.subr.bf16.mxu0 0
      %2909 = vmatpush1.bf16.msra.mxu0 0
      %2910 = vmatprep.subr.bf16.mxu0 0
      %2911 = vmatpush1.bf16.msra.mxu0 0
      %2912 = vmatprep.subr.bf16.mxu0 0
      %2913 = vmatpush1.bf16.msra.mxu0 0
      %2914 = vmatprep.subr.bf16.mxu0 0
      %2915 = vmatpush1.bf16.msra.mxu0 0
      %2916 = vmatprep.subr.bf16.mxu0 0
      %2917 = vmatpush1.bf16.msra.mxu0 0
      %2918 = vmatprep.subr.bf16.mxu0 0
      %2919 = vmatpush1.bf16.msra.mxu0 0
      %2920 = vmatprep.mubr.bf16.mxu0 0
      %2921 = vmatmul.mubr.bf16.gmra.mrb[0].mxu0 %v2886
      %v2922 = vpop.f32.mrb[0].mxu0
      %v2923 = vadd.f32 %v2840, %v2922
      %v2924 = vpop.f32.mrb[0].mxu0
      %v2925 = vadd.f32 %v2844, %v2924
      %v2926 = vpop.f32.mrb[0].mxu0
      %v2927 = vpop.f32.mrb[0].mxu0
      %2928 = vdwg.mxu0
      %v2929 = vmul.f32 %v2923, 0.5
      %v2930 = vmul.f32 %v2925, 0.5
      %v2931 = vmul.f32 %v2923, 0.044715
      %v2932 = vmul.f32 %v2925, 0.044715
      %v2933 = vmul.f32 %v2931, %v2923
      %v2934 = vmul.f32 %v2932, %v2925
      %v2935 = vmul.f32 %v2933, %v2923
      %v2936 = vmul.f32 %v2934, %v2925
      %v2937 = vadd.f32 %v2923, %v2935
      %v2938 = vadd.f32 %v2925, %v2936
      %v2939 = vmul.f32 %v2937, 0.7978846
      %v2940 = vmul.f32 %v2938, 0.7978846
      %v2941 = vtanh.pop %v2939
      %v2942 = vtanh.pop %v2940
      %v2943 = vadd.f32 %v2941, 1.0
      %v2944 = vadd.f32 %v2942, 1.0
      %v2945 = vmul.f32 %v2929, %v2943
      %v2946 = vmul.f32 %v2930, %v2944
      %v2947 = vpack.c.bf16 %v2945, %v2945
      %v2948 = vpack.c.bf16 %v2946, %v2946
      %v2949 = vld [vmem:[%s20] sm:$0xf]
      %v2950 = vld [vmem:[%s20 + $0x4] sm:$0xf]
      %v2951 = vld [vmem:[%s20 + $0x8] sm:$0xf]
      %v2952 = vld [vmem:[%s20 + $0xc] sm:$0xf]
      %v2953 = vld [vmem:[%s20 + $0x10] sm:$0xf]
      %v2954 = vld [vmem:[%s20 + $0x14] sm:$0xf]
      %v2955 = vld [vmem:[%s20 + $0x18] sm:$0xf]
      %v2956 = vld [vmem:[%s20 + $0x1c] sm:$0xf]
      %v2957 = vld [vmem:[%s20 + $0x20] sm:$0xf]
      %v2958 = vld [vmem:[%s20 + $0x24] sm:$0xf]
      %v2959 = vld [vmem:[%s20 + $0x28] sm:$0xf]
      %v2960 = vld [vmem:[%s20 + $0x2c] sm:$0xf]
      %v2961 = vld [vmem:[%s20 + $0x30] sm:$0xf]
      %v2962 = vld [vmem:[%s20 + $0x34] sm:$0xf]
      %v2963 = vld [vmem:[%s20 + $0x38] sm:$0xf]
      %v2964 = vld [vmem:[%s20 + $0x3c] sm:$0xf]
      %v2965 = vld [vmem:[%s20 + $0x40] sm:$0xf]
      %v2966 = vld [vmem:[%s20 + $0x44] sm:$0xf]
      %v2967 = vld [vmem:[%s20 + $0x48] sm:$0xf]
      %v2968 = vld [vmem:[%s20 + $0x4c] sm:$0xf]
      %v2969 = vld [vmem:[%s20 + $0x50] sm:$0xf]
      %v2970 = vld [vmem:[%s20 + $0x54] sm:$0xf]
      %v2971 = vld [vmem:[%s20 + $0x58] sm:$0xf]
      %v2972 = vld [vmem:[%s20 + $0x5c] sm:$0xf]
      %v2973 = vld [vmem:[%s20 + $0x60] sm:$0xf]
      %v2974 = vld [vmem:[%s20 + $0x64] sm:$0xf]
      %v2975 = vld [vmem:[%s20 + $0x68] sm:$0xf]
      %v2976 = vld [vmem:[%s20 + $0x6c] sm:$0xf]
      %v2977 = vld [vmem:[%s20 + $0x70] sm:$0xf]
      %v2978 = vld [vmem:[%s20 + $0x74] sm:$0xf]
      %v2979 = vld [vmem:[%s20 + $0x78] sm:$0xf]
      %v2980 = vld [vmem:[%s20 + $0x7c] sm:$0xf]
      %v2981 = vld [vmem:[%s21] sm:$0x1]
      %v2982 = vunpack.c.l.bf16 %v2981
      %v2983 = vlaneseq
      %v2984 = vshrl.u32 %v2983, 7
      %v2985 = vsub.s32 0, %v2984
      %v2986 = vrot.slane %v2982, %v2985
      %v3019 = vunpack.c.l.b16 %v2949
      %v3020 = vunpack.c.l.b16 %v2950
      %v3021 = vunpack.c.l.b16 %v2951
      %v3022 = vunpack.c.l.b16 %v2952
      %v3023 = vunpack.c.l.b16 %v2953
      %v3024 = vunpack.c.l.b16 %v2954
      %v3025 = vunpack.c.l.b16 %v2955
      %v3026 = vunpack.c.l.b16 %v2956
      %v3027 = vunpack.c.l.b16 %v2957
      %v3028 = vunpack.c.l.b16 %v2958
      %v3029 = vunpack.c.l.b16 %v2959
      %v3030 = vunpack.c.l.b16 %v2960
      %v3031 = vunpack.c.l.b16 %v2961
      %v3032 = vunpack.c.l.b16 %v2962
      %v3033 = vunpack.c.l.b16 %v2963
      %v3034 = vunpack.c.l.b16 %v2964
      %v3035 = vunpack.c.l.b16 %v2965
      %v3036 = vunpack.c.l.b16 %v2966
      %v3037 = vunpack.c.l.b16 %v2967
      %v3038 = vunpack.c.l.b16 %v2968
      %v3039 = vunpack.c.l.b16 %v2969
      %v3040 = vunpack.c.l.b16 %v2970
      %v3041 = vunpack.c.l.b16 %v2971
      %v3042 = vunpack.c.l.b16 %v2972
      %v3043 = vunpack.c.l.b16 %v2973
      %v3044 = vunpack.c.l.b16 %v2974
      %v3045 = vunpack.c.l.b16 %v2975
      %v3046 = vunpack.c.l.b16 %v2976
      %v3047 = vunpack.c.l.b16 %v2977
      %v3048 = vunpack.c.l.b16 %v2978
      %v3049 = vunpack.c.l.b16 %v2979
      %v3050 = vunpack.c.l.b16 %v2980
      %v3051 = vpack.c.b16 %v3020, %v3019
      %v3052 = vpack.c.b16 %v3022, %v3021
      %v3053 = vpack.c.b16 %v3024, %v3023
      %v3054 = vpack.c.b16 %v3026, %v3025
      %v3055 = vpack.c.b16 %v3028, %v3027
      %v3056 = vpack.c.b16 %v3030, %v3029
      %v3057 = vpack.c.b16 %v3032, %v3031
      %v3058 = vpack.c.b16 %v3034, %v3033
      %v3059 = vpack.c.b16 %v3036, %v3035
      %v3060 = vpack.c.b16 %v3038, %v3037
      %v3061 = vpack.c.b16 %v3040, %v3039
      %v3062 = vpack.c.b16 %v3042, %v3041
      %v3063 = vpack.c.b16 %v3044, %v3043
      %v3064 = vpack.c.b16 %v3046, %v3045
      %v3065 = vpack.c.b16 %v3048, %v3047
      %v3066 = vpack.c.b16 %v3050, %v3049
      %3083 = vmatprep.subr.bf16.mxu0 0
      %3084 = vmatpush1.bf16.msra.mxu0 %v3051
      %3085 = vmatprep.subr.bf16.mxu0 0
      %3086 = vmatpush1.bf16.msra.mxu0 %v3052
      %3087 = vmatprep.subr.bf16.mxu0 0
      %3088 = vmatpush1.bf16.msra.mxu0 %v3053
      %3089 = vmatprep.subr.bf16.mxu0 0
      %3090 = vmatpush1.bf16.msra.mxu0 %v3054
      %3091 = vmatprep.subr.bf16.mxu0 0
      %3092 = vmatpush1.bf16.msra.mxu0 %v3055
      %3093 = vmatprep.subr.bf16.mxu0 0
      %3094 = vmatpush1.bf16.msra.mxu0 %v3056
      %3095 = vmatprep.subr.bf16.mxu0 0
      %3096 = vmatpush1.bf16.msra.mxu0 %v3057
      %3097 = vmatprep.subr.bf16.mxu0 0
      %3098 = vmatpush1.bf16.msra.mxu0 %v3058
      %3099 = vmatprep.subr.bf16.mxu0 0
      %3100 = vmatpush1.bf16.msra.mxu0 %v3059
      %3101 = vmatprep.subr.bf16.mxu0 0
      %3102 = vmatpush1.bf16.msra.mxu0 %v3060
      %3103 = vmatprep.subr.bf16.mxu0 0
      %3104 = vmatpush1.bf16.msra.mxu0 %v3061
      %3105 = vmatprep.subr.bf16.mxu0 0
      %3106 = vmatpush1.bf16.msra.mxu0 %v3062
      %3107 = vmatprep.subr.bf16.mxu0 0
      %3108 = vmatpush1.bf16.msra.mxu0 %v3063
      %3109 = vmatprep.subr.bf16.mxu0 0
      %3110 = vmatpush1.bf16.msra.mxu0 %v3064
      %3111 = vmatprep.subr.bf16.mxu0 0
      %3112 = vmatpush1.bf16.msra.mxu0 %v3065
      %3113 = vmatprep.subr.bf16.mxu0 0
      %3114 = vmatpush1.bf16.msra.mxu0 %v3066
      %3115 = vmatprep.mubr.bf16.mxu0 %v2948
      %3116 = vmatmul.mubr.bf16.gmra.mrb[0].mxu0 %v2947
      %v3117 = vpop.f32.mrb[0].mxu0
      %v3118 = vadd.f32 %v2986, %v3117
      %v3119 = vpop.f32.mrb[0].mxu0
      %v3120 = vpop.f32.mrb[0].mxu0
      %v3121 = vpop.f32.mrb[0].mxu0
      %3122 = vdwg.mxu0
      %v3123 = vlaneseq
      %v3124 = vshrl.u32 %v3123, 7
      %v3125 = vsub.s32 0, %v3124
      %v3126 = vrot.slane %v1008, %v3125
      %3128 = vrot.lane.b32.xlu0 %v3118, 64
      %v3129 = vpop.permute.xlu0 %3128
      %v3131 = vmul.f32 %v3126, %v3129
      %3133 = vrot.lane.b32.xlu0 %v3131, 64
      %v3134 = vpop.permute.xlu0 %3133
      %v3136 = vadd.f32 %v2790, %v3134
      %v3137 = vpack.c.bf16 %v2783, %v3136
      %v3138 = vpack.c.bf16 %v2784, %v2784
      %v3141 = vunpack.c.l.b16 %v3137
      %v3142 = vunpack.c.h.b16 %v3137
      %v3143 = vunpack.c.l.b16 %v3138
      %v3144 = vpack.c.b16 %v3141, %v3141
      %v3145 = vpack.c.b16 %v3142, %v3142
      %v3146 = vpack.c.b16 %v3143, %v3143
      %vm3150 = vcmask 519168
      %3151 = vst.msk [vmem:[%s697] sm:$0xf] %vm3150, %v3144
      %3152 = vst.msk [vmem:[%s697 + $0x4] sm:$0xf] %vm3150, %v3145
      %3153 = vst.msk [vmem:[%s697 + $0x8] sm:$0xf] %vm3150, %v3146
      %p3154 = scmp.lt.s32.totalorder %s33, 1
      %s3155 = scalar_select %p3154, %s33, 1
      %s3156 = smul.addr %s3155, 3
      %s3157 = smul.addr %s3156, 4
      %s3158 = scalar_lea.vmem %s22, %s3157
      // Predicated region
      $region109: #{flux_transformer_forward.5} parent=107 // pred_check
        %p3159 = pneg %p523
      $region110: #{flux_transformer_forward.5} parent=107 // pred_check_branch
        %3161 = sbr.rel (%p3159) target = $region112
      $region111: #{flux_transformer_forward.5} parent=107 // pred_region
        _
      $region112: #{flux_transformer_forward.5} parent=107 // pred_fallthru
        _
    $region108: #{flux_transformer_forward.5} parent=5 // pred_fallthru
      _
    %p3162 = scmp.le.s32.totalorder 2, %s28
    // Predicated region
    $region113: #{flux_transformer_forward.5} parent=5 // pred_check
      %p3163 = pneg %p3162
    $region114: #{flux_transformer_forward.5} parent=5 // pred_check_branch
      %3165 = sbr.rel (%p3163) target = $region116
    $region115: #{flux_transformer_forward.5} parent=5 // pred_region
      %s3166 = ssub.s32 %s28, 2
      // Predicated region
      $region117: #{flux_transformer_forward.5} parent=115 // pred_check
        %p3167 = pneg %p529
      $region118: #{flux_transformer_forward.5} parent=115 // pred_check_branch
        %3169 = sbr.rel (%p3167) target = $region120
      $region119: #{flux_transformer_forward.5} parent=115 // pred_region
        %p3170 = scmp.lt.s32.totalorder %s34, 1
        %s3171 = scalar_select %p3170, %s34, 1
        %s3172 = smul.addr %s3171, 3
        %s3173 = smul.addr %s3172, 4
        %s3174 = scalar_lea.vmem %s22, %s3173
      $region120: #{flux_transformer_forward.5} parent=115 // pred_fallthru
        _
    $region116: #{flux_transformer_forward.5} parent=5 // pred_fallthru
      _
  $region6: #{flux_transformer_forward.5} parent=0 // loop_footer
    %s32 = sadd.s32 1, %s28
  $region7: #{flux_transformer_forward.5} parent=0 // loop_footer_branch
    %27 = sbr.rel target = $region3
  $region8: #{flux_transformer_forward.5} parent=0 // loop_exit
    _

</llo_original>
